<compile_context>
chip_gen: v7x
topology: tpu7x:2x2x1
jax: 0.10.0
libtpu: 0.0.40
codegen_flags: <defaults>
</compile_context>

<pallas_src>
import functools

import numpy as np

import jax
import jax.numpy as jnp
from jax.experimental import pallas as pl
from jax.experimental.pallas import tpu as pltpu


# ---------------------------------------------------------------------------
# In-kernel 3x3 conv (pad=1) on the merged-lane layout.
# ---------------------------------------------------------------------------
def _conv_merged(feat, bw_ref, bias_ref, *, stride, h_out, relu):
    """feat: (h_in, w_in*cin) bf16, bw_ref: (3, w_in*cin, w_out*cout) bf16,
    bias_ref: (1, w_out*cout) f32  ->  (h_out, w_out*cout) f32."""
    h_in = feat.shape[0]
    lanes_out = bw_ref.shape[-1]
    a_idx = jax.lax.broadcasted_iota(jnp.int32, (h_out, h_in), 0)
    r_idx = jax.lax.broadcasted_iota(jnp.int32, (h_out, h_in), 1)
    acc = jnp.zeros((h_out, lanes_out), jnp.float32)
    for i in range(3):
        # S_i picks input row stride*a + i - 1; out-of-range rows select
        # nothing -> vertical zero padding comes for free.
        sel = jnp.where(r_idx == stride * a_idx + (i - 1), 1.0, 0.0)
        sel = sel.astype(jnp.bfloat16)
        rows = jnp.dot(sel, feat, preferred_element_type=jnp.float32)
        acc += jnp.dot(rows.astype(jnp.bfloat16), bw_ref[i],
                       preferred_element_type=jnp.float32)
    acc = acc + bias_ref[...]
    if relu:
        acc = jnp.maximum(acc, 0.0)
    return acc


def _ssd_fused_kernel(x_ref,
                      bw1, b1, bw2, b2, bw3, b3, bw4, b4,
                      bwh0, bh0, bwh1, bh1, bwh2, bh2,
                      out0_ref, out1_ref, out2_ref, *, h_levels):
    h0, h1, h2 = h_levels
    x = x_ref[0]                                              # (H, W*Cin) bf16
    # --- base (multi-scale backbone), everything stays on-chip ---
    f = _conv_merged(x, bw1, b1, stride=1, h_out=h0, relu=True).astype(jnp.bfloat16)
    f0 = _conv_merged(f, bw2, b2, stride=1, h_out=h0, relu=True).astype(jnp.bfloat16)
    f1 = _conv_merged(f0, bw3, b3, stride=2, h_out=h1, relu=True).astype(jnp.bfloat16)
    f2 = _conv_merged(f1, bw4, b4, stride=2, h_out=h2, relu=True).astype(jnp.bfloat16)
    # --- fused cls+reg heads (one matmul per level) ---
    out0_ref[0] = _conv_merged(f0, bwh0, bh0, stride=1, h_out=h0, relu=False)
    out1_ref[0] = _conv_merged(f1, bwh1, bh1, stride=1, h_out=h1, relu=False)
    out2_ref[0] = _conv_merged(f2, bwh2, bh2, stride=1, h_out=h2, relu=False)


# ---------------------------------------------------------------------------
# Host-side, one-time construction of kernel-ready weights (at model init).
# ---------------------------------------------------------------------------
def _banded_conv_params(w_oihw, bias, *, w_in, stride):
    """Fold horizontal taps / stride / padding + Cin->Cout projection into
    3 banded matrices BW_i (one per vertical tap) and a tiled bias row."""
    w = np.asarray(w_oihw, np.float32)
    b = np.asarray(bias, np.float32)
    cout, cin, kh, kw = w.shape
    assert kh == 3 and kw == 3
    w_out = (w_in + 2 - kw) // stride + 1
    bw = np.zeros((kh, w_in * cin, w_out * cout), np.float32)
    for i in range(kh):
        for bcol in range(w_out):
            for j in range(kw):
                col = stride * bcol + j - 1
                if 0 <= col < w_in:
                    bw[i, col * cin:(col + 1) * cin,
                       bcol * cout:(bcol + 1) * cout] = w[:, :, i, j].T
    br = np.tile(b, w_out).reshape(1, w_out * cout)
    return jnp.asarray(bw, jnp.bfloat16), jnp.asarray(br, jnp.float32)


def _init_conv(key, cout, cin, k=3):
    kw_, kb_ = jax.random.split(key)
    fan_in = float(cin * k * k)
    w = jax.random.normal(kw_, (cout, cin, k, k), jnp.float32) / jnp.sqrt(fan_in)
    b = 0.01 * jax.random.normal(kb_, (cout,), jnp.float32)
    return w, b


_PARAM_ORDER = ("conv1", "conv2", "conv3", "conv4", "head0", "head1", "head2")


def _resident_spec(arr):
    nd = arr.ndim
    return pl.BlockSpec(arr.shape, lambda i, _nd=nd: (0,) * _nd)


@functools.partial(jax.jit, static_argnums=(2, 3))
def _ssd_forward(img_nchw, params_flat, num_anchors, num_classes):
    n, cin, h, w = img_nchw.shape
    assert h % 4 == 0 and w % 4 == 0
    couth = num_anchors * (num_classes + 4)
    dims = ((h, w), (h // 2, w // 2), (h // 4, w // 4))

    # NCHW -> per-image merged-lane layout (N, H, W*Cin), bf16.
    x = jnp.transpose(img_nchw, (0, 2, 3, 1)).reshape(n, h, w * cin)
    x = x.astype(jnp.bfloat16)

    in_specs = [pl.BlockSpec((1, h, w * cin), lambda i: (i, 0, 0))]
    for arr in params_flat:
        in_specs.append(_resident_spec(arr))

    out_shapes = tuple(
        jax.ShapeDtypeStruct((n, hh, ww * couth), jnp.float32) for hh, ww in dims)
    out_specs = tuple(
        pl.BlockSpec((1, hh, ww * couth), lambda i: (i, 0, 0)) for hh, ww in dims)

    kernel = functools.partial(
        _ssd_fused_kernel, h_levels=tuple(hh for hh, _ in dims))

    outs = pl.pallas_call(
        kernel,
        out_shape=out_shapes,
        grid_spec=pltpu.PrefetchScalarGridSpec(
            num_scalar_prefetch=0,
            grid=(n,),
            in_specs=in_specs,
            out_specs=out_specs,
        ),
        compiler_params=pltpu.CompilerParams(
            dimension_semantics=("parallel",)),
    )(x, *params_flat)

    n_cls = num_anchors * num_classes
    cls_scores, bbox_preds = [], []
    for o, (hh, ww) in zip(outs, dims):
        o = o.reshape(n, hh, ww, couth)
        cls_scores.append(jnp.transpose(o[..., :n_cls], (0, 3, 1, 2)))
        bbox_preds.append(jnp.transpose(o[..., n_cls:], (0, 3, 1, 2)))
    return tuple(cls_scores), tuple(bbox_preds)


# ---------------------------------------------------------------------------
# Model
# ---------------------------------------------------------------------------
class SSDDetPallas:
    """Pallas re-implementation of SSD_DET.forward (base -> header)."""

    def __init__(self, num_classes, in_channels=4, num_anchors=4, spatial=16,
                 key=jax.random.PRNGKey(0)):
        assert spatial % 4 == 0
        self.num_classes = num_classes
        self.num_anchors = num_anchors
        self.in_channels = in_channels
        self.spatial = spatial

        ks = jax.random.split(key, 12)
        raw = {}
        # --- base (SSD-style multi-scale backbone) ---
        raw["conv1"] = _init_conv(ks[0], 16, in_channels)
        raw["conv2"] = _init_conv(ks[1], 16, 16)
        raw["conv3"] = _init_conv(ks[2], 32, 16)   # stride 2
        raw["conv4"] = _init_conv(ks[3], 32, 32)   # stride 2
        # --- header (per-level cls / reg convs) ---
        level_channels = [16, 32, 32]
        for i, c in enumerate(level_channels):
            raw[f"cls{i}"] = _init_conv(ks[4 + 2 * i], num_anchors * num_classes, c)
            raw[f"reg{i}"] = _init_conv(ks[5 + 2 * i], num_anchors * 4, c)
        self.raw = raw

        # Precompute kernel-ready banded weights / bias rows ONCE (bf16/f32).
        lvl_w = [spatial, spatial // 2, spatial // 4]
        p = {}
        p["conv1"] = _banded_conv_params(*raw["conv1"], w_in=spatial, stride=1)
        p["conv2"] = _banded_conv_params(*raw["conv2"], w_in=spatial, stride=1)
        p["conv3"] = _banded_conv_params(*raw["conv3"], w_in=spatial, stride=2)
        p["conv4"] = _banded_conv_params(*raw["conv4"], w_in=spatial // 2, stride=2)
        for i, wl in enumerate(lvl_w):
            wc, bc = raw[f"cls{i}"]
            wr, br = raw[f"reg{i}"]
            w_cat = jnp.concatenate([wc, wr], axis=0)   # fuse cls + reg heads
            b_cat = jnp.concatenate([bc, br], axis=0)
            p[f"head{i}"] = _banded_conv_params(w_cat, b_cat, w_in=wl, stride=1)

        flat = []
        for name in _PARAM_ORDER:
            flat.extend(p[name])
        self.params_flat = tuple(flat)

    def __call__(self, img_nchw):
        assert img_nchw.shape[1] == self.in_channels
        assert img_nchw.shape[2] == img_nchw.shape[3] == self.spatial
        cls_scores, bbox_preds = _ssd_forward(
            img_nchw, self.params_flat, self.num_anchors, self.num_classes)
        return list(cls_scores), list(bbox_preds)

    # Pure-JAX (XLA conv) reference for correctness checking.
    def reference_forward(self, img_nchw):
        def conv(x, wb, stride, relu):
            w, b = wb
            y = jax.lax.conv_general_dilated(
                x, w, (stride, stride), ((1, 1), (1, 1)),
                dimension_numbers=("NHWC", "OIHW", "NHWC"))
            y = y + b
            return jnp.maximum(y, 0.0) if relu else y

        x = jnp.transpose(img_nchw, (0, 2, 3, 1))
        f = conv(x, self.raw["conv1"], 1, True)
        f0 = conv(f, self.raw["conv2"], 1, True)
        f1 = conv(f0, self.raw["conv3"], 2, True)
        f2 = conv(f1, self.raw["conv4"], 2, True)
        cls_scores, bbox_preds = [], []
        for i, ft in enumerate((f0, f1, f2)):
            cls = conv(ft, self.raw[f"cls{i}"], 1, False)
            reg = conv(ft, self.raw[f"reg{i}"], 1, False)
            cls_scores.append(jnp.transpose(cls, (0, 3, 1, 2)))
            bbox_preds.append(jnp.transpose(reg, (0, 3, 1, 2)))
        return cls_scores, bbox_preds


if __name__ == "__main__":
    key = jax.random.PRNGKey(0)
    k_img, k_params = jax.random.split(key)

    batch, in_ch, hw = 2, 4, 16
    num_classes = 5
    img = jax.random.normal(k_img, (batch, in_ch, hw, hw), jnp.float32)

    model = SSDDetPallas(num_classes=num_classes, in_channels=in_ch,
                         num_anchors=4, spatial=hw, key=k_params)

    cls_scores, bbox_preds = model(img)
    cls_scores = [jax.block_until_ready(c) for c in cls_scores]
    bbox_preds = [jax.block_until_ready(b) for b in bbox_preds]

    # shape / finiteness checks (NCHW, per level)
    expected_sp = [16, 8, 4]
    for lvl, (c, b) in enumerate(zip(cls_scores, bbox_preds)):
        s = expected_sp[lvl]
        assert c.shape == (batch, 4 * num_classes, s, s), c.shape
        assert b.shape == (batch, 4 * 4, s, s), b.shape
        assert jnp.all(jnp.isfinite(c)) and jnp.all(jnp.isfinite(b))

    # numerics vs a pure-JAX (XLA conv) reference; loose tol for bf16 matmuls
    ref_cls, ref_reg = model.reference_forward(img)
    for got, ref in list(zip(cls_scores, ref_cls)) + list(zip(bbox_preds, ref_reg)):
        scale = jnp.maximum(jnp.max(jnp.abs(ref)), 1e-3)
        err = float(jnp.max(jnp.abs(got - ref)) / scale)
        assert err < 0.1, f"max normalized error too large: {err}"

    print("KERNEL_OK")
</pallas_src>

<mosaic_0001>
module attributes {stable_mosaic.version = 11 : i64} {
  func.func @_ssd_fused_kernel(%arg0: i32, %arg1: memref<1x16x64xbf16, #tpu.memory_space<vmem>>, %arg2: memref<3x64x256xbf16, #tpu.memory_space<vmem>>, %arg3: memref<1x256xf32, #tpu.memory_space<vmem>>, %arg4: memref<3x256x256xbf16, #tpu.memory_space<vmem>>, %arg5: memref<1x256xf32, #tpu.memory_space<vmem>>, %arg6: memref<3x256x256xbf16, #tpu.memory_space<vmem>>, %arg7: memref<1x256xf32, #tpu.memory_space<vmem>>, %arg8: memref<3x256x128xbf16, #tpu.memory_space<vmem>>, %arg9: memref<1x128xf32, #tpu.memory_space<vmem>>, %arg10: memref<3x256x576xbf16, #tpu.memory_space<vmem>>, %arg11: memref<1x576xf32, #tpu.memory_space<vmem>>, %arg12: memref<3x256x288xbf16, #tpu.memory_space<vmem>>, %arg13: memref<1x288xf32, #tpu.memory_space<vmem>>, %arg14: memref<3x128x144xbf16, #tpu.memory_space<vmem>>, %arg15: memref<1x144xf32, #tpu.memory_space<vmem>>, %arg16: memref<1x16x576xf32, #tpu.memory_space<vmem>>, %arg17: memref<1x8x288xf32, #tpu.memory_space<vmem>>, %arg18: memref<1x4x144xf32, #tpu.memory_space<vmem>>) attributes {dimension_semantics = [#tpu.dimension_semantics<parallel>], iteration_bounds = array<i64: 2>, scalar_prefetch = 0 : i64, scratch_operands = 0 : i64, tpu.core_type = #tpu.core_type<tc>, window_params = [{transform_indices = @transform_0, window_bounds = array<i64: 1, 16, 64>}, {pipeline_mode = #tpu.pipeline_mode<synchronous>, transform_indices = @transform_1, window_bounds = array<i64: 3, 64, 256>}, {pipeline_mode = #tpu.pipeline_mode<synchronous>, transform_indices = @transform_2, window_bounds = array<i64: 1, 256>}, {pipeline_mode = #tpu.pipeline_mode<synchronous>, transform_indices = @transform_3, window_bounds = array<i64: 3, 256, 256>}, {pipeline_mode = #tpu.pipeline_mode<synchronous>, transform_indices = @transform_4, window_bounds = array<i64: 1, 256>}, {pipeline_mode = #tpu.pipeline_mode<synchronous>, transform_indices = @transform_5, window_bounds = array<i64: 3, 256, 256>}, {pipeline_mode = #tpu.pipeline_mode<synchronous>, transform_indices = @transform_6, window_bounds = array<i64: 1, 256>}, {pipeline_mode = #tpu.pipeline_mode<synchronous>, transform_indices = @transform_7, window_bounds = array<i64: 3, 256, 128>}, {pipeline_mode = #tpu.pipeline_mode<synchronous>, transform_indices = @transform_8, window_bounds = array<i64: 1, 128>}, {pipeline_mode = #tpu.pipeline_mode<synchronous>, transform_indices = @transform_9, window_bounds = array<i64: 3, 256, 576>}, {pipeline_mode = #tpu.pipeline_mode<synchronous>, transform_indices = @transform_10, window_bounds = array<i64: 1, 576>}, {pipeline_mode = #tpu.pipeline_mode<synchronous>, transform_indices = @transform_11, window_bounds = array<i64: 3, 256, 288>}, {pipeline_mode = #tpu.pipeline_mode<synchronous>, transform_indices = @transform_12, window_bounds = array<i64: 1, 288>}, {pipeline_mode = #tpu.pipeline_mode<synchronous>, transform_indices = @transform_13, window_bounds = array<i64: 3, 128, 144>}, {pipeline_mode = #tpu.pipeline_mode<synchronous>, transform_indices = @transform_14, window_bounds = array<i64: 1, 144>}, {transform_indices = @transform_15, window_bounds = array<i64: 1, 16, 576>}, {transform_indices = @transform_16, window_bounds = array<i64: 1, 8, 288>}, {transform_indices = @transform_17, window_bounds = array<i64: 1, 4, 144>}]} {
    %c0 = arith.constant 0 : index
    %c0_0 = arith.constant 0 : index
    %c0_1 = arith.constant 0 : index
    %0 = vector.load %arg1[%c0, %c0_0, %c0_1] : memref<1x16x64xbf16, #tpu.memory_space<vmem>>, vector<1x16x64xbf16>
    %1 = vector.shape_cast %0 : vector<1x16x64xbf16> to vector<16x64xbf16>
    %2 = tpu.iota {dimensions = array<i32: 0>} : vector<16x16xi32>
    %3 = tpu.iota {dimensions = array<i32: 1>} : vector<16x16xi32>
    %cst = arith.constant 0.000000e+00 : f32
    %4 = vector.broadcast %cst : f32 to vector<16x256xf32>
    %c1_i32 = arith.constant 1 : i32
    %5 = vector.broadcast %c1_i32 : i32 to vector<16x16xi32>
    %6 = arith.muli %5, %2 : vector<16x16xi32>
    %c-1_i32 = arith.constant -1 : i32
    %7 = vector.broadcast %c-1_i32 : i32 to vector<16x16xi32>
    %8 = arith.addi %6, %7 : vector<16x16xi32>
    %9 = arith.cmpi eq, %3, %8 : vector<16x16xi32>
    %cst_2 = arith.constant 1.000000e+00 : f32
    %cst_3 = arith.constant 0.000000e+00 : f32
    %10 = vector.broadcast %cst_2 : f32 to vector<16x16xf32>
    %11 = vector.broadcast %cst_3 : f32 to vector<16x16xf32>
    %12 = arith.select %9, %10, %11 : vector<16x16xi1>, vector<16x16xf32>
    %13 = arith.truncf %12 : vector<16x16xf32> to vector<16x16xbf16>
    %cst_4 = arith.constant dense<0.000000e+00> : vector<16x64xf32>
    %14 = tpu.matmul %13, %1, %cst_4 {dimension_numbers = #tpu.dot_dimension_numbers<[1], [0], [0], [1], [0, 0, 1, 1], [], []>} : vector<16x16xbf16>, vector<16x64xbf16>, vector<16x64xf32> -> vector<16x64xf32>
    %15 = arith.truncf %14 : vector<16x64xf32> to vector<16x64xbf16>
    %c0_5 = arith.constant 0 : index
    %c0_6 = arith.constant 0 : index
    %c0_7 = arith.constant 0 : index
    %16 = vector.load %arg2[%c0_5, %c0_6, %c0_7] : memref<3x64x256xbf16, #tpu.memory_space<vmem>>, vector<1x64x256xbf16>
    %17 = vector.shape_cast %16 : vector<1x64x256xbf16> to vector<64x256xbf16>
    %cst_8 = arith.constant dense<0.000000e+00> : vector<16x256xf32>
    %18 = tpu.matmul %15, %17, %cst_8 {dimension_numbers = #tpu.dot_dimension_numbers<[1], [0], [0], [1], [0, 0, 1, 1], [], []>} : vector<16x64xbf16>, vector<64x256xbf16>, vector<16x256xf32> -> vector<16x256xf32>
    %19 = arith.addf %4, %18 : vector<16x256xf32>
    %c1_i32_9 = arith.constant 1 : i32
    %20 = vector.broadcast %c1_i32_9 : i32 to vector<16x16xi32>
    %21 = arith.muli %20, %2 : vector<16x16xi32>
    %c0_i32 = arith.constant 0 : i32
    %22 = vector.broadcast %c0_i32 : i32 to vector<16x16xi32>
    %23 = arith.addi %21, %22 : vector<16x16xi32>
    %24 = arith.cmpi eq, %3, %23 : vector<16x16xi32>
    %cst_10 = arith.constant 1.000000e+00 : f32
    %cst_11 = arith.constant 0.000000e+00 : f32
    %25 = vector.broadcast %cst_10 : f32 to vector<16x16xf32>
    %26 = vector.broadcast %cst_11 : f32 to vector<16x16xf32>
    %27 = arith.select %24, %25, %26 : vector<16x16xi1>, vector<16x16xf32>
    %28 = arith.truncf %27 : vector<16x16xf32> to vector<16x16xbf16>
    %cst_12 = arith.constant dense<0.000000e+00> : vector<16x64xf32>
    %29 = tpu.matmul %28, %1, %cst_12 {dimension_numbers = #tpu.dot_dimension_numbers<[1], [0], [0], [1], [0, 0, 1, 1], [], []>} : vector<16x16xbf16>, vector<16x64xbf16>, vector<16x64xf32> -> vector<16x64xf32>
    %30 = arith.truncf %29 : vector<16x64xf32> to vector<16x64xbf16>
    %c1 = arith.constant 1 : index
    %c0_13 = arith.constant 0 : index
    %c0_14 = arith.constant 0 : index
    %31 = vector.load %arg2[%c1, %c0_13, %c0_14] : memref<3x64x256xbf16, #tpu.memory_space<vmem>>, vector<1x64x256xbf16>
    %32 = vector.shape_cast %31 : vector<1x64x256xbf16> to vector<64x256xbf16>
    %cst_15 = arith.constant dense<0.000000e+00> : vector<16x256xf32>
    %33 = tpu.matmul %30, %32, %cst_15 {dimension_numbers = #tpu.dot_dimension_numbers<[1], [0], [0], [1], [0, 0, 1, 1], [], []>} : vector<16x64xbf16>, vector<64x256xbf16>, vector<16x256xf32> -> vector<16x256xf32>
    %34 = arith.addf %19, %33 : vector<16x256xf32>
    %c1_i32_16 = arith.constant 1 : i32
    %35 = vector.broadcast %c1_i32_16 : i32 to vector<16x16xi32>
    %36 = arith.muli %35, %2 : vector<16x16xi32>
    %c1_i32_17 = arith.constant 1 : i32
    %37 = vector.broadcast %c1_i32_17 : i32 to vector<16x16xi32>
    %38 = arith.addi %36, %37 : vector<16x16xi32>
    %39 = arith.cmpi eq, %3, %38 : vector<16x16xi32>
    %cst_18 = arith.constant 1.000000e+00 : f32
    %cst_19 = arith.constant 0.000000e+00 : f32
    %40 = vector.broadcast %cst_18 : f32 to vector<16x16xf32>
    %41 = vector.broadcast %cst_19 : f32 to vector<16x16xf32>
    %42 = arith.select %39, %40, %41 : vector<16x16xi1>, vector<16x16xf32>
    %43 = arith.truncf %42 : vector<16x16xf32> to vector<16x16xbf16>
    %cst_20 = arith.constant dense<0.000000e+00> : vector<16x64xf32>
    %44 = tpu.matmul %43, %1, %cst_20 {dimension_numbers = #tpu.dot_dimension_numbers<[1], [0], [0], [1], [0, 0, 1, 1], [], []>} : vector<16x16xbf16>, vector<16x64xbf16>, vector<16x64xf32> -> vector<16x64xf32>
    %45 = arith.truncf %44 : vector<16x64xf32> to vector<16x64xbf16>
    %c2 = arith.constant 2 : index
    %c0_21 = arith.constant 0 : index
    %c0_22 = arith.constant 0 : index
    %46 = vector.load %arg2[%c2, %c0_21, %c0_22] : memref<3x64x256xbf16, #tpu.memory_space<vmem>>, vector<1x64x256xbf16>
    %47 = vector.shape_cast %46 : vector<1x64x256xbf16> to vector<64x256xbf16>
    %cst_23 = arith.constant dense<0.000000e+00> : vector<16x256xf32>
    %48 = tpu.matmul %45, %47, %cst_23 {dimension_numbers = #tpu.dot_dimension_numbers<[1], [0], [0], [1], [0, 0, 1, 1], [], []>} : vector<16x64xbf16>, vector<64x256xbf16>, vector<16x256xf32> -> vector<16x256xf32>
    %49 = arith.addf %34, %48 : vector<16x256xf32>
    %c0_24 = arith.constant 0 : index
    %c0_25 = arith.constant 0 : index
    %50 = vector.load %arg3[%c0_24, %c0_25] : memref<1x256xf32, #tpu.memory_space<vmem>>, vector<1x256xf32>
    %51 = vector.broadcast %50 : vector<1x256xf32> to vector<16x256xf32>
    %52 = arith.addf %49, %51 : vector<16x256xf32>
    %cst_26 = arith.constant 0.000000e+00 : f32
    %53 = vector.broadcast %cst_26 : f32 to vector<16x256xf32>
    %54 = arith.maximumf %52, %53 : vector<16x256xf32>
    %55 = arith.truncf %54 : vector<16x256xf32> to vector<16x256xbf16>
    %56 = tpu.iota {dimensions = array<i32: 0>} : vector<16x16xi32>
    %57 = tpu.iota {dimensions = array<i32: 1>} : vector<16x16xi32>
    %cst_27 = arith.constant 0.000000e+00 : f32
    %58 = vector.broadcast %cst_27 : f32 to vector<16x256xf32>
    %c1_i32_28 = arith.constant 1 : i32
    %59 = vector.broadcast %c1_i32_28 : i32 to vector<16x16xi32>
    %60 = arith.muli %59, %56 : vector<16x16xi32>
    %c-1_i32_29 = arith.constant -1 : i32
    %61 = vector.broadcast %c-1_i32_29 : i32 to vector<16x16xi32>
    %62 = arith.addi %60, %61 : vector<16x16xi32>
    %63 = arith.cmpi eq, %57, %62 : vector<16x16xi32>
    %cst_30 = arith.constant 1.000000e+00 : f32
    %cst_31 = arith.constant 0.000000e+00 : f32
    %64 = vector.broadcast %cst_30 : f32 to vector<16x16xf32>
    %65 = vector.broadcast %cst_31 : f32 to vector<16x16xf32>
    %66 = arith.select %63, %64, %65 : vector<16x16xi1>, vector<16x16xf32>
    %67 = arith.truncf %66 : vector<16x16xf32> to vector<16x16xbf16>
    %cst_32 = arith.constant dense<0.000000e+00> : vector<16x256xf32>
    %68 = tpu.matmul %67, %55, %cst_32 {dimension_numbers = #tpu.dot_dimension_numbers<[1], [0], [0], [1], [0, 0, 1, 1], [], []>} : vector<16x16xbf16>, vector<16x256xbf16>, vector<16x256xf32> -> vector<16x256xf32>
    %69 = arith.truncf %68 : vector<16x256xf32> to vector<16x256xbf16>
    %c0_33 = arith.constant 0 : index
    %c0_34 = arith.constant 0 : index
    %c0_35 = arith.constant 0 : index
    %70 = vector.load %arg4[%c0_33, %c0_34, %c0_35] : memref<3x256x256xbf16, #tpu.memory_space<vmem>>, vector<1x256x256xbf16>
    %71 = vector.shape_cast %70 : vector<1x256x256xbf16> to vector<256x256xbf16>
    %cst_36 = arith.constant dense<0.000000e+00> : vector<16x256xf32>
    %72 = tpu.matmul %69, %71, %cst_36 {dimension_numbers = #tpu.dot_dimension_numbers<[1], [0], [0], [1], [0, 0, 1, 1], [], []>} : vector<16x256xbf16>, vector<256x256xbf16>, vector<16x256xf32> -> vector<16x256xf32>
    %73 = arith.addf %58, %72 : vector<16x256xf32>
    %c1_i32_37 = arith.constant 1 : i32
    %74 = vector.broadcast %c1_i32_37 : i32 to vector<16x16xi32>
    %75 = arith.muli %74, %56 : vector<16x16xi32>
    %c0_i32_38 = arith.constant 0 : i32
    %76 = vector.broadcast %c0_i32_38 : i32 to vector<16x16xi32>
    %77 = arith.addi %75, %76 : vector<16x16xi32>
    %78 = arith.cmpi eq, %57, %77 : vector<16x16xi32>
    %cst_39 = arith.constant 1.000000e+00 : f32
    %cst_40 = arith.constant 0.000000e+00 : f32
    %79 = vector.broadcast %cst_39 : f32 to vector<16x16xf32>
    %80 = vector.broadcast %cst_40 : f32 to vector<16x16xf32>
    %81 = arith.select %78, %79, %80 : vector<16x16xi1>, vector<16x16xf32>
    %82 = arith.truncf %81 : vector<16x16xf32> to vector<16x16xbf16>
    %cst_41 = arith.constant dense<0.000000e+00> : vector<16x256xf32>
    %83 = tpu.matmul %82, %55, %cst_41 {dimension_numbers = #tpu.dot_dimension_numbers<[1], [0], [0], [1], [0, 0, 1, 1], [], []>} : vector<16x16xbf16>, vector<16x256xbf16>, vector<16x256xf32> -> vector<16x256xf32>
    %84 = arith.truncf %83 : vector<16x256xf32> to vector<16x256xbf16>
    %c1_42 = arith.constant 1 : index
    %c0_43 = arith.constant 0 : index
    %c0_44 = arith.constant 0 : index
    %85 = vector.load %arg4[%c1_42, %c0_43, %c0_44] : memref<3x256x256xbf16, #tpu.memory_space<vmem>>, vector<1x256x256xbf16>
    %86 = vector.shape_cast %85 : vector<1x256x256xbf16> to vector<256x256xbf16>
    %cst_45 = arith.constant dense<0.000000e+00> : vector<16x256xf32>
    %87 = tpu.matmul %84, %86, %cst_45 {dimension_numbers = #tpu.dot_dimension_numbers<[1], [0], [0], [1], [0, 0, 1, 1], [], []>} : vector<16x256xbf16>, vector<256x256xbf16>, vector<16x256xf32> -> vector<16x256xf32>
    %88 = arith.addf %73, %87 : vector<16x256xf32>
    %c1_i32_46 = arith.constant 1 : i32
    %89 = vector.broadcast %c1_i32_46 : i32 to vector<16x16xi32>
    %90 = arith.muli %89, %56 : vector<16x16xi32>
    %c1_i32_47 = arith.constant 1 : i32
    %91 = vector.broadcast %c1_i32_47 : i32 to vector<16x16xi32>
    %92 = arith.addi %90, %91 : vector<16x16xi32>
    %93 = arith.cmpi eq, %57, %92 : vector<16x16xi32>
    %cst_48 = arith.constant 1.000000e+00 : f32
    %cst_49 = arith.constant 0.000000e+00 : f32
    %94 = vector.broadcast %cst_48 : f32 to vector<16x16xf32>
    %95 = vector.broadcast %cst_49 : f32 to vector<16x16xf32>
    %96 = arith.select %93, %94, %95 : vector<16x16xi1>, vector<16x16xf32>
    %97 = arith.truncf %96 : vector<16x16xf32> to vector<16x16xbf16>
    %cst_50 = arith.constant dense<0.000000e+00> : vector<16x256xf32>
    %98 = tpu.matmul %97, %55, %cst_50 {dimension_numbers = #tpu.dot_dimension_numbers<[1], [0], [0], [1], [0, 0, 1, 1], [], []>} : vector<16x16xbf16>, vector<16x256xbf16>, vector<16x256xf32> -> vector<16x256xf32>
    %99 = arith.truncf %98 : vector<16x256xf32> to vector<16x256xbf16>
    %c2_51 = arith.constant 2 : index
    %c0_52 = arith.constant 0 : index
    %c0_53 = arith.constant 0 : index
    %100 = vector.load %arg4[%c2_51, %c0_52, %c0_53] : memref<3x256x256xbf16, #tpu.memory_space<vmem>>, vector<1x256x256xbf16>
    %101 = vector.shape_cast %100 : vector<1x256x256xbf16> to vector<256x256xbf16>
    %cst_54 = arith.constant dense<0.000000e+00> : vector<16x256xf32>
    %102 = tpu.matmul %99, %101, %cst_54 {dimension_numbers = #tpu.dot_dimension_numbers<[1], [0], [0], [1], [0, 0, 1, 1], [], []>} : vector<16x256xbf16>, vector<256x256xbf16>, vector<16x256xf32> -> vector<16x256xf32>
    %103 = arith.addf %88, %102 : vector<16x256xf32>
    %c0_55 = arith.constant 0 : index
    %c0_56 = arith.constant 0 : index
    %104 = vector.load %arg5[%c0_55, %c0_56] : memref<1x256xf32, #tpu.memory_space<vmem>>, vector<1x256xf32>
    %105 = vector.broadcast %104 : vector<1x256xf32> to vector<16x256xf32>
    %106 = arith.addf %103, %105 : vector<16x256xf32>
    %cst_57 = arith.constant 0.000000e+00 : f32
    %107 = vector.broadcast %cst_57 : f32 to vector<16x256xf32>
    %108 = arith.maximumf %106, %107 : vector<16x256xf32>
    %109 = arith.truncf %108 : vector<16x256xf32> to vector<16x256xbf16>
    %110 = tpu.iota {dimensions = array<i32: 0>} : vector<8x16xi32>
    %111 = tpu.iota {dimensions = array<i32: 1>} : vector<8x16xi32>
    %cst_58 = arith.constant 0.000000e+00 : f32
    %112 = vector.broadcast %cst_58 : f32 to vector<8x256xf32>
    %c2_i32 = arith.constant 2 : i32
    %113 = vector.broadcast %c2_i32 : i32 to vector<8x16xi32>
    %114 = arith.muli %113, %110 : vector<8x16xi32>
    %c-1_i32_59 = arith.constant -1 : i32
    %115 = vector.broadcast %c-1_i32_59 : i32 to vector<8x16xi32>
    %116 = arith.addi %114, %115 : vector<8x16xi32>
    %117 = arith.cmpi eq, %111, %116 : vector<8x16xi32>
    %cst_60 = arith.constant 1.000000e+00 : f32
    %cst_61 = arith.constant 0.000000e+00 : f32
    %118 = vector.broadcast %cst_60 : f32 to vector<8x16xf32>
    %119 = vector.broadcast %cst_61 : f32 to vector<8x16xf32>
    %120 = arith.select %117, %118, %119 : vector<8x16xi1>, vector<8x16xf32>
    %121 = arith.truncf %120 : vector<8x16xf32> to vector<8x16xbf16>
    %cst_62 = arith.constant dense<0.000000e+00> : vector<8x256xf32>
    %122 = tpu.matmul %121, %109, %cst_62 {dimension_numbers = #tpu.dot_dimension_numbers<[1], [0], [0], [1], [0, 0, 1, 1], [], []>} : vector<8x16xbf16>, vector<16x256xbf16>, vector<8x256xf32> -> vector<8x256xf32>
    %123 = arith.truncf %122 : vector<8x256xf32> to vector<8x256xbf16>
    %c0_63 = arith.constant 0 : index
    %c0_64 = arith.constant 0 : index
    %c0_65 = arith.constant 0 : index
    %124 = vector.load %arg6[%c0_63, %c0_64, %c0_65] : memref<3x256x256xbf16, #tpu.memory_space<vmem>>, vector<1x256x256xbf16>
    %125 = vector.shape_cast %124 : vector<1x256x256xbf16> to vector<256x256xbf16>
    %cst_66 = arith.constant dense<0.000000e+00> : vector<8x256xf32>
    %126 = tpu.matmul %123, %125, %cst_66 {dimension_numbers = #tpu.dot_dimension_numbers<[1], [0], [0], [1], [0, 0, 1, 1], [], []>} : vector<8x256xbf16>, vector<256x256xbf16>, vector<8x256xf32> -> vector<8x256xf32>
    %127 = arith.addf %112, %126 : vector<8x256xf32>
    %c2_i32_67 = arith.constant 2 : i32
    %128 = vector.broadcast %c2_i32_67 : i32 to vector<8x16xi32>
    %129 = arith.muli %128, %110 : vector<8x16xi32>
    %c0_i32_68 = arith.constant 0 : i32
    %130 = vector.broadcast %c0_i32_68 : i32 to vector<8x16xi32>
    %131 = arith.addi %129, %130 : vector<8x16xi32>
    %132 = arith.cmpi eq, %111, %131 : vector<8x16xi32>
    %cst_69 = arith.constant 1.000000e+00 : f32
    %cst_70 = arith.constant 0.000000e+00 : f32
    %133 = vector.broadcast %cst_69 : f32 to vector<8x16xf32>
    %134 = vector.broadcast %cst_70 : f32 to vector<8x16xf32>
    %135 = arith.select %132, %133, %134 : vector<8x16xi1>, vector<8x16xf32>
    %136 = arith.truncf %135 : vector<8x16xf32> to vector<8x16xbf16>
    %cst_71 = arith.constant dense<0.000000e+00> : vector<8x256xf32>
    %137 = tpu.matmul %136, %109, %cst_71 {dimension_numbers = #tpu.dot_dimension_numbers<[1], [0], [0], [1], [0, 0, 1, 1], [], []>} : vector<8x16xbf16>, vector<16x256xbf16>, vector<8x256xf32> -> vector<8x256xf32>
    %138 = arith.truncf %137 : vector<8x256xf32> to vector<8x256xbf16>
    %c1_72 = arith.constant 1 : index
    %c0_73 = arith.constant 0 : index
    %c0_74 = arith.constant 0 : index
    %139 = vector.load %arg6[%c1_72, %c0_73, %c0_74] : memref<3x256x256xbf16, #tpu.memory_space<vmem>>, vector<1x256x256xbf16>
    %140 = vector.shape_cast %139 : vector<1x256x256xbf16> to vector<256x256xbf16>
    %cst_75 = arith.constant dense<0.000000e+00> : vector<8x256xf32>
    %141 = tpu.matmul %138, %140, %cst_75 {dimension_numbers = #tpu.dot_dimension_numbers<[1], [0], [0], [1], [0, 0, 1, 1], [], []>} : vector<8x256xbf16>, vector<256x256xbf16>, vector<8x256xf32> -> vector<8x256xf32>
    %142 = arith.addf %127, %141 : vector<8x256xf32>
    %c2_i32_76 = arith.constant 2 : i32
    %143 = vector.broadcast %c2_i32_76 : i32 to vector<8x16xi32>
    %144 = arith.muli %143, %110 : vector<8x16xi32>
    %c1_i32_77 = arith.constant 1 : i32
    %145 = vector.broadcast %c1_i32_77 : i32 to vector<8x16xi32>
    %146 = arith.addi %144, %145 : vector<8x16xi32>
    %147 = arith.cmpi eq, %111, %146 : vector<8x16xi32>
    %cst_78 = arith.constant 1.000000e+00 : f32
    %cst_79 = arith.constant 0.000000e+00 : f32
    %148 = vector.broadcast %cst_78 : f32 to vector<8x16xf32>
    %149 = vector.broadcast %cst_79 : f32 to vector<8x16xf32>
    %150 = arith.select %147, %148, %149 : vector<8x16xi1>, vector<8x16xf32>
    %151 = arith.truncf %150 : vector<8x16xf32> to vector<8x16xbf16>
    %cst_80 = arith.constant dense<0.000000e+00> : vector<8x256xf32>
    %152 = tpu.matmul %151, %109, %cst_80 {dimension_numbers = #tpu.dot_dimension_numbers<[1], [0], [0], [1], [0, 0, 1, 1], [], []>} : vector<8x16xbf16>, vector<16x256xbf16>, vector<8x256xf32> -> vector<8x256xf32>
    %153 = arith.truncf %152 : vector<8x256xf32> to vector<8x256xbf16>
    %c2_81 = arith.constant 2 : index
    %c0_82 = arith.constant 0 : index
    %c0_83 = arith.constant 0 : index
    %154 = vector.load %arg6[%c2_81, %c0_82, %c0_83] : memref<3x256x256xbf16, #tpu.memory_space<vmem>>, vector<1x256x256xbf16>
    %155 = vector.shape_cast %154 : vector<1x256x256xbf16> to vector<256x256xbf16>
    %cst_84 = arith.constant dense<0.000000e+00> : vector<8x256xf32>
    %156 = tpu.matmul %153, %155, %cst_84 {dimension_numbers = #tpu.dot_dimension_numbers<[1], [0], [0], [1], [0, 0, 1, 1], [], []>} : vector<8x256xbf16>, vector<256x256xbf16>, vector<8x256xf32> -> vector<8x256xf32>
    %157 = arith.addf %142, %156 : vector<8x256xf32>
    %c0_85 = arith.constant 0 : index
    %c0_86 = arith.constant 0 : index
    %158 = vector.load %arg7[%c0_85, %c0_86] : memref<1x256xf32, #tpu.memory_space<vmem>>, vector<1x256xf32>
    %159 = vector.broadcast %158 : vector<1x256xf32> to vector<8x256xf32>
    %160 = arith.addf %157, %159 : vector<8x256xf32>
    %cst_87 = arith.constant 0.000000e+00 : f32
    %161 = vector.broadcast %cst_87 : f32 to vector<8x256xf32>
    %162 = arith.maximumf %160, %161 : vector<8x256xf32>
    %163 = arith.truncf %162 : vector<8x256xf32> to vector<8x256xbf16>
    %164 = tpu.iota {dimensions = array<i32: 0>} : vector<4x8xi32>
    %165 = tpu.iota {dimensions = array<i32: 1>} : vector<4x8xi32>
    %cst_88 = arith.constant 0.000000e+00 : f32
    %166 = vector.broadcast %cst_88 : f32 to vector<4x128xf32>
    %c2_i32_89 = arith.constant 2 : i32
    %167 = vector.broadcast %c2_i32_89 : i32 to vector<4x8xi32>
    %168 = arith.muli %167, %164 : vector<4x8xi32>
    %c-1_i32_90 = arith.constant -1 : i32
    %169 = vector.broadcast %c-1_i32_90 : i32 to vector<4x8xi32>
    %170 = arith.addi %168, %169 : vector<4x8xi32>
    %171 = arith.cmpi eq, %165, %170 : vector<4x8xi32>
    %cst_91 = arith.constant 1.000000e+00 : f32
    %cst_92 = arith.constant 0.000000e+00 : f32
    %172 = vector.broadcast %cst_91 : f32 to vector<4x8xf32>
    %173 = vector.broadcast %cst_92 : f32 to vector<4x8xf32>
    %174 = arith.select %171, %172, %173 : vector<4x8xi1>, vector<4x8xf32>
    %175 = arith.truncf %174 : vector<4x8xf32> to vector<4x8xbf16>
    %cst_93 = arith.constant dense<0.000000e+00> : vector<4x256xf32>
    %176 = tpu.matmul %175, %163, %cst_93 {dimension_numbers = #tpu.dot_dimension_numbers<[1], [0], [0], [1], [0, 0, 1, 1], [], []>} : vector<4x8xbf16>, vector<8x256xbf16>, vector<4x256xf32> -> vector<4x256xf32>
    %177 = arith.truncf %176 : vector<4x256xf32> to vector<4x256xbf16>
    %c0_94 = arith.constant 0 : index
    %c0_95 = arith.constant 0 : index
    %c0_96 = arith.constant 0 : index
    %178 = vector.load %arg8[%c0_94, %c0_95, %c0_96] : memref<3x256x128xbf16, #tpu.memory_space<vmem>>, vector<1x256x128xbf16>
    %179 = vector.shape_cast %178 : vector<1x256x128xbf16> to vector<256x128xbf16>
    %cst_97 = arith.constant dense<0.000000e+00> : vector<4x128xf32>
    %180 = tpu.matmul %177, %179, %cst_97 {dimension_numbers = #tpu.dot_dimension_numbers<[1], [0], [0], [1], [0, 0, 1, 1], [], []>} : vector<4x256xbf16>, vector<256x128xbf16>, vector<4x128xf32> -> vector<4x128xf32>
    %181 = arith.addf %166, %180 : vector<4x128xf32>
    %c2_i32_98 = arith.constant 2 : i32
    %182 = vector.broadcast %c2_i32_98 : i32 to vector<4x8xi32>
    %183 = arith.muli %182, %164 : vector<4x8xi32>
    %c0_i32_99 = arith.constant 0 : i32
    %184 = vector.broadcast %c0_i32_99 : i32 to vector<4x8xi32>
    %185 = arith.addi %183, %184 : vector<4x8xi32>
    %186 = arith.cmpi eq, %165, %185 : vector<4x8xi32>
    %cst_100 = arith.constant 1.000000e+00 : f32
    %cst_101 = arith.constant 0.000000e+00 : f32
    %187 = vector.broadcast %cst_100 : f32 to vector<4x8xf32>
    %188 = vector.broadcast %cst_101 : f32 to vector<4x8xf32>
    %189 = arith.select %186, %187, %188 : vector<4x8xi1>, vector<4x8xf32>
    %190 = arith.truncf %189 : vector<4x8xf32> to vector<4x8xbf16>
    %cst_102 = arith.constant dense<0.000000e+00> : vector<4x256xf32>
    %191 = tpu.matmul %190, %163, %cst_102 {dimension_numbers = #tpu.dot_dimension_numbers<[1], [0], [0], [1], [0, 0, 1, 1], [], []>} : vector<4x8xbf16>, vector<8x256xbf16>, vector<4x256xf32> -> vector<4x256xf32>
    %192 = arith.truncf %191 : vector<4x256xf32> to vector<4x256xbf16>
    %c1_103 = arith.constant 1 : index
    %c0_104 = arith.constant 0 : index
    %c0_105 = arith.constant 0 : index
    %193 = vector.load %arg8[%c1_103, %c0_104, %c0_105] : memref<3x256x128xbf16, #tpu.memory_space<vmem>>, vector<1x256x128xbf16>
    %194 = vector.shape_cast %193 : vector<1x256x128xbf16> to vector<256x128xbf16>
    %cst_106 = arith.constant dense<0.000000e+00> : vector<4x128xf32>
    %195 = tpu.matmul %192, %194, %cst_106 {dimension_numbers = #tpu.dot_dimension_numbers<[1], [0], [0], [1], [0, 0, 1, 1], [], []>} : vector<4x256xbf16>, vector<256x128xbf16>, vector<4x128xf32> -> vector<4x128xf32>
    %196 = arith.addf %181, %195 : vector<4x128xf32>
    %c2_i32_107 = arith.constant 2 : i32
    %197 = vector.broadcast %c2_i32_107 : i32 to vector<4x8xi32>
    %198 = arith.muli %197, %164 : vector<4x8xi32>
    %c1_i32_108 = arith.constant 1 : i32
    %199 = vector.broadcast %c1_i32_108 : i32 to vector<4x8xi32>
    %200 = arith.addi %198, %199 : vector<4x8xi32>
    %201 = arith.cmpi eq, %165, %200 : vector<4x8xi32>
    %cst_109 = arith.constant 1.000000e+00 : f32
    %cst_110 = arith.constant 0.000000e+00 : f32
    %202 = vector.broadcast %cst_109 : f32 to vector<4x8xf32>
    %203 = vector.broadcast %cst_110 : f32 to vector<4x8xf32>
    %204 = arith.select %201, %202, %203 : vector<4x8xi1>, vector<4x8xf32>
    %205 = arith.truncf %204 : vector<4x8xf32> to vector<4x8xbf16>
    %cst_111 = arith.constant dense<0.000000e+00> : vector<4x256xf32>
    %206 = tpu.matmul %205, %163, %cst_111 {dimension_numbers = #tpu.dot_dimension_numbers<[1], [0], [0], [1], [0, 0, 1, 1], [], []>} : vector<4x8xbf16>, vector<8x256xbf16>, vector<4x256xf32> -> vector<4x256xf32>
    %207 = arith.truncf %206 : vector<4x256xf32> to vector<4x256xbf16>
    %c2_112 = arith.constant 2 : index
    %c0_113 = arith.constant 0 : index
    %c0_114 = arith.constant 0 : index
    %208 = vector.load %arg8[%c2_112, %c0_113, %c0_114] : memref<3x256x128xbf16, #tpu.memory_space<vmem>>, vector<1x256x128xbf16>
    %209 = vector.shape_cast %208 : vector<1x256x128xbf16> to vector<256x128xbf16>
    %cst_115 = arith.constant dense<0.000000e+00> : vector<4x128xf32>
    %210 = tpu.matmul %207, %209, %cst_115 {dimension_numbers = #tpu.dot_dimension_numbers<[1], [0], [0], [1], [0, 0, 1, 1], [], []>} : vector<4x256xbf16>, vector<256x128xbf16>, vector<4x128xf32> -> vector<4x128xf32>
    %211 = arith.addf %196, %210 : vector<4x128xf32>
    %c0_116 = arith.constant 0 : index
    %c0_117 = arith.constant 0 : index
    %212 = vector.load %arg9[%c0_116, %c0_117] : memref<1x128xf32, #tpu.memory_space<vmem>>, vector<1x128xf32>
    %213 = vector.broadcast %212 : vector<1x128xf32> to vector<4x128xf32>
    %214 = arith.addf %211, %213 : vector<4x128xf32>
    %cst_118 = arith.constant 0.000000e+00 : f32
    %215 = vector.broadcast %cst_118 : f32 to vector<4x128xf32>
    %216 = arith.maximumf %214, %215 : vector<4x128xf32>
    %217 = arith.truncf %216 : vector<4x128xf32> to vector<4x128xbf16>
    %218 = tpu.iota {dimensions = array<i32: 0>} : vector<16x16xi32>
    %219 = tpu.iota {dimensions = array<i32: 1>} : vector<16x16xi32>
    %cst_119 = arith.constant 0.000000e+00 : f32
    %220 = vector.broadcast %cst_119 : f32 to vector<16x576xf32>
    %c1_i32_120 = arith.constant 1 : i32
    %221 = vector.broadcast %c1_i32_120 : i32 to vector<16x16xi32>
    %222 = arith.muli %221, %218 : vector<16x16xi32>
    %c-1_i32_121 = arith.constant -1 : i32
    %223 = vector.broadcast %c-1_i32_121 : i32 to vector<16x16xi32>
    %224 = arith.addi %222, %223 : vector<16x16xi32>
    %225 = arith.cmpi eq, %219, %224 : vector<16x16xi32>
    %cst_122 = arith.constant 1.000000e+00 : f32
    %cst_123 = arith.constant 0.000000e+00 : f32
    %226 = vector.broadcast %cst_122 : f32 to vector<16x16xf32>
    %227 = vector.broadcast %cst_123 : f32 to vector<16x16xf32>
    %228 = arith.select %225, %226, %227 : vector<16x16xi1>, vector<16x16xf32>
    %229 = arith.truncf %228 : vector<16x16xf32> to vector<16x16xbf16>
    %cst_124 = arith.constant dense<0.000000e+00> : vector<16x256xf32>
    %230 = tpu.matmul %229, %109, %cst_124 {dimension_numbers = #tpu.dot_dimension_numbers<[1], [0], [0], [1], [0, 0, 1, 1], [], []>} : vector<16x16xbf16>, vector<16x256xbf16>, vector<16x256xf32> -> vector<16x256xf32>
    %231 = arith.truncf %230 : vector<16x256xf32> to vector<16x256xbf16>
    %c0_125 = arith.constant 0 : index
    %c0_126 = arith.constant 0 : index
    %c0_127 = arith.constant 0 : index
    %232 = vector.load %arg10[%c0_125, %c0_126, %c0_127] : memref<3x256x576xbf16, #tpu.memory_space<vmem>>, vector<1x256x576xbf16>
    %233 = vector.shape_cast %232 : vector<1x256x576xbf16> to vector<256x576xbf16>
    %cst_128 = arith.constant dense<0.000000e+00> : vector<16x576xf32>
    %234 = tpu.matmul %231, %233, %cst_128 {dimension_numbers = #tpu.dot_dimension_numbers<[1], [0], [0], [1], [0, 0, 1, 1], [], []>} : vector<16x256xbf16>, vector<256x576xbf16>, vector<16x576xf32> -> vector<16x576xf32>
    %235 = arith.addf %220, %234 : vector<16x576xf32>
    %c1_i32_129 = arith.constant 1 : i32
    %236 = vector.broadcast %c1_i32_129 : i32 to vector<16x16xi32>
    %237 = arith.muli %236, %218 : vector<16x16xi32>
    %c0_i32_130 = arith.constant 0 : i32
    %238 = vector.broadcast %c0_i32_130 : i32 to vector<16x16xi32>
    %239 = arith.addi %237, %238 : vector<16x16xi32>
    %240 = arith.cmpi eq, %219, %239 : vector<16x16xi32>
    %cst_131 = arith.constant 1.000000e+00 : f32
    %cst_132 = arith.constant 0.000000e+00 : f32
    %241 = vector.broadcast %cst_131 : f32 to vector<16x16xf32>
    %242 = vector.broadcast %cst_132 : f32 to vector<16x16xf32>
    %243 = arith.select %240, %241, %242 : vector<16x16xi1>, vector<16x16xf32>
    %244 = arith.truncf %243 : vector<16x16xf32> to vector<16x16xbf16>
    %cst_133 = arith.constant dense<0.000000e+00> : vector<16x256xf32>
    %245 = tpu.matmul %244, %109, %cst_133 {dimension_numbers = #tpu.dot_dimension_numbers<[1], [0], [0], [1], [0, 0, 1, 1], [], []>} : vector<16x16xbf16>, vector<16x256xbf16>, vector<16x256xf32> -> vector<16x256xf32>
    %246 = arith.truncf %245 : vector<16x256xf32> to vector<16x256xbf16>
    %c1_134 = arith.constant 1 : index
    %c0_135 = arith.constant 0 : index
    %c0_136 = arith.constant 0 : index
    %247 = vector.load %arg10[%c1_134, %c0_135, %c0_136] : memref<3x256x576xbf16, #tpu.memory_space<vmem>>, vector<1x256x576xbf16>
    %248 = vector.shape_cast %247 : vector<1x256x576xbf16> to vector<256x576xbf16>
    %cst_137 = arith.constant dense<0.000000e+00> : vector<16x576xf32>
    %249 = tpu.matmul %246, %248, %cst_137 {dimension_numbers = #tpu.dot_dimension_numbers<[1], [0], [0], [1], [0, 0, 1, 1], [], []>} : vector<16x256xbf16>, vector<256x576xbf16>, vector<16x576xf32> -> vector<16x576xf32>
    %250 = arith.addf %235, %249 : vector<16x576xf32>
    %c1_i32_138 = arith.constant 1 : i32
    %251 = vector.broadcast %c1_i32_138 : i32 to vector<16x16xi32>
    %252 = arith.muli %251, %218 : vector<16x16xi32>
    %c1_i32_139 = arith.constant 1 : i32
    %253 = vector.broadcast %c1_i32_139 : i32 to vector<16x16xi32>
    %254 = arith.addi %252, %253 : vector<16x16xi32>
    %255 = arith.cmpi eq, %219, %254 : vector<16x16xi32>
    %cst_140 = arith.constant 1.000000e+00 : f32
    %cst_141 = arith.constant 0.000000e+00 : f32
    %256 = vector.broadcast %cst_140 : f32 to vector<16x16xf32>
    %257 = vector.broadcast %cst_141 : f32 to vector<16x16xf32>
    %258 = arith.select %255, %256, %257 : vector<16x16xi1>, vector<16x16xf32>
    %259 = arith.truncf %258 : vector<16x16xf32> to vector<16x16xbf16>
    %cst_142 = arith.constant dense<0.000000e+00> : vector<16x256xf32>
    %260 = tpu.matmul %259, %109, %cst_142 {dimension_numbers = #tpu.dot_dimension_numbers<[1], [0], [0], [1], [0, 0, 1, 1], [], []>} : vector<16x16xbf16>, vector<16x256xbf16>, vector<16x256xf32> -> vector<16x256xf32>
    %261 = arith.truncf %260 : vector<16x256xf32> to vector<16x256xbf16>
    %c2_143 = arith.constant 2 : index
    %c0_144 = arith.constant 0 : index
    %c0_145 = arith.constant 0 : index
    %262 = vector.load %arg10[%c2_143, %c0_144, %c0_145] : memref<3x256x576xbf16, #tpu.memory_space<vmem>>, vector<1x256x576xbf16>
    %263 = vector.shape_cast %262 : vector<1x256x576xbf16> to vector<256x576xbf16>
    %cst_146 = arith.constant dense<0.000000e+00> : vector<16x576xf32>
    %264 = tpu.matmul %261, %263, %cst_146 {dimension_numbers = #tpu.dot_dimension_numbers<[1], [0], [0], [1], [0, 0, 1, 1], [], []>} : vector<16x256xbf16>, vector<256x576xbf16>, vector<16x576xf32> -> vector<16x576xf32>
    %265 = arith.addf %250, %264 : vector<16x576xf32>
    %c0_147 = arith.constant 0 : index
    %c0_148 = arith.constant 0 : index
    %266 = vector.load %arg11[%c0_147, %c0_148] : memref<1x576xf32, #tpu.memory_space<vmem>>, vector<1x576xf32>
    %267 = vector.broadcast %266 : vector<1x576xf32> to vector<16x576xf32>
    %268 = arith.addf %265, %267 : vector<16x576xf32>
    %c0_149 = arith.constant 0 : index
    %c0_150 = arith.constant 0 : index
    %c0_151 = arith.constant 0 : index
    %269 = vector.load %arg16[%c0_149, %c0_150, %c0_151] : memref<1x16x576xf32, #tpu.memory_space<vmem>>, vector<1x16x576xf32>
    %270 = vector.shape_cast %269 : vector<1x16x576xf32> to vector<16x576xf32>
    %271 = vector.shape_cast %268 : vector<16x576xf32> to vector<1x16x576xf32>
    tpu.vector_store %arg16[%c0_149, %c0_150, %c0_151], %271 {strides = array<i32>} : memref<1x16x576xf32, #tpu.memory_space<vmem>>, vector<1x16x576xf32>,
    %272 = tpu.iota {dimensions = array<i32: 0>} : vector<8x8xi32>
    %273 = tpu.iota {dimensions = array<i32: 1>} : vector<8x8xi32>
    %cst_152 = arith.constant 0.000000e+00 : f32
    %274 = vector.broadcast %cst_152 : f32 to vector<8x288xf32>
    %c1_i32_153 = arith.constant 1 : i32
    %275 = vector.broadcast %c1_i32_153 : i32 to vector<8x8xi32>
    %276 = arith.muli %275, %272 : vector<8x8xi32>
    %c-1_i32_154 = arith.constant -1 : i32
    %277 = vector.broadcast %c-1_i32_154 : i32 to vector<8x8xi32>
    %278 = arith.addi %276, %277 : vector<8x8xi32>
    %279 = arith.cmpi eq, %273, %278 : vector<8x8xi32>
    %cst_155 = arith.constant 1.000000e+00 : f32
    %cst_156 = arith.constant 0.000000e+00 : f32
    %280 = vector.broadcast %cst_155 : f32 to vector<8x8xf32>
    %281 = vector.broadcast %cst_156 : f32 to vector<8x8xf32>
    %282 = arith.select %279, %280, %281 : vector<8x8xi1>, vector<8x8xf32>
    %283 = arith.truncf %282 : vector<8x8xf32> to vector<8x8xbf16>
    %cst_157 = arith.constant dense<0.000000e+00> : vector<8x256xf32>
    %284 = tpu.matmul %283, %163, %cst_157 {dimension_numbers = #tpu.dot_dimension_numbers<[1], [0], [0], [1], [0, 0, 1, 1], [], []>} : vector<8x8xbf16>, vector<8x256xbf16>, vector<8x256xf32> -> vector<8x256xf32>
    %285 = arith.truncf %284 : vector<8x256xf32> to vector<8x256xbf16>
    %c0_158 = arith.constant 0 : index
    %c0_159 = arith.constant 0 : index
    %c0_160 = arith.constant 0 : index
    %286 = vector.load %arg12[%c0_158, %c0_159, %c0_160] : memref<3x256x288xbf16, #tpu.memory_space<vmem>>, vector<1x256x288xbf16>
    %287 = vector.shape_cast %286 : vector<1x256x288xbf16> to vector<256x288xbf16>
    %cst_161 = arith.constant dense<0.000000e+00> : vector<8x288xf32>
    %288 = tpu.matmul %285, %287, %cst_161 {dimension_numbers = #tpu.dot_dimension_numbers<[1], [0], [0], [1], [0, 0, 1, 1], [], []>} : vector<8x256xbf16>, vector<256x288xbf16>, vector<8x288xf32> -> vector<8x288xf32>
    %289 = arith.addf %274, %288 : vector<8x288xf32>
    %c1_i32_162 = arith.constant 1 : i32
    %290 = vector.broadcast %c1_i32_162 : i32 to vector<8x8xi32>
    %291 = arith.muli %290, %272 : vector<8x8xi32>
    %c0_i32_163 = arith.constant 0 : i32
    %292 = vector.broadcast %c0_i32_163 : i32 to vector<8x8xi32>
    %293 = arith.addi %291, %292 : vector<8x8xi32>
    %294 = arith.cmpi eq, %273, %293 : vector<8x8xi32>
    %cst_164 = arith.constant 1.000000e+00 : f32
    %cst_165 = arith.constant 0.000000e+00 : f32
    %295 = vector.broadcast %cst_164 : f32 to vector<8x8xf32>
    %296 = vector.broadcast %cst_165 : f32 to vector<8x8xf32>
    %297 = arith.select %294, %295, %296 : vector<8x8xi1>, vector<8x8xf32>
    %298 = arith.truncf %297 : vector<8x8xf32> to vector<8x8xbf16>
    %cst_166 = arith.constant dense<0.000000e+00> : vector<8x256xf32>
    %299 = tpu.matmul %298, %163, %cst_166 {dimension_numbers = #tpu.dot_dimension_numbers<[1], [0], [0], [1], [0, 0, 1, 1], [], []>} : vector<8x8xbf16>, vector<8x256xbf16>, vector<8x256xf32> -> vector<8x256xf32>
    %300 = arith.truncf %299 : vector<8x256xf32> to vector<8x256xbf16>
    %c1_167 = arith.constant 1 : index
    %c0_168 = arith.constant 0 : index
    %c0_169 = arith.constant 0 : index
    %301 = vector.load %arg12[%c1_167, %c0_168, %c0_169] : memref<3x256x288xbf16, #tpu.memory_space<vmem>>, vector<1x256x288xbf16>
    %302 = vector.shape_cast %301 : vector<1x256x288xbf16> to vector<256x288xbf16>
    %cst_170 = arith.constant dense<0.000000e+00> : vector<8x288xf32>
    %303 = tpu.matmul %300, %302, %cst_170 {dimension_numbers = #tpu.dot_dimension_numbers<[1], [0], [0], [1], [0, 0, 1, 1], [], []>} : vector<8x256xbf16>, vector<256x288xbf16>, vector<8x288xf32> -> vector<8x288xf32>
    %304 = arith.addf %289, %303 : vector<8x288xf32>
    %c1_i32_171 = arith.constant 1 : i32
    %305 = vector.broadcast %c1_i32_171 : i32 to vector<8x8xi32>
    %306 = arith.muli %305, %272 : vector<8x8xi32>
    %c1_i32_172 = arith.constant 1 : i32
    %307 = vector.broadcast %c1_i32_172 : i32 to vector<8x8xi32>
    %308 = arith.addi %306, %307 : vector<8x8xi32>
    %309 = arith.cmpi eq, %273, %308 : vector<8x8xi32>
    %cst_173 = arith.constant 1.000000e+00 : f32
    %cst_174 = arith.constant 0.000000e+00 : f32
    %310 = vector.broadcast %cst_173 : f32 to vector<8x8xf32>
    %311 = vector.broadcast %cst_174 : f32 to vector<8x8xf32>
    %312 = arith.select %309, %310, %311 : vector<8x8xi1>, vector<8x8xf32>
    %313 = arith.truncf %312 : vector<8x8xf32> to vector<8x8xbf16>
    %cst_175 = arith.constant dense<0.000000e+00> : vector<8x256xf32>
    %314 = tpu.matmul %313, %163, %cst_175 {dimension_numbers = #tpu.dot_dimension_numbers<[1], [0], [0], [1], [0, 0, 1, 1], [], []>} : vector<8x8xbf16>, vector<8x256xbf16>, vector<8x256xf32> -> vector<8x256xf32>
    %315 = arith.truncf %314 : vector<8x256xf32> to vector<8x256xbf16>
    %c2_176 = arith.constant 2 : index
    %c0_177 = arith.constant 0 : index
    %c0_178 = arith.constant 0 : index
    %316 = vector.load %arg12[%c2_176, %c0_177, %c0_178] : memref<3x256x288xbf16, #tpu.memory_space<vmem>>, vector<1x256x288xbf16>
    %317 = vector.shape_cast %316 : vector<1x256x288xbf16> to vector<256x288xbf16>
    %cst_179 = arith.constant dense<0.000000e+00> : vector<8x288xf32>
    %318 = tpu.matmul %315, %317, %cst_179 {dimension_numbers = #tpu.dot_dimension_numbers<[1], [0], [0], [1], [0, 0, 1, 1], [], []>} : vector<8x256xbf16>, vector<256x288xbf16>, vector<8x288xf32> -> vector<8x288xf32>
    %319 = arith.addf %304, %318 : vector<8x288xf32>
    %c0_180 = arith.constant 0 : index
    %c0_181 = arith.constant 0 : index
    %320 = vector.load %arg13[%c0_180, %c0_181] : memref<1x288xf32, #tpu.memory_space<vmem>>, vector<1x288xf32>
    %321 = vector.broadcast %320 : vector<1x288xf32> to vector<8x288xf32>
    %322 = arith.addf %319, %321 : vector<8x288xf32>
    %c0_182 = arith.constant 0 : index
    %c0_183 = arith.constant 0 : index
    %c0_184 = arith.constant 0 : index
    %323 = vector.load %arg17[%c0_182, %c0_183, %c0_184] : memref<1x8x288xf32, #tpu.memory_space<vmem>>, vector<1x8x288xf32>
    %324 = vector.shape_cast %323 : vector<1x8x288xf32> to vector<8x288xf32>
    %325 = vector.shape_cast %322 : vector<8x288xf32> to vector<1x8x288xf32>
    tpu.vector_store %arg17[%c0_182, %c0_183, %c0_184], %325 {strides = array<i32>} : memref<1x8x288xf32, #tpu.memory_space<vmem>>, vector<1x8x288xf32>,
    %326 = tpu.iota {dimensions = array<i32: 0>} : vector<4x4xi32>
    %327 = tpu.iota {dimensions = array<i32: 1>} : vector<4x4xi32>
    %cst_185 = arith.constant 0.000000e+00 : f32
    %328 = vector.broadcast %cst_185 : f32 to vector<4x144xf32>
    %c1_i32_186 = arith.constant 1 : i32
    %329 = vector.broadcast %c1_i32_186 : i32 to vector<4x4xi32>
    %330 = arith.muli %329, %326 : vector<4x4xi32>
    %c-1_i32_187 = arith.constant -1 : i32
    %331 = vector.broadcast %c-1_i32_187 : i32 to vector<4x4xi32>
    %332 = arith.addi %330, %331 : vector<4x4xi32>
    %333 = arith.cmpi eq, %327, %332 : vector<4x4xi32>
    %cst_188 = arith.constant 1.000000e+00 : f32
    %cst_189 = arith.constant 0.000000e+00 : f32
    %334 = vector.broadcast %cst_188 : f32 to vector<4x4xf32>
    %335 = vector.broadcast %cst_189 : f32 to vector<4x4xf32>
    %336 = arith.select %333, %334, %335 : vector<4x4xi1>, vector<4x4xf32>
    %337 = arith.truncf %336 : vector<4x4xf32> to vector<4x4xbf16>
    %cst_190 = arith.constant dense<0.000000e+00> : vector<4x128xf32>
    %338 = tpu.matmul %337, %217, %cst_190 {dimension_numbers = #tpu.dot_dimension_numbers<[1], [0], [0], [1], [0, 0, 1, 1], [], []>} : vector<4x4xbf16>, vector<4x128xbf16>, vector<4x128xf32> -> vector<4x128xf32>
    %339 = arith.truncf %338 : vector<4x128xf32> to vector<4x128xbf16>
    %c0_191 = arith.constant 0 : index
    %c0_192 = arith.constant 0 : index
    %c0_193 = arith.constant 0 : index
    %340 = vector.load %arg14[%c0_191, %c0_192, %c0_193] : memref<3x128x144xbf16, #tpu.memory_space<vmem>>, vector<1x128x144xbf16>
    %341 = vector.shape_cast %340 : vector<1x128x144xbf16> to vector<128x144xbf16>
    %cst_194 = arith.constant dense<0.000000e+00> : vector<4x144xf32>
    %342 = tpu.matmul %339, %341, %cst_194 {dimension_numbers = #tpu.dot_dimension_numbers<[1], [0], [0], [1], [0, 0, 1, 1], [], []>} : vector<4x128xbf16>, vector<128x144xbf16>, vector<4x144xf32> -> vector<4x144xf32>
    %343 = arith.addf %328, %342 : vector<4x144xf32>
    %c1_i32_195 = arith.constant 1 : i32
    %344 = vector.broadcast %c1_i32_195 : i32 to vector<4x4xi32>
    %345 = arith.muli %344, %326 : vector<4x4xi32>
    %c0_i32_196 = arith.constant 0 : i32
    %346 = vector.broadcast %c0_i32_196 : i32 to vector<4x4xi32>
    %347 = arith.addi %345, %346 : vector<4x4xi32>
    %348 = arith.cmpi eq, %327, %347 : vector<4x4xi32>
    %cst_197 = arith.constant 1.000000e+00 : f32
    %cst_198 = arith.constant 0.000000e+00 : f32
    %349 = vector.broadcast %cst_197 : f32 to vector<4x4xf32>
    %350 = vector.broadcast %cst_198 : f32 to vector<4x4xf32>
    %351 = arith.select %348, %349, %350 : vector<4x4xi1>, vector<4x4xf32>
    %352 = arith.truncf %351 : vector<4x4xf32> to vector<4x4xbf16>
    %cst_199 = arith.constant dense<0.000000e+00> : vector<4x128xf32>
    %353 = tpu.matmul %352, %217, %cst_199 {dimension_numbers = #tpu.dot_dimension_numbers<[1], [0], [0], [1], [0, 0, 1, 1], [], []>} : vector<4x4xbf16>, vector<4x128xbf16>, vector<4x128xf32> -> vector<4x128xf32>
    %354 = arith.truncf %353 : vector<4x128xf32> to vector<4x128xbf16>
    %c1_200 = arith.constant 1 : index
    %c0_201 = arith.constant 0 : index
    %c0_202 = arith.constant 0 : index
    %355 = vector.load %arg14[%c1_200, %c0_201, %c0_202] : memref<3x128x144xbf16, #tpu.memory_space<vmem>>, vector<1x128x144xbf16>
    %356 = vector.shape_cast %355 : vector<1x128x144xbf16> to vector<128x144xbf16>
    %cst_203 = arith.constant dense<0.000000e+00> : vector<4x144xf32>
    %357 = tpu.matmul %354, %356, %cst_203 {dimension_numbers = #tpu.dot_dimension_numbers<[1], [0], [0], [1], [0, 0, 1, 1], [], []>} : vector<4x128xbf16>, vector<128x144xbf16>, vector<4x144xf32> -> vector<4x144xf32>
    %358 = arith.addf %343, %357 : vector<4x144xf32>
    %c1_i32_204 = arith.constant 1 : i32
    %359 = vector.broadcast %c1_i32_204 : i32 to vector<4x4xi32>
    %360 = arith.muli %359, %326 : vector<4x4xi32>
    %c1_i32_205 = arith.constant 1 : i32
    %361 = vector.broadcast %c1_i32_205 : i32 to vector<4x4xi32>
    %362 = arith.addi %360, %361 : vector<4x4xi32>
    %363 = arith.cmpi eq, %327, %362 : vector<4x4xi32>
    %cst_206 = arith.constant 1.000000e+00 : f32
    %cst_207 = arith.constant 0.000000e+00 : f32
    %364 = vector.broadcast %cst_206 : f32 to vector<4x4xf32>
    %365 = vector.broadcast %cst_207 : f32 to vector<4x4xf32>
    %366 = arith.select %363, %364, %365 : vector<4x4xi1>, vector<4x4xf32>
    %367 = arith.truncf %366 : vector<4x4xf32> to vector<4x4xbf16>
    %cst_208 = arith.constant dense<0.000000e+00> : vector<4x128xf32>
    %368 = tpu.matmul %367, %217, %cst_208 {dimension_numbers = #tpu.dot_dimension_numbers<[1], [0], [0], [1], [0, 0, 1, 1], [], []>} : vector<4x4xbf16>, vector<4x128xbf16>, vector<4x128xf32> -> vector<4x128xf32>
    %369 = arith.truncf %368 : vector<4x128xf32> to vector<4x128xbf16>
    %c2_209 = arith.constant 2 : index
    %c0_210 = arith.constant 0 : index
    %c0_211 = arith.constant 0 : index
    %370 = vector.load %arg14[%c2_209, %c0_210, %c0_211] : memref<3x128x144xbf16, #tpu.memory_space<vmem>>, vector<1x128x144xbf16>
    %371 = vector.shape_cast %370 : vector<1x128x144xbf16> to vector<128x144xbf16>
    %cst_212 = arith.constant dense<0.000000e+00> : vector<4x144xf32>
    %372 = tpu.matmul %369, %371, %cst_212 {dimension_numbers = #tpu.dot_dimension_numbers<[1], [0], [0], [1], [0, 0, 1, 1], [], []>} : vector<4x128xbf16>, vector<128x144xbf16>, vector<4x144xf32> -> vector<4x144xf32>
    %373 = arith.addf %358, %372 : vector<4x144xf32>
    %c0_213 = arith.constant 0 : index
    %c0_214 = arith.constant 0 : index
    %374 = vector.load %arg15[%c0_213, %c0_214] : memref<1x144xf32, #tpu.memory_space<vmem>>, vector<1x144xf32>
    %375 = vector.broadcast %374 : vector<1x144xf32> to vector<4x144xf32>
    %376 = arith.addf %373, %375 : vector<4x144xf32>
    %c0_215 = arith.constant 0 : index
    %c0_216 = arith.constant 0 : index
    %c0_217 = arith.constant 0 : index
    %377 = vector.load %arg18[%c0_215, %c0_216, %c0_217] : memref<1x4x144xf32, #tpu.memory_space<vmem>>, vector<1x4x144xf32>
    %378 = vector.shape_cast %377 : vector<1x4x144xf32> to vector<4x144xf32>
    %379 = vector.shape_cast %376 : vector<4x144xf32> to vector<1x4x144xf32>
    tpu.vector_store %arg18[%c0_215, %c0_216, %c0_217], %379 {strides = array<i32>} : memref<1x4x144xf32, #tpu.memory_space<vmem>>, vector<1x4x144xf32>,
    return
  }
  func.func @transform_0(%arg0: i32) -> (i32, i32, i32) {
    %c0_i32 = arith.constant 0 : i32
    %c0_i32_0 = arith.constant 0 : i32
    %c0_i32_1 = arith.constant 0 : i32
    return %arg0, %c0_i32, %c0_i32_0 : i32, i32, i32
  }
  func.func @transform_1(%arg0: i32) -> (i32, i32, i32) {
    %c0_i32 = arith.constant 0 : i32
    %c0_i32_0 = arith.constant 0 : i32
    %c0_i32_1 = arith.constant 0 : i32
    %c0_i32_2 = arith.constant 0 : i32
    return %c0_i32, %c0_i32_0, %c0_i32_1 : i32, i32, i32
  }
  func.func @transform_2(%arg0: i32) -> (i32, i32) {
    %c0_i32 = arith.constant 0 : i32
    %c0_i32_0 = arith.constant 0 : i32
    %c0_i32_1 = arith.constant 0 : i32
    return %c0_i32, %c0_i32_0 : i32, i32
  }
  func.func @transform_3(%arg0: i32) -> (i32, i32, i32) {
    %c0_i32 = arith.constant 0 : i32
    %c0_i32_0 = arith.constant 0 : i32
    %c0_i32_1 = arith.constant 0 : i32
    %c0_i32_2 = arith.constant 0 : i32
    return %c0_i32, %c0_i32_0, %c0_i32_1 : i32, i32, i32
  }
  func.func @transform_4(%arg0: i32) -> (i32, i32) {
    %c0_i32 = arith.constant 0 : i32
    %c0_i32_0 = arith.constant 0 : i32
    %c0_i32_1 = arith.constant 0 : i32
    return %c0_i32, %c0_i32_0 : i32, i32
  }
  func.func @transform_5(%arg0: i32) -> (i32, i32, i32) {
    %c0_i32 = arith.constant 0 : i32
    %c0_i32_0 = arith.constant 0 : i32
    %c0_i32_1 = arith.constant 0 : i32
    %c0_i32_2 = arith.constant 0 : i32
    return %c0_i32, %c0_i32_0, %c0_i32_1 : i32, i32, i32
  }
  func.func @transform_6(%arg0: i32) -> (i32, i32) {
    %c0_i32 = arith.constant 0 : i32
    %c0_i32_0 = arith.constant 0 : i32
    %c0_i32_1 = arith.constant 0 : i32
    return %c0_i32, %c0_i32_0 : i32, i32
  }
  func.func @transform_7(%arg0: i32) -> (i32, i32, i32) {
    %c0_i32 = arith.constant 0 : i32
    %c0_i32_0 = arith.constant 0 : i32
    %c0_i32_1 = arith.constant 0 : i32
    %c0_i32_2 = arith.constant 0 : i32
    return %c0_i32, %c0_i32_0, %c0_i32_1 : i32, i32, i32
  }
  func.func @transform_8(%arg0: i32) -> (i32, i32) {
    %c0_i32 = arith.constant 0 : i32
    %c0_i32_0 = arith.constant 0 : i32
    %c0_i32_1 = arith.constant 0 : i32
    return %c0_i32, %c0_i32_0 : i32, i32
  }
  func.func @transform_9(%arg0: i32) -> (i32, i32, i32) {
    %c0_i32 = arith.constant 0 : i32
    %c0_i32_0 = arith.constant 0 : i32
    %c0_i32_1 = arith.constant 0 : i32
    %c0_i32_2 = arith.constant 0 : i32
    return %c0_i32, %c0_i32_0, %c0_i32_1 : i32, i32, i32
  }
  func.func @transform_10(%arg0: i32) -> (i32, i32) {
    %c0_i32 = arith.constant 0 : i32
    %c0_i32_0 = arith.constant 0 : i32
    %c0_i32_1 = arith.constant 0 : i32
    return %c0_i32, %c0_i32_0 : i32, i32
  }
  func.func @transform_11(%arg0: i32) -> (i32, i32, i32) {
    %c0_i32 = arith.constant 0 : i32
    %c0_i32_0 = arith.constant 0 : i32
    %c0_i32_1 = arith.constant 0 : i32
    %c0_i32_2 = arith.constant 0 : i32
    return %c0_i32, %c0_i32_0, %c0_i32_1 : i32, i32, i32
  }
  func.func @transform_12(%arg0: i32) -> (i32, i32) {
    %c0_i32 = arith.constant 0 : i32
    %c0_i32_0 = arith.constant 0 : i32
    %c0_i32_1 = arith.constant 0 : i32
    return %c0_i32, %c0_i32_0 : i32, i32
  }
  func.func @transform_13(%arg0: i32) -> (i32, i32, i32) {
    %c0_i32 = arith.constant 0 : i32
    %c0_i32_0 = arith.constant 0 : i32
    %c0_i32_1 = arith.constant 0 : i32
    %c0_i32_2 = arith.constant 0 : i32
    return %c0_i32, %c0_i32_0, %c0_i32_1 : i32, i32, i32
  }
  func.func @transform_14(%arg0: i32) -> (i32, i32) {
    %c0_i32 = arith.constant 0 : i32
    %c0_i32_0 = arith.constant 0 : i32
    %c0_i32_1 = arith.constant 0 : i32
    return %c0_i32, %c0_i32_0 : i32, i32
  }
  func.func @transform_15(%arg0: i32) -> (i32, i32, i32) {
    %c0_i32 = arith.constant 0 : i32
    %c0_i32_0 = arith.constant 0 : i32
    %c0_i32_1 = arith.constant 0 : i32
    return %arg0, %c0_i32, %c0_i32_0 : i32, i32, i32
  }
  func.func @transform_16(%arg0: i32) -> (i32, i32, i32) {
    %c0_i32 = arith.constant 0 : i32
    %c0_i32_0 = arith.constant 0 : i32
    %c0_i32_1 = arith.constant 0 : i32
    return %arg0, %c0_i32, %c0_i32_0 : i32, i32, i32
  }
  func.func @transform_17(%arg0: i32) -> (i32, i32, i32) {
    %c0_i32 = arith.constant 0 : i32
    %c0_i32_0 = arith.constant 0 : i32
    %c0_i32_1 = arith.constant 0 : i32
    return %arg0, %c0_i32, %c0_i32_0 : i32, i32, i32
  }
}

</mosaic_0001>

<llo_original>
// kernel: _ssd_forward.1
$region0: #{_ssd_forward.1}
  #allocation0 [shape = 'u32[]', space=smem, size = 0x4, offset = 0x4, fixed_abs, tag = 'smem constant byte address 0x4 - core index']
  #allocation1 [shape = 'u32[144,128]{1,0:T(1,128)}', space=vmem, size = 0x12000, scoped, tag = 'internal scratch']
  %s0 = inlined_call_operand.vmem [shape: bf16[2,16,64], index: 0, kind: input, shape index: {}]
  %s1 = inlined_call_operand.vmem [shape: bf16[3,64,256], index: 1, kind: input, shape index: {}]
  %s2 = inlined_call_operand.vmem [shape: f32[1,256], index: 2, kind: input, shape index: {}]
  %s3 = inlined_call_operand.vmem [shape: bf16[3,256,256], index: 3, kind: input, shape index: {}]
  %s4 = inlined_call_operand.vmem [shape: f32[1,256], index: 4, kind: input, shape index: {}]
  %s5 = inlined_call_operand.vmem [shape: bf16[3,256,256], index: 5, kind: input, shape index: {}]
  %s6 = inlined_call_operand.vmem [shape: f32[1,256], index: 6, kind: input, shape index: {}]
  %s7 = inlined_call_operand.vmem [shape: bf16[3,256,128], index: 7, kind: input, shape index: {}]
  %s8 = inlined_call_operand.vmem [shape: f32[1,128], index: 8, kind: input, shape index: {}]
  %s9 = inlined_call_operand.vmem [shape: bf16[3,256,576], index: 9, kind: input, shape index: {}]
  %s10 = inlined_call_operand.vmem [shape: f32[1,576], index: 10, kind: input, shape index: {}]
  %s11 = inlined_call_operand.vmem [shape: bf16[3,256,288], index: 11, kind: input, shape index: {}]
  %s12 = inlined_call_operand.vmem [shape: f32[1,288], index: 12, kind: input, shape index: {}]
  %s13 = inlined_call_operand.vmem [shape: bf16[3,128,144], index: 13, kind: input, shape index: {}]
  %s14 = inlined_call_operand.vmem [shape: f32[1,144], index: 14, kind: input, shape index: {}]
  %s15 = inlined_call_operand.vmem [shape: f32[2,16,576], index: 15, kind: output, shape index: {0}]
  %s16 = inlined_call_operand.vmem [shape: f32[2,8,288], index: 16, kind: output, shape index: {1}]
  %s17 = inlined_call_operand.vmem [shape: f32[2,4,144], index: 17, kind: output, shape index: {2}]
  %18 = xla_tuple %s15, %s16, %s17
  %s19 = sld [smem:[#allocation0]]
  $region109: #{_ssd_forward.1} parent=0
    _
  %s21 = ssub.s32 1, %s19
  %s22 = scalar_select 0, %s21, %s19
  loop: start=0, step=1, limit=4
  $region2: #{_ssd_forward.1} parent=0 // loop_pre_header
    _
  $region3: #{_ssd_forward.1} parent=0 // loop_header
    %s24 = sphi 0, %s28
    %p25 = scmp.ge.s32.totalorder %s24, 4
    %s34 = sphi 0, %s36
    %s37 = sphi 0, %s34
    %s38 = sphi 0, %s37
    %s54 = sphi 0, %s38
    %s58 = sphi 0, %s58
    %s60 = sphi 0, %s58
    %s61 = sphi 0, %s60
    %s75 = sphi 0, %s61
    %s79 = sphi 0, %s79
    %s81 = sphi 0, %s79
    %s82 = sphi 0, %s81
    %s96 = sphi 0, %s82
    %s100 = sphi 0, %s100
    %s102 = sphi 0, %s100
    %s103 = sphi 0, %s102
    %s117 = sphi 0, %s103
    %s121 = sphi 0, %s121
    %s123 = sphi 0, %s121
    %s124 = sphi 0, %s123
    %s138 = sphi 0, %s124
    %s142 = sphi 0, %s142
    %s144 = sphi 0, %s142
    %s145 = sphi 0, %s144
    %s159 = sphi 0, %s145
    %s163 = sphi 0, %s163
    %s165 = sphi 0, %s163
    %s166 = sphi 0, %s165
    %s180 = sphi 0, %s166
    %s184 = sphi 0, %s184
    %s186 = sphi 0, %s184
    %s187 = sphi 0, %s186
    %s201 = sphi 0, %s187
    %s205 = sphi 0, %s205
    %s207 = sphi 0, %s205
    %s208 = sphi 0, %s207
    %s222 = sphi 0, %s208
    %s226 = sphi 0, %s226
    %s228 = sphi 0, %s226
    %s229 = sphi 0, %s228
    %s243 = sphi 0, %s229
    %s247 = sphi 0, %s247
    %s249 = sphi 0, %s247
    %s250 = sphi 0, %s249
    %s264 = sphi 0, %s250
    %s268 = sphi 0, %s268
    %s270 = sphi 0, %s268
    %s271 = sphi 0, %s270
    %s285 = sphi 0, %s271
    %s289 = sphi 0, %s289
    %s291 = sphi 0, %s289
    %s292 = sphi 0, %s291
    %s306 = sphi 0, %s292
    %s310 = sphi 0, %s310
    %s312 = sphi 0, %s310
    %s313 = sphi 0, %s312
    %s327 = sphi 0, %s313
    %s331 = sphi 0, %s331
    %s333 = sphi 0, %s331
    %s334 = sphi 0, %s333
    %s348 = sphi 0, %s334
    %s354 = sphi 0, %s356
    %s357 = sphi 0, %s354
    %s358 = sphi 0, %s357
    %s374 = sphi 0, %s358
    %s380 = sphi 0, %s382
    %s383 = sphi 0, %s380
    %s384 = sphi 0, %s383
    %s400 = sphi 0, %s384
    %s406 = sphi 0, %s408
    %s409 = sphi 0, %s406
    %s410 = sphi 0, %s409
    %s426 = sphi 0, %s410
  $region4: #{_ssd_forward.1} parent=0 // loop_header_branch
    %27 = sbr.rel (%p25) target = $region8
  $region5: #{_ssd_forward.1} parent=0 // loop_body
    %s29 = ssub.s32 %s24, 1
    %s30 = ssub.s32 %s24, 2
    %s31 = sadd.s32 %s24, 1
    %s32 = ssub.s32 %s24, %s31
    %p33 = scmp.eq.s32.totalorder %s32, 0
    %s35 = sadd.s32 %s34, 1
    %s36 = scalar_select %p33, %s34, %s35
    %p39 = pneg %p33
    %p40 = scmp.eq.s32.totalorder %s24, 1
    %p41 = por %p39, %p40
    %p42 = scmp.ne.s32.totalorder %s34, %s37
    %p43 = scmp.eq.s32.totalorder %s24, 0
    %p44 = por %p42, %p43
    %p45 = scmp.ne.s32.totalorder %s34, %s37
    %p46 = scmp.eq.s32.totalorder %s29, 1
    %p47 = por %p45, %p46
    %p48 = scmp.ne.s32.totalorder %s37, %s38
    %p49 = scmp.eq.s32.totalorder %s29, 0
    %p50 = por %p48, %p49
    %p51 = scmp.ne.s32.totalorder %s37, %s38
    %p52 = scmp.eq.s32.totalorder %s30, 1
    %p53 = por %p51, %p52
    %p55 = scmp.ne.s32.totalorder %s38, %s54
    %p56 = scmp.eq.s32.totalorder %s30, 0
    %p57 = por %p55, %p56
    %s59 = sadd.s32 %s58, 1
    %p62 = scmp.eq.s32.totalorder %s24, 1
    %p63 = scmp.ne.s32.totalorder %s58, %s60
    %p64 = scmp.eq.s32.totalorder %s24, 0
    %p65 = por %p63, %p64
    %p66 = scmp.ne.s32.totalorder %s58, %s60
    %p67 = scmp.eq.s32.totalorder %s29, 1
    %p68 = por %p66, %p67
    %p69 = scmp.ne.s32.totalorder %s60, %s61
    %p70 = scmp.eq.s32.totalorder %s29, 0
    %p71 = por %p69, %p70
    %p72 = scmp.ne.s32.totalorder %s60, %s61
    %p73 = scmp.eq.s32.totalorder %s30, 1
    %p74 = por %p72, %p73
    %p76 = scmp.ne.s32.totalorder %s61, %s75
    %p77 = scmp.eq.s32.totalorder %s30, 0
    %p78 = por %p76, %p77
    %s80 = sadd.s32 %s79, 1
    %p83 = scmp.eq.s32.totalorder %s24, 1
    %p84 = scmp.ne.s32.totalorder %s79, %s81
    %p85 = scmp.eq.s32.totalorder %s24, 0
    %p86 = por %p84, %p85
    %p87 = scmp.ne.s32.totalorder %s79, %s81
    %p88 = scmp.eq.s32.totalorder %s29, 1
    %p89 = por %p87, %p88
    %p90 = scmp.ne.s32.totalorder %s81, %s82
    %p91 = scmp.eq.s32.totalorder %s29, 0
    %p92 = por %p90, %p91
    %p93 = scmp.ne.s32.totalorder %s81, %s82
    %p94 = scmp.eq.s32.totalorder %s30, 1
    %p95 = por %p93, %p94
    %p97 = scmp.ne.s32.totalorder %s82, %s96
    %p98 = scmp.eq.s32.totalorder %s30, 0
    %p99 = por %p97, %p98
    %s101 = sadd.s32 %s100, 1
    %p104 = scmp.eq.s32.totalorder %s24, 1
    %p105 = scmp.ne.s32.totalorder %s100, %s102
    %p106 = scmp.eq.s32.totalorder %s24, 0
    %p107 = por %p105, %p106
    %p108 = scmp.ne.s32.totalorder %s100, %s102
    %p109 = scmp.eq.s32.totalorder %s29, 1
    %p110 = por %p108, %p109
    %p111 = scmp.ne.s32.totalorder %s102, %s103
    %p112 = scmp.eq.s32.totalorder %s29, 0
    %p113 = por %p111, %p112
    %p114 = scmp.ne.s32.totalorder %s102, %s103
    %p115 = scmp.eq.s32.totalorder %s30, 1
    %p116 = por %p114, %p115
    %p118 = scmp.ne.s32.totalorder %s103, %s117
    %p119 = scmp.eq.s32.totalorder %s30, 0
    %p120 = por %p118, %p119
    %s122 = sadd.s32 %s121, 1
    %p125 = scmp.eq.s32.totalorder %s24, 1
    %p126 = scmp.ne.s32.totalorder %s121, %s123
    %p127 = scmp.eq.s32.totalorder %s24, 0
    %p128 = por %p126, %p127
    %p129 = scmp.ne.s32.totalorder %s121, %s123
    %p130 = scmp.eq.s32.totalorder %s29, 1
    %p131 = por %p129, %p130
    %p132 = scmp.ne.s32.totalorder %s123, %s124
    %p133 = scmp.eq.s32.totalorder %s29, 0
    %p134 = por %p132, %p133
    %p135 = scmp.ne.s32.totalorder %s123, %s124
    %p136 = scmp.eq.s32.totalorder %s30, 1
    %p137 = por %p135, %p136
    %p139 = scmp.ne.s32.totalorder %s124, %s138
    %p140 = scmp.eq.s32.totalorder %s30, 0
    %p141 = por %p139, %p140
    %s143 = sadd.s32 %s142, 1
    %p146 = scmp.eq.s32.totalorder %s24, 1
    %p147 = scmp.ne.s32.totalorder %s142, %s144
    %p148 = scmp.eq.s32.totalorder %s24, 0
    %p149 = por %p147, %p148
    %p150 = scmp.ne.s32.totalorder %s142, %s144
    %p151 = scmp.eq.s32.totalorder %s29, 1
    %p152 = por %p150, %p151
    %p153 = scmp.ne.s32.totalorder %s144, %s145
    %p154 = scmp.eq.s32.totalorder %s29, 0
    %p155 = por %p153, %p154
    %p156 = scmp.ne.s32.totalorder %s144, %s145
    %p157 = scmp.eq.s32.totalorder %s30, 1
    %p158 = por %p156, %p157
    %p160 = scmp.ne.s32.totalorder %s145, %s159
    %p161 = scmp.eq.s32.totalorder %s30, 0
    %p162 = por %p160, %p161
    %s164 = sadd.s32 %s163, 1
    %p167 = scmp.eq.s32.totalorder %s24, 1
    %p168 = scmp.ne.s32.totalorder %s163, %s165
    %p169 = scmp.eq.s32.totalorder %s24, 0
    %p170 = por %p168, %p169
    %p171 = scmp.ne.s32.totalorder %s163, %s165
    %p172 = scmp.eq.s32.totalorder %s29, 1
    %p173 = por %p171, %p172
    %p174 = scmp.ne.s32.totalorder %s165, %s166
    %p175 = scmp.eq.s32.totalorder %s29, 0
    %p176 = por %p174, %p175
    %p177 = scmp.ne.s32.totalorder %s165, %s166
    %p178 = scmp.eq.s32.totalorder %s30, 1
    %p179 = por %p177, %p178
    %p181 = scmp.ne.s32.totalorder %s166, %s180
    %p182 = scmp.eq.s32.totalorder %s30, 0
    %p183 = por %p181, %p182
    %s185 = sadd.s32 %s184, 1
    %p188 = scmp.eq.s32.totalorder %s24, 1
    %p189 = scmp.ne.s32.totalorder %s184, %s186
    %p190 = scmp.eq.s32.totalorder %s24, 0
    %p191 = por %p189, %p190
    %p192 = scmp.ne.s32.totalorder %s184, %s186
    %p193 = scmp.eq.s32.totalorder %s29, 1
    %p194 = por %p192, %p193
    %p195 = scmp.ne.s32.totalorder %s186, %s187
    %p196 = scmp.eq.s32.totalorder %s29, 0
    %p197 = por %p195, %p196
    %p198 = scmp.ne.s32.totalorder %s186, %s187
    %p199 = scmp.eq.s32.totalorder %s30, 1
    %p200 = por %p198, %p199
    %p202 = scmp.ne.s32.totalorder %s187, %s201
    %p203 = scmp.eq.s32.totalorder %s30, 0
    %p204 = por %p202, %p203
    %s206 = sadd.s32 %s205, 1
    %p209 = scmp.eq.s32.totalorder %s24, 1
    %p210 = scmp.ne.s32.totalorder %s205, %s207
    %p211 = scmp.eq.s32.totalorder %s24, 0
    %p212 = por %p210, %p211
    %p213 = scmp.ne.s32.totalorder %s205, %s207
    %p214 = scmp.eq.s32.totalorder %s29, 1
    %p215 = por %p213, %p214
    %p216 = scmp.ne.s32.totalorder %s207, %s208
    %p217 = scmp.eq.s32.totalorder %s29, 0
    %p218 = por %p216, %p217
    %p219 = scmp.ne.s32.totalorder %s207, %s208
    %p220 = scmp.eq.s32.totalorder %s30, 1
    %p221 = por %p219, %p220
    %p223 = scmp.ne.s32.totalorder %s208, %s222
    %p224 = scmp.eq.s32.totalorder %s30, 0
    %p225 = por %p223, %p224
    %s227 = sadd.s32 %s226, 1
    %p230 = scmp.eq.s32.totalorder %s24, 1
    %p231 = scmp.ne.s32.totalorder %s226, %s228
    %p232 = scmp.eq.s32.totalorder %s24, 0
    %p233 = por %p231, %p232
    %p234 = scmp.ne.s32.totalorder %s226, %s228
    %p235 = scmp.eq.s32.totalorder %s29, 1
    %p236 = por %p234, %p235
    %p237 = scmp.ne.s32.totalorder %s228, %s229
    %p238 = scmp.eq.s32.totalorder %s29, 0
    %p239 = por %p237, %p238
    %p240 = scmp.ne.s32.totalorder %s228, %s229
    %p241 = scmp.eq.s32.totalorder %s30, 1
    %p242 = por %p240, %p241
    %p244 = scmp.ne.s32.totalorder %s229, %s243
    %p245 = scmp.eq.s32.totalorder %s30, 0
    %p246 = por %p244, %p245
    %s248 = sadd.s32 %s247, 1
    %p251 = scmp.eq.s32.totalorder %s24, 1
    %p252 = scmp.ne.s32.totalorder %s247, %s249
    %p253 = scmp.eq.s32.totalorder %s24, 0
    %p254 = por %p252, %p253
    %p255 = scmp.ne.s32.totalorder %s247, %s249
    %p256 = scmp.eq.s32.totalorder %s29, 1
    %p257 = por %p255, %p256
    %p258 = scmp.ne.s32.totalorder %s249, %s250
    %p259 = scmp.eq.s32.totalorder %s29, 0
    %p260 = por %p258, %p259
    %p261 = scmp.ne.s32.totalorder %s249, %s250
    %p262 = scmp.eq.s32.totalorder %s30, 1
    %p263 = por %p261, %p262
    %p265 = scmp.ne.s32.totalorder %s250, %s264
    %p266 = scmp.eq.s32.totalorder %s30, 0
    %p267 = por %p265, %p266
    %s269 = sadd.s32 %s268, 1
    %p272 = scmp.eq.s32.totalorder %s24, 1
    %p273 = scmp.ne.s32.totalorder %s268, %s270
    %p274 = scmp.eq.s32.totalorder %s24, 0
    %p275 = por %p273, %p274
    %p276 = scmp.ne.s32.totalorder %s268, %s270
    %p277 = scmp.eq.s32.totalorder %s29, 1
    %p278 = por %p276, %p277
    %p279 = scmp.ne.s32.totalorder %s270, %s271
    %p280 = scmp.eq.s32.totalorder %s29, 0
    %p281 = por %p279, %p280
    %p282 = scmp.ne.s32.totalorder %s270, %s271
    %p283 = scmp.eq.s32.totalorder %s30, 1
    %p284 = por %p282, %p283
    %p286 = scmp.ne.s32.totalorder %s271, %s285
    %p287 = scmp.eq.s32.totalorder %s30, 0
    %p288 = por %p286, %p287
    %s290 = sadd.s32 %s289, 1
    %p293 = scmp.eq.s32.totalorder %s24, 1
    %p294 = scmp.ne.s32.totalorder %s289, %s291
    %p295 = scmp.eq.s32.totalorder %s24, 0
    %p296 = por %p294, %p295
    %p297 = scmp.ne.s32.totalorder %s289, %s291
    %p298 = scmp.eq.s32.totalorder %s29, 1
    %p299 = por %p297, %p298
    %p300 = scmp.ne.s32.totalorder %s291, %s292
    %p301 = scmp.eq.s32.totalorder %s29, 0
    %p302 = por %p300, %p301
    %p303 = scmp.ne.s32.totalorder %s291, %s292
    %p304 = scmp.eq.s32.totalorder %s30, 1
    %p305 = por %p303, %p304
    %p307 = scmp.ne.s32.totalorder %s292, %s306
    %p308 = scmp.eq.s32.totalorder %s30, 0
    %p309 = por %p307, %p308
    %s311 = sadd.s32 %s310, 1
    %p314 = scmp.eq.s32.totalorder %s24, 1
    %p315 = scmp.ne.s32.totalorder %s310, %s312
    %p316 = scmp.eq.s32.totalorder %s24, 0
    %p317 = por %p315, %p316
    %p318 = scmp.ne.s32.totalorder %s310, %s312
    %p319 = scmp.eq.s32.totalorder %s29, 1
    %p320 = por %p318, %p319
    %p321 = scmp.ne.s32.totalorder %s312, %s313
    %p322 = scmp.eq.s32.totalorder %s29, 0
    %p323 = por %p321, %p322
    %p324 = scmp.ne.s32.totalorder %s312, %s313
    %p325 = scmp.eq.s32.totalorder %s30, 1
    %p326 = por %p324, %p325
    %p328 = scmp.ne.s32.totalorder %s313, %s327
    %p329 = scmp.eq.s32.totalorder %s30, 0
    %p330 = por %p328, %p329
    %s332 = sadd.s32 %s331, 1
    %p335 = scmp.eq.s32.totalorder %s24, 1
    %p336 = scmp.ne.s32.totalorder %s331, %s333
    %p337 = scmp.eq.s32.totalorder %s24, 0
    %p338 = por %p336, %p337
    %p339 = scmp.ne.s32.totalorder %s331, %s333
    %p340 = scmp.eq.s32.totalorder %s29, 1
    %p341 = por %p339, %p340
    %p342 = scmp.ne.s32.totalorder %s333, %s334
    %p343 = scmp.eq.s32.totalorder %s29, 0
    %p344 = por %p342, %p343
    %p345 = scmp.ne.s32.totalorder %s333, %s334
    %p346 = scmp.eq.s32.totalorder %s30, 1
    %p347 = por %p345, %p346
    %p349 = scmp.ne.s32.totalorder %s334, %s348
    %p350 = scmp.eq.s32.totalorder %s30, 0
    %p351 = por %p349, %p350
    %s352 = ssub.s32 %s24, %s31
    %p353 = scmp.eq.s32.totalorder %s352, 0
    %s355 = sadd.s32 %s354, 1
    %s356 = scalar_select %p353, %s354, %s355
    %p359 = pneg %p353
    %p360 = scmp.eq.s32.totalorder %s24, 1
    %p361 = por %p359, %p360
    %p362 = scmp.ne.s32.totalorder %s354, %s357
    %p363 = scmp.eq.s32.totalorder %s24, 0
    %p364 = por %p362, %p363
    %p365 = scmp.ne.s32.totalorder %s354, %s357
    %p366 = scmp.eq.s32.totalorder %s29, 1
    %p367 = por %p365, %p366
    %p368 = scmp.ne.s32.totalorder %s357, %s358
    %p369 = scmp.eq.s32.totalorder %s29, 0
    %p370 = por %p368, %p369
    %p371 = scmp.ne.s32.totalorder %s357, %s358
    %p372 = scmp.eq.s32.totalorder %s30, 1
    %p373 = por %p371, %p372
    %p375 = scmp.ne.s32.totalorder %s358, %s374
    %p376 = scmp.eq.s32.totalorder %s30, 0
    %p377 = por %p375, %p376
    %s378 = ssub.s32 %s24, %s31
    %p379 = scmp.eq.s32.totalorder %s378, 0
    %s381 = sadd.s32 %s380, 1
    %s382 = scalar_select %p379, %s380, %s381
    %p385 = pneg %p379
    %p386 = scmp.eq.s32.totalorder %s24, 1
    %p387 = por %p385, %p386
    %p388 = scmp.ne.s32.totalorder %s380, %s383
    %p389 = scmp.eq.s32.totalorder %s24, 0
    %p390 = por %p388, %p389
    %p391 = scmp.ne.s32.totalorder %s380, %s383
    %p392 = scmp.eq.s32.totalorder %s29, 1
    %p393 = por %p391, %p392
    %p394 = scmp.ne.s32.totalorder %s383, %s384
    %p395 = scmp.eq.s32.totalorder %s29, 0
    %p396 = por %p394, %p395
    %p397 = scmp.ne.s32.totalorder %s383, %s384
    %p398 = scmp.eq.s32.totalorder %s30, 1
    %p399 = por %p397, %p398
    %p401 = scmp.ne.s32.totalorder %s384, %s400
    %p402 = scmp.eq.s32.totalorder %s30, 0
    %p403 = por %p401, %p402
    %s404 = ssub.s32 %s24, %s31
    %p405 = scmp.eq.s32.totalorder %s404, 0
    %s407 = sadd.s32 %s406, 1
    %s408 = scalar_select %p405, %s406, %s407
    %p411 = pneg %p405
    %p412 = scmp.eq.s32.totalorder %s24, 1
    %p413 = por %p411, %p412
    %p414 = scmp.ne.s32.totalorder %s406, %s409
    %p415 = scmp.eq.s32.totalorder %s24, 0
    %p416 = por %p414, %p415
    %p417 = scmp.ne.s32.totalorder %s406, %s409
    %p418 = scmp.eq.s32.totalorder %s29, 1
    %p419 = por %p417, %p418
    %p420 = scmp.ne.s32.totalorder %s409, %s410
    %p421 = scmp.eq.s32.totalorder %s29, 0
    %p422 = por %p420, %p421
    %p423 = scmp.ne.s32.totalorder %s409, %s410
    %p424 = scmp.eq.s32.totalorder %s30, 1
    %p425 = por %p423, %p424
    %p427 = scmp.ne.s32.totalorder %s410, %s426
    %p428 = scmp.eq.s32.totalorder %s30, 0
    %p429 = por %p427, %p428
    %p430 = scmp.le.s32.totalorder 1, %s24
    %p431 = scmp.lt.s32.totalorder %s24, 3
    %p432 = pnand %p430, %p431
    %p433 = pneg %p432
    // Predicated region
    $region9: #{_ssd_forward.1} parent=5 // pred_check
      _
    $region10: #{_ssd_forward.1} parent=5 // pred_check_branch
      %435 = sbr.rel (%p432) target = $region12
    $region11: #{_ssd_forward.1} parent=5 // pred_region
      %s436 = ssub.s32 %s24, 1
      // Predicated region
      $region13: #{_ssd_forward.1} parent=11 // pred_check
        %p437 = pneg %p71
      $region14: #{_ssd_forward.1} parent=11 // pred_check_branch
        %439 = sbr.rel (%p437) target = $region16
      $region15: #{_ssd_forward.1} parent=11 // pred_region
        _
      $region16: #{_ssd_forward.1} parent=11 // pred_fallthru
        _
      // Predicated region
      $region17: #{_ssd_forward.1} parent=11 // pred_check
        %p440 = pneg %p92
      $region18: #{_ssd_forward.1} parent=11 // pred_check_branch
        %442 = sbr.rel (%p440) target = $region20
      $region19: #{_ssd_forward.1} parent=11 // pred_region
        _
      $region20: #{_ssd_forward.1} parent=11 // pred_fallthru
        _
      // Predicated region
      $region21: #{_ssd_forward.1} parent=11 // pred_check
        %p443 = pneg %p113
      $region22: #{_ssd_forward.1} parent=11 // pred_check_branch
        %445 = sbr.rel (%p443) target = $region24
      $region23: #{_ssd_forward.1} parent=11 // pred_region
        _
      $region24: #{_ssd_forward.1} parent=11 // pred_fallthru
        _
      // Predicated region
      $region25: #{_ssd_forward.1} parent=11 // pred_check
        %p446 = pneg %p134
      $region26: #{_ssd_forward.1} parent=11 // pred_check_branch
        %448 = sbr.rel (%p446) target = $region28
      $region27: #{_ssd_forward.1} parent=11 // pred_region
        _
      $region28: #{_ssd_forward.1} parent=11 // pred_fallthru
        _
      // Predicated region
      $region29: #{_ssd_forward.1} parent=11 // pred_check
        %p449 = pneg %p155
      $region30: #{_ssd_forward.1} parent=11 // pred_check_branch
        %451 = sbr.rel (%p449) target = $region32
      $region31: #{_ssd_forward.1} parent=11 // pred_region
        _
      $region32: #{_ssd_forward.1} parent=11 // pred_fallthru
        _
      // Predicated region
      $region33: #{_ssd_forward.1} parent=11 // pred_check
        %p452 = pneg %p176
      $region34: #{_ssd_forward.1} parent=11 // pred_check_branch
        %454 = sbr.rel (%p452) target = $region36
      $region35: #{_ssd_forward.1} parent=11 // pred_region
        _
      $region36: #{_ssd_forward.1} parent=11 // pred_fallthru
        _
      // Predicated region
      $region37: #{_ssd_forward.1} parent=11 // pred_check
        %p455 = pneg %p197
      $region38: #{_ssd_forward.1} parent=11 // pred_check_branch
        %457 = sbr.rel (%p455) target = $region40
      $region39: #{_ssd_forward.1} parent=11 // pred_region
        _
      $region40: #{_ssd_forward.1} parent=11 // pred_fallthru
        _
      // Predicated region
      $region41: #{_ssd_forward.1} parent=11 // pred_check
        %p458 = pneg %p218
      $region42: #{_ssd_forward.1} parent=11 // pred_check_branch
        %460 = sbr.rel (%p458) target = $region44
      $region43: #{_ssd_forward.1} parent=11 // pred_region
        _
      $region44: #{_ssd_forward.1} parent=11 // pred_fallthru
        _
      // Predicated region
      $region45: #{_ssd_forward.1} parent=11 // pred_check
        %p461 = pneg %p239
      $region46: #{_ssd_forward.1} parent=11 // pred_check_branch
        %463 = sbr.rel (%p461) target = $region48
      $region47: #{_ssd_forward.1} parent=11 // pred_region
        _
      $region48: #{_ssd_forward.1} parent=11 // pred_fallthru
        _
      // Predicated region
      $region49: #{_ssd_forward.1} parent=11 // pred_check
        %p464 = pneg %p260
      $region50: #{_ssd_forward.1} parent=11 // pred_check_branch
        %466 = sbr.rel (%p464) target = $region52
      $region51: #{_ssd_forward.1} parent=11 // pred_region
        _
      $region52: #{_ssd_forward.1} parent=11 // pred_fallthru
        _
      // Predicated region
      $region53: #{_ssd_forward.1} parent=11 // pred_check
        %p467 = pneg %p281
      $region54: #{_ssd_forward.1} parent=11 // pred_check_branch
        %469 = sbr.rel (%p467) target = $region56
      $region55: #{_ssd_forward.1} parent=11 // pred_region
        _
      $region56: #{_ssd_forward.1} parent=11 // pred_fallthru
        _
      // Predicated region
      $region57: #{_ssd_forward.1} parent=11 // pred_check
        %p470 = pneg %p302
      $region58: #{_ssd_forward.1} parent=11 // pred_check_branch
        %472 = sbr.rel (%p470) target = $region60
      $region59: #{_ssd_forward.1} parent=11 // pred_region
        _
      $region60: #{_ssd_forward.1} parent=11 // pred_fallthru
        _
      // Predicated region
      $region61: #{_ssd_forward.1} parent=11 // pred_check
        %p473 = pneg %p323
      $region62: #{_ssd_forward.1} parent=11 // pred_check_branch
        %475 = sbr.rel (%p473) target = $region64
      $region63: #{_ssd_forward.1} parent=11 // pred_region
        _
      $region64: #{_ssd_forward.1} parent=11 // pred_fallthru
        _
      // Predicated region
      $region65: #{_ssd_forward.1} parent=11 // pred_check
        %p476 = pneg %p344
      $region66: #{_ssd_forward.1} parent=11 // pred_check_branch
        %478 = sbr.rel (%p476) target = $region68
      $region67: #{_ssd_forward.1} parent=11 // pred_region
        _
      $region68: #{_ssd_forward.1} parent=11 // pred_fallthru
        _
    $region12: #{_ssd_forward.1} parent=5 // pred_fallthru
      _
    %p479 = scmp.lt.s32.totalorder %s24, 2
    // Predicated region
    $region69: #{_ssd_forward.1} parent=5 // pred_check
      %p480 = pneg %p479
    $region70: #{_ssd_forward.1} parent=5 // pred_check_branch
      %482 = sbr.rel (%p480) target = $region72
    $region71: #{_ssd_forward.1} parent=5 // pred_region
      // Predicated region
      $region73: #{_ssd_forward.1} parent=71 // pred_check
        %p483 = pneg %p44
      $region74: #{_ssd_forward.1} parent=71 // pred_check_branch
        %485 = sbr.rel (%p483) target = $region76
      $region75: #{_ssd_forward.1} parent=71 // pred_region
        %p486 = scmp.lt.s32.totalorder %s24, 1
        %s487 = scalar_select %p486, %s24, 1
        %s488 = smul.addr %s487, 2
        %s489 = smul.addr %s488, 4
        %s490 = scalar_lea.vmem %s0, %s489
      $region76: #{_ssd_forward.1} parent=71 // pred_fallthru
        _
    $region72: #{_ssd_forward.1} parent=5 // pred_fallthru
      _
    %p491 = scmp.le.s32.totalorder 1, %s24
    %p492 = scmp.lt.s32.totalorder %s24, 3
    %p493 = pnand %p491, %p492
    %p494 = pneg %p493
    // Predicated region
    $region77: #{_ssd_forward.1} parent=5 // pred_check
      _
    $region78: #{_ssd_forward.1} parent=5 // pred_check_branch
      %496 = sbr.rel (%p493) target = $region80
    $region79: #{_ssd_forward.1} parent=5 // pred_region
      %s497 = ssub.s32 %s24, 1
      %p498 = scmp.lt.s32.totalorder %s29, 1
      %s499 = scalar_select %p498, %s29, 1
      %s500 = smul.addr %s499, 2
      %s501 = smul.addr %s500, 4
      %s502 = scalar_lea.vmem %s0, %s501
      %p503 = pneg %p50
      %p504 = pneg %p47
      %p505 = pneg %p71
      %p506 = pneg %p68
      %p507 = pneg %p92
      %p508 = pneg %p89
      %p509 = pneg %p113
      %p510 = pneg %p110
      %p511 = pneg %p134
      %p512 = pneg %p131
      %p513 = pneg %p155
      %p514 = pneg %p152
      %p515 = pneg %p176
      %p516 = pneg %p173
      %p517 = pneg %p197
      %p518 = pneg %p194
      %p519 = pneg %p218
      %p520 = pneg %p215
      %p521 = pneg %p239
      %p522 = pneg %p236
      %p523 = pneg %p260
      %p524 = pneg %p257
      %p525 = pneg %p281
      %p526 = pneg %p278
      %p527 = pneg %p302
      %p528 = pneg %p299
      %p529 = pneg %p323
      %p530 = pneg %p320
      %p531 = pneg %p344
      %p532 = pneg %p341
      %p533 = pneg %p370
      %p534 = pneg %p367
      %p535 = scmp.lt.s32.totalorder %s29, 1
      %s536 = scalar_select %p535, %s29, 1
      %s537 = smul.addr %s536, 10
      %s538 = smul.addr %s537, 8
      %s539 = scalar_lea.vmem %s15, %s538
      %p540 = pneg %p396
      %p541 = pneg %p393
      %p542 = scmp.lt.s32.totalorder %s29, 1
      %s543 = scalar_select %p542, %s29, 1
      %s544 = smul.addr %s543, 3
      %s545 = smul.addr %s544, 8
      %s546 = scalar_lea.vmem %s16, %s545
      %p547 = pneg %p422
      %p548 = pneg %p419
      %p549 = scmp.lt.s32.totalorder %s29, 1
      %s550 = scalar_select %p549, %s29, 1
      %s551 = smul.addr %s550, 2
      %s552 = smul.addr %s551, 4
      %s553 = scalar_lea.vmem %s17, %s552
      %p554 = scmp.lt.s32.totalorder %s29, 1
      %s555 = scalar_select %p554, %s29, 1
      %s556 = smul.addr %s555, 2
      %s557 = smul.addr %s556, 4
      %s558 = scalar_lea.vmem %s0, %s557
      %p559 = scmp.lt.s32.totalorder %s29, 1
      %s560 = scalar_select %p559, %s29, 1
      %s561 = smul.addr %s560, 10
      %s562 = smul.addr %s561, 8
      %s563 = scalar_lea.vmem %s15, %s562
      %p564 = scmp.lt.s32.totalorder %s29, 1
      %s565 = scalar_select %p564, %s29, 1
      %s566 = smul.addr %s565, 3
      %s567 = smul.addr %s566, 8
      %s568 = scalar_lea.vmem %s16, %s567
      %p569 = scmp.lt.s32.totalorder %s29, 1
      %s570 = scalar_select %p569, %s29, 1
      %s571 = smul.addr %s570, 2
      %s572 = smul.addr %s571, 4
      %s573 = scalar_lea.vmem %s17, %s572
      %v575 = vld [vmem:[%s558] sm:$0xf]
      %v576 = vld [vmem:[%s558 + $0x4] sm:$0xf]
      %v577 = vlaneseq
      %v578 = vshrl.u32 %v577, 7
      %v579 = vadd.s32 %v578, 8
      %v580 = vlaneseq
      %v581 = vand.u32 %v580, 127
      %v582 = vadd.s32 %v578, 4294967295
      %v583 = vadd.s32 %v579, 4294967295
      %vm584 = vcmp.eq.s32.totalorder %v581, %v582
      %vm585 = vcmp.eq.s32.totalorder %v581, %v583
      %v586 = vsel %vm584, 1.0, 0.0
      %v587 = vsel %vm585, 1.0, 0.0
      %v588 = vpack.c.bf16 %v587, %v586
      %v591 = vunpack.c.l.b16 %v575
      %v592 = vunpack.c.l.b16 %v576
      %v593 = vpack.c.b16 %v592, %v591
      %vm595 = vcmask 130048
      %v597 = vsel %vm595, %v588, 0
      %599 = vmatprep.subr.bf16.mxu0 0
      %600 = vmatpush1.bf16.msra.mxu0 %v593
      %601 = vmatprep.subr.bf16.mxu0 0
      %602 = vmatpush1.bf16.msra.mxu0 0
      %603 = vmatprep.subr.bf16.mxu0 0
      %604 = vmatpush1.bf16.msra.mxu0 0
      %605 = vmatprep.subr.bf16.mxu0 0
      %606 = vmatpush1.bf16.msra.mxu0 0
      %607 = vmatprep.subr.bf16.mxu0 0
      %608 = vmatpush1.bf16.msra.mxu0 0
      %609 = vmatprep.subr.bf16.mxu0 0
      %610 = vmatpush1.bf16.msra.mxu0 0
      %611 = vmatprep.subr.bf16.mxu0 0
      %612 = vmatpush1.bf16.msra.mxu0 0
      %613 = vmatprep.subr.bf16.mxu0 0
      %614 = vmatpush1.bf16.msra.mxu0 0
      %615 = vmatprep.subr.bf16.mxu0 0
      %616 = vmatpush1.bf16.msra.mxu0 0
      %617 = vmatprep.subr.bf16.mxu0 0
      %618 = vmatpush1.bf16.msra.mxu0 0
      %619 = vmatprep.subr.bf16.mxu0 0
      %620 = vmatpush1.bf16.msra.mxu0 0
      %621 = vmatprep.subr.bf16.mxu0 0
      %622 = vmatpush1.bf16.msra.mxu0 0
      %623 = vmatprep.subr.bf16.mxu0 0
      %624 = vmatpush1.bf16.msra.mxu0 0
      %625 = vmatprep.subr.bf16.mxu0 0
      %626 = vmatpush1.bf16.msra.mxu0 0
      %627 = vmatprep.subr.bf16.mxu0 0
      %628 = vmatpush1.bf16.msra.mxu0 0
      %629 = vmatprep.subr.bf16.mxu0 0
      %630 = vmatpush1.bf16.msra.mxu0 0
      %631 = vmatprep.mubr.bf16.mxu0 0
      %632 = vmatmul.mubr.bf16.gmra.mrb[0].mxu0 %v597
      %v633 = vpop.f32.mrb[0].mxu0
      %v634 = vadd.f32 0.0, %v633
      %v635 = vpop.f32.mrb[0].mxu0
      %v636 = vpop.f32.mrb[0].mxu0
      %v637 = vadd.f32 0.0, %v636
      %v638 = vpop.f32.mrb[0].mxu0
      %639 = vdwg.mxu0
      %v640 = vpack.c.bf16 %v637, %v634
      %v641 = vld [vmem:[%s1] sm:$0xff]
      %v642 = vld [vmem:[%s1 + $0x8] sm:$0xff]
      %v643 = vld [vmem:[%s1 + $0x10] sm:$0xff]
      %v644 = vld [vmem:[%s1 + $0x18] sm:$0xff]
      %v645 = vld [vmem:[%s1 + $0x20] sm:$0xff]
      %v646 = vld [vmem:[%s1 + $0x28] sm:$0xff]
      %v647 = vld [vmem:[%s1 + $0x30] sm:$0xff]
      %v648 = vld [vmem:[%s1 + $0x38] sm:$0xff]
      %vm649 = vcmp.eq.s32.totalorder %v581, %v578
      %vm650 = vcmp.eq.s32.totalorder %v581, %v579
      %v651 = vsel %vm649, 1.0, 0.0
      %v652 = vsel %vm650, 1.0, 0.0
      %v653 = vpack.c.bf16 %v652, %v651
      %v655 = vsel %vm595, %v653, 0
      %657 = vmatprep.subr.bf16.mxu0 0
      %658 = vmatpush1.bf16.msra.mxu0 %v593
      %659 = vmatprep.subr.bf16.mxu0 0
      %660 = vmatpush1.bf16.msra.mxu0 0
      %661 = vmatprep.subr.bf16.mxu0 0
      %662 = vmatpush1.bf16.msra.mxu0 0
      %663 = vmatprep.subr.bf16.mxu0 0
      %664 = vmatpush1.bf16.msra.mxu0 0
      %665 = vmatprep.subr.bf16.mxu0 0
      %666 = vmatpush1.bf16.msra.mxu0 0
      %667 = vmatprep.subr.bf16.mxu0 0
      %668 = vmatpush1.bf16.msra.mxu0 0
      %669 = vmatprep.subr.bf16.mxu0 0
      %670 = vmatpush1.bf16.msra.mxu0 0
      %671 = vmatprep.subr.bf16.mxu0 0
      %672 = vmatpush1.bf16.msra.mxu0 0
      %673 = vmatprep.subr.bf16.mxu0 0
      %674 = vmatpush1.bf16.msra.mxu0 0
      %675 = vmatprep.subr.bf16.mxu0 0
      %676 = vmatpush1.bf16.msra.mxu0 0
      %677 = vmatprep.subr.bf16.mxu0 0
      %678 = vmatpush1.bf16.msra.mxu0 0
      %679 = vmatprep.subr.bf16.mxu0 0
      %680 = vmatpush1.bf16.msra.mxu0 0
      %681 = vmatprep.subr.bf16.mxu0 0
      %682 = vmatpush1.bf16.msra.mxu0 0
      %683 = vmatprep.subr.bf16.mxu0 0
      %684 = vmatpush1.bf16.msra.mxu0 0
      %685 = vmatprep.subr.bf16.mxu0 0
      %686 = vmatpush1.bf16.msra.mxu0 0
      %687 = vmatprep.subr.bf16.mxu0 0
      %688 = vmatpush1.bf16.msra.mxu0 0
      %689 = vmatprep.mubr.bf16.mxu0 0
      %690 = vmatmul.mubr.bf16.gmra.mrb[0].mxu0 %v655
      %v691 = vpop.f32.mrb[0].mxu0
      %v692 = vadd.f32 0.0, %v691
      %v693 = vpop.f32.mrb[0].mxu0
      %v694 = vpop.f32.mrb[0].mxu0
      %v695 = vadd.f32 0.0, %v694
      %v696 = vpop.f32.mrb[0].mxu0
      %697 = vdwg.mxu0
      %v698 = vpack.c.bf16 %v695, %v692
      %s699 = scalar_lea.vmem %s1, 64
      %v700 = vld [vmem:[%s699] sm:$0xff]
      %v701 = vld [vmem:[%s699 + $0x8] sm:$0xff]
      %v702 = vld [vmem:[%s699 + $0x10] sm:$0xff]
      %v703 = vld [vmem:[%s699 + $0x18] sm:$0xff]
      %v704 = vld [vmem:[%s699 + $0x20] sm:$0xff]
      %v705 = vld [vmem:[%s699 + $0x28] sm:$0xff]
      %v706 = vld [vmem:[%s699 + $0x30] sm:$0xff]
      %v707 = vld [vmem:[%s699 + $0x38] sm:$0xff]
      %v716 = vunpack.c.l.b16 %v700
      %v717 = vunpack.c.h.b16 %v700
      %v718 = vunpack.c.l.b16 %v701
      %v719 = vunpack.c.h.b16 %v701
      %v720 = vunpack.c.l.b16 %v702
      %v721 = vunpack.c.h.b16 %v702
      %v722 = vunpack.c.l.b16 %v703
      %v723 = vunpack.c.h.b16 %v703
      %v724 = vunpack.c.l.b16 %v704
      %v725 = vunpack.c.h.b16 %v704
      %v726 = vunpack.c.l.b16 %v705
      %v727 = vunpack.c.h.b16 %v705
      %v728 = vunpack.c.l.b16 %v706
      %v729 = vunpack.c.h.b16 %v706
      %v730 = vunpack.c.l.b16 %v707
      %v731 = vunpack.c.h.b16 %v707
      %v732 = vpack.c.b16 %v718, %v716
      %v733 = vpack.c.b16 %v719, %v717
      %v734 = vpack.c.b16 %v722, %v720
      %v735 = vpack.c.b16 %v723, %v721
      %v736 = vpack.c.b16 %v726, %v724
      %v737 = vpack.c.b16 %v727, %v725
      %v738 = vpack.c.b16 %v730, %v728
      %v739 = vpack.c.b16 %v731, %v729
      %vm748 = vcmask 523264
      %v750 = vsel %vm748, %v698, 0
      %752 = vmatprep.subr.bf16.mxu0 %v733
      %753 = vmatpush1.bf16.msra.mxu0 %v732
      %754 = vmatprep.subr.bf16.mxu0 %v735
      %755 = vmatpush1.bf16.msra.mxu0 %v734
      %756 = vmatprep.subr.bf16.mxu0 %v737
      %757 = vmatpush1.bf16.msra.mxu0 %v736
      %758 = vmatprep.subr.bf16.mxu0 %v739
      %759 = vmatpush1.bf16.msra.mxu0 %v738
      %760 = vmatprep.subr.bf16.mxu0 0
      %761 = vmatpush1.bf16.msra.mxu0 0
      %762 = vmatprep.subr.bf16.mxu0 0
      %763 = vmatpush1.bf16.msra.mxu0 0
      %764 = vmatprep.subr.bf16.mxu0 0
      %765 = vmatpush1.bf16.msra.mxu0 0
      %766 = vmatprep.subr.bf16.mxu0 0
      %767 = vmatpush1.bf16.msra.mxu0 0
      %768 = vmatprep.subr.bf16.mxu0 0
      %769 = vmatpush1.bf16.msra.mxu0 0
      %770 = vmatprep.subr.bf16.mxu0 0
      %771 = vmatpush1.bf16.msra.mxu0 0
      %772 = vmatprep.subr.bf16.mxu0 0
      %773 = vmatpush1.bf16.msra.mxu0 0
      %774 = vmatprep.subr.bf16.mxu0 0
      %775 = vmatpush1.bf16.msra.mxu0 0
      %776 = vmatprep.subr.bf16.mxu0 0
      %777 = vmatpush1.bf16.msra.mxu0 0
      %778 = vmatprep.subr.bf16.mxu0 0
      %779 = vmatpush1.bf16.msra.mxu0 0
      %780 = vmatprep.subr.bf16.mxu0 0
      %781 = vmatpush1.bf16.msra.mxu0 0
      %782 = vmatprep.subr.bf16.mxu0 0
      %783 = vmatpush1.bf16.msra.mxu0 0
      %784 = vmatprep.mubr.bf16.mxu0 0
      %785 = vmatmul.mubr.bf16.gmra.mrb[0].mxu0 %v750
      %v786 = vpop.f32.mrb[0].mxu0
      %v787 = vadd.f32 0.0, %v786
      %v788 = vpop.f32.mrb[0].mxu0
      %v789 = vadd.f32 0.0, %v788
      %v790 = vpop.f32.mrb[0].mxu0
      %v791 = vadd.f32 0.0, %v790
      %v792 = vpop.f32.mrb[0].mxu0
      %v793 = vadd.f32 0.0, %v792
      %794 = vdwg.mxu0
      %v803 = vunpack.c.l.b16 %v641
      %v804 = vunpack.c.h.b16 %v641
      %v805 = vunpack.c.l.b16 %v642
      %v806 = vunpack.c.h.b16 %v642
      %v807 = vunpack.c.l.b16 %v643
      %v808 = vunpack.c.h.b16 %v643
      %v809 = vunpack.c.l.b16 %v644
      %v810 = vunpack.c.h.b16 %v644
      %v811 = vunpack.c.l.b16 %v645
      %v812 = vunpack.c.h.b16 %v645
      %v813 = vunpack.c.l.b16 %v646
      %v814 = vunpack.c.h.b16 %v646
      %v815 = vunpack.c.l.b16 %v647
      %v816 = vunpack.c.h.b16 %v647
      %v817 = vunpack.c.l.b16 %v648
      %v818 = vunpack.c.h.b16 %v648
      %v819 = vpack.c.b16 %v805, %v803
      %v820 = vpack.c.b16 %v806, %v804
      %v821 = vpack.c.b16 %v809, %v807
      %v822 = vpack.c.b16 %v810, %v808
      %v823 = vpack.c.b16 %v813, %v811
      %v824 = vpack.c.b16 %v814, %v812
      %v825 = vpack.c.b16 %v817, %v815
      %v826 = vpack.c.b16 %v818, %v816
      %v836 = vsel %vm748, %v640, 0
      %838 = vmatprep.subr.bf16.mxu0 %v820
      %839 = vmatpush1.bf16.msra.mxu0 %v819
      %840 = vmatprep.subr.bf16.mxu0 %v822
      %841 = vmatpush1.bf16.msra.mxu0 %v821
      %842 = vmatprep.subr.bf16.mxu0 %v824
      %843 = vmatpush1.bf16.msra.mxu0 %v823
      %844 = vmatprep.subr.bf16.mxu0 %v826
      %845 = vmatpush1.bf16.msra.mxu0 %v825
      %846 = vmatprep.subr.bf16.mxu0 0
      %847 = vmatpush1.bf16.msra.mxu0 0
      %848 = vmatprep.subr.bf16.mxu0 0
      %849 = vmatpush1.bf16.msra.mxu0 0
      %850 = vmatprep.subr.bf16.mxu0 0
      %851 = vmatpush1.bf16.msra.mxu0 0
      %852 = vmatprep.subr.bf16.mxu0 0
      %853 = vmatpush1.bf16.msra.mxu0 0
      %854 = vmatprep.subr.bf16.mxu0 0
      %855 = vmatpush1.bf16.msra.mxu0 0
      %856 = vmatprep.subr.bf16.mxu0 0
      %857 = vmatpush1.bf16.msra.mxu0 0
      %858 = vmatprep.subr.bf16.mxu0 0
      %859 = vmatpush1.bf16.msra.mxu0 0
      %860 = vmatprep.subr.bf16.mxu0 0
      %861 = vmatpush1.bf16.msra.mxu0 0
      %862 = vmatprep.subr.bf16.mxu0 0
      %863 = vmatpush1.bf16.msra.mxu0 0
      %864 = vmatprep.subr.bf16.mxu0 0
      %865 = vmatpush1.bf16.msra.mxu0 0
      %866 = vmatprep.subr.bf16.mxu0 0
      %867 = vmatpush1.bf16.msra.mxu0 0
      %868 = vmatprep.subr.bf16.mxu0 0
      %869 = vmatpush1.bf16.msra.mxu0 0
      %870 = vmatprep.mubr.bf16.mxu0 0
      %871 = vmatmul.mubr.bf16.gmra.mrb[0].mxu0 %v836
      %v872 = vpop.f32.mrb[0].mxu0
      %v873 = vadd.f32 %v787, %v872
      %v874 = vpop.f32.mrb[0].mxu0
      %v875 = vadd.f32 %v789, %v874
      %v876 = vpop.f32.mrb[0].mxu0
      %v877 = vadd.f32 %v791, %v876
      %v878 = vpop.f32.mrb[0].mxu0
      %v879 = vadd.f32 %v793, %v878
      %880 = vdwg.mxu0
      %v881 = vadd.s32 %v578, 1
      %v882 = vadd.s32 %v579, 1
      %vm883 = vcmp.eq.s32.totalorder %v581, %v881
      %vm884 = vcmp.eq.s32.totalorder %v581, %v882
      %v885 = vsel %vm883, 1.0, 0.0
      %v886 = vsel %vm884, 1.0, 0.0
      %v887 = vpack.c.bf16 %v886, %v885
      %v889 = vsel %vm595, %v887, 0
      %891 = vmatprep.subr.bf16.mxu0 0
      %892 = vmatpush1.bf16.msra.mxu0 %v593
      %893 = vmatprep.subr.bf16.mxu0 0
      %894 = vmatpush1.bf16.msra.mxu0 0
      %895 = vmatprep.subr.bf16.mxu0 0
      %896 = vmatpush1.bf16.msra.mxu0 0
      %897 = vmatprep.subr.bf16.mxu0 0
      %898 = vmatpush1.bf16.msra.mxu0 0
      %899 = vmatprep.subr.bf16.mxu0 0
      %900 = vmatpush1.bf16.msra.mxu0 0
      %901 = vmatprep.subr.bf16.mxu0 0
      %902 = vmatpush1.bf16.msra.mxu0 0
      %903 = vmatprep.subr.bf16.mxu0 0
      %904 = vmatpush1.bf16.msra.mxu0 0
      %905 = vmatprep.subr.bf16.mxu0 0
      %906 = vmatpush1.bf16.msra.mxu0 0
      %907 = vmatprep.subr.bf16.mxu0 0
      %908 = vmatpush1.bf16.msra.mxu0 0
      %909 = vmatprep.subr.bf16.mxu0 0
      %910 = vmatpush1.bf16.msra.mxu0 0
      %911 = vmatprep.subr.bf16.mxu0 0
      %912 = vmatpush1.bf16.msra.mxu0 0
      %913 = vmatprep.subr.bf16.mxu0 0
      %914 = vmatpush1.bf16.msra.mxu0 0
      %915 = vmatprep.subr.bf16.mxu0 0
      %916 = vmatpush1.bf16.msra.mxu0 0
      %917 = vmatprep.subr.bf16.mxu0 0
      %918 = vmatpush1.bf16.msra.mxu0 0
      %919 = vmatprep.subr.bf16.mxu0 0
      %920 = vmatpush1.bf16.msra.mxu0 0
      %921 = vmatprep.subr.bf16.mxu0 0
      %922 = vmatpush1.bf16.msra.mxu0 0
      %923 = vmatprep.mubr.bf16.mxu0 0
      %924 = vmatmul.mubr.bf16.gmra.mrb[0].mxu0 %v889
      %v925 = vpop.f32.mrb[0].mxu0
      %v926 = vadd.f32 0.0, %v925
      %v927 = vpop.f32.mrb[0].mxu0
      %v928 = vpop.f32.mrb[0].mxu0
      %v929 = vadd.f32 0.0, %v928
      %v930 = vpop.f32.mrb[0].mxu0
      %931 = vdwg.mxu0
      %v932 = vpack.c.bf16 %v929, %v926
      %s933 = scalar_lea.vmem %s1, 128
      %v934 = vld [vmem:[%s933] sm:$0xff]
      %v935 = vld [vmem:[%s933 + $0x8] sm:$0xff]
      %v936 = vld [vmem:[%s933 + $0x10] sm:$0xff]
      %v937 = vld [vmem:[%s933 + $0x18] sm:$0xff]
      %v938 = vld [vmem:[%s933 + $0x20] sm:$0xff]
      %v939 = vld [vmem:[%s933 + $0x28] sm:$0xff]
      %v940 = vld [vmem:[%s933 + $0x30] sm:$0xff]
      %v941 = vld [vmem:[%s933 + $0x38] sm:$0xff]
      %v950 = vunpack.c.l.b16 %v934
      %v951 = vunpack.c.h.b16 %v934
      %v952 = vunpack.c.l.b16 %v935
      %v953 = vunpack.c.h.b16 %v935
      %v954 = vunpack.c.l.b16 %v936
      %v955 = vunpack.c.h.b16 %v936
      %v956 = vunpack.c.l.b16 %v937
      %v957 = vunpack.c.h.b16 %v937
      %v958 = vunpack.c.l.b16 %v938
      %v959 = vunpack.c.h.b16 %v938
      %v960 = vunpack.c.l.b16 %v939
      %v961 = vunpack.c.h.b16 %v939
      %v962 = vunpack.c.l.b16 %v940
      %v963 = vunpack.c.h.b16 %v940
      %v964 = vunpack.c.l.b16 %v941
      %v965 = vunpack.c.h.b16 %v941
      %v966 = vpack.c.b16 %v952, %v950
      %v967 = vpack.c.b16 %v953, %v951
      %v968 = vpack.c.b16 %v956, %v954
      %v969 = vpack.c.b16 %v957, %v955
      %v970 = vpack.c.b16 %v960, %v958
      %v971 = vpack.c.b16 %v961, %v959
      %v972 = vpack.c.b16 %v964, %v962
      %v973 = vpack.c.b16 %v965, %v963
      %v983 = vsel %vm748, %v932, 0
      %985 = vmatprep.subr.bf16.mxu0 %v967
      %986 = vmatpush1.bf16.msra.mxu0 %v966
      %987 = vmatprep.subr.bf16.mxu0 %v969
      %988 = vmatpush1.bf16.msra.mxu0 %v968
      %989 = vmatprep.subr.bf16.mxu0 %v971
      %990 = vmatpush1.bf16.msra.mxu0 %v970
      %991 = vmatprep.subr.bf16.mxu0 %v973
      %992 = vmatpush1.bf16.msra.mxu0 %v972
      %993 = vmatprep.subr.bf16.mxu0 0
      %994 = vmatpush1.bf16.msra.mxu0 0
      %995 = vmatprep.subr.bf16.mxu0 0
      %996 = vmatpush1.bf16.msra.mxu0 0
      %997 = vmatprep.subr.bf16.mxu0 0
      %998 = vmatpush1.bf16.msra.mxu0 0
      %999 = vmatprep.subr.bf16.mxu0 0
      %1000 = vmatpush1.bf16.msra.mxu0 0
      %1001 = vmatprep.subr.bf16.mxu0 0
      %1002 = vmatpush1.bf16.msra.mxu0 0
      %1003 = vmatprep.subr.bf16.mxu0 0
      %1004 = vmatpush1.bf16.msra.mxu0 0
      %1005 = vmatprep.subr.bf16.mxu0 0
      %1006 = vmatpush1.bf16.msra.mxu0 0
      %1007 = vmatprep.subr.bf16.mxu0 0
      %1008 = vmatpush1.bf16.msra.mxu0 0
      %1009 = vmatprep.subr.bf16.mxu0 0
      %1010 = vmatpush1.bf16.msra.mxu0 0
      %1011 = vmatprep.subr.bf16.mxu0 0
      %1012 = vmatpush1.bf16.msra.mxu0 0
      %1013 = vmatprep.subr.bf16.mxu0 0
      %1014 = vmatpush1.bf16.msra.mxu0 0
      %1015 = vmatprep.subr.bf16.mxu0 0
      %1016 = vmatpush1.bf16.msra.mxu0 0
      %1017 = vmatprep.mubr.bf16.mxu0 0
      %1018 = vmatmul.mubr.bf16.gmra.mrb[0].mxu0 %v983
      %v1019 = vpop.f32.mrb[0].mxu0
      %v1020 = vadd.f32 0.0, %v1019
      %v1021 = vpop.f32.mrb[0].mxu0
      %v1022 = vadd.f32 0.0, %v1021
      %v1023 = vpop.f32.mrb[0].mxu0
      %v1024 = vadd.f32 0.0, %v1023
      %v1025 = vpop.f32.mrb[0].mxu0
      %v1026 = vadd.f32 0.0, %v1025
      %1027 = vdwg.mxu0
      %v1028 = vadd.f32 %v873, %v1020
      %v1029 = vadd.f32 %v875, %v1022
      %v1030 = vadd.f32 %v877, %v1024
      %v1031 = vadd.f32 %v879, %v1026
      %v1032 = vld [vmem:[%s2] sm:$0x3]
      %v1034 = vlaneseq
      %v1035 = vshrl.u32 %v1034, 7
      %v1036 = vsub.s32 0, %v1035
      %v1037 = vrot.slane %v1032, %v1036
      %v1038 = vlaneseq
      %v1039 = vshrl.u32 %v1038, 7
      %v1040 = vsub.s32 1, %v1039
      %v1041 = vrot.slane %v1032, %v1040
      %v1044 = vadd.f32 %v1028, %v1037
      %v1045 = vadd.f32 %v1029, %v1041
      %v1046 = vadd.f32 %v1030, %v1037
      %v1047 = vadd.f32 %v1031, %v1041
      %v1048 = vmax.f32 %v1044, 0.0
      %v1049 = vmax.f32 %v1045, 0.0
      %v1050 = vmax.f32 %v1046, 0.0
      %v1051 = vmax.f32 %v1047, 0.0
      %v1052 = vpack.c.bf16 %v1050, %v1048
      %v1053 = vpack.c.bf16 %v1051, %v1049
      %1054 = vmatprep.subr.bf16.mxu0 %v1053
      %1055 = vmatpush1.bf16.msra.mxu0 %v1052
      %1056 = vmatprep.subr.bf16.mxu0 0
      %1057 = vmatpush1.bf16.msra.mxu0 0
      %1058 = vmatprep.subr.bf16.mxu0 0
      %1059 = vmatpush1.bf16.msra.mxu0 0
      %1060 = vmatprep.subr.bf16.mxu0 0
      %1061 = vmatpush1.bf16.msra.mxu0 0
      %1062 = vmatprep.subr.bf16.mxu0 0
      %1063 = vmatpush1.bf16.msra.mxu0 0
      %1064 = vmatprep.subr.bf16.mxu0 0
      %1065 = vmatpush1.bf16.msra.mxu0 0
      %1066 = vmatprep.subr.bf16.mxu0 0
      %1067 = vmatpush1.bf16.msra.mxu0 0
      %1068 = vmatprep.subr.bf16.mxu0 0
      %1069 = vmatpush1.bf16.msra.mxu0 0
      %1070 = vmatprep.subr.bf16.mxu0 0
      %1071 = vmatpush1.bf16.msra.mxu0 0
      %1072 = vmatprep.subr.bf16.mxu0 0
      %1073 = vmatpush1.bf16.msra.mxu0 0
      %1074 = vmatprep.subr.bf16.mxu0 0
      %1075 = vmatpush1.bf16.msra.mxu0 0
      %1076 = vmatprep.subr.bf16.mxu0 0
      %1077 = vmatpush1.bf16.msra.mxu0 0
      %1078 = vmatprep.subr.bf16.mxu0 0
      %1079 = vmatpush1.bf16.msra.mxu0 0
      %1080 = vmatprep.subr.bf16.mxu0 0
      %1081 = vmatpush1.bf16.msra.mxu0 0
      %1082 = vmatprep.subr.bf16.mxu0 0
      %1083 = vmatpush1.bf16.msra.mxu0 0
      %1084 = vmatprep.subr.bf16.mxu0 0
      %1085 = vmatpush1.bf16.msra.mxu0 0
      %1086 = vmatprep.mubr.bf16.mxu0 0
      %1087 = vmatmul.mubr.bf16.gmra.mrb[0].mxu0 %v597
      %v1088 = vpop.f32.mrb[0].mxu0
      %v1089 = vadd.f32 0.0, %v1088
      %v1090 = vpop.f32.mrb[0].mxu0
      %v1091 = vadd.f32 0.0, %v1090
      %v1092 = vpop.f32.mrb[0].mxu0
      %v1093 = vadd.f32 0.0, %v1092
      %v1094 = vpop.f32.mrb[0].mxu0
      %v1095 = vadd.f32 0.0, %v1094
      %1096 = vdwg.mxu0
      %v1097 = vpack.c.bf16 %v1093, %v1089
      %v1098 = vpack.c.bf16 %v1095, %v1091
      %v1099 = vld [vmem:[%s3] sm:$0xff]
      %v1100 = vld [vmem:[%s3 + $0x8] sm:$0xff]
      %v1101 = vld [vmem:[%s3 + $0x10] sm:$0xff]
      %v1102 = vld [vmem:[%s3 + $0x18] sm:$0xff]
      %v1103 = vld [vmem:[%s3 + $0x20] sm:$0xff]
      %v1104 = vld [vmem:[%s3 + $0x28] sm:$0xff]
      %v1105 = vld [vmem:[%s3 + $0x30] sm:$0xff]
      %v1106 = vld [vmem:[%s3 + $0x38] sm:$0xff]
      %v1107 = vld [vmem:[%s3 + $0x40] sm:$0xff]
      %v1108 = vld [vmem:[%s3 + $0x48] sm:$0xff]
      %v1109 = vld [vmem:[%s3 + $0x50] sm:$0xff]
      %v1110 = vld [vmem:[%s3 + $0x58] sm:$0xff]
      %v1111 = vld [vmem:[%s3 + $0x60] sm:$0xff]
      %v1112 = vld [vmem:[%s3 + $0x68] sm:$0xff]
      %v1113 = vld [vmem:[%s3 + $0x70] sm:$0xff]
      %v1114 = vld [vmem:[%s3 + $0x78] sm:$0xff]
      %v1115 = vld [vmem:[%s3 + $0x80] sm:$0xff]
      %v1116 = vld [vmem:[%s3 + $0x88] sm:$0xff]
      %v1117 = vld [vmem:[%s3 + $0x90] sm:$0xff]
      %v1118 = vld [vmem:[%s3 + $0x98] sm:$0xff]
      %v1119 = vld [vmem:[%s3 + $0xa0] sm:$0xff]
      %v1120 = vld [vmem:[%s3 + $0xa8] sm:$0xff]
      %v1121 = vld [vmem:[%s3 + $0xb0] sm:$0xff]
      %v1122 = vld [vmem:[%s3 + $0xb8] sm:$0xff]
      %v1123 = vld [vmem:[%s3 + $0xc0] sm:$0xff]
      %v1124 = vld [vmem:[%s3 + $0xc8] sm:$0xff]
      %v1125 = vld [vmem:[%s3 + $0xd0] sm:$0xff]
      %v1126 = vld [vmem:[%s3 + $0xd8] sm:$0xff]
      %v1127 = vld [vmem:[%s3 + $0xe0] sm:$0xff]
      %v1128 = vld [vmem:[%s3 + $0xe8] sm:$0xff]
      %v1129 = vld [vmem:[%s3 + $0xf0] sm:$0xff]
      %v1130 = vld [vmem:[%s3 + $0xf8] sm:$0xff]
      %1131 = vmatprep.subr.bf16.mxu0 %v1053
      %1132 = vmatpush1.bf16.msra.mxu0 %v1052
      %1133 = vmatprep.subr.bf16.mxu0 0
      %1134 = vmatpush1.bf16.msra.mxu0 0
      %1135 = vmatprep.subr.bf16.mxu0 0
      %1136 = vmatpush1.bf16.msra.mxu0 0
      %1137 = vmatprep.subr.bf16.mxu0 0
      %1138 = vmatpush1.bf16.msra.mxu0 0
      %1139 = vmatprep.subr.bf16.mxu0 0
      %1140 = vmatpush1.bf16.msra.mxu0 0
      %1141 = vmatprep.subr.bf16.mxu0 0
      %1142 = vmatpush1.bf16.msra.mxu0 0
      %1143 = vmatprep.subr.bf16.mxu0 0
      %1144 = vmatpush1.bf16.msra.mxu0 0
      %1145 = vmatprep.subr.bf16.mxu0 0
      %1146 = vmatpush1.bf16.msra.mxu0 0
      %1147 = vmatprep.subr.bf16.mxu0 0
      %1148 = vmatpush1.bf16.msra.mxu0 0
      %1149 = vmatprep.subr.bf16.mxu0 0
      %1150 = vmatpush1.bf16.msra.mxu0 0
      %1151 = vmatprep.subr.bf16.mxu0 0
      %1152 = vmatpush1.bf16.msra.mxu0 0
      %1153 = vmatprep.subr.bf16.mxu0 0
      %1154 = vmatpush1.bf16.msra.mxu0 0
      %1155 = vmatprep.subr.bf16.mxu0 0
      %1156 = vmatpush1.bf16.msra.mxu0 0
      %1157 = vmatprep.subr.bf16.mxu0 0
      %1158 = vmatpush1.bf16.msra.mxu0 0
      %1159 = vmatprep.subr.bf16.mxu0 0
      %1160 = vmatpush1.bf16.msra.mxu0 0
      %1161 = vmatprep.subr.bf16.mxu0 0
      %1162 = vmatpush1.bf16.msra.mxu0 0
      %1163 = vmatprep.mubr.bf16.mxu0 0
      %1164 = vmatmul.mubr.bf16.gmra.mrb[0].mxu0 %v655
      %v1165 = vpop.f32.mrb[0].mxu0
      %v1166 = vadd.f32 0.0, %v1165
      %v1167 = vpop.f32.mrb[0].mxu0
      %v1168 = vadd.f32 0.0, %v1167
      %v1169 = vpop.f32.mrb[0].mxu0
      %v1170 = vadd.f32 0.0, %v1169
      %v1171 = vpop.f32.mrb[0].mxu0
      %v1172 = vadd.f32 0.0, %v1171
      %1173 = vdwg.mxu0
      %v1174 = vpack.c.bf16 %v1170, %v1166
      %v1175 = vpack.c.bf16 %v1172, %v1168
      %s1176 = scalar_lea.vmem %s3, 256
      %v1177 = vld [vmem:[%s1176] sm:$0xff]
      %v1178 = vld [vmem:[%s1176 + $0x8] sm:$0xff]
      %v1179 = vld [vmem:[%s1176 + $0x10] sm:$0xff]
      %v1180 = vld [vmem:[%s1176 + $0x18] sm:$0xff]
      %v1181 = vld [vmem:[%s1176 + $0x20] sm:$0xff]
      %v1182 = vld [vmem:[%s1176 + $0x28] sm:$0xff]
      %v1183 = vld [vmem:[%s1176 + $0x30] sm:$0xff]
      %v1184 = vld [vmem:[%s1176 + $0x38] sm:$0xff]
      %v1185 = vld [vmem:[%s1176 + $0x40] sm:$0xff]
      %v1186 = vld [vmem:[%s1176 + $0x48] sm:$0xff]
      %v1187 = vld [vmem:[%s1176 + $0x50] sm:$0xff]
      %v1188 = vld [vmem:[%s1176 + $0x58] sm:$0xff]
      %v1189 = vld [vmem:[%s1176 + $0x60] sm:$0xff]
      %v1190 = vld [vmem:[%s1176 + $0x68] sm:$0xff]
      %v1191 = vld [vmem:[%s1176 + $0x70] sm:$0xff]
      %v1192 = vld [vmem:[%s1176 + $0x78] sm:$0xff]
      %v1193 = vld [vmem:[%s1176 + $0x80] sm:$0xff]
      %v1194 = vld [vmem:[%s1176 + $0x88] sm:$0xff]
      %v1195 = vld [vmem:[%s1176 + $0x90] sm:$0xff]
      %v1196 = vld [vmem:[%s1176 + $0x98] sm:$0xff]
      %v1197 = vld [vmem:[%s1176 + $0xa0] sm:$0xff]
      %v1198 = vld [vmem:[%s1176 + $0xa8] sm:$0xff]
      %v1199 = vld [vmem:[%s1176 + $0xb0] sm:$0xff]
      %v1200 = vld [vmem:[%s1176 + $0xb8] sm:$0xff]
      %v1201 = vld [vmem:[%s1176 + $0xc0] sm:$0xff]
      %v1202 = vld [vmem:[%s1176 + $0xc8] sm:$0xff]
      %v1203 = vld [vmem:[%s1176 + $0xd0] sm:$0xff]
      %v1204 = vld [vmem:[%s1176 + $0xd8] sm:$0xff]
      %v1205 = vld [vmem:[%s1176 + $0xe0] sm:$0xff]
      %v1206 = vld [vmem:[%s1176 + $0xe8] sm:$0xff]
      %v1207 = vld [vmem:[%s1176 + $0xf0] sm:$0xff]
      %v1208 = vld [vmem:[%s1176 + $0xf8] sm:$0xff]
      %v1241 = vunpack.c.l.b16 %v1177
      %v1242 = vunpack.c.h.b16 %v1177
      %v1243 = vunpack.c.l.b16 %v1178
      %v1244 = vunpack.c.h.b16 %v1178
      %v1245 = vunpack.c.l.b16 %v1179
      %v1246 = vunpack.c.h.b16 %v1179
      %v1247 = vunpack.c.l.b16 %v1180
      %v1248 = vunpack.c.h.b16 %v1180
      %v1249 = vunpack.c.l.b16 %v1181
      %v1250 = vunpack.c.h.b16 %v1181
      %v1251 = vunpack.c.l.b16 %v1182
      %v1252 = vunpack.c.h.b16 %v1182
      %v1253 = vunpack.c.l.b16 %v1183
      %v1254 = vunpack.c.h.b16 %v1183
      %v1255 = vunpack.c.l.b16 %v1184
      %v1256 = vunpack.c.h.b16 %v1184
      %v1257 = vunpack.c.l.b16 %v1185
      %v1258 = vunpack.c.h.b16 %v1185
      %v1259 = vunpack.c.l.b16 %v1186
      %v1260 = vunpack.c.h.b16 %v1186
      %v1261 = vunpack.c.l.b16 %v1187
      %v1262 = vunpack.c.h.b16 %v1187
      %v1263 = vunpack.c.l.b16 %v1188
      %v1264 = vunpack.c.h.b16 %v1188
      %v1265 = vunpack.c.l.b16 %v1189
      %v1266 = vunpack.c.h.b16 %v1189
      %v1267 = vunpack.c.l.b16 %v1190
      %v1268 = vunpack.c.h.b16 %v1190
      %v1269 = vunpack.c.l.b16 %v1191
      %v1270 = vunpack.c.h.b16 %v1191
      %v1271 = vunpack.c.l.b16 %v1192
      %v1272 = vunpack.c.h.b16 %v1192
      %v1273 = vunpack.c.l.b16 %v1193
      %v1274 = vunpack.c.h.b16 %v1193
      %v1275 = vunpack.c.l.b16 %v1194
      %v1276 = vunpack.c.h.b16 %v1194
      %v1277 = vunpack.c.l.b16 %v1195
      %v1278 = vunpack.c.h.b16 %v1195
      %v1279 = vunpack.c.l.b16 %v1196
      %v1280 = vunpack.c.h.b16 %v1196
      %v1281 = vunpack.c.l.b16 %v1197
      %v1282 = vunpack.c.h.b16 %v1197
      %v1283 = vunpack.c.l.b16 %v1198
      %v1284 = vunpack.c.h.b16 %v1198
      %v1285 = vunpack.c.l.b16 %v1199
      %v1286 = vunpack.c.h.b16 %v1199
      %v1287 = vunpack.c.l.b16 %v1200
      %v1288 = vunpack.c.h.b16 %v1200
      %v1289 = vunpack.c.l.b16 %v1201
      %v1290 = vunpack.c.h.b16 %v1201
      %v1291 = vunpack.c.l.b16 %v1202
      %v1292 = vunpack.c.h.b16 %v1202
      %v1293 = vunpack.c.l.b16 %v1203
      %v1294 = vunpack.c.h.b16 %v1203
      %v1295 = vunpack.c.l.b16 %v1204
      %v1296 = vunpack.c.h.b16 %v1204
      %v1297 = vunpack.c.l.b16 %v1205
      %v1298 = vunpack.c.h.b16 %v1205
      %v1299 = vunpack.c.l.b16 %v1206
      %v1300 = vunpack.c.h.b16 %v1206
      %v1301 = vunpack.c.l.b16 %v1207
      %v1302 = vunpack.c.h.b16 %v1207
      %v1303 = vunpack.c.l.b16 %v1208
      %v1304 = vunpack.c.h.b16 %v1208
      %v1305 = vpack.c.b16 %v1243, %v1241
      %v1306 = vpack.c.b16 %v1244, %v1242
      %v1307 = vpack.c.b16 %v1247, %v1245
      %v1308 = vpack.c.b16 %v1248, %v1246
      %v1309 = vpack.c.b16 %v1251, %v1249
      %v1310 = vpack.c.b16 %v1252, %v1250
      %v1311 = vpack.c.b16 %v1255, %v1253
      %v1312 = vpack.c.b16 %v1256, %v1254
      %v1313 = vpack.c.b16 %v1259, %v1257
      %v1314 = vpack.c.b16 %v1260, %v1258
      %v1315 = vpack.c.b16 %v1263, %v1261
      %v1316 = vpack.c.b16 %v1264, %v1262
      %v1317 = vpack.c.b16 %v1267, %v1265
      %v1318 = vpack.c.b16 %v1268, %v1266
      %v1319 = vpack.c.b16 %v1271, %v1269
      %v1320 = vpack.c.b16 %v1272, %v1270
      %v1321 = vpack.c.b16 %v1275, %v1273
      %v1322 = vpack.c.b16 %v1276, %v1274
      %v1323 = vpack.c.b16 %v1279, %v1277
      %v1324 = vpack.c.b16 %v1280, %v1278
      %v1325 = vpack.c.b16 %v1283, %v1281
      %v1326 = vpack.c.b16 %v1284, %v1282
      %v1327 = vpack.c.b16 %v1287, %v1285
      %v1328 = vpack.c.b16 %v1288, %v1286
      %v1329 = vpack.c.b16 %v1291, %v1289
      %v1330 = vpack.c.b16 %v1292, %v1290
      %v1331 = vpack.c.b16 %v1295, %v1293
      %v1332 = vpack.c.b16 %v1296, %v1294
      %v1333 = vpack.c.b16 %v1299, %v1297
      %v1334 = vpack.c.b16 %v1300, %v1298
      %v1335 = vpack.c.b16 %v1303, %v1301
      %v1336 = vpack.c.b16 %v1304, %v1302
      %1369 = vmatprep.subr.bf16.mxu0 %v1306
      %1370 = vmatpush1.bf16.msra.mxu0 %v1305
      %1371 = vmatprep.subr.bf16.mxu0 %v1308
      %1372 = vmatpush1.bf16.msra.mxu0 %v1307
      %1373 = vmatprep.subr.bf16.mxu0 %v1310
      %1374 = vmatpush1.bf16.msra.mxu0 %v1309
      %1375 = vmatprep.subr.bf16.mxu0 %v1312
      %1376 = vmatpush1.bf16.msra.mxu0 %v1311
      %1377 = vmatprep.subr.bf16.mxu0 %v1314
      %1378 = vmatpush1.bf16.msra.mxu0 %v1313
      %1379 = vmatprep.subr.bf16.mxu0 %v1316
      %1380 = vmatpush1.bf16.msra.mxu0 %v1315
      %1381 = vmatprep.subr.bf16.mxu0 %v1318
      %1382 = vmatpush1.bf16.msra.mxu0 %v1317
      %1383 = vmatprep.subr.bf16.mxu0 %v1320
      %1384 = vmatpush1.bf16.msra.mxu0 %v1319
      %1385 = vmatprep.subr.bf16.mxu0 %v1322
      %1386 = vmatpush1.bf16.msra.mxu0 %v1321
      %1387 = vmatprep.subr.bf16.mxu0 %v1324
      %1388 = vmatpush1.bf16.msra.mxu0 %v1323
      %1389 = vmatprep.subr.bf16.mxu0 %v1326
      %1390 = vmatpush1.bf16.msra.mxu0 %v1325
      %1391 = vmatprep.subr.bf16.mxu0 %v1328
      %1392 = vmatpush1.bf16.msra.mxu0 %v1327
      %1393 = vmatprep.subr.bf16.mxu0 %v1330
      %1394 = vmatpush1.bf16.msra.mxu0 %v1329
      %1395 = vmatprep.subr.bf16.mxu0 %v1332
      %1396 = vmatpush1.bf16.msra.mxu0 %v1331
      %1397 = vmatprep.subr.bf16.mxu0 %v1334
      %1398 = vmatpush1.bf16.msra.mxu0 %v1333
      %1399 = vmatprep.subr.bf16.mxu0 %v1336
      %1400 = vmatpush1.bf16.msra.mxu0 %v1335
      %1401 = vmatprep.mubr.bf16.mxu0 %v1175
      %1402 = vmatmul.mubr.bf16.gmra.mrb[0].mxu0 %v1174
      %v1403 = vpop.f32.mrb[0].mxu0
      %v1404 = vadd.f32 0.0, %v1403
      %v1405 = vpop.f32.mrb[0].mxu0
      %v1406 = vadd.f32 0.0, %v1405
      %v1407 = vpop.f32.mrb[0].mxu0
      %v1408 = vadd.f32 0.0, %v1407
      %v1409 = vpop.f32.mrb[0].mxu0
      %v1410 = vadd.f32 0.0, %v1409
      %1411 = vdwg.mxu0
      %v1444 = vunpack.c.l.b16 %v1099
      %v1445 = vunpack.c.h.b16 %v1099
      %v1446 = vunpack.c.l.b16 %v1100
      %v1447 = vunpack.c.h.b16 %v1100
      %v1448 = vunpack.c.l.b16 %v1101
      %v1449 = vunpack.c.h.b16 %v1101
      %v1450 = vunpack.c.l.b16 %v1102
      %v1451 = vunpack.c.h.b16 %v1102
      %v1452 = vunpack.c.l.b16 %v1103
      %v1453 = vunpack.c.h.b16 %v1103
      %v1454 = vunpack.c.l.b16 %v1104
      %v1455 = vunpack.c.h.b16 %v1104
      %v1456 = vunpack.c.l.b16 %v1105
      %v1457 = vunpack.c.h.b16 %v1105
      %v1458 = vunpack.c.l.b16 %v1106
      %v1459 = vunpack.c.h.b16 %v1106
      %v1460 = vunpack.c.l.b16 %v1107
      %v1461 = vunpack.c.h.b16 %v1107
      %v1462 = vunpack.c.l.b16 %v1108
      %v1463 = vunpack.c.h.b16 %v1108
      %v1464 = vunpack.c.l.b16 %v1109
      %v1465 = vunpack.c.h.b16 %v1109
      %v1466 = vunpack.c.l.b16 %v1110
      %v1467 = vunpack.c.h.b16 %v1110
      %v1468 = vunpack.c.l.b16 %v1111
      %v1469 = vunpack.c.h.b16 %v1111
      %v1470 = vunpack.c.l.b16 %v1112
      %v1471 = vunpack.c.h.b16 %v1112
      %v1472 = vunpack.c.l.b16 %v1113
      %v1473 = vunpack.c.h.b16 %v1113
      %v1474 = vunpack.c.l.b16 %v1114
      %v1475 = vunpack.c.h.b16 %v1114
      %v1476 = vunpack.c.l.b16 %v1115
      %v1477 = vunpack.c.h.b16 %v1115
      %v1478 = vunpack.c.l.b16 %v1116
      %v1479 = vunpack.c.h.b16 %v1116
      %v1480 = vunpack.c.l.b16 %v1117
      %v1481 = vunpack.c.h.b16 %v1117
      %v1482 = vunpack.c.l.b16 %v1118
      %v1483 = vunpack.c.h.b16 %v1118
      %v1484 = vunpack.c.l.b16 %v1119
      %v1485 = vunpack.c.h.b16 %v1119
      %v1486 = vunpack.c.l.b16 %v1120
      %v1487 = vunpack.c.h.b16 %v1120
      %v1488 = vunpack.c.l.b16 %v1121
      %v1489 = vunpack.c.h.b16 %v1121
      %v1490 = vunpack.c.l.b16 %v1122
      %v1491 = vunpack.c.h.b16 %v1122
      %v1492 = vunpack.c.l.b16 %v1123
      %v1493 = vunpack.c.h.b16 %v1123
      %v1494 = vunpack.c.l.b16 %v1124
      %v1495 = vunpack.c.h.b16 %v1124
      %v1496 = vunpack.c.l.b16 %v1125
      %v1497 = vunpack.c.h.b16 %v1125
      %v1498 = vunpack.c.l.b16 %v1126
      %v1499 = vunpack.c.h.b16 %v1126
      %v1500 = vunpack.c.l.b16 %v1127
      %v1501 = vunpack.c.h.b16 %v1127
      %v1502 = vunpack.c.l.b16 %v1128
      %v1503 = vunpack.c.h.b16 %v1128
      %v1504 = vunpack.c.l.b16 %v1129
      %v1505 = vunpack.c.h.b16 %v1129
      %v1506 = vunpack.c.l.b16 %v1130
      %v1507 = vunpack.c.h.b16 %v1130
      %v1508 = vpack.c.b16 %v1446, %v1444
      %v1509 = vpack.c.b16 %v1447, %v1445
      %v1510 = vpack.c.b16 %v1450, %v1448
      %v1511 = vpack.c.b16 %v1451, %v1449
      %v1512 = vpack.c.b16 %v1454, %v1452
      %v1513 = vpack.c.b16 %v1455, %v1453
      %v1514 = vpack.c.b16 %v1458, %v1456
      %v1515 = vpack.c.b16 %v1459, %v1457
      %v1516 = vpack.c.b16 %v1462, %v1460
      %v1517 = vpack.c.b16 %v1463, %v1461
      %v1518 = vpack.c.b16 %v1466, %v1464
      %v1519 = vpack.c.b16 %v1467, %v1465
      %v1520 = vpack.c.b16 %v1470, %v1468
      %v1521 = vpack.c.b16 %v1471, %v1469
      %v1522 = vpack.c.b16 %v1474, %v1472
      %v1523 = vpack.c.b16 %v1475, %v1473
      %v1524 = vpack.c.b16 %v1478, %v1476
      %v1525 = vpack.c.b16 %v1479, %v1477
      %v1526 = vpack.c.b16 %v1482, %v1480
      %v1527 = vpack.c.b16 %v1483, %v1481
      %v1528 = vpack.c.b16 %v1486, %v1484
      %v1529 = vpack.c.b16 %v1487, %v1485
      %v1530 = vpack.c.b16 %v1490, %v1488
      %v1531 = vpack.c.b16 %v1491, %v1489
      %v1532 = vpack.c.b16 %v1494, %v1492
      %v1533 = vpack.c.b16 %v1495, %v1493
      %v1534 = vpack.c.b16 %v1498, %v1496
      %v1535 = vpack.c.b16 %v1499, %v1497
      %v1536 = vpack.c.b16 %v1502, %v1500
      %v1537 = vpack.c.b16 %v1503, %v1501
      %v1538 = vpack.c.b16 %v1506, %v1504
      %v1539 = vpack.c.b16 %v1507, %v1505
      %1572 = vmatprep.subr.bf16.mxu0 %v1509
      %1573 = vmatpush1.bf16.msra.mxu0 %v1508
      %1574 = vmatprep.subr.bf16.mxu0 %v1511
      %1575 = vmatpush1.bf16.msra.mxu0 %v1510
      %1576 = vmatprep.subr.bf16.mxu0 %v1513
      %1577 = vmatpush1.bf16.msra.mxu0 %v1512
      %1578 = vmatprep.subr.bf16.mxu0 %v1515
      %1579 = vmatpush1.bf16.msra.mxu0 %v1514
      %1580 = vmatprep.subr.bf16.mxu0 %v1517
      %1581 = vmatpush1.bf16.msra.mxu0 %v1516
      %1582 = vmatprep.subr.bf16.mxu0 %v1519
      %1583 = vmatpush1.bf16.msra.mxu0 %v1518
      %1584 = vmatprep.subr.bf16.mxu0 %v1521
      %1585 = vmatpush1.bf16.msra.mxu0 %v1520
      %1586 = vmatprep.subr.bf16.mxu0 %v1523
      %1587 = vmatpush1.bf16.msra.mxu0 %v1522
      %1588 = vmatprep.subr.bf16.mxu0 %v1525
      %1589 = vmatpush1.bf16.msra.mxu0 %v1524
      %1590 = vmatprep.subr.bf16.mxu0 %v1527
      %1591 = vmatpush1.bf16.msra.mxu0 %v1526
      %1592 = vmatprep.subr.bf16.mxu0 %v1529
      %1593 = vmatpush1.bf16.msra.mxu0 %v1528
      %1594 = vmatprep.subr.bf16.mxu0 %v1531
      %1595 = vmatpush1.bf16.msra.mxu0 %v1530
      %1596 = vmatprep.subr.bf16.mxu0 %v1533
      %1597 = vmatpush1.bf16.msra.mxu0 %v1532
      %1598 = vmatprep.subr.bf16.mxu0 %v1535
      %1599 = vmatpush1.bf16.msra.mxu0 %v1534
      %1600 = vmatprep.subr.bf16.mxu0 %v1537
      %1601 = vmatpush1.bf16.msra.mxu0 %v1536
      %1602 = vmatprep.subr.bf16.mxu0 %v1539
      %1603 = vmatpush1.bf16.msra.mxu0 %v1538
      %1604 = vmatprep.mubr.bf16.mxu0 %v1098
      %1605 = vmatmul.mubr.bf16.gmra.mrb[0].mxu0 %v1097
      %v1606 = vpop.f32.mrb[0].mxu0
      %v1607 = vadd.f32 %v1404, %v1606
      %v1608 = vpop.f32.mrb[0].mxu0
      %v1609 = vadd.f32 %v1406, %v1608
      %v1610 = vpop.f32.mrb[0].mxu0
      %v1611 = vadd.f32 %v1408, %v1610
      %v1612 = vpop.f32.mrb[0].mxu0
      %v1613 = vadd.f32 %v1410, %v1612
      %1614 = vdwg.mxu0
      %1615 = vmatprep.subr.bf16.mxu0 %v1053
      %1616 = vmatpush1.bf16.msra.mxu0 %v1052
      %1617 = vmatprep.subr.bf16.mxu0 0
      %1618 = vmatpush1.bf16.msra.mxu0 0
      %1619 = vmatprep.subr.bf16.mxu0 0
      %1620 = vmatpush1.bf16.msra.mxu0 0
      %1621 = vmatprep.subr.bf16.mxu0 0
      %1622 = vmatpush1.bf16.msra.mxu0 0
      %1623 = vmatprep.subr.bf16.mxu0 0
      %1624 = vmatpush1.bf16.msra.mxu0 0
      %1625 = vmatprep.subr.bf16.mxu0 0
      %1626 = vmatpush1.bf16.msra.mxu0 0
      %1627 = vmatprep.subr.bf16.mxu0 0
      %1628 = vmatpush1.bf16.msra.mxu0 0
      %1629 = vmatprep.subr.bf16.mxu0 0
      %1630 = vmatpush1.bf16.msra.mxu0 0
      %1631 = vmatprep.subr.bf16.mxu0 0
      %1632 = vmatpush1.bf16.msra.mxu0 0
      %1633 = vmatprep.subr.bf16.mxu0 0
      %1634 = vmatpush1.bf16.msra.mxu0 0
      %1635 = vmatprep.subr.bf16.mxu0 0
      %1636 = vmatpush1.bf16.msra.mxu0 0
      %1637 = vmatprep.subr.bf16.mxu0 0
      %1638 = vmatpush1.bf16.msra.mxu0 0
      %1639 = vmatprep.subr.bf16.mxu0 0
      %1640 = vmatpush1.bf16.msra.mxu0 0
      %1641 = vmatprep.subr.bf16.mxu0 0
      %1642 = vmatpush1.bf16.msra.mxu0 0
      %1643 = vmatprep.subr.bf16.mxu0 0
      %1644 = vmatpush1.bf16.msra.mxu0 0
      %1645 = vmatprep.subr.bf16.mxu0 0
      %1646 = vmatpush1.bf16.msra.mxu0 0
      %1647 = vmatprep.mubr.bf16.mxu0 0
      %1648 = vmatmul.mubr.bf16.gmra.mrb[0].mxu0 %v889
      %v1649 = vpop.f32.mrb[0].mxu0
      %v1650 = vadd.f32 0.0, %v1649
      %v1651 = vpop.f32.mrb[0].mxu0
      %v1652 = vadd.f32 0.0, %v1651
      %v1653 = vpop.f32.mrb[0].mxu0
      %v1654 = vadd.f32 0.0, %v1653
      %v1655 = vpop.f32.mrb[0].mxu0
      %v1656 = vadd.f32 0.0, %v1655
      %1657 = vdwg.mxu0
      %v1658 = vpack.c.bf16 %v1654, %v1650
      %v1659 = vpack.c.bf16 %v1656, %v1652
      %s1660 = scalar_lea.vmem %s3, 512
      %v1661 = vld [vmem:[%s1660] sm:$0xff]
      %v1662 = vld [vmem:[%s1660 + $0x8] sm:$0xff]
      %v1663 = vld [vmem:[%s1660 + $0x10] sm:$0xff]
      %v1664 = vld [vmem:[%s1660 + $0x18] sm:$0xff]
      %v1665 = vld [vmem:[%s1660 + $0x20] sm:$0xff]
      %v1666 = vld [vmem:[%s1660 + $0x28] sm:$0xff]
      %v1667 = vld [vmem:[%s1660 + $0x30] sm:$0xff]
      %v1668 = vld [vmem:[%s1660 + $0x38] sm:$0xff]
      %v1669 = vld [vmem:[%s1660 + $0x40] sm:$0xff]
      %v1670 = vld [vmem:[%s1660 + $0x48] sm:$0xff]
      %v1671 = vld [vmem:[%s1660 + $0x50] sm:$0xff]
      %v1672 = vld [vmem:[%s1660 + $0x58] sm:$0xff]
      %v1673 = vld [vmem:[%s1660 + $0x60] sm:$0xff]
      %v1674 = vld [vmem:[%s1660 + $0x68] sm:$0xff]
      %v1675 = vld [vmem:[%s1660 + $0x70] sm:$0xff]
      %v1676 = vld [vmem:[%s1660 + $0x78] sm:$0xff]
      %v1677 = vld [vmem:[%s1660 + $0x80] sm:$0xff]
      %v1678 = vld [vmem:[%s1660 + $0x88] sm:$0xff]
      %v1679 = vld [vmem:[%s1660 + $0x90] sm:$0xff]
      %v1680 = vld [vmem:[%s1660 + $0x98] sm:$0xff]
      %v1681 = vld [vmem:[%s1660 + $0xa0] sm:$0xff]
      %v1682 = vld [vmem:[%s1660 + $0xa8] sm:$0xff]
      %v1683 = vld [vmem:[%s1660 + $0xb0] sm:$0xff]
      %v1684 = vld [vmem:[%s1660 + $0xb8] sm:$0xff]
      %v1685 = vld [vmem:[%s1660 + $0xc0] sm:$0xff]
      %v1686 = vld [vmem:[%s1660 + $0xc8] sm:$0xff]
      %v1687 = vld [vmem:[%s1660 + $0xd0] sm:$0xff]
      %v1688 = vld [vmem:[%s1660 + $0xd8] sm:$0xff]
      %v1689 = vld [vmem:[%s1660 + $0xe0] sm:$0xff]
      %v1690 = vld [vmem:[%s1660 + $0xe8] sm:$0xff]
      %v1691 = vld [vmem:[%s1660 + $0xf0] sm:$0xff]
      %v1692 = vld [vmem:[%s1660 + $0xf8] sm:$0xff]
      %v1725 = vunpack.c.l.b16 %v1661
      %v1726 = vunpack.c.h.b16 %v1661
      %v1727 = vunpack.c.l.b16 %v1662
      %v1728 = vunpack.c.h.b16 %v1662
      %v1729 = vunpack.c.l.b16 %v1663
      %v1730 = vunpack.c.h.b16 %v1663
      %v1731 = vunpack.c.l.b16 %v1664
      %v1732 = vunpack.c.h.b16 %v1664
      %v1733 = vunpack.c.l.b16 %v1665
      %v1734 = vunpack.c.h.b16 %v1665
      %v1735 = vunpack.c.l.b16 %v1666
      %v1736 = vunpack.c.h.b16 %v1666
      %v1737 = vunpack.c.l.b16 %v1667
      %v1738 = vunpack.c.h.b16 %v1667
      %v1739 = vunpack.c.l.b16 %v1668
      %v1740 = vunpack.c.h.b16 %v1668
      %v1741 = vunpack.c.l.b16 %v1669
      %v1742 = vunpack.c.h.b16 %v1669
      %v1743 = vunpack.c.l.b16 %v1670
      %v1744 = vunpack.c.h.b16 %v1670
      %v1745 = vunpack.c.l.b16 %v1671
      %v1746 = vunpack.c.h.b16 %v1671
      %v1747 = vunpack.c.l.b16 %v1672
      %v1748 = vunpack.c.h.b16 %v1672
      %v1749 = vunpack.c.l.b16 %v1673
      %v1750 = vunpack.c.h.b16 %v1673
      %v1751 = vunpack.c.l.b16 %v1674
      %v1752 = vunpack.c.h.b16 %v1674
      %v1753 = vunpack.c.l.b16 %v1675
      %v1754 = vunpack.c.h.b16 %v1675
      %v1755 = vunpack.c.l.b16 %v1676
      %v1756 = vunpack.c.h.b16 %v1676
      %v1757 = vunpack.c.l.b16 %v1677
      %v1758 = vunpack.c.h.b16 %v1677
      %v1759 = vunpack.c.l.b16 %v1678
      %v1760 = vunpack.c.h.b16 %v1678
      %v1761 = vunpack.c.l.b16 %v1679
      %v1762 = vunpack.c.h.b16 %v1679
      %v1763 = vunpack.c.l.b16 %v1680
      %v1764 = vunpack.c.h.b16 %v1680
      %v1765 = vunpack.c.l.b16 %v1681
      %v1766 = vunpack.c.h.b16 %v1681
      %v1767 = vunpack.c.l.b16 %v1682
      %v1768 = vunpack.c.h.b16 %v1682
      %v1769 = vunpack.c.l.b16 %v1683
      %v1770 = vunpack.c.h.b16 %v1683
      %v1771 = vunpack.c.l.b16 %v1684
      %v1772 = vunpack.c.h.b16 %v1684
      %v1773 = vunpack.c.l.b16 %v1685
      %v1774 = vunpack.c.h.b16 %v1685
      %v1775 = vunpack.c.l.b16 %v1686
      %v1776 = vunpack.c.h.b16 %v1686
      %v1777 = vunpack.c.l.b16 %v1687
      %v1778 = vunpack.c.h.b16 %v1687
      %v1779 = vunpack.c.l.b16 %v1688
      %v1780 = vunpack.c.h.b16 %v1688
      %v1781 = vunpack.c.l.b16 %v1689
      %v1782 = vunpack.c.h.b16 %v1689
      %v1783 = vunpack.c.l.b16 %v1690
      %v1784 = vunpack.c.h.b16 %v1690
      %v1785 = vunpack.c.l.b16 %v1691
      %v1786 = vunpack.c.h.b16 %v1691
      %v1787 = vunpack.c.l.b16 %v1692
      %v1788 = vunpack.c.h.b16 %v1692
      %v1789 = vpack.c.b16 %v1727, %v1725
      %v1790 = vpack.c.b16 %v1728, %v1726
      %v1791 = vpack.c.b16 %v1731, %v1729
      %v1792 = vpack.c.b16 %v1732, %v1730
      %v1793 = vpack.c.b16 %v1735, %v1733
      %v1794 = vpack.c.b16 %v1736, %v1734
      %v1795 = vpack.c.b16 %v1739, %v1737
      %v1796 = vpack.c.b16 %v1740, %v1738
      %v1797 = vpack.c.b16 %v1743, %v1741
      %v1798 = vpack.c.b16 %v1744, %v1742
      %v1799 = vpack.c.b16 %v1747, %v1745
      %v1800 = vpack.c.b16 %v1748, %v1746
      %v1801 = vpack.c.b16 %v1751, %v1749
      %v1802 = vpack.c.b16 %v1752, %v1750
      %v1803 = vpack.c.b16 %v1755, %v1753
      %v1804 = vpack.c.b16 %v1756, %v1754
      %v1805 = vpack.c.b16 %v1759, %v1757
      %v1806 = vpack.c.b16 %v1760, %v1758
      %v1807 = vpack.c.b16 %v1763, %v1761
      %v1808 = vpack.c.b16 %v1764, %v1762
      %v1809 = vpack.c.b16 %v1767, %v1765
      %v1810 = vpack.c.b16 %v1768, %v1766
      %v1811 = vpack.c.b16 %v1771, %v1769
      %v1812 = vpack.c.b16 %v1772, %v1770
      %v1813 = vpack.c.b16 %v1775, %v1773
      %v1814 = vpack.c.b16 %v1776, %v1774
      %v1815 = vpack.c.b16 %v1779, %v1777
      %v1816 = vpack.c.b16 %v1780, %v1778
      %v1817 = vpack.c.b16 %v1783, %v1781
      %v1818 = vpack.c.b16 %v1784, %v1782
      %v1819 = vpack.c.b16 %v1787, %v1785
      %v1820 = vpack.c.b16 %v1788, %v1786
      %1853 = vmatprep.subr.bf16.mxu0 %v1790
      %1854 = vmatpush1.bf16.msra.mxu0 %v1789
      %1855 = vmatprep.subr.bf16.mxu0 %v1792
      %1856 = vmatpush1.bf16.msra.mxu0 %v1791
      %1857 = vmatprep.subr.bf16.mxu0 %v1794
      %1858 = vmatpush1.bf16.msra.mxu0 %v1793
      %1859 = vmatprep.subr.bf16.mxu0 %v1796
      %1860 = vmatpush1.bf16.msra.mxu0 %v1795
      %1861 = vmatprep.subr.bf16.mxu0 %v1798
      %1862 = vmatpush1.bf16.msra.mxu0 %v1797
      %1863 = vmatprep.subr.bf16.mxu0 %v1800
      %1864 = vmatpush1.bf16.msra.mxu0 %v1799
      %1865 = vmatprep.subr.bf16.mxu0 %v1802
      %1866 = vmatpush1.bf16.msra.mxu0 %v1801
      %1867 = vmatprep.subr.bf16.mxu0 %v1804
      %1868 = vmatpush1.bf16.msra.mxu0 %v1803
      %1869 = vmatprep.subr.bf16.mxu0 %v1806
      %1870 = vmatpush1.bf16.msra.mxu0 %v1805
      %1871 = vmatprep.subr.bf16.mxu0 %v1808
      %1872 = vmatpush1.bf16.msra.mxu0 %v1807
      %1873 = vmatprep.subr.bf16.mxu0 %v1810
      %1874 = vmatpush1.bf16.msra.mxu0 %v1809
      %1875 = vmatprep.subr.bf16.mxu0 %v1812
      %1876 = vmatpush1.bf16.msra.mxu0 %v1811
      %1877 = vmatprep.subr.bf16.mxu0 %v1814
      %1878 = vmatpush1.bf16.msra.mxu0 %v1813
      %1879 = vmatprep.subr.bf16.mxu0 %v1816
      %1880 = vmatpush1.bf16.msra.mxu0 %v1815
      %1881 = vmatprep.subr.bf16.mxu0 %v1818
      %1882 = vmatpush1.bf16.msra.mxu0 %v1817
      %1883 = vmatprep.subr.bf16.mxu0 %v1820
      %1884 = vmatpush1.bf16.msra.mxu0 %v1819
      %1885 = vmatprep.mubr.bf16.mxu0 %v1659
      %1886 = vmatmul.mubr.bf16.gmra.mrb[0].mxu0 %v1658
      %v1887 = vpop.f32.mrb[0].mxu0
      %v1888 = vadd.f32 0.0, %v1887
      %v1889 = vpop.f32.mrb[0].mxu0
      %v1890 = vadd.f32 0.0, %v1889
      %v1891 = vpop.f32.mrb[0].mxu0
      %v1892 = vadd.f32 0.0, %v1891
      %v1893 = vpop.f32.mrb[0].mxu0
      %v1894 = vadd.f32 0.0, %v1893
      %1895 = vdwg.mxu0
      %v1896 = vadd.f32 %v1607, %v1888
      %v1897 = vadd.f32 %v1609, %v1890
      %v1898 = vadd.f32 %v1611, %v1892
      %v1899 = vadd.f32 %v1613, %v1894
      %v1900 = vld [vmem:[%s4] sm:$0x3]
      %v1902 = vlaneseq
      %v1903 = vshrl.u32 %v1902, 7
      %v1904 = vsub.s32 0, %v1903
      %v1905 = vrot.slane %v1900, %v1904
      %v1906 = vlaneseq
      %v1907 = vshrl.u32 %v1906, 7
      %v1908 = vsub.s32 1, %v1907
      %v1909 = vrot.slane %v1900, %v1908
      %v1912 = vadd.f32 %v1896, %v1905
      %v1913 = vadd.f32 %v1897, %v1909
      %v1914 = vadd.f32 %v1898, %v1905
      %v1915 = vadd.f32 %v1899, %v1909
      %v1916 = vmax.f32 %v1912, 0.0
      %v1917 = vmax.f32 %v1913, 0.0
      %v1918 = vmax.f32 %v1914, 0.0
      %v1919 = vmax.f32 %v1915, 0.0
      %v1920 = vpack.c.bf16 %v1918, %v1916
      %v1921 = vpack.c.bf16 %v1919, %v1917
      %v1922 = vmul.u32 %v578, 2
      %v1923 = vadd.s32 %v1922, 4294967295
      %vm1924 = vcmp.eq.s32.totalorder %v581, %v1923
      %v1925 = vsel %vm1924, 1.0, 0.0
      %v1926 = vpack.c.bf16 %v1925, %v1925
      %v1928 = vsel %vm595, %v1926, 0
      %1930 = vmatprep.subr.bf16.mxu0 %v1921
      %1931 = vmatpush1.bf16.msra.mxu0 %v1920
      %1932 = vmatprep.subr.bf16.mxu0 0
      %1933 = vmatpush1.bf16.msra.mxu0 0
      %1934 = vmatprep.subr.bf16.mxu0 0
      %1935 = vmatpush1.bf16.msra.mxu0 0
      %1936 = vmatprep.subr.bf16.mxu0 0
      %1937 = vmatpush1.bf16.msra.mxu0 0
      %1938 = vmatprep.subr.bf16.mxu0 0
      %1939 = vmatpush1.bf16.msra.mxu0 0
      %1940 = vmatprep.subr.bf16.mxu0 0
      %1941 = vmatpush1.bf16.msra.mxu0 0
      %1942 = vmatprep.subr.bf16.mxu0 0
      %1943 = vmatpush1.bf16.msra.mxu0 0
      %1944 = vmatprep.subr.bf16.mxu0 0
      %1945 = vmatpush1.bf16.msra.mxu0 0
      %1946 = vmatprep.subr.bf16.mxu0 0
      %1947 = vmatpush1.bf16.msra.mxu0 0
      %1948 = vmatprep.subr.bf16.mxu0 0
      %1949 = vmatpush1.bf16.msra.mxu0 0
      %1950 = vmatprep.subr.bf16.mxu0 0
      %1951 = vmatpush1.bf16.msra.mxu0 0
      %1952 = vmatprep.subr.bf16.mxu0 0
      %1953 = vmatpush1.bf16.msra.mxu0 0
      %1954 = vmatprep.subr.bf16.mxu0 0
      %1955 = vmatpush1.bf16.msra.mxu0 0
      %1956 = vmatprep.subr.bf16.mxu0 0
      %1957 = vmatpush1.bf16.msra.mxu0 0
      %1958 = vmatprep.subr.bf16.mxu0 0
      %1959 = vmatpush1.bf16.msra.mxu0 0
      %1960 = vmatprep.subr.bf16.mxu0 0
      %1961 = vmatpush1.bf16.msra.mxu0 0
      %1962 = vmatprep.mubr.bf16.mxu0 0
      %1963 = vmatmul.mubr.bf16.gmra.mrb[0].mxu0 %v1928
      %v1964 = vpop.f32.mrb[0].mxu0
      %v1965 = vadd.f32 0.0, %v1964
      %v1966 = vpop.f32.mrb[0].mxu0
      %v1967 = vadd.f32 0.0, %v1966
      %v1968 = vpop.f32.mrb[0].mxu0
      %v1969 = vpop.f32.mrb[0].mxu0
      %1970 = vdwg.mxu0
      %v1971 = vpack.c.bf16 %v1965, %v1965
      %v1972 = vpack.c.bf16 %v1967, %v1967
      %v1973 = vld [vmem:[%s5] sm:$0xff]
      %v1974 = vld [vmem:[%s5 + $0x8] sm:$0xff]
      %v1975 = vld [vmem:[%s5 + $0x10] sm:$0xff]
      %v1976 = vld [vmem:[%s5 + $0x18] sm:$0xff]
      %v1977 = vld [vmem:[%s5 + $0x20] sm:$0xff]
      %v1978 = vld [vmem:[%s5 + $0x28] sm:$0xff]
      %v1979 = vld [vmem:[%s5 + $0x30] sm:$0xff]
      %v1980 = vld [vmem:[%s5 + $0x38] sm:$0xff]
      %v1981 = vld [vmem:[%s5 + $0x40] sm:$0xff]
      %v1982 = vld [vmem:[%s5 + $0x48] sm:$0xff]
      %v1983 = vld [vmem:[%s5 + $0x50] sm:$0xff]
      %v1984 = vld [vmem:[%s5 + $0x58] sm:$0xff]
      %v1985 = vld [vmem:[%s5 + $0x60] sm:$0xff]
      %v1986 = vld [vmem:[%s5 + $0x68] sm:$0xff]
      %v1987 = vld [vmem:[%s5 + $0x70] sm:$0xff]
      %v1988 = vld [vmem:[%s5 + $0x78] sm:$0xff]
      %v1989 = vld [vmem:[%s5 + $0x80] sm:$0xff]
      %v1990 = vld [vmem:[%s5 + $0x88] sm:$0xff]
      %v1991 = vld [vmem:[%s5 + $0x90] sm:$0xff]
      %v1992 = vld [vmem:[%s5 + $0x98] sm:$0xff]
      %v1993 = vld [vmem:[%s5 + $0xa0] sm:$0xff]
      %v1994 = vld [vmem:[%s5 + $0xa8] sm:$0xff]
      %v1995 = vld [vmem:[%s5 + $0xb0] sm:$0xff]
      %v1996 = vld [vmem:[%s5 + $0xb8] sm:$0xff]
      %v1997 = vld [vmem:[%s5 + $0xc0] sm:$0xff]
      %v1998 = vld [vmem:[%s5 + $0xc8] sm:$0xff]
      %v1999 = vld [vmem:[%s5 + $0xd0] sm:$0xff]
      %v2000 = vld [vmem:[%s5 + $0xd8] sm:$0xff]
      %v2001 = vld [vmem:[%s5 + $0xe0] sm:$0xff]
      %v2002 = vld [vmem:[%s5 + $0xe8] sm:$0xff]
      %v2003 = vld [vmem:[%s5 + $0xf0] sm:$0xff]
      %v2004 = vld [vmem:[%s5 + $0xf8] sm:$0xff]
      %vm2005 = vcmp.eq.s32.totalorder %v581, %v1922
      %v2006 = vsel %vm2005, 1.0, 0.0
      %v2007 = vpack.c.bf16 %v2006, %v2006
      %v2009 = vsel %vm595, %v2007, 0
      %2011 = vmatprep.subr.bf16.mxu0 %v1921
      %2012 = vmatpush1.bf16.msra.mxu0 %v1920
      %2013 = vmatprep.subr.bf16.mxu0 0
      %2014 = vmatpush1.bf16.msra.mxu0 0
      %2015 = vmatprep.subr.bf16.mxu0 0
      %2016 = vmatpush1.bf16.msra.mxu0 0
      %2017 = vmatprep.subr.bf16.mxu0 0
      %2018 = vmatpush1.bf16.msra.mxu0 0
      %2019 = vmatprep.subr.bf16.mxu0 0
      %2020 = vmatpush1.bf16.msra.mxu0 0
      %2021 = vmatprep.subr.bf16.mxu0 0
      %2022 = vmatpush1.bf16.msra.mxu0 0
      %2023 = vmatprep.subr.bf16.mxu0 0
      %2024 = vmatpush1.bf16.msra.mxu0 0
      %2025 = vmatprep.subr.bf16.mxu0 0
      %2026 = vmatpush1.bf16.msra.mxu0 0
      %2027 = vmatprep.subr.bf16.mxu0 0
      %2028 = vmatpush1.bf16.msra.mxu0 0
      %2029 = vmatprep.subr.bf16.mxu0 0
      %2030 = vmatpush1.bf16.msra.mxu0 0
      %2031 = vmatprep.subr.bf16.mxu0 0
      %2032 = vmatpush1.bf16.msra.mxu0 0
      %2033 = vmatprep.subr.bf16.mxu0 0
      %2034 = vmatpush1.bf16.msra.mxu0 0
      %2035 = vmatprep.subr.bf16.mxu0 0
      %2036 = vmatpush1.bf16.msra.mxu0 0
      %2037 = vmatprep.subr.bf16.mxu0 0
      %2038 = vmatpush1.bf16.msra.mxu0 0
      %2039 = vmatprep.subr.bf16.mxu0 0
      %2040 = vmatpush1.bf16.msra.mxu0 0
      %2041 = vmatprep.subr.bf16.mxu0 0
      %2042 = vmatpush1.bf16.msra.mxu0 0
      %2043 = vmatprep.mubr.bf16.mxu0 0
      %2044 = vmatmul.mubr.bf16.gmra.mrb[0].mxu0 %v2009
      %v2045 = vpop.f32.mrb[0].mxu0
      %v2046 = vadd.f32 0.0, %v2045
      %v2047 = vpop.f32.mrb[0].mxu0
      %v2048 = vadd.f32 0.0, %v2047
      %v2049 = vpop.f32.mrb[0].mxu0
      %v2050 = vpop.f32.mrb[0].mxu0
      %2051 = vdwg.mxu0
      %v2052 = vpack.c.bf16 %v2046, %v2046
      %v2053 = vpack.c.bf16 %v2048, %v2048
      %s2054 = scalar_lea.vmem %s5, 256
      %v2055 = vld [vmem:[%s2054] sm:$0xff]
      %v2056 = vld [vmem:[%s2054 + $0x8] sm:$0xff]
      %v2057 = vld [vmem:[%s2054 + $0x10] sm:$0xff]
      %v2058 = vld [vmem:[%s2054 + $0x18] sm:$0xff]
      %v2059 = vld [vmem:[%s2054 + $0x20] sm:$0xff]
      %v2060 = vld [vmem:[%s2054 + $0x28] sm:$0xff]
      %v2061 = vld [vmem:[%s2054 + $0x30] sm:$0xff]
      %v2062 = vld [vmem:[%s2054 + $0x38] sm:$0xff]
      %v2063 = vld [vmem:[%s2054 + $0x40] sm:$0xff]
      %v2064 = vld [vmem:[%s2054 + $0x48] sm:$0xff]
      %v2065 = vld [vmem:[%s2054 + $0x50] sm:$0xff]
      %v2066 = vld [vmem:[%s2054 + $0x58] sm:$0xff]
      %v2067 = vld [vmem:[%s2054 + $0x60] sm:$0xff]
      %v2068 = vld [vmem:[%s2054 + $0x68] sm:$0xff]
      %v2069 = vld [vmem:[%s2054 + $0x70] sm:$0xff]
      %v2070 = vld [vmem:[%s2054 + $0x78] sm:$0xff]
      %v2071 = vld [vmem:[%s2054 + $0x80] sm:$0xff]
      %v2072 = vld [vmem:[%s2054 + $0x88] sm:$0xff]
      %v2073 = vld [vmem:[%s2054 + $0x90] sm:$0xff]
      %v2074 = vld [vmem:[%s2054 + $0x98] sm:$0xff]
      %v2075 = vld [vmem:[%s2054 + $0xa0] sm:$0xff]
      %v2076 = vld [vmem:[%s2054 + $0xa8] sm:$0xff]
      %v2077 = vld [vmem:[%s2054 + $0xb0] sm:$0xff]
      %v2078 = vld [vmem:[%s2054 + $0xb8] sm:$0xff]
      %v2079 = vld [vmem:[%s2054 + $0xc0] sm:$0xff]
      %v2080 = vld [vmem:[%s2054 + $0xc8] sm:$0xff]
      %v2081 = vld [vmem:[%s2054 + $0xd0] sm:$0xff]
      %v2082 = vld [vmem:[%s2054 + $0xd8] sm:$0xff]
      %v2083 = vld [vmem:[%s2054 + $0xe0] sm:$0xff]
      %v2084 = vld [vmem:[%s2054 + $0xe8] sm:$0xff]
      %v2085 = vld [vmem:[%s2054 + $0xf0] sm:$0xff]
      %v2086 = vld [vmem:[%s2054 + $0xf8] sm:$0xff]
      %v2119 = vunpack.c.l.b16 %v2055
      %v2120 = vunpack.c.h.b16 %v2055
      %v2121 = vunpack.c.l.b16 %v2056
      %v2122 = vunpack.c.h.b16 %v2056
      %v2123 = vunpack.c.l.b16 %v2057
      %v2124 = vunpack.c.h.b16 %v2057
      %v2125 = vunpack.c.l.b16 %v2058
      %v2126 = vunpack.c.h.b16 %v2058
      %v2127 = vunpack.c.l.b16 %v2059
      %v2128 = vunpack.c.h.b16 %v2059
      %v2129 = vunpack.c.l.b16 %v2060
      %v2130 = vunpack.c.h.b16 %v2060
      %v2131 = vunpack.c.l.b16 %v2061
      %v2132 = vunpack.c.h.b16 %v2061
      %v2133 = vunpack.c.l.b16 %v2062
      %v2134 = vunpack.c.h.b16 %v2062
      %v2135 = vunpack.c.l.b16 %v2063
      %v2136 = vunpack.c.h.b16 %v2063
      %v2137 = vunpack.c.l.b16 %v2064
      %v2138 = vunpack.c.h.b16 %v2064
      %v2139 = vunpack.c.l.b16 %v2065
      %v2140 = vunpack.c.h.b16 %v2065
      %v2141 = vunpack.c.l.b16 %v2066
      %v2142 = vunpack.c.h.b16 %v2066
      %v2143 = vunpack.c.l.b16 %v2067
      %v2144 = vunpack.c.h.b16 %v2067
      %v2145 = vunpack.c.l.b16 %v2068
      %v2146 = vunpack.c.h.b16 %v2068
      %v2147 = vunpack.c.l.b16 %v2069
      %v2148 = vunpack.c.h.b16 %v2069
      %v2149 = vunpack.c.l.b16 %v2070
      %v2150 = vunpack.c.h.b16 %v2070
      %v2151 = vunpack.c.l.b16 %v2071
      %v2152 = vunpack.c.h.b16 %v2071
      %v2153 = vunpack.c.l.b16 %v2072
      %v2154 = vunpack.c.h.b16 %v2072
      %v2155 = vunpack.c.l.b16 %v2073
      %v2156 = vunpack.c.h.b16 %v2073
      %v2157 = vunpack.c.l.b16 %v2074
      %v2158 = vunpack.c.h.b16 %v2074
      %v2159 = vunpack.c.l.b16 %v2075
      %v2160 = vunpack.c.h.b16 %v2075
      %v2161 = vunpack.c.l.b16 %v2076
      %v2162 = vunpack.c.h.b16 %v2076
      %v2163 = vunpack.c.l.b16 %v2077
      %v2164 = vunpack.c.h.b16 %v2077
      %v2165 = vunpack.c.l.b16 %v2078
      %v2166 = vunpack.c.h.b16 %v2078
      %v2167 = vunpack.c.l.b16 %v2079
      %v2168 = vunpack.c.h.b16 %v2079
      %v2169 = vunpack.c.l.b16 %v2080
      %v2170 = vunpack.c.h.b16 %v2080
      %v2171 = vunpack.c.l.b16 %v2081
      %v2172 = vunpack.c.h.b16 %v2081
      %v2173 = vunpack.c.l.b16 %v2082
      %v2174 = vunpack.c.h.b16 %v2082
      %v2175 = vunpack.c.l.b16 %v2083
      %v2176 = vunpack.c.h.b16 %v2083
      %v2177 = vunpack.c.l.b16 %v2084
      %v2178 = vunpack.c.h.b16 %v2084
      %v2179 = vunpack.c.l.b16 %v2085
      %v2180 = vunpack.c.h.b16 %v2085
      %v2181 = vunpack.c.l.b16 %v2086
      %v2182 = vunpack.c.h.b16 %v2086
      %v2183 = vpack.c.b16 %v2121, %v2119
      %v2184 = vpack.c.b16 %v2122, %v2120
      %v2185 = vpack.c.b16 %v2125, %v2123
      %v2186 = vpack.c.b16 %v2126, %v2124
      %v2187 = vpack.c.b16 %v2129, %v2127
      %v2188 = vpack.c.b16 %v2130, %v2128
      %v2189 = vpack.c.b16 %v2133, %v2131
      %v2190 = vpack.c.b16 %v2134, %v2132
      %v2191 = vpack.c.b16 %v2137, %v2135
      %v2192 = vpack.c.b16 %v2138, %v2136
      %v2193 = vpack.c.b16 %v2141, %v2139
      %v2194 = vpack.c.b16 %v2142, %v2140
      %v2195 = vpack.c.b16 %v2145, %v2143
      %v2196 = vpack.c.b16 %v2146, %v2144
      %v2197 = vpack.c.b16 %v2149, %v2147
      %v2198 = vpack.c.b16 %v2150, %v2148
      %v2199 = vpack.c.b16 %v2153, %v2151
      %v2200 = vpack.c.b16 %v2154, %v2152
      %v2201 = vpack.c.b16 %v2157, %v2155
      %v2202 = vpack.c.b16 %v2158, %v2156
      %v2203 = vpack.c.b16 %v2161, %v2159
      %v2204 = vpack.c.b16 %v2162, %v2160
      %v2205 = vpack.c.b16 %v2165, %v2163
      %v2206 = vpack.c.b16 %v2166, %v2164
      %v2207 = vpack.c.b16 %v2169, %v2167
      %v2208 = vpack.c.b16 %v2170, %v2168
      %v2209 = vpack.c.b16 %v2173, %v2171
      %v2210 = vpack.c.b16 %v2174, %v2172
      %v2211 = vpack.c.b16 %v2177, %v2175
      %v2212 = vpack.c.b16 %v2178, %v2176
      %v2213 = vpack.c.b16 %v2181, %v2179
      %v2214 = vpack.c.b16 %v2182, %v2180
      %2247 = vmatprep.subr.bf16.mxu0 %v2184
      %2248 = vmatpush1.bf16.msra.mxu0 %v2183
      %2249 = vmatprep.subr.bf16.mxu0 %v2186
      %2250 = vmatpush1.bf16.msra.mxu0 %v2185
      %2251 = vmatprep.subr.bf16.mxu0 %v2188
      %2252 = vmatpush1.bf16.msra.mxu0 %v2187
      %2253 = vmatprep.subr.bf16.mxu0 %v2190
      %2254 = vmatpush1.bf16.msra.mxu0 %v2189
      %2255 = vmatprep.subr.bf16.mxu0 %v2192
      %2256 = vmatpush1.bf16.msra.mxu0 %v2191
      %2257 = vmatprep.subr.bf16.mxu0 %v2194
      %2258 = vmatpush1.bf16.msra.mxu0 %v2193
      %2259 = vmatprep.subr.bf16.mxu0 %v2196
      %2260 = vmatpush1.bf16.msra.mxu0 %v2195
      %2261 = vmatprep.subr.bf16.mxu0 %v2198
      %2262 = vmatpush1.bf16.msra.mxu0 %v2197
      %2263 = vmatprep.subr.bf16.mxu0 %v2200
      %2264 = vmatpush1.bf16.msra.mxu0 %v2199
      %2265 = vmatprep.subr.bf16.mxu0 %v2202
      %2266 = vmatpush1.bf16.msra.mxu0 %v2201
      %2267 = vmatprep.subr.bf16.mxu0 %v2204
      %2268 = vmatpush1.bf16.msra.mxu0 %v2203
      %2269 = vmatprep.subr.bf16.mxu0 %v2206
      %2270 = vmatpush1.bf16.msra.mxu0 %v2205
      %2271 = vmatprep.subr.bf16.mxu0 %v2208
      %2272 = vmatpush1.bf16.msra.mxu0 %v2207
      %2273 = vmatprep.subr.bf16.mxu0 %v2210
      %2274 = vmatpush1.bf16.msra.mxu0 %v2209
      %2275 = vmatprep.subr.bf16.mxu0 %v2212
      %2276 = vmatpush1.bf16.msra.mxu0 %v2211
      %2277 = vmatprep.subr.bf16.mxu0 %v2214
      %2278 = vmatpush1.bf16.msra.mxu0 %v2213
      %2279 = vmatprep.mubr.bf16.mxu0 %v2053
      %2280 = vmatmul.mubr.bf16.gmra.mrb[0].mxu0 %v2052
      %v2281 = vpop.f32.mrb[0].mxu0
      %v2282 = vadd.f32 0.0, %v2281
      %v2283 = vpop.f32.mrb[0].mxu0
      %v2284 = vadd.f32 0.0, %v2283
      %v2285 = vpop.f32.mrb[0].mxu0
      %v2286 = vpop.f32.mrb[0].mxu0
      %2287 = vdwg.mxu0
      %v2320 = vunpack.c.l.b16 %v1973
      %v2321 = vunpack.c.h.b16 %v1973
      %v2322 = vunpack.c.l.b16 %v1974
      %v2323 = vunpack.c.h.b16 %v1974
      %v2324 = vunpack.c.l.b16 %v1975
      %v2325 = vunpack.c.h.b16 %v1975
      %v2326 = vunpack.c.l.b16 %v1976
      %v2327 = vunpack.c.h.b16 %v1976
      %v2328 = vunpack.c.l.b16 %v1977
      %v2329 = vunpack.c.h.b16 %v1977
      %v2330 = vunpack.c.l.b16 %v1978
      %v2331 = vunpack.c.h.b16 %v1978
      %v2332 = vunpack.c.l.b16 %v1979
      %v2333 = vunpack.c.h.b16 %v1979
      %v2334 = vunpack.c.l.b16 %v1980
      %v2335 = vunpack.c.h.b16 %v1980
      %v2336 = vunpack.c.l.b16 %v1981
      %v2337 = vunpack.c.h.b16 %v1981
      %v2338 = vunpack.c.l.b16 %v1982
      %v2339 = vunpack.c.h.b16 %v1982
      %v2340 = vunpack.c.l.b16 %v1983
      %v2341 = vunpack.c.h.b16 %v1983
      %v2342 = vunpack.c.l.b16 %v1984
      %v2343 = vunpack.c.h.b16 %v1984
      %v2344 = vunpack.c.l.b16 %v1985
      %v2345 = vunpack.c.h.b16 %v1985
      %v2346 = vunpack.c.l.b16 %v1986
      %v2347 = vunpack.c.h.b16 %v1986
      %v2348 = vunpack.c.l.b16 %v1987
      %v2349 = vunpack.c.h.b16 %v1987
      %v2350 = vunpack.c.l.b16 %v1988
      %v2351 = vunpack.c.h.b16 %v1988
      %v2352 = vunpack.c.l.b16 %v1989
      %v2353 = vunpack.c.h.b16 %v1989
      %v2354 = vunpack.c.l.b16 %v1990
      %v2355 = vunpack.c.h.b16 %v1990
      %v2356 = vunpack.c.l.b16 %v1991
      %v2357 = vunpack.c.h.b16 %v1991
      %v2358 = vunpack.c.l.b16 %v1992
      %v2359 = vunpack.c.h.b16 %v1992
      %v2360 = vunpack.c.l.b16 %v1993
      %v2361 = vunpack.c.h.b16 %v1993
      %v2362 = vunpack.c.l.b16 %v1994
      %v2363 = vunpack.c.h.b16 %v1994
      %v2364 = vunpack.c.l.b16 %v1995
      %v2365 = vunpack.c.h.b16 %v1995
      %v2366 = vunpack.c.l.b16 %v1996
      %v2367 = vunpack.c.h.b16 %v1996
      %v2368 = vunpack.c.l.b16 %v1997
      %v2369 = vunpack.c.h.b16 %v1997
      %v2370 = vunpack.c.l.b16 %v1998
      %v2371 = vunpack.c.h.b16 %v1998
      %v2372 = vunpack.c.l.b16 %v1999
      %v2373 = vunpack.c.h.b16 %v1999
      %v2374 = vunpack.c.l.b16 %v2000
      %v2375 = vunpack.c.h.b16 %v2000
      %v2376 = vunpack.c.l.b16 %v2001
      %v2377 = vunpack.c.h.b16 %v2001
      %v2378 = vunpack.c.l.b16 %v2002
      %v2379 = vunpack.c.h.b16 %v2002
      %v2380 = vunpack.c.l.b16 %v2003
      %v2381 = vunpack.c.h.b16 %v2003
      %v2382 = vunpack.c.l.b16 %v2004
      %v2383 = vunpack.c.h.b16 %v2004
      %v2384 = vpack.c.b16 %v2322, %v2320
      %v2385 = vpack.c.b16 %v2323, %v2321
      %v2386 = vpack.c.b16 %v2326, %v2324
      %v2387 = vpack.c.b16 %v2327, %v2325
      %v2388 = vpack.c.b16 %v2330, %v2328
      %v2389 = vpack.c.b16 %v2331, %v2329
      %v2390 = vpack.c.b16 %v2334, %v2332
      %v2391 = vpack.c.b16 %v2335, %v2333
      %v2392 = vpack.c.b16 %v2338, %v2336
      %v2393 = vpack.c.b16 %v2339, %v2337
      %v2394 = vpack.c.b16 %v2342, %v2340
      %v2395 = vpack.c.b16 %v2343, %v2341
      %v2396 = vpack.c.b16 %v2346, %v2344
      %v2397 = vpack.c.b16 %v2347, %v2345
      %v2398 = vpack.c.b16 %v2350, %v2348
      %v2399 = vpack.c.b16 %v2351, %v2349
      %v2400 = vpack.c.b16 %v2354, %v2352
      %v2401 = vpack.c.b16 %v2355, %v2353
      %v2402 = vpack.c.b16 %v2358, %v2356
      %v2403 = vpack.c.b16 %v2359, %v2357
      %v2404 = vpack.c.b16 %v2362, %v2360
      %v2405 = vpack.c.b16 %v2363, %v2361
      %v2406 = vpack.c.b16 %v2366, %v2364
      %v2407 = vpack.c.b16 %v2367, %v2365
      %v2408 = vpack.c.b16 %v2370, %v2368
      %v2409 = vpack.c.b16 %v2371, %v2369
      %v2410 = vpack.c.b16 %v2374, %v2372
      %v2411 = vpack.c.b16 %v2375, %v2373
      %v2412 = vpack.c.b16 %v2378, %v2376
      %v2413 = vpack.c.b16 %v2379, %v2377
      %v2414 = vpack.c.b16 %v2382, %v2380
      %v2415 = vpack.c.b16 %v2383, %v2381
      %2448 = vmatprep.subr.bf16.mxu0 %v2385
      %2449 = vmatpush1.bf16.msra.mxu0 %v2384
      %2450 = vmatprep.subr.bf16.mxu0 %v2387
      %2451 = vmatpush1.bf16.msra.mxu0 %v2386
      %2452 = vmatprep.subr.bf16.mxu0 %v2389
      %2453 = vmatpush1.bf16.msra.mxu0 %v2388
      %2454 = vmatprep.subr.bf16.mxu0 %v2391
      %2455 = vmatpush1.bf16.msra.mxu0 %v2390
      %2456 = vmatprep.subr.bf16.mxu0 %v2393
      %2457 = vmatpush1.bf16.msra.mxu0 %v2392
      %2458 = vmatprep.subr.bf16.mxu0 %v2395
      %2459 = vmatpush1.bf16.msra.mxu0 %v2394
      %2460 = vmatprep.subr.bf16.mxu0 %v2397
      %2461 = vmatpush1.bf16.msra.mxu0 %v2396
      %2462 = vmatprep.subr.bf16.mxu0 %v2399
      %2463 = vmatpush1.bf16.msra.mxu0 %v2398
      %2464 = vmatprep.subr.bf16.mxu0 %v2401
      %2465 = vmatpush1.bf16.msra.mxu0 %v2400
      %2466 = vmatprep.subr.bf16.mxu0 %v2403
      %2467 = vmatpush1.bf16.msra.mxu0 %v2402
      %2468 = vmatprep.subr.bf16.mxu0 %v2405
      %2469 = vmatpush1.bf16.msra.mxu0 %v2404
      %2470 = vmatprep.subr.bf16.mxu0 %v2407
      %2471 = vmatpush1.bf16.msra.mxu0 %v2406
      %2472 = vmatprep.subr.bf16.mxu0 %v2409
      %2473 = vmatpush1.bf16.msra.mxu0 %v2408
      %2474 = vmatprep.subr.bf16.mxu0 %v2411
      %2475 = vmatpush1.bf16.msra.mxu0 %v2410
      %2476 = vmatprep.subr.bf16.mxu0 %v2413
      %2477 = vmatpush1.bf16.msra.mxu0 %v2412
      %2478 = vmatprep.subr.bf16.mxu0 %v2415
      %2479 = vmatpush1.bf16.msra.mxu0 %v2414
      %2480 = vmatprep.mubr.bf16.mxu0 %v1972
      %2481 = vmatmul.mubr.bf16.gmra.mrb[0].mxu0 %v1971
      %v2482 = vpop.f32.mrb[0].mxu0
      %v2483 = vadd.f32 %v2282, %v2482
      %v2484 = vpop.f32.mrb[0].mxu0
      %v2485 = vadd.f32 %v2284, %v2484
      %v2486 = vpop.f32.mrb[0].mxu0
      %v2487 = vpop.f32.mrb[0].mxu0
      %2488 = vdwg.mxu0
      %v2489 = vadd.s32 %v1922, 1
      %vm2490 = vcmp.eq.s32.totalorder %v581, %v2489
      %v2491 = vsel %vm2490, 1.0, 0.0
      %v2492 = vpack.c.bf16 %v2491, %v2491
      %v2494 = vsel %vm595, %v2492, 0
      %2496 = vmatprep.subr.bf16.mxu0 %v1921
      %2497 = vmatpush1.bf16.msra.mxu0 %v1920
      %2498 = vmatprep.subr.bf16.mxu0 0
      %2499 = vmatpush1.bf16.msra.mxu0 0
      %2500 = vmatprep.subr.bf16.mxu0 0
      %2501 = vmatpush1.bf16.msra.mxu0 0
      %2502 = vmatprep.subr.bf16.mxu0 0
      %2503 = vmatpush1.bf16.msra.mxu0 0
      %2504 = vmatprep.subr.bf16.mxu0 0
      %2505 = vmatpush1.bf16.msra.mxu0 0
      %2506 = vmatprep.subr.bf16.mxu0 0
      %2507 = vmatpush1.bf16.msra.mxu0 0
      %2508 = vmatprep.subr.bf16.mxu0 0
      %2509 = vmatpush1.bf16.msra.mxu0 0
      %2510 = vmatprep.subr.bf16.mxu0 0
      %2511 = vmatpush1.bf16.msra.mxu0 0
      %2512 = vmatprep.subr.bf16.mxu0 0
      %2513 = vmatpush1.bf16.msra.mxu0 0
      %2514 = vmatprep.subr.bf16.mxu0 0
      %2515 = vmatpush1.bf16.msra.mxu0 0
      %2516 = vmatprep.subr.bf16.mxu0 0
      %2517 = vmatpush1.bf16.msra.mxu0 0
      %2518 = vmatprep.subr.bf16.mxu0 0
      %2519 = vmatpush1.bf16.msra.mxu0 0
      %2520 = vmatprep.subr.bf16.mxu0 0
      %2521 = vmatpush1.bf16.msra.mxu0 0
      %2522 = vmatprep.subr.bf16.mxu0 0
      %2523 = vmatpush1.bf16.msra.mxu0 0
      %2524 = vmatprep.subr.bf16.mxu0 0
      %2525 = vmatpush1.bf16.msra.mxu0 0
      %2526 = vmatprep.subr.bf16.mxu0 0
      %2527 = vmatpush1.bf16.msra.mxu0 0
      %2528 = vmatprep.mubr.bf16.mxu0 0
      %2529 = vmatmul.mubr.bf16.gmra.mrb[0].mxu0 %v2494
      %v2530 = vpop.f32.mrb[0].mxu0
      %v2531 = vadd.f32 0.0, %v2530
      %v2532 = vpop.f32.mrb[0].mxu0
      %v2533 = vadd.f32 0.0, %v2532
      %v2534 = vpop.f32.mrb[0].mxu0
      %v2535 = vpop.f32.mrb[0].mxu0
      %2536 = vdwg.mxu0
      %v2537 = vpack.c.bf16 %v2531, %v2531
      %v2538 = vpack.c.bf16 %v2533, %v2533
      %s2539 = scalar_lea.vmem %s5, 512
      %v2540 = vld [vmem:[%s2539] sm:$0xff]
      %v2541 = vld [vmem:[%s2539 + $0x8] sm:$0xff]
      %v2542 = vld [vmem:[%s2539 + $0x10] sm:$0xff]
      %v2543 = vld [vmem:[%s2539 + $0x18] sm:$0xff]
      %v2544 = vld [vmem:[%s2539 + $0x20] sm:$0xff]
      %v2545 = vld [vmem:[%s2539 + $0x28] sm:$0xff]
      %v2546 = vld [vmem:[%s2539 + $0x30] sm:$0xff]
      %v2547 = vld [vmem:[%s2539 + $0x38] sm:$0xff]
      %v2548 = vld [vmem:[%s2539 + $0x40] sm:$0xff]
      %v2549 = vld [vmem:[%s2539 + $0x48] sm:$0xff]
      %v2550 = vld [vmem:[%s2539 + $0x50] sm:$0xff]
      %v2551 = vld [vmem:[%s2539 + $0x58] sm:$0xff]
      %v2552 = vld [vmem:[%s2539 + $0x60] sm:$0xff]
      %v2553 = vld [vmem:[%s2539 + $0x68] sm:$0xff]
      %v2554 = vld [vmem:[%s2539 + $0x70] sm:$0xff]
      %v2555 = vld [vmem:[%s2539 + $0x78] sm:$0xff]
      %v2556 = vld [vmem:[%s2539 + $0x80] sm:$0xff]
      %v2557 = vld [vmem:[%s2539 + $0x88] sm:$0xff]
      %v2558 = vld [vmem:[%s2539 + $0x90] sm:$0xff]
      %v2559 = vld [vmem:[%s2539 + $0x98] sm:$0xff]
      %v2560 = vld [vmem:[%s2539 + $0xa0] sm:$0xff]
      %v2561 = vld [vmem:[%s2539 + $0xa8] sm:$0xff]
      %v2562 = vld [vmem:[%s2539 + $0xb0] sm:$0xff]
      %v2563 = vld [vmem:[%s2539 + $0xb8] sm:$0xff]
      %v2564 = vld [vmem:[%s2539 + $0xc0] sm:$0xff]
      %v2565 = vld [vmem:[%s2539 + $0xc8] sm:$0xff]
      %v2566 = vld [vmem:[%s2539 + $0xd0] sm:$0xff]
      %v2567 = vld [vmem:[%s2539 + $0xd8] sm:$0xff]
      %v2568 = vld [vmem:[%s2539 + $0xe0] sm:$0xff]
      %v2569 = vld [vmem:[%s2539 + $0xe8] sm:$0xff]
      %v2570 = vld [vmem:[%s2539 + $0xf0] sm:$0xff]
      %v2571 = vld [vmem:[%s2539 + $0xf8] sm:$0xff]
      %v2604 = vunpack.c.l.b16 %v2540
      %v2605 = vunpack.c.h.b16 %v2540
      %v2606 = vunpack.c.l.b16 %v2541
      %v2607 = vunpack.c.h.b16 %v2541
      %v2608 = vunpack.c.l.b16 %v2542
      %v2609 = vunpack.c.h.b16 %v2542
      %v2610 = vunpack.c.l.b16 %v2543
      %v2611 = vunpack.c.h.b16 %v2543
      %v2612 = vunpack.c.l.b16 %v2544
      %v2613 = vunpack.c.h.b16 %v2544
      %v2614 = vunpack.c.l.b16 %v2545
      %v2615 = vunpack.c.h.b16 %v2545
      %v2616 = vunpack.c.l.b16 %v2546
      %v2617 = vunpack.c.h.b16 %v2546
      %v2618 = vunpack.c.l.b16 %v2547
      %v2619 = vunpack.c.h.b16 %v2547
      %v2620 = vunpack.c.l.b16 %v2548
      %v2621 = vunpack.c.h.b16 %v2548
      %v2622 = vunpack.c.l.b16 %v2549
      %v2623 = vunpack.c.h.b16 %v2549
      %v2624 = vunpack.c.l.b16 %v2550
      %v2625 = vunpack.c.h.b16 %v2550
      %v2626 = vunpack.c.l.b16 %v2551
      %v2627 = vunpack.c.h.b16 %v2551
      %v2628 = vunpack.c.l.b16 %v2552
      %v2629 = vunpack.c.h.b16 %v2552
      %v2630 = vunpack.c.l.b16 %v2553
      %v2631 = vunpack.c.h.b16 %v2553
      %v2632 = vunpack.c.l.b16 %v2554
      %v2633 = vunpack.c.h.b16 %v2554
      %v2634 = vunpack.c.l.b16 %v2555
      %v2635 = vunpack.c.h.b16 %v2555
      %v2636 = vunpack.c.l.b16 %v2556
      %v2637 = vunpack.c.h.b16 %v2556
      %v2638 = vunpack.c.l.b16 %v2557
      %v2639 = vunpack.c.h.b16 %v2557
      %v2640 = vunpack.c.l.b16 %v2558
      %v2641 = vunpack.c.h.b16 %v2558
      %v2642 = vunpack.c.l.b16 %v2559
      %v2643 = vunpack.c.h.b16 %v2559
      %v2644 = vunpack.c.l.b16 %v2560
      %v2645 = vunpack.c.h.b16 %v2560
      %v2646 = vunpack.c.l.b16 %v2561
      %v2647 = vunpack.c.h.b16 %v2561
      %v2648 = vunpack.c.l.b16 %v2562
      %v2649 = vunpack.c.h.b16 %v2562
      %v2650 = vunpack.c.l.b16 %v2563
      %v2651 = vunpack.c.h.b16 %v2563
      %v2652 = vunpack.c.l.b16 %v2564
      %v2653 = vunpack.c.h.b16 %v2564
      %v2654 = vunpack.c.l.b16 %v2565
      %v2655 = vunpack.c.h.b16 %v2565
      %v2656 = vunpack.c.l.b16 %v2566
      %v2657 = vunpack.c.h.b16 %v2566
      %v2658 = vunpack.c.l.b16 %v2567
      %v2659 = vunpack.c.h.b16 %v2567
      %v2660 = vunpack.c.l.b16 %v2568
      %v2661 = vunpack.c.h.b16 %v2568
      %v2662 = vunpack.c.l.b16 %v2569
      %v2663 = vunpack.c.h.b16 %v2569
      %v2664 = vunpack.c.l.b16 %v2570
      %v2665 = vunpack.c.h.b16 %v2570
      %v2666 = vunpack.c.l.b16 %v2571
      %v2667 = vunpack.c.h.b16 %v2571
      %v2668 = vpack.c.b16 %v2606, %v2604
      %v2669 = vpack.c.b16 %v2607, %v2605
      %v2670 = vpack.c.b16 %v2610, %v2608
      %v2671 = vpack.c.b16 %v2611, %v2609
      %v2672 = vpack.c.b16 %v2614, %v2612
      %v2673 = vpack.c.b16 %v2615, %v2613
      %v2674 = vpack.c.b16 %v2618, %v2616
      %v2675 = vpack.c.b16 %v2619, %v2617
      %v2676 = vpack.c.b16 %v2622, %v2620
      %v2677 = vpack.c.b16 %v2623, %v2621
      %v2678 = vpack.c.b16 %v2626, %v2624
      %v2679 = vpack.c.b16 %v2627, %v2625
      %v2680 = vpack.c.b16 %v2630, %v2628
      %v2681 = vpack.c.b16 %v2631, %v2629
      %v2682 = vpack.c.b16 %v2634, %v2632
      %v2683 = vpack.c.b16 %v2635, %v2633
      %v2684 = vpack.c.b16 %v2638, %v2636
      %v2685 = vpack.c.b16 %v2639, %v2637
      %v2686 = vpack.c.b16 %v2642, %v2640
      %v2687 = vpack.c.b16 %v2643, %v2641
      %v2688 = vpack.c.b16 %v2646, %v2644
      %v2689 = vpack.c.b16 %v2647, %v2645
      %v2690 = vpack.c.b16 %v2650, %v2648
      %v2691 = vpack.c.b16 %v2651, %v2649
      %v2692 = vpack.c.b16 %v2654, %v2652
      %v2693 = vpack.c.b16 %v2655, %v2653
      %v2694 = vpack.c.b16 %v2658, %v2656
      %v2695 = vpack.c.b16 %v2659, %v2657
      %v2696 = vpack.c.b16 %v2662, %v2660
      %v2697 = vpack.c.b16 %v2663, %v2661
      %v2698 = vpack.c.b16 %v2666, %v2664
      %v2699 = vpack.c.b16 %v2667, %v2665
      %2732 = vmatprep.subr.bf16.mxu0 %v2669
      %2733 = vmatpush1.bf16.msra.mxu0 %v2668
      %2734 = vmatprep.subr.bf16.mxu0 %v2671
      %2735 = vmatpush1.bf16.msra.mxu0 %v2670
      %2736 = vmatprep.subr.bf16.mxu0 %v2673
      %2737 = vmatpush1.bf16.msra.mxu0 %v2672
      %2738 = vmatprep.subr.bf16.mxu0 %v2675
      %2739 = vmatpush1.bf16.msra.mxu0 %v2674
      %2740 = vmatprep.subr.bf16.mxu0 %v2677
      %2741 = vmatpush1.bf16.msra.mxu0 %v2676
      %2742 = vmatprep.subr.bf16.mxu0 %v2679
      %2743 = vmatpush1.bf16.msra.mxu0 %v2678
      %2744 = vmatprep.subr.bf16.mxu0 %v2681
      %2745 = vmatpush1.bf16.msra.mxu0 %v2680
      %2746 = vmatprep.subr.bf16.mxu0 %v2683
      %2747 = vmatpush1.bf16.msra.mxu0 %v2682
      %2748 = vmatprep.subr.bf16.mxu0 %v2685
      %2749 = vmatpush1.bf16.msra.mxu0 %v2684
      %2750 = vmatprep.subr.bf16.mxu0 %v2687
      %2751 = vmatpush1.bf16.msra.mxu0 %v2686
      %2752 = vmatprep.subr.bf16.mxu0 %v2689
      %2753 = vmatpush1.bf16.msra.mxu0 %v2688
      %2754 = vmatprep.subr.bf16.mxu0 %v2691
      %2755 = vmatpush1.bf16.msra.mxu0 %v2690
      %2756 = vmatprep.subr.bf16.mxu0 %v2693
      %2757 = vmatpush1.bf16.msra.mxu0 %v2692
      %2758 = vmatprep.subr.bf16.mxu0 %v2695
      %2759 = vmatpush1.bf16.msra.mxu0 %v2694
      %2760 = vmatprep.subr.bf16.mxu0 %v2697
      %2761 = vmatpush1.bf16.msra.mxu0 %v2696
      %2762 = vmatprep.subr.bf16.mxu0 %v2699
      %2763 = vmatpush1.bf16.msra.mxu0 %v2698
      %2764 = vmatprep.mubr.bf16.mxu0 %v2538
      %2765 = vmatmul.mubr.bf16.gmra.mrb[0].mxu0 %v2537
      %v2766 = vpop.f32.mrb[0].mxu0
      %v2767 = vadd.f32 0.0, %v2766
      %v2768 = vpop.f32.mrb[0].mxu0
      %v2769 = vadd.f32 0.0, %v2768
      %v2770 = vpop.f32.mrb[0].mxu0
      %v2771 = vpop.f32.mrb[0].mxu0
      %2772 = vdwg.mxu0
      %v2773 = vadd.f32 %v2483, %v2767
      %v2774 = vadd.f32 %v2485, %v2769
      %v2775 = vld [vmem:[%s6] sm:$0x3]
      %v2777 = vlaneseq
      %v2778 = vshrl.u32 %v2777, 7
      %v2779 = vsub.s32 0, %v2778
      %v2780 = vrot.slane %v2775, %v2779
      %v2781 = vlaneseq
      %v2782 = vshrl.u32 %v2781, 7
      %v2783 = vsub.s32 1, %v2782
      %v2784 = vrot.slane %v2775, %v2783
      %v2787 = vadd.f32 %v2773, %v2780
      %v2788 = vadd.f32 %v2774, %v2784
      %v2789 = vmax.f32 %v2787, 0.0
      %v2790 = vmax.f32 %v2788, 0.0
      %v2791 = vpack.c.bf16 %v2789, %v2789
      %v2792 = vpack.c.bf16 %v2790, %v2790
      %vm2793 = vcmask 64512
      %v2794 = vsel %vm2793, %v1926, 0
      %vm2796 = vcmask 1043456
      %v2798 = vsel %vm2796, %v2791, 0
      %v2801 = vsel %vm2796, %v2792, 0
      %2803 = vmatprep.subr.bf16.mxu0 %v2801
      %2804 = vmatpush1.bf16.msra.mxu0 %v2798
      %2805 = vmatprep.subr.bf16.mxu0 0
      %2806 = vmatpush1.bf16.msra.mxu0 0
      %2807 = vmatprep.subr.bf16.mxu0 0
      %2808 = vmatpush1.bf16.msra.mxu0 0
      %2809 = vmatprep.subr.bf16.mxu0 0
      %2810 = vmatpush1.bf16.msra.mxu0 0
      %2811 = vmatprep.subr.bf16.mxu0 0
      %2812 = vmatpush1.bf16.msra.mxu0 0
      %2813 = vmatprep.subr.bf16.mxu0 0
      %2814 = vmatpush1.bf16.msra.mxu0 0
      %2815 = vmatprep.subr.bf16.mxu0 0
      %2816 = vmatpush1.bf16.msra.mxu0 0
      %2817 = vmatprep.subr.bf16.mxu0 0
      %2818 = vmatpush1.bf16.msra.mxu0 0
      %2819 = vmatprep.subr.bf16.mxu0 0
      %2820 = vmatpush1.bf16.msra.mxu0 0
      %2821 = vmatprep.subr.bf16.mxu0 0
      %2822 = vmatpush1.bf16.msra.mxu0 0
      %2823 = vmatprep.subr.bf16.mxu0 0
      %2824 = vmatpush1.bf16.msra.mxu0 0
      %2825 = vmatprep.subr.bf16.mxu0 0
      %2826 = vmatpush1.bf16.msra.mxu0 0
      %2827 = vmatprep.subr.bf16.mxu0 0
      %2828 = vmatpush1.bf16.msra.mxu0 0
      %2829 = vmatprep.subr.bf16.mxu0 0
      %2830 = vmatpush1.bf16.msra.mxu0 0
      %2831 = vmatprep.subr.bf16.mxu0 0
      %2832 = vmatpush1.bf16.msra.mxu0 0
      %2833 = vmatprep.subr.bf16.mxu0 0
      %2834 = vmatpush1.bf16.msra.mxu0 0
      %2835 = vmatprep.mubr.bf16.mxu0 0
      %2836 = vmatmul.mubr.bf16.gmra.mrb[0].mxu0 %v2794
      %v2837 = vpop.f32.mrb[0].mxu0
      %v2838 = vadd.f32 0.0, %v2837
      %v2839 = vpop.f32.mrb[0].mxu0
      %v2840 = vadd.f32 0.0, %v2839
      %v2841 = vpop.f32.mrb[0].mxu0
      %v2842 = vpop.f32.mrb[0].mxu0
      %2843 = vdwg.mxu0
      %v2844 = vpack.c.bf16 %v2838, %v2838
      %v2845 = vpack.c.bf16 %v2840, %v2840
      %v2846 = vld [vmem:[%s7] sm:$0xf]
      %v2847 = vld [vmem:[%s7 + $0x4] sm:$0xf]
      %v2848 = vld [vmem:[%s7 + $0x8] sm:$0xf]
      %v2849 = vld [vmem:[%s7 + $0xc] sm:$0xf]
      %v2850 = vld [vmem:[%s7 + $0x10] sm:$0xf]
      %v2851 = vld [vmem:[%s7 + $0x14] sm:$0xf]
      %v2852 = vld [vmem:[%s7 + $0x18] sm:$0xf]
      %v2853 = vld [vmem:[%s7 + $0x1c] sm:$0xf]
      %v2854 = vld [vmem:[%s7 + $0x20] sm:$0xf]
      %v2855 = vld [vmem:[%s7 + $0x24] sm:$0xf]
      %v2856 = vld [vmem:[%s7 + $0x28] sm:$0xf]
      %v2857 = vld [vmem:[%s7 + $0x2c] sm:$0xf]
      %v2858 = vld [vmem:[%s7 + $0x30] sm:$0xf]
      %v2859 = vld [vmem:[%s7 + $0x34] sm:$0xf]
      %v2860 = vld [vmem:[%s7 + $0x38] sm:$0xf]
      %v2861 = vld [vmem:[%s7 + $0x3c] sm:$0xf]
      %v2862 = vld [vmem:[%s7 + $0x40] sm:$0xf]
      %v2863 = vld [vmem:[%s7 + $0x44] sm:$0xf]
      %v2864 = vld [vmem:[%s7 + $0x48] sm:$0xf]
      %v2865 = vld [vmem:[%s7 + $0x4c] sm:$0xf]
      %v2866 = vld [vmem:[%s7 + $0x50] sm:$0xf]
      %v2867 = vld [vmem:[%s7 + $0x54] sm:$0xf]
      %v2868 = vld [vmem:[%s7 + $0x58] sm:$0xf]
      %v2869 = vld [vmem:[%s7 + $0x5c] sm:$0xf]
      %v2870 = vld [vmem:[%s7 + $0x60] sm:$0xf]
      %v2871 = vld [vmem:[%s7 + $0x64] sm:$0xf]
      %v2872 = vld [vmem:[%s7 + $0x68] sm:$0xf]
      %v2873 = vld [vmem:[%s7 + $0x6c] sm:$0xf]
      %v2874 = vld [vmem:[%s7 + $0x70] sm:$0xf]
      %v2875 = vld [vmem:[%s7 + $0x74] sm:$0xf]
      %v2876 = vld [vmem:[%s7 + $0x78] sm:$0xf]
      %v2877 = vld [vmem:[%s7 + $0x7c] sm:$0xf]
      %v2878 = vsel %vm2793, %v2007, 0
      %2880 = vmatprep.subr.bf16.mxu0 %v2801
      %2881 = vmatpush1.bf16.msra.mxu0 %v2798
      %2882 = vmatprep.subr.bf16.mxu0 0
      %2883 = vmatpush1.bf16.msra.mxu0 0
      %2884 = vmatprep.subr.bf16.mxu0 0
      %2885 = vmatpush1.bf16.msra.mxu0 0
      %2886 = vmatprep.subr.bf16.mxu0 0
      %2887 = vmatpush1.bf16.msra.mxu0 0
      %2888 = vmatprep.subr.bf16.mxu0 0
      %2889 = vmatpush1.bf16.msra.mxu0 0
      %2890 = vmatprep.subr.bf16.mxu0 0
      %2891 = vmatpush1.bf16.msra.mxu0 0
      %2892 = vmatprep.subr.bf16.mxu0 0
      %2893 = vmatpush1.bf16.msra.mxu0 0
      %2894 = vmatprep.subr.bf16.mxu0 0
      %2895 = vmatpush1.bf16.msra.mxu0 0
      %2896 = vmatprep.subr.bf16.mxu0 0
      %2897 = vmatpush1.bf16.msra.mxu0 0
      %2898 = vmatprep.subr.bf16.mxu0 0
      %2899 = vmatpush1.bf16.msra.mxu0 0
      %2900 = vmatprep.subr.bf16.mxu0 0
      %2901 = vmatpush1.bf16.msra.mxu0 0
      %2902 = vmatprep.subr.bf16.mxu0 0
      %2903 = vmatpush1.bf16.msra.mxu0 0
      %2904 = vmatprep.subr.bf16.mxu0 0
      %2905 = vmatpush1.bf16.msra.mxu0 0
      %2906 = vmatprep.subr.bf16.mxu0 0
      %2907 = vmatpush1.bf16.msra.mxu0 0
      %2908 = vmatprep.subr.bf16.mxu0 0
      %2909 = vmatpush1.bf16.msra.mxu0 0
      %2910 = vmatprep.subr.bf16.mxu0 0
      %2911 = vmatpush1.bf16.msra.mxu0 0
      %2912 = vmatprep.mubr.bf16.mxu0 0
      %2913 = vmatmul.mubr.bf16.gmra.mrb[0].mxu0 %v2878
      %v2914 = vpop.f32.mrb[0].mxu0
      %v2915 = vadd.f32 0.0, %v2914
      %v2916 = vpop.f32.mrb[0].mxu0
      %v2917 = vadd.f32 0.0, %v2916
      %v2918 = vpop.f32.mrb[0].mxu0
      %v2919 = vpop.f32.mrb[0].mxu0
      %2920 = vdwg.mxu0
      %v2921 = vpack.c.bf16 %v2915, %v2915
      %v2922 = vpack.c.bf16 %v2917, %v2917
      %s2923 = scalar_lea.vmem %s7, 128
      %v2924 = vld [vmem:[%s2923] sm:$0xf]
      %v2925 = vld [vmem:[%s2923 + $0x4] sm:$0xf]
      %v2926 = vld [vmem:[%s2923 + $0x8] sm:$0xf]
      %v2927 = vld [vmem:[%s2923 + $0xc] sm:$0xf]
      %v2928 = vld [vmem:[%s2923 + $0x10] sm:$0xf]
      %v2929 = vld [vmem:[%s2923 + $0x14] sm:$0xf]
      %v2930 = vld [vmem:[%s2923 + $0x18] sm:$0xf]
      %v2931 = vld [vmem:[%s2923 + $0x1c] sm:$0xf]
      %v2932 = vld [vmem:[%s2923 + $0x20] sm:$0xf]
      %v2933 = vld [vmem:[%s2923 + $0x24] sm:$0xf]
      %v2934 = vld [vmem:[%s2923 + $0x28] sm:$0xf]
      %v2935 = vld [vmem:[%s2923 + $0x2c] sm:$0xf]
      %v2936 = vld [vmem:[%s2923 + $0x30] sm:$0xf]
      %v2937 = vld [vmem:[%s2923 + $0x34] sm:$0xf]
      %v2938 = vld [vmem:[%s2923 + $0x38] sm:$0xf]
      %v2939 = vld [vmem:[%s2923 + $0x3c] sm:$0xf]
      %v2940 = vld [vmem:[%s2923 + $0x40] sm:$0xf]
      %v2941 = vld [vmem:[%s2923 + $0x44] sm:$0xf]
      %v2942 = vld [vmem:[%s2923 + $0x48] sm:$0xf]
      %v2943 = vld [vmem:[%s2923 + $0x4c] sm:$0xf]
      %v2944 = vld [vmem:[%s2923 + $0x50] sm:$0xf]
      %v2945 = vld [vmem:[%s2923 + $0x54] sm:$0xf]
      %v2946 = vld [vmem:[%s2923 + $0x58] sm:$0xf]
      %v2947 = vld [vmem:[%s2923 + $0x5c] sm:$0xf]
      %v2948 = vld [vmem:[%s2923 + $0x60] sm:$0xf]
      %v2949 = vld [vmem:[%s2923 + $0x64] sm:$0xf]
      %v2950 = vld [vmem:[%s2923 + $0x68] sm:$0xf]
      %v2951 = vld [vmem:[%s2923 + $0x6c] sm:$0xf]
      %v2952 = vld [vmem:[%s2923 + $0x70] sm:$0xf]
      %v2953 = vld [vmem:[%s2923 + $0x74] sm:$0xf]
      %v2954 = vld [vmem:[%s2923 + $0x78] sm:$0xf]
      %v2955 = vld [vmem:[%s2923 + $0x7c] sm:$0xf]
      %v2988 = vunpack.c.l.b16 %v2924
      %v2989 = vunpack.c.l.b16 %v2925
      %v2990 = vunpack.c.l.b16 %v2926
      %v2991 = vunpack.c.l.b16 %v2927
      %v2992 = vunpack.c.l.b16 %v2928
      %v2993 = vunpack.c.l.b16 %v2929
      %v2994 = vunpack.c.l.b16 %v2930
      %v2995 = vunpack.c.l.b16 %v2931
      %v2996 = vunpack.c.l.b16 %v2932
      %v2997 = vunpack.c.l.b16 %v2933
      %v2998 = vunpack.c.l.b16 %v2934
      %v2999 = vunpack.c.l.b16 %v2935
      %v3000 = vunpack.c.l.b16 %v2936
      %v3001 = vunpack.c.l.b16 %v2937
      %v3002 = vunpack.c.l.b16 %v2938
      %v3003 = vunpack.c.l.b16 %v2939
      %v3004 = vunpack.c.l.b16 %v2940
      %v3005 = vunpack.c.l.b16 %v2941
      %v3006 = vunpack.c.l.b16 %v2942
      %v3007 = vunpack.c.l.b16 %v2943
      %v3008 = vunpack.c.l.b16 %v2944
      %v3009 = vunpack.c.l.b16 %v2945
      %v3010 = vunpack.c.l.b16 %v2946
      %v3011 = vunpack.c.l.b16 %v2947
      %v3012 = vunpack.c.l.b16 %v2948
      %v3013 = vunpack.c.l.b16 %v2949
      %v3014 = vunpack.c.l.b16 %v2950
      %v3015 = vunpack.c.l.b16 %v2951
      %v3016 = vunpack.c.l.b16 %v2952
      %v3017 = vunpack.c.l.b16 %v2953
      %v3018 = vunpack.c.l.b16 %v2954
      %v3019 = vunpack.c.l.b16 %v2955
      %v3020 = vpack.c.b16 %v2989, %v2988
      %v3021 = vpack.c.b16 %v2991, %v2990
      %v3022 = vpack.c.b16 %v2993, %v2992
      %v3023 = vpack.c.b16 %v2995, %v2994
      %v3024 = vpack.c.b16 %v2997, %v2996
      %v3025 = vpack.c.b16 %v2999, %v2998
      %v3026 = vpack.c.b16 %v3001, %v3000
      %v3027 = vpack.c.b16 %v3003, %v3002
      %v3028 = vpack.c.b16 %v3005, %v3004
      %v3029 = vpack.c.b16 %v3007, %v3006
      %v3030 = vpack.c.b16 %v3009, %v3008
      %v3031 = vpack.c.b16 %v3011, %v3010
      %v3032 = vpack.c.b16 %v3013, %v3012
      %v3033 = vpack.c.b16 %v3015, %v3014
      %v3034 = vpack.c.b16 %v3017, %v3016
      %v3035 = vpack.c.b16 %v3019, %v3018
      %3052 = vmatprep.subr.bf16.mxu0 0
      %3053 = vmatpush1.bf16.msra.mxu0 %v3020
      %3054 = vmatprep.subr.bf16.mxu0 0
      %3055 = vmatpush1.bf16.msra.mxu0 %v3021
      %3056 = vmatprep.subr.bf16.mxu0 0
      %3057 = vmatpush1.bf16.msra.mxu0 %v3022
      %3058 = vmatprep.subr.bf16.mxu0 0
      %3059 = vmatpush1.bf16.msra.mxu0 %v3023
      %3060 = vmatprep.subr.bf16.mxu0 0
      %3061 = vmatpush1.bf16.msra.mxu0 %v3024
      %3062 = vmatprep.subr.bf16.mxu0 0
      %3063 = vmatpush1.bf16.msra.mxu0 %v3025
      %3064 = vmatprep.subr.bf16.mxu0 0
      %3065 = vmatpush1.bf16.msra.mxu0 %v3026
      %3066 = vmatprep.subr.bf16.mxu0 0
      %3067 = vmatpush1.bf16.msra.mxu0 %v3027
      %3068 = vmatprep.subr.bf16.mxu0 0
      %3069 = vmatpush1.bf16.msra.mxu0 %v3028
      %3070 = vmatprep.subr.bf16.mxu0 0
      %3071 = vmatpush1.bf16.msra.mxu0 %v3029
      %3072 = vmatprep.subr.bf16.mxu0 0
      %3073 = vmatpush1.bf16.msra.mxu0 %v3030
      %3074 = vmatprep.subr.bf16.mxu0 0
      %3075 = vmatpush1.bf16.msra.mxu0 %v3031
      %3076 = vmatprep.subr.bf16.mxu0 0
      %3077 = vmatpush1.bf16.msra.mxu0 %v3032
      %3078 = vmatprep.subr.bf16.mxu0 0
      %3079 = vmatpush1.bf16.msra.mxu0 %v3033
      %3080 = vmatprep.subr.bf16.mxu0 0
      %3081 = vmatpush1.bf16.msra.mxu0 %v3034
      %3082 = vmatprep.subr.bf16.mxu0 0
      %3083 = vmatpush1.bf16.msra.mxu0 %v3035
      %3084 = vmatprep.mubr.bf16.mxu0 %v2922
      %3085 = vmatmul.mubr.bf16.gmra.mrb[0].mxu0 %v2921
      %v3086 = vpop.f32.mrb[0].mxu0
      %v3087 = vadd.f32 0.0, %v3086
      %v3088 = vpop.f32.mrb[0].mxu0
      %v3089 = vpop.f32.mrb[0].mxu0
      %v3090 = vpop.f32.mrb[0].mxu0
      %3091 = vdwg.mxu0
      %v3124 = vunpack.c.l.b16 %v2846
      %v3125 = vunpack.c.l.b16 %v2847
      %v3126 = vunpack.c.l.b16 %v2848
      %v3127 = vunpack.c.l.b16 %v2849
      %v3128 = vunpack.c.l.b16 %v2850
      %v3129 = vunpack.c.l.b16 %v2851
      %v3130 = vunpack.c.l.b16 %v2852
      %v3131 = vunpack.c.l.b16 %v2853
      %v3132 = vunpack.c.l.b16 %v2854
      %v3133 = vunpack.c.l.b16 %v2855
      %v3134 = vunpack.c.l.b16 %v2856
      %v3135 = vunpack.c.l.b16 %v2857
      %v3136 = vunpack.c.l.b16 %v2858
      %v3137 = vunpack.c.l.b16 %v2859
      %v3138 = vunpack.c.l.b16 %v2860
      %v3139 = vunpack.c.l.b16 %v2861
      %v3140 = vunpack.c.l.b16 %v2862
      %v3141 = vunpack.c.l.b16 %v2863
      %v3142 = vunpack.c.l.b16 %v2864
      %v3143 = vunpack.c.l.b16 %v2865
      %v3144 = vunpack.c.l.b16 %v2866
      %v3145 = vunpack.c.l.b16 %v2867
      %v3146 = vunpack.c.l.b16 %v2868
      %v3147 = vunpack.c.l.b16 %v2869
      %v3148 = vunpack.c.l.b16 %v2870
      %v3149 = vunpack.c.l.b16 %v2871
      %v3150 = vunpack.c.l.b16 %v2872
      %v3151 = vunpack.c.l.b16 %v2873
      %v3152 = vunpack.c.l.b16 %v2874
      %v3153 = vunpack.c.l.b16 %v2875
      %v3154 = vunpack.c.l.b16 %v2876
      %v3155 = vunpack.c.l.b16 %v2877
      %v3156 = vpack.c.b16 %v3125, %v3124
      %v3157 = vpack.c.b16 %v3127, %v3126
      %v3158 = vpack.c.b16 %v3129, %v3128
      %v3159 = vpack.c.b16 %v3131, %v3130
      %v3160 = vpack.c.b16 %v3133, %v3132
      %v3161 = vpack.c.b16 %v3135, %v3134
      %v3162 = vpack.c.b16 %v3137, %v3136
      %v3163 = vpack.c.b16 %v3139, %v3138
      %v3164 = vpack.c.b16 %v3141, %v3140
      %v3165 = vpack.c.b16 %v3143, %v3142
      %v3166 = vpack.c.b16 %v3145, %v3144
      %v3167 = vpack.c.b16 %v3147, %v3146
      %v3168 = vpack.c.b16 %v3149, %v3148
      %v3169 = vpack.c.b16 %v3151, %v3150
      %v3170 = vpack.c.b16 %v3153, %v3152
      %v3171 = vpack.c.b16 %v3155, %v3154
      %3188 = vmatprep.subr.bf16.mxu0 0
      %3189 = vmatpush1.bf16.msra.mxu0 %v3156
      %3190 = vmatprep.subr.bf16.mxu0 0
      %3191 = vmatpush1.bf16.msra.mxu0 %v3157
      %3192 = vmatprep.subr.bf16.mxu0 0
      %3193 = vmatpush1.bf16.msra.mxu0 %v3158
      %3194 = vmatprep.subr.bf16.mxu0 0
      %3195 = vmatpush1.bf16.msra.mxu0 %v3159
      %3196 = vmatprep.subr.bf16.mxu0 0
      %3197 = vmatpush1.bf16.msra.mxu0 %v3160
      %3198 = vmatprep.subr.bf16.mxu0 0
      %3199 = vmatpush1.bf16.msra.mxu0 %v3161
      %3200 = vmatprep.subr.bf16.mxu0 0
      %3201 = vmatpush1.bf16.msra.mxu0 %v3162
      %3202 = vmatprep.subr.bf16.mxu0 0
      %3203 = vmatpush1.bf16.msra.mxu0 %v3163
      %3204 = vmatprep.subr.bf16.mxu0 0
      %3205 = vmatpush1.bf16.msra.mxu0 %v3164
      %3206 = vmatprep.subr.bf16.mxu0 0
      %3207 = vmatpush1.bf16.msra.mxu0 %v3165
      %3208 = vmatprep.subr.bf16.mxu0 0
      %3209 = vmatpush1.bf16.msra.mxu0 %v3166
      %3210 = vmatprep.subr.bf16.mxu0 0
      %3211 = vmatpush1.bf16.msra.mxu0 %v3167
      %3212 = vmatprep.subr.bf16.mxu0 0
      %3213 = vmatpush1.bf16.msra.mxu0 %v3168
      %3214 = vmatprep.subr.bf16.mxu0 0
      %3215 = vmatpush1.bf16.msra.mxu0 %v3169
      %3216 = vmatprep.subr.bf16.mxu0 0
      %3217 = vmatpush1.bf16.msra.mxu0 %v3170
      %3218 = vmatprep.subr.bf16.mxu0 0
      %3219 = vmatpush1.bf16.msra.mxu0 %v3171
      %3220 = vmatprep.mubr.bf16.mxu0 %v2845
      %3221 = vmatmul.mubr.bf16.gmra.mrb[0].mxu0 %v2844
      %v3222 = vpop.f32.mrb[0].mxu0
      %v3223 = vadd.f32 %v3087, %v3222
      %v3224 = vpop.f32.mrb[0].mxu0
      %v3225 = vpop.f32.mrb[0].mxu0
      %v3226 = vpop.f32.mrb[0].mxu0
      %3227 = vdwg.mxu0
      %v3228 = vsel %vm2793, %v2492, 0
      %3230 = vmatprep.subr.bf16.mxu0 %v2801
      %3231 = vmatpush1.bf16.msra.mxu0 %v2798
      %3232 = vmatprep.subr.bf16.mxu0 0
      %3233 = vmatpush1.bf16.msra.mxu0 0
      %3234 = vmatprep.subr.bf16.mxu0 0
      %3235 = vmatpush1.bf16.msra.mxu0 0
      %3236 = vmatprep.subr.bf16.mxu0 0
      %3237 = vmatpush1.bf16.msra.mxu0 0
      %3238 = vmatprep.subr.bf16.mxu0 0
      %3239 = vmatpush1.bf16.msra.mxu0 0
      %3240 = vmatprep.subr.bf16.mxu0 0
      %3241 = vmatpush1.bf16.msra.mxu0 0
      %3242 = vmatprep.subr.bf16.mxu0 0
      %3243 = vmatpush1.bf16.msra.mxu0 0
      %3244 = vmatprep.subr.bf16.mxu0 0
      %3245 = vmatpush1.bf16.msra.mxu0 0
      %3246 = vmatprep.subr.bf16.mxu0 0
      %3247 = vmatpush1.bf16.msra.mxu0 0
      %3248 = vmatprep.subr.bf16.mxu0 0
      %3249 = vmatpush1.bf16.msra.mxu0 0
      %3250 = vmatprep.subr.bf16.mxu0 0
      %3251 = vmatpush1.bf16.msra.mxu0 0
      %3252 = vmatprep.subr.bf16.mxu0 0
      %3253 = vmatpush1.bf16.msra.mxu0 0
      %3254 = vmatprep.subr.bf16.mxu0 0
      %3255 = vmatpush1.bf16.msra.mxu0 0
      %3256 = vmatprep.subr.bf16.mxu0 0
      %3257 = vmatpush1.bf16.msra.mxu0 0
      %3258 = vmatprep.subr.bf16.mxu0 0
      %3259 = vmatpush1.bf16.msra.mxu0 0
      %3260 = vmatprep.subr.bf16.mxu0 0
      %3261 = vmatpush1.bf16.msra.mxu0 0
      %3262 = vmatprep.mubr.bf16.mxu0 0
      %3263 = vmatmul.mubr.bf16.gmra.mrb[0].mxu0 %v3228
      %v3264 = vpop.f32.mrb[0].mxu0
      %v3265 = vadd.f32 0.0, %v3264
      %v3266 = vpop.f32.mrb[0].mxu0
      %v3267 = vadd.f32 0.0, %v3266
      %v3268 = vpop.f32.mrb[0].mxu0
      %v3269 = vpop.f32.mrb[0].mxu0
      %3270 = vdwg.mxu0
      %v3271 = vpack.c.bf16 %v3265, %v3265
      %v3272 = vpack.c.bf16 %v3267, %v3267
      %s3273 = scalar_lea.vmem %s7, 256
      %v3274 = vld [vmem:[%s3273] sm:$0xf]
      %v3275 = vld [vmem:[%s3273 + $0x4] sm:$0xf]
      %v3276 = vld [vmem:[%s3273 + $0x8] sm:$0xf]
      %v3277 = vld [vmem:[%s3273 + $0xc] sm:$0xf]
      %v3278 = vld [vmem:[%s3273 + $0x10] sm:$0xf]
      %v3279 = vld [vmem:[%s3273 + $0x14] sm:$0xf]
      %v3280 = vld [vmem:[%s3273 + $0x18] sm:$0xf]
      %v3281 = vld [vmem:[%s3273 + $0x1c] sm:$0xf]
      %v3282 = vld [vmem:[%s3273 + $0x20] sm:$0xf]
      %v3283 = vld [vmem:[%s3273 + $0x24] sm:$0xf]
      %v3284 = vld [vmem:[%s3273 + $0x28] sm:$0xf]
      %v3285 = vld [vmem:[%s3273 + $0x2c] sm:$0xf]
      %v3286 = vld [vmem:[%s3273 + $0x30] sm:$0xf]
      %v3287 = vld [vmem:[%s3273 + $0x34] sm:$0xf]
      %v3288 = vld [vmem:[%s3273 + $0x38] sm:$0xf]
      %v3289 = vld [vmem:[%s3273 + $0x3c] sm:$0xf]
      %v3290 = vld [vmem:[%s3273 + $0x40] sm:$0xf]
      %v3291 = vld [vmem:[%s3273 + $0x44] sm:$0xf]
      %v3292 = vld [vmem:[%s3273 + $0x48] sm:$0xf]
      %v3293 = vld [vmem:[%s3273 + $0x4c] sm:$0xf]
      %v3294 = vld [vmem:[%s3273 + $0x50] sm:$0xf]
      %v3295 = vld [vmem:[%s3273 + $0x54] sm:$0xf]
      %v3296 = vld [vmem:[%s3273 + $0x58] sm:$0xf]
      %v3297 = vld [vmem:[%s3273 + $0x5c] sm:$0xf]
      %v3298 = vld [vmem:[%s3273 + $0x60] sm:$0xf]
      %v3299 = vld [vmem:[%s3273 + $0x64] sm:$0xf]
      %v3300 = vld [vmem:[%s3273 + $0x68] sm:$0xf]
      %v3301 = vld [vmem:[%s3273 + $0x6c] sm:$0xf]
      %v3302 = vld [vmem:[%s3273 + $0x70] sm:$0xf]
      %v3303 = vld [vmem:[%s3273 + $0x74] sm:$0xf]
      %v3304 = vld [vmem:[%s3273 + $0x78] sm:$0xf]
      %v3305 = vld [vmem:[%s3273 + $0x7c] sm:$0xf]
      %v3338 = vunpack.c.l.b16 %v3274
      %v3339 = vunpack.c.l.b16 %v3275
      %v3340 = vunpack.c.l.b16 %v3276
      %v3341 = vunpack.c.l.b16 %v3277
      %v3342 = vunpack.c.l.b16 %v3278
      %v3343 = vunpack.c.l.b16 %v3279
      %v3344 = vunpack.c.l.b16 %v3280
      %v3345 = vunpack.c.l.b16 %v3281
      %v3346 = vunpack.c.l.b16 %v3282
      %v3347 = vunpack.c.l.b16 %v3283
      %v3348 = vunpack.c.l.b16 %v3284
      %v3349 = vunpack.c.l.b16 %v3285
      %v3350 = vunpack.c.l.b16 %v3286
      %v3351 = vunpack.c.l.b16 %v3287
      %v3352 = vunpack.c.l.b16 %v3288
      %v3353 = vunpack.c.l.b16 %v3289
      %v3354 = vunpack.c.l.b16 %v3290
      %v3355 = vunpack.c.l.b16 %v3291
      %v3356 = vunpack.c.l.b16 %v3292
      %v3357 = vunpack.c.l.b16 %v3293
      %v3358 = vunpack.c.l.b16 %v3294
      %v3359 = vunpack.c.l.b16 %v3295
      %v3360 = vunpack.c.l.b16 %v3296
      %v3361 = vunpack.c.l.b16 %v3297
      %v3362 = vunpack.c.l.b16 %v3298
      %v3363 = vunpack.c.l.b16 %v3299
      %v3364 = vunpack.c.l.b16 %v3300
      %v3365 = vunpack.c.l.b16 %v3301
      %v3366 = vunpack.c.l.b16 %v3302
      %v3367 = vunpack.c.l.b16 %v3303
      %v3368 = vunpack.c.l.b16 %v3304
      %v3369 = vunpack.c.l.b16 %v3305
      %v3370 = vpack.c.b16 %v3339, %v3338
      %v3371 = vpack.c.b16 %v3341, %v3340
      %v3372 = vpack.c.b16 %v3343, %v3342
      %v3373 = vpack.c.b16 %v3345, %v3344
      %v3374 = vpack.c.b16 %v3347, %v3346
      %v3375 = vpack.c.b16 %v3349, %v3348
      %v3376 = vpack.c.b16 %v3351, %v3350
      %v3377 = vpack.c.b16 %v3353, %v3352
      %v3378 = vpack.c.b16 %v3355, %v3354
      %v3379 = vpack.c.b16 %v3357, %v3356
      %v3380 = vpack.c.b16 %v3359, %v3358
      %v3381 = vpack.c.b16 %v3361, %v3360
      %v3382 = vpack.c.b16 %v3363, %v3362
      %v3383 = vpack.c.b16 %v3365, %v3364
      %v3384 = vpack.c.b16 %v3367, %v3366
      %v3385 = vpack.c.b16 %v3369, %v3368
      %3402 = vmatprep.subr.bf16.mxu0 0
      %3403 = vmatpush1.bf16.msra.mxu0 %v3370
      %3404 = vmatprep.subr.bf16.mxu0 0
      %3405 = vmatpush1.bf16.msra.mxu0 %v3371
      %3406 = vmatprep.subr.bf16.mxu0 0
      %3407 = vmatpush1.bf16.msra.mxu0 %v3372
      %3408 = vmatprep.subr.bf16.mxu0 0
      %3409 = vmatpush1.bf16.msra.mxu0 %v3373
      %3410 = vmatprep.subr.bf16.mxu0 0
      %3411 = vmatpush1.bf16.msra.mxu0 %v3374
      %3412 = vmatprep.subr.bf16.mxu0 0
      %3413 = vmatpush1.bf16.msra.mxu0 %v3375
      %3414 = vmatprep.subr.bf16.mxu0 0
      %3415 = vmatpush1.bf16.msra.mxu0 %v3376
      %3416 = vmatprep.subr.bf16.mxu0 0
      %3417 = vmatpush1.bf16.msra.mxu0 %v3377
      %3418 = vmatprep.subr.bf16.mxu0 0
      %3419 = vmatpush1.bf16.msra.mxu0 %v3378
      %3420 = vmatprep.subr.bf16.mxu0 0
      %3421 = vmatpush1.bf16.msra.mxu0 %v3379
      %3422 = vmatprep.subr.bf16.mxu0 0
      %3423 = vmatpush1.bf16.msra.mxu0 %v3380
      %3424 = vmatprep.subr.bf16.mxu0 0
      %3425 = vmatpush1.bf16.msra.mxu0 %v3381
      %3426 = vmatprep.subr.bf16.mxu0 0
      %3427 = vmatpush1.bf16.msra.mxu0 %v3382
      %3428 = vmatprep.subr.bf16.mxu0 0
      %3429 = vmatpush1.bf16.msra.mxu0 %v3383
      %3430 = vmatprep.subr.bf16.mxu0 0
      %3431 = vmatpush1.bf16.msra.mxu0 %v3384
      %3432 = vmatprep.subr.bf16.mxu0 0
      %3433 = vmatpush1.bf16.msra.mxu0 %v3385
      %3434 = vmatprep.mubr.bf16.mxu0 %v3272
      %3435 = vmatmul.mubr.bf16.gmra.mrb[0].mxu0 %v3271
      %v3436 = vpop.f32.mrb[0].mxu0
      %v3437 = vadd.f32 0.0, %v3436
      %v3438 = vpop.f32.mrb[0].mxu0
      %v3439 = vpop.f32.mrb[0].mxu0
      %v3440 = vpop.f32.mrb[0].mxu0
      %3441 = vdwg.mxu0
      %v3442 = vadd.f32 %v3223, %v3437
      %v3443 = vld [vmem:[%s8] sm:$0x1]
      %v3445 = vlaneseq
      %v3446 = vshrl.u32 %v3445, 7
      %v3447 = vsub.s32 0, %v3446
      %v3448 = vrot.slane %v3443, %v3447
      %v3450 = vadd.f32 %v3442, %v3448
      %v3451 = vmax.f32 %v3450, 0.0
      %v3452 = vpack.c.bf16 %v3451, %v3451
      %3453 = vmatprep.subr.bf16.mxu0 %v1921
      %3454 = vmatpush1.bf16.msra.mxu0 %v1920
      %3455 = vmatprep.subr.bf16.mxu0 0
      %3456 = vmatpush1.bf16.msra.mxu0 0
      %3457 = vmatprep.subr.bf16.mxu0 0
      %3458 = vmatpush1.bf16.msra.mxu0 0
      %3459 = vmatprep.subr.bf16.mxu0 0
      %3460 = vmatpush1.bf16.msra.mxu0 0
      %3461 = vmatprep.subr.bf16.mxu0 0
      %3462 = vmatpush1.bf16.msra.mxu0 0
      %3463 = vmatprep.subr.bf16.mxu0 0
      %3464 = vmatpush1.bf16.msra.mxu0 0
      %3465 = vmatprep.subr.bf16.mxu0 0
      %3466 = vmatpush1.bf16.msra.mxu0 0
      %3467 = vmatprep.subr.bf16.mxu0 0
      %3468 = vmatpush1.bf16.msra.mxu0 0
      %3469 = vmatprep.subr.bf16.mxu0 0
      %3470 = vmatpush1.bf16.msra.mxu0 0
      %3471 = vmatprep.subr.bf16.mxu0 0
      %3472 = vmatpush1.bf16.msra.mxu0 0
      %3473 = vmatprep.subr.bf16.mxu0 0
      %3474 = vmatpush1.bf16.msra.mxu0 0
      %3475 = vmatprep.subr.bf16.mxu0 0
      %3476 = vmatpush1.bf16.msra.mxu0 0
      %3477 = vmatprep.subr.bf16.mxu0 0
      %3478 = vmatpush1.bf16.msra.mxu0 0
      %3479 = vmatprep.subr.bf16.mxu0 0
      %3480 = vmatpush1.bf16.msra.mxu0 0
      %3481 = vmatprep.subr.bf16.mxu0 0
      %3482 = vmatpush1.bf16.msra.mxu0 0
      %3483 = vmatprep.subr.bf16.mxu0 0
      %3484 = vmatpush1.bf16.msra.mxu0 0
      %3485 = vmatprep.mubr.bf16.mxu0 0
      %3486 = vmatmul.mubr.bf16.gmra.mrb[0].mxu0 %v597
      %v3487 = vpop.f32.mrb[0].mxu0
      %v3488 = vadd.f32 0.0, %v3487
      %v3489 = vpop.f32.mrb[0].mxu0
      %v3490 = vadd.f32 0.0, %v3489
      %v3491 = vpop.f32.mrb[0].mxu0
      %v3492 = vadd.f32 0.0, %v3491
      %v3493 = vpop.f32.mrb[0].mxu0
      %v3494 = vadd.f32 0.0, %v3493
      %3495 = vdwg.mxu0
      %v3496 = vpack.c.bf16 %v3492, %v3488
      %v3497 = vpack.c.bf16 %v3494, %v3490
      %v3498 = vld [vmem:[%s9] sm:$0xff]
      %v3499 = vld [vmem:[%s9 + $0x8] sm:$0xff]
      %v3500 = vld [vmem:[%s9 + $0x10] sm:$0xf]
      %v3501 = vld [vmem:[%s9 + $0x14] sm:$0xff]
      %v3502 = vld [vmem:[%s9 + $0x1c] sm:$0xff]
      %v3503 = vld [vmem:[%s9 + $0x24] sm:$0xf]
      %v3504 = vld [vmem:[%s9 + $0x28] sm:$0xff]
      %v3505 = vld [vmem:[%s9 + $0x30] sm:$0xff]
      %v3506 = vld [vmem:[%s9 + $0x38] sm:$0xf]
      %v3507 = vld [vmem:[%s9 + $0x3c] sm:$0xff]
      %v3508 = vld [vmem:[%s9 + $0x44] sm:$0xff]
      %v3509 = vld [vmem:[%s9 + $0x4c] sm:$0xf]
      %v3510 = vld [vmem:[%s9 + $0x50] sm:$0xff]
      %v3511 = vld [vmem:[%s9 + $0x58] sm:$0xff]
      %v3512 = vld [vmem:[%s9 + $0x60] sm:$0xf]
      %v3513 = vld [vmem:[%s9 + $0x64] sm:$0xff]
      %v3514 = vld [vmem:[%s9 + $0x6c] sm:$0xff]
      %v3515 = vld [vmem:[%s9 + $0x74] sm:$0xf]
      %v3516 = vld [vmem:[%s9 + $0x78] sm:$0xff]
      %v3517 = vld [vmem:[%s9 + $0x80] sm:$0xff]
      %v3518 = vld [vmem:[%s9 + $0x88] sm:$0xf]
      %v3519 = vld [vmem:[%s9 + $0x8c] sm:$0xff]
      %v3520 = vld [vmem:[%s9 + $0x94] sm:$0xff]
      %v3521 = vld [vmem:[%s9 + $0x9c] sm:$0xf]
      %v3522 = vld [vmem:[%s9 + $0xa0] sm:$0xff]
      %v3523 = vld [vmem:[%s9 + $0xa8] sm:$0xff]
      %v3524 = vld [vmem:[%s9 + $0xb0] sm:$0xf]
      %v3525 = vld [vmem:[%s9 + $0xb4] sm:$0xff]
      %v3526 = vld [vmem:[%s9 + $0xbc] sm:$0xff]
      %v3527 = vld [vmem:[%s9 + $0xc4] sm:$0xf]
      %v3528 = vld [vmem:[%s9 + $0xc8] sm:$0xff]
      %v3529 = vld [vmem:[%s9 + $0xd0] sm:$0xff]
      %v3530 = vld [vmem:[%s9 + $0xd8] sm:$0xf]
      %v3531 = vld [vmem:[%s9 + $0xdc] sm:$0xff]
      %v3532 = vld [vmem:[%s9 + $0xe4] sm:$0xff]
      %v3533 = vld [vmem:[%s9 + $0xec] sm:$0xf]
      %v3534 = vld [vmem:[%s9 + $0xf0] sm:$0xff]
      %v3535 = vld [vmem:[%s9 + $0xf8] sm:$0xff]
      %v3536 = vld [vmem:[%s9 + $0x100] sm:$0xf]
      %v3537 = vld [vmem:[%s9 + $0x104] sm:$0xff]
      %v3538 = vld [vmem:[%s9 + $0x10c] sm:$0xff]
      %v3539 = vld [vmem:[%s9 + $0x114] sm:$0xf]
      %v3540 = vld [vmem:[%s9 + $0x118] sm:$0xff]
      %v3541 = vld [vmem:[%s9 + $0x120] sm:$0xff]
      %v3542 = vld [vmem:[%s9 + $0x128] sm:$0xf]
      %v3543 = vld [vmem:[%s9 + $0x12c] sm:$0xff]
      %v3544 = vld [vmem:[%s9 + $0x134] sm:$0xff]
      %v3545 = vld [vmem:[%s9 + $0x13c] sm:$0xf]
      %v3546 = vld [vmem:[%s9 + $0x140] sm:$0xff]
      %v3547 = vld [vmem:[%s9 + $0x148] sm:$0xff]
      %v3548 = vld [vmem:[%s9 + $0x150] sm:$0xf]
      %v3549 = vld [vmem:[%s9 + $0x154] sm:$0xff]
      %v3550 = vld [vmem:[%s9 + $0x15c] sm:$0xff]
      %v3551 = vld [vmem:[%s9 + $0x164] sm:$0xf]
      %v3552 = vld [vmem:[%s9 + $0x168] sm:$0xff]
      %v3553 = vld [vmem:[%s9 + $0x170] sm:$0xff]
      %v3554 = vld [vmem:[%s9 + $0x178] sm:$0xf]
      %v3555 = vld [vmem:[%s9 + $0x17c] sm:$0xff]
      %v3556 = vld [vmem:[%s9 + $0x184] sm:$0xff]
      %v3557 = vld [vmem:[%s9 + $0x18c] sm:$0xf]
      %v3558 = vld [vmem:[%s9 + $0x190] sm:$0xff]
      %v3559 = vld [vmem:[%s9 + $0x198] sm:$0xff]
      %v3560 = vld [vmem:[%s9 + $0x1a0] sm:$0xf]
      %v3561 = vld [vmem:[%s9 + $0x1a4] sm:$0xff]
      %v3562 = vld [vmem:[%s9 + $0x1ac] sm:$0xff]
      %v3563 = vld [vmem:[%s9 + $0x1b4] sm:$0xf]
      %v3564 = vld [vmem:[%s9 + $0x1b8] sm:$0xff]
      %v3565 = vld [vmem:[%s9 + $0x1c0] sm:$0xff]
      %v3566 = vld [vmem:[%s9 + $0x1c8] sm:$0xf]
      %v3567 = vld [vmem:[%s9 + $0x1cc] sm:$0xff]
      %v3568 = vld [vmem:[%s9 + $0x1d4] sm:$0xff]
      %v3569 = vld [vmem:[%s9 + $0x1dc] sm:$0xf]
      %v3570 = vld [vmem:[%s9 + $0x1e0] sm:$0xff]
      %v3571 = vld [vmem:[%s9 + $0x1e8] sm:$0xff]
      %v3572 = vld [vmem:[%s9 + $0x1f0] sm:$0xf]
      %v3573 = vld [vmem:[%s9 + $0x1f4] sm:$0xff]
      %v3574 = vld [vmem:[%s9 + $0x1fc] sm:$0xff]
      %v3575 = vld [vmem:[%s9 + $0x204] sm:$0xf]
      %v3576 = vld [vmem:[%s9 + $0x208] sm:$0xff]
      %v3577 = vld [vmem:[%s9 + $0x210] sm:$0xff]
      %v3578 = vld [vmem:[%s9 + $0x218] sm:$0xf]
      %v3579 = vld [vmem:[%s9 + $0x21c] sm:$0xff]
      %v3580 = vld [vmem:[%s9 + $0x224] sm:$0xff]
      %v3581 = vld [vmem:[%s9 + $0x22c] sm:$0xf]
      %v3582 = vld [vmem:[%s9 + $0x230] sm:$0xff]
      %v3583 = vld [vmem:[%s9 + $0x238] sm:$0xff]
      %v3584 = vld [vmem:[%s9 + $0x240] sm:$0xf]
      %v3585 = vld [vmem:[%s9 + $0x244] sm:$0xff]
      %v3586 = vld [vmem:[%s9 + $0x24c] sm:$0xff]
      %v3587 = vld [vmem:[%s9 + $0x254] sm:$0xf]
      %v3588 = vld [vmem:[%s9 + $0x258] sm:$0xff]
      %v3589 = vld [vmem:[%s9 + $0x260] sm:$0xff]
      %v3590 = vld [vmem:[%s9 + $0x268] sm:$0xf]
      %v3591 = vld [vmem:[%s9 + $0x26c] sm:$0xff]
      %v3592 = vld [vmem:[%s9 + $0x274] sm:$0xff]
      %v3593 = vld [vmem:[%s9 + $0x27c] sm:$0xf]
      %3594 = vmatprep.subr.bf16.mxu0 %v1921
      %3595 = vmatpush1.bf16.msra.mxu0 %v1920
      %3596 = vmatprep.subr.bf16.mxu0 0
      %3597 = vmatpush1.bf16.msra.mxu0 0
      %3598 = vmatprep.subr.bf16.mxu0 0
      %3599 = vmatpush1.bf16.msra.mxu0 0
      %3600 = vmatprep.subr.bf16.mxu0 0
      %3601 = vmatpush1.bf16.msra.mxu0 0
      %3602 = vmatprep.subr.bf16.mxu0 0
      %3603 = vmatpush1.bf16.msra.mxu0 0
      %3604 = vmatprep.subr.bf16.mxu0 0
      %3605 = vmatpush1.bf16.msra.mxu0 0
      %3606 = vmatprep.subr.bf16.mxu0 0
      %3607 = vmatpush1.bf16.msra.mxu0 0
      %3608 = vmatprep.subr.bf16.mxu0 0
      %3609 = vmatpush1.bf16.msra.mxu0 0
      %3610 = vmatprep.subr.bf16.mxu0 0
      %3611 = vmatpush1.bf16.msra.mxu0 0
      %3612 = vmatprep.subr.bf16.mxu0 0
      %3613 = vmatpush1.bf16.msra.mxu0 0
      %3614 = vmatprep.subr.bf16.mxu0 0
      %3615 = vmatpush1.bf16.msra.mxu0 0
      %3616 = vmatprep.subr.bf16.mxu0 0
      %3617 = vmatpush1.bf16.msra.mxu0 0
      %3618 = vmatprep.subr.bf16.mxu0 0
      %3619 = vmatpush1.bf16.msra.mxu0 0
      %3620 = vmatprep.subr.bf16.mxu0 0
      %3621 = vmatpush1.bf16.msra.mxu0 0
      %3622 = vmatprep.subr.bf16.mxu0 0
      %3623 = vmatpush1.bf16.msra.mxu0 0
      %3624 = vmatprep.subr.bf16.mxu0 0
      %3625 = vmatpush1.bf16.msra.mxu0 0
      %3626 = vmatprep.mubr.bf16.mxu0 0
      %3627 = vmatmul.mubr.bf16.gmra.mrb[0].mxu0 %v655
      %v3628 = vpop.f32.mrb[0].mxu0
      %v3629 = vadd.f32 0.0, %v3628
      %v3630 = vpop.f32.mrb[0].mxu0
      %v3631 = vadd.f32 0.0, %v3630
      %v3632 = vpop.f32.mrb[0].mxu0
      %v3633 = vadd.f32 0.0, %v3632
      %v3634 = vpop.f32.mrb[0].mxu0
      %v3635 = vadd.f32 0.0, %v3634
      %3636 = vdwg.mxu0
      %v3637 = vpack.c.bf16 %v3633, %v3629
      %v3638 = vpack.c.bf16 %v3635, %v3631
      %s3639 = scalar_lea.vmem %s9, 640
      %v3640 = vld [vmem:[%s3639] sm:$0xff]
      %v3641 = vld [vmem:[%s3639 + $0x8] sm:$0xff]
      %v3642 = vld [vmem:[%s3639 + $0x10] sm:$0xf]
      %v3643 = vld [vmem:[%s3639 + $0x14] sm:$0xff]
      %v3644 = vld [vmem:[%s3639 + $0x1c] sm:$0xff]
      %v3645 = vld [vmem:[%s3639 + $0x24] sm:$0xf]
      %v3646 = vld [vmem:[%s3639 + $0x28] sm:$0xff]
      %v3647 = vld [vmem:[%s3639 + $0x30] sm:$0xff]
      %v3648 = vld [vmem:[%s3639 + $0x38] sm:$0xf]
      %v3649 = vld [vmem:[%s3639 + $0x3c] sm:$0xff]
      %v3650 = vld [vmem:[%s3639 + $0x44] sm:$0xff]
      %v3651 = vld [vmem:[%s3639 + $0x4c] sm:$0xf]
      %v3652 = vld [vmem:[%s3639 + $0x50] sm:$0xff]
      %v3653 = vld [vmem:[%s3639 + $0x58] sm:$0xff]
      %v3654 = vld [vmem:[%s3639 + $0x60] sm:$0xf]
      %v3655 = vld [vmem:[%s3639 + $0x64] sm:$0xff]
      %v3656 = vld [vmem:[%s3639 + $0x6c] sm:$0xff]
      %v3657 = vld [vmem:[%s3639 + $0x74] sm:$0xf]
      %v3658 = vld [vmem:[%s3639 + $0x78] sm:$0xff]
      %v3659 = vld [vmem:[%s3639 + $0x80] sm:$0xff]
      %v3660 = vld [vmem:[%s3639 + $0x88] sm:$0xf]
      %v3661 = vld [vmem:[%s3639 + $0x8c] sm:$0xff]
      %v3662 = vld [vmem:[%s3639 + $0x94] sm:$0xff]
      %v3663 = vld [vmem:[%s3639 + $0x9c] sm:$0xf]
      %v3664 = vld [vmem:[%s3639 + $0xa0] sm:$0xff]
      %v3665 = vld [vmem:[%s3639 + $0xa8] sm:$0xff]
      %v3666 = vld [vmem:[%s3639 + $0xb0] sm:$0xf]
      %v3667 = vld [vmem:[%s3639 + $0xb4] sm:$0xff]
      %v3668 = vld [vmem:[%s3639 + $0xbc] sm:$0xff]
      %v3669 = vld [vmem:[%s3639 + $0xc4] sm:$0xf]
      %v3670 = vld [vmem:[%s3639 + $0xc8] sm:$0xff]
      %v3671 = vld [vmem:[%s3639 + $0xd0] sm:$0xff]
      %v3672 = vld [vmem:[%s3639 + $0xd8] sm:$0xf]
      %v3673 = vld [vmem:[%s3639 + $0xdc] sm:$0xff]
      %v3674 = vld [vmem:[%s3639 + $0xe4] sm:$0xff]
      %v3675 = vld [vmem:[%s3639 + $0xec] sm:$0xf]
      %v3676 = vld [vmem:[%s3639 + $0xf0] sm:$0xff]
      %v3677 = vld [vmem:[%s3639 + $0xf8] sm:$0xff]
      %v3678 = vld [vmem:[%s3639 + $0x100] sm:$0xf]
      %v3679 = vld [vmem:[%s3639 + $0x104] sm:$0xff]
      %v3680 = vld [vmem:[%s3639 + $0x10c] sm:$0xff]
      %v3681 = vld [vmem:[%s3639 + $0x114] sm:$0xf]
      %v3682 = vld [vmem:[%s3639 + $0x118] sm:$0xff]
      %v3683 = vld [vmem:[%s3639 + $0x120] sm:$0xff]
      %v3684 = vld [vmem:[%s3639 + $0x128] sm:$0xf]
      %v3685 = vld [vmem:[%s3639 + $0x12c] sm:$0xff]
      %v3686 = vld [vmem:[%s3639 + $0x134] sm:$0xff]
      %v3687 = vld [vmem:[%s3639 + $0x13c] sm:$0xf]
      %v3688 = vld [vmem:[%s3639 + $0x140] sm:$0xff]
      %v3689 = vld [vmem:[%s3639 + $0x148] sm:$0xff]
      %v3690 = vld [vmem:[%s3639 + $0x150] sm:$0xf]
      %v3691 = vld [vmem:[%s3639 + $0x154] sm:$0xff]
      %v3692 = vld [vmem:[%s3639 + $0x15c] sm:$0xff]
      %v3693 = vld [vmem:[%s3639 + $0x164] sm:$0xf]
      %v3694 = vld [vmem:[%s3639 + $0x168] sm:$0xff]
      %v3695 = vld [vmem:[%s3639 + $0x170] sm:$0xff]
      %v3696 = vld [vmem:[%s3639 + $0x178] sm:$0xf]
      %v3697 = vld [vmem:[%s3639 + $0x17c] sm:$0xff]
      %v3698 = vld [vmem:[%s3639 + $0x184] sm:$0xff]
      %v3699 = vld [vmem:[%s3639 + $0x18c] sm:$0xf]
      %v3700 = vld [vmem:[%s3639 + $0x190] sm:$0xff]
      %v3701 = vld [vmem:[%s3639 + $0x198] sm:$0xff]
      %v3702 = vld [vmem:[%s3639 + $0x1a0] sm:$0xf]
      %v3703 = vld [vmem:[%s3639 + $0x1a4] sm:$0xff]
      %v3704 = vld [vmem:[%s3639 + $0x1ac] sm:$0xff]
      %v3705 = vld [vmem:[%s3639 + $0x1b4] sm:$0xf]
      %v3706 = vld [vmem:[%s3639 + $0x1b8] sm:$0xff]
      %v3707 = vld [vmem:[%s3639 + $0x1c0] sm:$0xff]
      %v3708 = vld [vmem:[%s3639 + $0x1c8] sm:$0xf]
      %v3709 = vld [vmem:[%s3639 + $0x1cc] sm:$0xff]
      %v3710 = vld [vmem:[%s3639 + $0x1d4] sm:$0xff]
      %v3711 = vld [vmem:[%s3639 + $0x1dc] sm:$0xf]
      %v3712 = vld [vmem:[%s3639 + $0x1e0] sm:$0xff]
      %v3713 = vld [vmem:[%s3639 + $0x1e8] sm:$0xff]
      %v3714 = vld [vmem:[%s3639 + $0x1f0] sm:$0xf]
      %v3715 = vld [vmem:[%s3639 + $0x1f4] sm:$0xff]
      %v3716 = vld [vmem:[%s3639 + $0x1fc] sm:$0xff]
      %v3717 = vld [vmem:[%s3639 + $0x204] sm:$0xf]
      %v3718 = vld [vmem:[%s3639 + $0x208] sm:$0xff]
      %v3719 = vld [vmem:[%s3639 + $0x210] sm:$0xff]
      %v3720 = vld [vmem:[%s3639 + $0x218] sm:$0xf]
      %v3721 = vld [vmem:[%s3639 + $0x21c] sm:$0xff]
      %v3722 = vld [vmem:[%s3639 + $0x224] sm:$0xff]
      %v3723 = vld [vmem:[%s3639 + $0x22c] sm:$0xf]
      %v3724 = vld [vmem:[%s3639 + $0x230] sm:$0xff]
      %v3725 = vld [vmem:[%s3639 + $0x238] sm:$0xff]
      %v3726 = vld [vmem:[%s3639 + $0x240] sm:$0xf]
      %v3727 = vld [vmem:[%s3639 + $0x244] sm:$0xff]
      %v3728 = vld [vmem:[%s3639 + $0x24c] sm:$0xff]
      %v3729 = vld [vmem:[%s3639 + $0x254] sm:$0xf]
      %v3730 = vld [vmem:[%s3639 + $0x258] sm:$0xff]
      %v3731 = vld [vmem:[%s3639 + $0x260] sm:$0xff]
      %v3732 = vld [vmem:[%s3639 + $0x268] sm:$0xf]
      %v3733 = vld [vmem:[%s3639 + $0x26c] sm:$0xff]
      %v3734 = vld [vmem:[%s3639 + $0x274] sm:$0xff]
      %v3735 = vld [vmem:[%s3639 + $0x27c] sm:$0xf]
      %v3832 = vunpack.c.l.b16 %v3640
      %v3833 = vunpack.c.h.b16 %v3640
      %v3834 = vunpack.c.l.b16 %v3641
      %v3835 = vunpack.c.h.b16 %v3641
      %v3836 = vunpack.c.l.b16 %v3642
      %v3837 = vunpack.c.l.b16 %v3643
      %v3838 = vunpack.c.h.b16 %v3643
      %v3839 = vunpack.c.l.b16 %v3644
      %v3840 = vunpack.c.h.b16 %v3644
      %v3841 = vunpack.c.l.b16 %v3645
      %v3842 = vunpack.c.l.b16 %v3646
      %v3843 = vunpack.c.h.b16 %v3646
      %v3844 = vunpack.c.l.b16 %v3647
      %v3845 = vunpack.c.h.b16 %v3647
      %v3846 = vunpack.c.l.b16 %v3648
      %v3847 = vunpack.c.l.b16 %v3649
      %v3848 = vunpack.c.h.b16 %v3649
      %v3849 = vunpack.c.l.b16 %v3650
      %v3850 = vunpack.c.h.b16 %v3650
      %v3851 = vunpack.c.l.b16 %v3651
      %v3852 = vunpack.c.l.b16 %v3652
      %v3853 = vunpack.c.h.b16 %v3652
      %v3854 = vunpack.c.l.b16 %v3653
      %v3855 = vunpack.c.h.b16 %v3653
      %v3856 = vunpack.c.l.b16 %v3654
      %v3857 = vunpack.c.l.b16 %v3655
      %v3858 = vunpack.c.h.b16 %v3655
      %v3859 = vunpack.c.l.b16 %v3656
      %v3860 = vunpack.c.h.b16 %v3656
      %v3861 = vunpack.c.l.b16 %v3657
      %v3862 = vunpack.c.l.b16 %v3658
      %v3863 = vunpack.c.h.b16 %v3658
      %v3864 = vunpack.c.l.b16 %v3659
      %v3865 = vunpack.c.h.b16 %v3659
      %v3866 = vunpack.c.l.b16 %v3660
      %v3867 = vunpack.c.l.b16 %v3661
      %v3868 = vunpack.c.h.b16 %v3661
      %v3869 = vunpack.c.l.b16 %v3662
      %v3870 = vunpack.c.h.b16 %v3662
      %v3871 = vunpack.c.l.b16 %v3663
      %v3872 = vunpack.c.l.b16 %v3664
      %v3873 = vunpack.c.h.b16 %v3664
      %v3874 = vunpack.c.l.b16 %v3665
      %v3875 = vunpack.c.h.b16 %v3665
      %v3876 = vunpack.c.l.b16 %v3666
      %v3877 = vunpack.c.l.b16 %v3667
      %v3878 = vunpack.c.h.b16 %v3667
      %v3879 = vunpack.c.l.b16 %v3668
      %v3880 = vunpack.c.h.b16 %v3668
      %v3881 = vunpack.c.l.b16 %v3669
      %v3882 = vunpack.c.l.b16 %v3670
      %v3883 = vunpack.c.h.b16 %v3670
      %v3884 = vunpack.c.l.b16 %v3671
      %v3885 = vunpack.c.h.b16 %v3671
      %v3886 = vunpack.c.l.b16 %v3672
      %v3887 = vunpack.c.l.b16 %v3673
      %v3888 = vunpack.c.h.b16 %v3673
      %v3889 = vunpack.c.l.b16 %v3674
      %v3890 = vunpack.c.h.b16 %v3674
      %v3891 = vunpack.c.l.b16 %v3675
      %v3892 = vunpack.c.l.b16 %v3676
      %v3893 = vunpack.c.h.b16 %v3676
      %v3894 = vunpack.c.l.b16 %v3677
      %v3895 = vunpack.c.h.b16 %v3677
      %v3896 = vunpack.c.l.b16 %v3678
      %v3897 = vunpack.c.l.b16 %v3679
      %v3898 = vunpack.c.h.b16 %v3679
      %v3899 = vunpack.c.l.b16 %v3680
      %v3900 = vunpack.c.h.b16 %v3680
      %v3901 = vunpack.c.l.b16 %v3681
      %v3902 = vunpack.c.l.b16 %v3682
      %v3903 = vunpack.c.h.b16 %v3682
      %v3904 = vunpack.c.l.b16 %v3683
      %v3905 = vunpack.c.h.b16 %v3683
      %v3906 = vunpack.c.l.b16 %v3684
      %v3907 = vunpack.c.l.b16 %v3685
      %v3908 = vunpack.c.h.b16 %v3685
      %v3909 = vunpack.c.l.b16 %v3686
      %v3910 = vunpack.c.h.b16 %v3686
      %v3911 = vunpack.c.l.b16 %v3687
      %v3912 = vunpack.c.l.b16 %v3688
      %v3913 = vunpack.c.h.b16 %v3688
      %v3914 = vunpack.c.l.b16 %v3689
      %v3915 = vunpack.c.h.b16 %v3689
      %v3916 = vunpack.c.l.b16 %v3690
      %v3917 = vunpack.c.l.b16 %v3691
      %v3918 = vunpack.c.h.b16 %v3691
      %v3919 = vunpack.c.l.b16 %v3692
      %v3920 = vunpack.c.h.b16 %v3692
      %v3921 = vunpack.c.l.b16 %v3693
      %v3922 = vunpack.c.l.b16 %v3694
      %v3923 = vunpack.c.h.b16 %v3694
      %v3924 = vunpack.c.l.b16 %v3695
      %v3925 = vunpack.c.h.b16 %v3695
      %v3926 = vunpack.c.l.b16 %v3696
      %v3927 = vunpack.c.l.b16 %v3697
      %v3928 = vunpack.c.h.b16 %v3697
      %v3929 = vunpack.c.l.b16 %v3698
      %v3930 = vunpack.c.h.b16 %v3698
      %v3931 = vunpack.c.l.b16 %v3699
      %v3932 = vunpack.c.l.b16 %v3700
      %v3933 = vunpack.c.h.b16 %v3700
      %v3934 = vunpack.c.l.b16 %v3701
      %v3935 = vunpack.c.h.b16 %v3701
      %v3936 = vunpack.c.l.b16 %v3702
      %v3937 = vunpack.c.l.b16 %v3703
      %v3938 = vunpack.c.h.b16 %v3703
      %v3939 = vunpack.c.l.b16 %v3704
      %v3940 = vunpack.c.h.b16 %v3704
      %v3941 = vunpack.c.l.b16 %v3705
      %v3942 = vunpack.c.l.b16 %v3706
      %v3943 = vunpack.c.h.b16 %v3706
      %v3944 = vunpack.c.l.b16 %v3707
      %v3945 = vunpack.c.h.b16 %v3707
      %v3946 = vunpack.c.l.b16 %v3708
      %v3947 = vunpack.c.l.b16 %v3709
      %v3948 = vunpack.c.h.b16 %v3709
      %v3949 = vunpack.c.l.b16 %v3710
      %v3950 = vunpack.c.h.b16 %v3710
      %v3951 = vunpack.c.l.b16 %v3711
      %v3952 = vunpack.c.l.b16 %v3712
      %v3953 = vunpack.c.h.b16 %v3712
      %v3954 = vunpack.c.l.b16 %v3713
      %v3955 = vunpack.c.h.b16 %v3713
      %v3956 = vunpack.c.l.b16 %v3714
      %v3957 = vunpack.c.l.b16 %v3715
      %v3958 = vunpack.c.h.b16 %v3715
      %v3959 = vunpack.c.l.b16 %v3716
      %v3960 = vunpack.c.h.b16 %v3716
      %v3961 = vunpack.c.l.b16 %v3717
      %v3962 = vunpack.c.l.b16 %v3718
      %v3963 = vunpack.c.h.b16 %v3718
      %v3964 = vunpack.c.l.b16 %v3719
      %v3965 = vunpack.c.h.b16 %v3719
      %v3966 = vunpack.c.l.b16 %v3720
      %v3967 = vunpack.c.l.b16 %v3721
      %v3968 = vunpack.c.h.b16 %v3721
      %v3969 = vunpack.c.l.b16 %v3722
      %v3970 = vunpack.c.h.b16 %v3722
      %v3971 = vunpack.c.l.b16 %v3723
      %v3972 = vunpack.c.l.b16 %v3724
      %v3973 = vunpack.c.h.b16 %v3724
      %v3974 = vunpack.c.l.b16 %v3725
      %v3975 = vunpack.c.h.b16 %v3725
      %v3976 = vunpack.c.l.b16 %v3726
      %v3977 = vunpack.c.l.b16 %v3727
      %v3978 = vunpack.c.h.b16 %v3727
      %v3979 = vunpack.c.l.b16 %v3728
      %v3980 = vunpack.c.h.b16 %v3728
      %v3981 = vunpack.c.l.b16 %v3729
      %v3982 = vunpack.c.l.b16 %v3730
      %v3983 = vunpack.c.h.b16 %v3730
      %v3984 = vunpack.c.l.b16 %v3731
      %v3985 = vunpack.c.h.b16 %v3731
      %v3986 = vunpack.c.l.b16 %v3732
      %v3987 = vunpack.c.l.b16 %v3733
      %v3988 = vunpack.c.h.b16 %v3733
      %v3989 = vunpack.c.l.b16 %v3734
      %v3990 = vunpack.c.h.b16 %v3734
      %v3991 = vunpack.c.l.b16 %v3735
      %v3992 = vpack.c.b16 %v3837, %v3832
      %v3993 = vpack.c.b16 %v3838, %v3833
      %v3994 = vpack.c.b16 %v3839, %v3834
      %v3995 = vpack.c.b16 %v3840, %v3835
      %v3996 = vpack.c.b16 %v3841, %v3836
      %v3997 = vpack.c.b16 %v3847, %v3842
      %v3998 = vpack.c.b16 %v3848, %v3843
      %v3999 = vpack.c.b16 %v3849, %v3844
      %v4000 = vpack.c.b16 %v3850, %v3845
      %v4001 = vpack.c.b16 %v3851, %v3846
      %v4002 = vpack.c.b16 %v3857, %v3852
      %v4003 = vpack.c.b16 %v3858, %v3853
      %v4004 = vpack.c.b16 %v3859, %v3854
      %v4005 = vpack.c.b16 %v3860, %v3855
      %v4006 = vpack.c.b16 %v3861, %v3856
      %v4007 = vpack.c.b16 %v3867, %v3862
      %v4008 = vpack.c.b16 %v3868, %v3863
      %v4009 = vpack.c.b16 %v3869, %v3864
      %v4010 = vpack.c.b16 %v3870, %v3865
      %v4011 = vpack.c.b16 %v3871, %v3866
      %v4012 = vpack.c.b16 %v3877, %v3872
      %v4013 = vpack.c.b16 %v3878, %v3873
      %v4014 = vpack.c.b16 %v3879, %v3874
      %v4015 = vpack.c.b16 %v3880, %v3875
      %v4016 = vpack.c.b16 %v3881, %v3876
      %v4017 = vpack.c.b16 %v3887, %v3882
      %v4018 = vpack.c.b16 %v3888, %v3883
      %v4019 = vpack.c.b16 %v3889, %v3884
      %v4020 = vpack.c.b16 %v3890, %v3885
      %v4021 = vpack.c.b16 %v3891, %v3886
      %v4022 = vpack.c.b16 %v3897, %v3892
      %v4023 = vpack.c.b16 %v3898, %v3893
      %v4024 = vpack.c.b16 %v3899, %v3894
      %v4025 = vpack.c.b16 %v3900, %v3895
      %v4026 = vpack.c.b16 %v3901, %v3896
      %v4027 = vpack.c.b16 %v3907, %v3902
      %v4028 = vpack.c.b16 %v3908, %v3903
      %v4029 = vpack.c.b16 %v3909, %v3904
      %v4030 = vpack.c.b16 %v3910, %v3905
      %v4031 = vpack.c.b16 %v3911, %v3906
      %v4032 = vpack.c.b16 %v3917, %v3912
      %v4033 = vpack.c.b16 %v3918, %v3913
      %v4034 = vpack.c.b16 %v3919, %v3914
      %v4035 = vpack.c.b16 %v3920, %v3915
      %v4036 = vpack.c.b16 %v3921, %v3916
      %v4037 = vpack.c.b16 %v3927, %v3922
      %v4038 = vpack.c.b16 %v3928, %v3923
      %v4039 = vpack.c.b16 %v3929, %v3924
      %v4040 = vpack.c.b16 %v3930, %v3925
      %v4041 = vpack.c.b16 %v3931, %v3926
      %v4042 = vpack.c.b16 %v3937, %v3932
      %v4043 = vpack.c.b16 %v3938, %v3933
      %v4044 = vpack.c.b16 %v3939, %v3934
      %v4045 = vpack.c.b16 %v3940, %v3935
      %v4046 = vpack.c.b16 %v3941, %v3936
      %v4047 = vpack.c.b16 %v3947, %v3942
      %v4048 = vpack.c.b16 %v3948, %v3943
      %v4049 = vpack.c.b16 %v3949, %v3944
      %v4050 = vpack.c.b16 %v3950, %v3945
      %v4051 = vpack.c.b16 %v3951, %v3946
      %v4052 = vpack.c.b16 %v3957, %v3952
      %v4053 = vpack.c.b16 %v3958, %v3953
      %v4054 = vpack.c.b16 %v3959, %v3954
      %v4055 = vpack.c.b16 %v3960, %v3955
      %v4056 = vpack.c.b16 %v3961, %v3956
      %v4057 = vpack.c.b16 %v3967, %v3962
      %v4058 = vpack.c.b16 %v3968, %v3963
      %v4059 = vpack.c.b16 %v3969, %v3964
      %v4060 = vpack.c.b16 %v3970, %v3965
      %v4061 = vpack.c.b16 %v3971, %v3966
      %v4062 = vpack.c.b16 %v3977, %v3972
      %v4063 = vpack.c.b16 %v3978, %v3973
      %v4064 = vpack.c.b16 %v3979, %v3974
      %v4065 = vpack.c.b16 %v3980, %v3975
      %v4066 = vpack.c.b16 %v3981, %v3976
      %v4067 = vpack.c.b16 %v3987, %v3982
      %v4068 = vpack.c.b16 %v3988, %v3983
      %v4069 = vpack.c.b16 %v3989, %v3984
      %v4070 = vpack.c.b16 %v3990, %v3985
      %v4071 = vpack.c.b16 %v3991, %v3986
      %4152 = vmatprep.subr.bf16.mxu0 %v3993
      %4153 = vmatpush1.bf16.msra.mxu0 %v3992
      %4154 = vmatprep.subr.bf16.mxu0 %v3998
      %4155 = vmatpush1.bf16.msra.mxu0 %v3997
      %4156 = vmatprep.subr.bf16.mxu0 %v4003
      %4157 = vmatpush1.bf16.msra.mxu0 %v4002
      %4158 = vmatprep.subr.bf16.mxu0 %v4008
      %4159 = vmatpush1.bf16.msra.mxu0 %v4007
      %4160 = vmatprep.subr.bf16.mxu0 %v4013
      %4161 = vmatpush1.bf16.msra.mxu0 %v4012
      %4162 = vmatprep.subr.bf16.mxu0 %v4018
      %4163 = vmatpush1.bf16.msra.mxu0 %v4017
      %4164 = vmatprep.subr.bf16.mxu0 %v4023
      %4165 = vmatpush1.bf16.msra.mxu0 %v4022
      %4166 = vmatprep.subr.bf16.mxu0 %v4028
      %4167 = vmatpush1.bf16.msra.mxu0 %v4027
      %4168 = vmatprep.subr.bf16.mxu0 %v4033
      %4169 = vmatpush1.bf16.msra.mxu0 %v4032
      %4170 = vmatprep.subr.bf16.mxu0 %v4038
      %4171 = vmatpush1.bf16.msra.mxu0 %v4037
      %4172 = vmatprep.subr.bf16.mxu0 %v4043
      %4173 = vmatpush1.bf16.msra.mxu0 %v4042
      %4174 = vmatprep.subr.bf16.mxu0 %v4048
      %4175 = vmatpush1.bf16.msra.mxu0 %v4047
      %4176 = vmatprep.subr.bf16.mxu0 %v4053
      %4177 = vmatpush1.bf16.msra.mxu0 %v4052
      %4178 = vmatprep.subr.bf16.mxu0 %v4058
      %4179 = vmatpush1.bf16.msra.mxu0 %v4057
      %4180 = vmatprep.subr.bf16.mxu0 %v4063
      %4181 = vmatpush1.bf16.msra.mxu0 %v4062
      %4182 = vmatprep.subr.bf16.mxu0 %v4068
      %4183 = vmatpush1.bf16.msra.mxu0 %v4067
      %4184 = vmatprep.mubr.bf16.mxu0 %v3638
      %4185 = vmatmul.mubr.bf16.gmra.mrb[0].mxu0 %v3637
      %v4186 = vpop.f32.mrb[0].mxu0
      %v4187 = vadd.f32 0.0, %v4186
      %v4188 = vpop.f32.mrb[0].mxu0
      %v4189 = vadd.f32 0.0, %v4188
      %v4190 = vpop.f32.mrb[0].mxu0
      %v4191 = vadd.f32 0.0, %v4190
      %v4192 = vpop.f32.mrb[0].mxu0
      %v4193 = vadd.f32 0.0, %v4192
      %4194 = vdwg.mxu0
      %4195 = vmatprep.subr.bf16.mxu0 %v3995
      %4196 = vmatpush1.bf16.msra.mxu0 %v3994
      %4197 = vmatprep.subr.bf16.mxu0 %v4000
      %4198 = vmatpush1.bf16.msra.mxu0 %v3999
      %4199 = vmatprep.subr.bf16.mxu0 %v4005
      %4200 = vmatpush1.bf16.msra.mxu0 %v4004
      %4201 = vmatprep.subr.bf16.mxu0 %v4010
      %4202 = vmatpush1.bf16.msra.mxu0 %v4009
      %4203 = vmatprep.subr.bf16.mxu0 %v4015
      %4204 = vmatpush1.bf16.msra.mxu0 %v4014
      %4205 = vmatprep.subr.bf16.mxu0 %v4020
      %4206 = vmatpush1.bf16.msra.mxu0 %v4019
      %4207 = vmatprep.subr.bf16.mxu0 %v4025
      %4208 = vmatpush1.bf16.msra.mxu0 %v4024
      %4209 = vmatprep.subr.bf16.mxu0 %v4030
      %4210 = vmatpush1.bf16.msra.mxu0 %v4029
      %4211 = vmatprep.subr.bf16.mxu0 %v4035
      %4212 = vmatpush1.bf16.msra.mxu0 %v4034
      %4213 = vmatprep.subr.bf16.mxu0 %v4040
      %4214 = vmatpush1.bf16.msra.mxu0 %v4039
      %4215 = vmatprep.subr.bf16.mxu0 %v4045
      %4216 = vmatpush1.bf16.msra.mxu0 %v4044
      %4217 = vmatprep.subr.bf16.mxu0 %v4050
      %4218 = vmatpush1.bf16.msra.mxu0 %v4049
      %4219 = vmatprep.subr.bf16.mxu0 %v4055
      %4220 = vmatpush1.bf16.msra.mxu0 %v4054
      %4221 = vmatprep.subr.bf16.mxu0 %v4060
      %4222 = vmatpush1.bf16.msra.mxu0 %v4059
      %4223 = vmatprep.subr.bf16.mxu0 %v4065
      %4224 = vmatpush1.bf16.msra.mxu0 %v4064
      %4225 = vmatprep.subr.bf16.mxu0 %v4070
      %4226 = vmatpush1.bf16.msra.mxu0 %v4069
      %4227 = vmatprep.mubr.bf16.mxu0 %v3638
      %4228 = vmatmul.mubr.bf16.gmra.mrb[0].mxu0 %v3637
      %v4229 = vpop.f32.mrb[0].mxu0
      %v4230 = vadd.f32 0.0, %v4229
      %v4231 = vpop.f32.mrb[0].mxu0
      %v4232 = vadd.f32 0.0, %v4231
      %v4233 = vpop.f32.mrb[0].mxu0
      %v4234 = vadd.f32 0.0, %v4233
      %v4235 = vpop.f32.mrb[0].mxu0
      %v4236 = vadd.f32 0.0, %v4235
      %4237 = vdwg.mxu0
      %4238 = vmatprep.subr.bf16.mxu0 0
      %4239 = vmatpush1.bf16.msra.mxu0 %v3996
      %4240 = vmatprep.subr.bf16.mxu0 0
      %4241 = vmatpush1.bf16.msra.mxu0 %v4001
      %4242 = vmatprep.subr.bf16.mxu0 0
      %4243 = vmatpush1.bf16.msra.mxu0 %v4006
      %4244 = vmatprep.subr.bf16.mxu0 0
      %4245 = vmatpush1.bf16.msra.mxu0 %v4011
      %4246 = vmatprep.subr.bf16.mxu0 0
      %4247 = vmatpush1.bf16.msra.mxu0 %v4016
      %4248 = vmatprep.subr.bf16.mxu0 0
      %4249 = vmatpush1.bf16.msra.mxu0 %v4021
      %4250 = vmatprep.subr.bf16.mxu0 0
      %4251 = vmatpush1.bf16.msra.mxu0 %v4026
      %4252 = vmatprep.subr.bf16.mxu0 0
      %4253 = vmatpush1.bf16.msra.mxu0 %v4031
      %4254 = vmatprep.subr.bf16.mxu0 0
      %4255 = vmatpush1.bf16.msra.mxu0 %v4036
      %4256 = vmatprep.subr.bf16.mxu0 0
      %4257 = vmatpush1.bf16.msra.mxu0 %v4041
      %4258 = vmatprep.subr.bf16.mxu0 0
      %4259 = vmatpush1.bf16.msra.mxu0 %v4046
      %4260 = vmatprep.subr.bf16.mxu0 0
      %4261 = vmatpush1.bf16.msra.mxu0 %v4051
      %4262 = vmatprep.subr.bf16.mxu0 0
      %4263 = vmatpush1.bf16.msra.mxu0 %v4056
      %4264 = vmatprep.subr.bf16.mxu0 0
      %4265 = vmatpush1.bf16.msra.mxu0 %v4061
      %4266 = vmatprep.subr.bf16.mxu0 0
      %4267 = vmatpush1.bf16.msra.mxu0 %v4066
      %4268 = vmatprep.subr.bf16.mxu0 0
      %4269 = vmatpush1.bf16.msra.mxu0 %v4071
      %4270 = vmatprep.mubr.bf16.mxu0 %v3638
      %4271 = vmatmul.mubr.bf16.gmra.mrb[0].mxu0 %v3637
      %v4272 = vpop.f32.mrb[0].mxu0
      %v4273 = vadd.f32 0.0, %v4272
      %v4274 = vpop.f32.mrb[0].mxu0
      %v4275 = vpop.f32.mrb[0].mxu0
      %v4276 = vadd.f32 0.0, %v4275
      %v4277 = vpop.f32.mrb[0].mxu0
      %4278 = vdwg.mxu0
      %v4375 = vunpack.c.l.b16 %v3498
      %v4376 = vunpack.c.h.b16 %v3498
      %v4377 = vunpack.c.l.b16 %v3499
      %v4378 = vunpack.c.h.b16 %v3499
      %v4379 = vunpack.c.l.b16 %v3500
      %v4380 = vunpack.c.l.b16 %v3501
      %v4381 = vunpack.c.h.b16 %v3501
      %v4382 = vunpack.c.l.b16 %v3502
      %v4383 = vunpack.c.h.b16 %v3502
      %v4384 = vunpack.c.l.b16 %v3503
      %v4385 = vunpack.c.l.b16 %v3504
      %v4386 = vunpack.c.h.b16 %v3504
      %v4387 = vunpack.c.l.b16 %v3505
      %v4388 = vunpack.c.h.b16 %v3505
      %v4389 = vunpack.c.l.b16 %v3506
      %v4390 = vunpack.c.l.b16 %v3507
      %v4391 = vunpack.c.h.b16 %v3507
      %v4392 = vunpack.c.l.b16 %v3508
      %v4393 = vunpack.c.h.b16 %v3508
      %v4394 = vunpack.c.l.b16 %v3509
      %v4395 = vunpack.c.l.b16 %v3510
      %v4396 = vunpack.c.h.b16 %v3510
      %v4397 = vunpack.c.l.b16 %v3511
      %v4398 = vunpack.c.h.b16 %v3511
      %v4399 = vunpack.c.l.b16 %v3512
      %v4400 = vunpack.c.l.b16 %v3513
      %v4401 = vunpack.c.h.b16 %v3513
      %v4402 = vunpack.c.l.b16 %v3514
      %v4403 = vunpack.c.h.b16 %v3514
      %v4404 = vunpack.c.l.b16 %v3515
      %v4405 = vunpack.c.l.b16 %v3516
      %v4406 = vunpack.c.h.b16 %v3516
      %v4407 = vunpack.c.l.b16 %v3517
      %v4408 = vunpack.c.h.b16 %v3517
      %v4409 = vunpack.c.l.b16 %v3518
      %v4410 = vunpack.c.l.b16 %v3519
      %v4411 = vunpack.c.h.b16 %v3519
      %v4412 = vunpack.c.l.b16 %v3520
      %v4413 = vunpack.c.h.b16 %v3520
      %v4414 = vunpack.c.l.b16 %v3521
      %v4415 = vunpack.c.l.b16 %v3522
      %v4416 = vunpack.c.h.b16 %v3522
      %v4417 = vunpack.c.l.b16 %v3523
      %v4418 = vunpack.c.h.b16 %v3523
      %v4419 = vunpack.c.l.b16 %v3524
      %v4420 = vunpack.c.l.b16 %v3525
      %v4421 = vunpack.c.h.b16 %v3525
      %v4422 = vunpack.c.l.b16 %v3526
      %v4423 = vunpack.c.h.b16 %v3526
      %v4424 = vunpack.c.l.b16 %v3527
      %v4425 = vunpack.c.l.b16 %v3528
      %v4426 = vunpack.c.h.b16 %v3528
      %v4427 = vunpack.c.l.b16 %v3529
      %v4428 = vunpack.c.h.b16 %v3529
      %v4429 = vunpack.c.l.b16 %v3530
      %v4430 = vunpack.c.l.b16 %v3531
      %v4431 = vunpack.c.h.b16 %v3531
      %v4432 = vunpack.c.l.b16 %v3532
      %v4433 = vunpack.c.h.b16 %v3532
      %v4434 = vunpack.c.l.b16 %v3533
      %v4435 = vunpack.c.l.b16 %v3534
      %v4436 = vunpack.c.h.b16 %v3534
      %v4437 = vunpack.c.l.b16 %v3535
      %v4438 = vunpack.c.h.b16 %v3535
      %v4439 = vunpack.c.l.b16 %v3536
      %v4440 = vunpack.c.l.b16 %v3537
      %v4441 = vunpack.c.h.b16 %v3537
      %v4442 = vunpack.c.l.b16 %v3538
      %v4443 = vunpack.c.h.b16 %v3538
      %v4444 = vunpack.c.l.b16 %v3539
      %v4445 = vunpack.c.l.b16 %v3540
      %v4446 = vunpack.c.h.b16 %v3540
      %v4447 = vunpack.c.l.b16 %v3541
      %v4448 = vunpack.c.h.b16 %v3541
      %v4449 = vunpack.c.l.b16 %v3542
      %v4450 = vunpack.c.l.b16 %v3543
      %v4451 = vunpack.c.h.b16 %v3543
      %v4452 = vunpack.c.l.b16 %v3544
      %v4453 = vunpack.c.h.b16 %v3544
      %v4454 = vunpack.c.l.b16 %v3545
      %v4455 = vunpack.c.l.b16 %v3546
      %v4456 = vunpack.c.h.b16 %v3546
      %v4457 = vunpack.c.l.b16 %v3547
      %v4458 = vunpack.c.h.b16 %v3547
      %v4459 = vunpack.c.l.b16 %v3548
      %v4460 = vunpack.c.l.b16 %v3549
      %v4461 = vunpack.c.h.b16 %v3549
      %v4462 = vunpack.c.l.b16 %v3550
      %v4463 = vunpack.c.h.b16 %v3550
      %v4464 = vunpack.c.l.b16 %v3551
      %v4465 = vunpack.c.l.b16 %v3552
      %v4466 = vunpack.c.h.b16 %v3552
      %v4467 = vunpack.c.l.b16 %v3553
      %v4468 = vunpack.c.h.b16 %v3553
      %v4469 = vunpack.c.l.b16 %v3554
      %v4470 = vunpack.c.l.b16 %v3555
      %v4471 = vunpack.c.h.b16 %v3555
      %v4472 = vunpack.c.l.b16 %v3556
      %v4473 = vunpack.c.h.b16 %v3556
      %v4474 = vunpack.c.l.b16 %v3557
      %v4475 = vunpack.c.l.b16 %v3558
      %v4476 = vunpack.c.h.b16 %v3558
      %v4477 = vunpack.c.l.b16 %v3559
      %v4478 = vunpack.c.h.b16 %v3559
      %v4479 = vunpack.c.l.b16 %v3560
      %v4480 = vunpack.c.l.b16 %v3561
      %v4481 = vunpack.c.h.b16 %v3561
      %v4482 = vunpack.c.l.b16 %v3562
      %v4483 = vunpack.c.h.b16 %v3562
      %v4484 = vunpack.c.l.b16 %v3563
      %v4485 = vunpack.c.l.b16 %v3564
      %v4486 = vunpack.c.h.b16 %v3564
      %v4487 = vunpack.c.l.b16 %v3565
      %v4488 = vunpack.c.h.b16 %v3565
      %v4489 = vunpack.c.l.b16 %v3566
      %v4490 = vunpack.c.l.b16 %v3567
      %v4491 = vunpack.c.h.b16 %v3567
      %v4492 = vunpack.c.l.b16 %v3568
      %v4493 = vunpack.c.h.b16 %v3568
      %v4494 = vunpack.c.l.b16 %v3569
      %v4495 = vunpack.c.l.b16 %v3570
      %v4496 = vunpack.c.h.b16 %v3570
      %v4497 = vunpack.c.l.b16 %v3571
      %v4498 = vunpack.c.h.b16 %v3571
      %v4499 = vunpack.c.l.b16 %v3572
      %v4500 = vunpack.c.l.b16 %v3573
      %v4501 = vunpack.c.h.b16 %v3573
      %v4502 = vunpack.c.l.b16 %v3574
      %v4503 = vunpack.c.h.b16 %v3574
      %v4504 = vunpack.c.l.b16 %v3575
      %v4505 = vunpack.c.l.b16 %v3576
      %v4506 = vunpack.c.h.b16 %v3576
      %v4507 = vunpack.c.l.b16 %v3577
      %v4508 = vunpack.c.h.b16 %v3577
      %v4509 = vunpack.c.l.b16 %v3578
      %v4510 = vunpack.c.l.b16 %v3579
      %v4511 = vunpack.c.h.b16 %v3579
      %v4512 = vunpack.c.l.b16 %v3580
      %v4513 = vunpack.c.h.b16 %v3580
      %v4514 = vunpack.c.l.b16 %v3581
      %v4515 = vunpack.c.l.b16 %v3582
      %v4516 = vunpack.c.h.b16 %v3582
      %v4517 = vunpack.c.l.b16 %v3583
      %v4518 = vunpack.c.h.b16 %v3583
      %v4519 = vunpack.c.l.b16 %v3584
      %v4520 = vunpack.c.l.b16 %v3585
      %v4521 = vunpack.c.h.b16 %v3585
      %v4522 = vunpack.c.l.b16 %v3586
      %v4523 = vunpack.c.h.b16 %v3586
      %v4524 = vunpack.c.l.b16 %v3587
      %v4525 = vunpack.c.l.b16 %v3588
      %v4526 = vunpack.c.h.b16 %v3588
      %v4527 = vunpack.c.l.b16 %v3589
      %v4528 = vunpack.c.h.b16 %v3589
      %v4529 = vunpack.c.l.b16 %v3590
      %v4530 = vunpack.c.l.b16 %v3591
      %v4531 = vunpack.c.h.b16 %v3591
      %v4532 = vunpack.c.l.b16 %v3592
      %v4533 = vunpack.c.h.b16 %v3592
      %v4534 = vunpack.c.l.b16 %v3593
      %v4535 = vpack.c.b16 %v4380, %v4375
      %v4536 = vpack.c.b16 %v4381, %v4376
      %v4537 = vpack.c.b16 %v4382, %v4377
      %v4538 = vpack.c.b16 %v4383, %v4378
      %v4539 = vpack.c.b16 %v4384, %v4379
      %v4540 = vpack.c.b16 %v4390, %v4385
      %v4541 = vpack.c.b16 %v4391, %v4386
      %v4542 = vpack.c.b16 %v4392, %v4387
      %v4543 = vpack.c.b16 %v4393, %v4388
      %v4544 = vpack.c.b16 %v4394, %v4389
      %v4545 = vpack.c.b16 %v4400, %v4395
      %v4546 = vpack.c.b16 %v4401, %v4396
      %v4547 = vpack.c.b16 %v4402, %v4397
      %v4548 = vpack.c.b16 %v4403, %v4398
      %v4549 = vpack.c.b16 %v4404, %v4399
      %v4550 = vpack.c.b16 %v4410, %v4405
      %v4551 = vpack.c.b16 %v4411, %v4406
      %v4552 = vpack.c.b16 %v4412, %v4407
      %v4553 = vpack.c.b16 %v4413, %v4408
      %v4554 = vpack.c.b16 %v4414, %v4409
      %v4555 = vpack.c.b16 %v4420, %v4415
      %v4556 = vpack.c.b16 %v4421, %v4416
      %v4557 = vpack.c.b16 %v4422, %v4417
      %v4558 = vpack.c.b16 %v4423, %v4418
      %v4559 = vpack.c.b16 %v4424, %v4419
      %v4560 = vpack.c.b16 %v4430, %v4425
      %v4561 = vpack.c.b16 %v4431, %v4426
      %v4562 = vpack.c.b16 %v4432, %v4427
      %v4563 = vpack.c.b16 %v4433, %v4428
      %v4564 = vpack.c.b16 %v4434, %v4429
      %v4565 = vpack.c.b16 %v4440, %v4435
      %v4566 = vpack.c.b16 %v4441, %v4436
      %v4567 = vpack.c.b16 %v4442, %v4437
      %v4568 = vpack.c.b16 %v4443, %v4438
      %v4569 = vpack.c.b16 %v4444, %v4439
      %v4570 = vpack.c.b16 %v4450, %v4445
      %v4571 = vpack.c.b16 %v4451, %v4446
      %v4572 = vpack.c.b16 %v4452, %v4447
      %v4573 = vpack.c.b16 %v4453, %v4448
      %v4574 = vpack.c.b16 %v4454, %v4449
      %v4575 = vpack.c.b16 %v4460, %v4455
      %v4576 = vpack.c.b16 %v4461, %v4456
      %v4577 = vpack.c.b16 %v4462, %v4457
      %v4578 = vpack.c.b16 %v4463, %v4458
      %v4579 = vpack.c.b16 %v4464, %v4459
      %v4580 = vpack.c.b16 %v4470, %v4465
      %v4581 = vpack.c.b16 %v4471, %v4466
      %v4582 = vpack.c.b16 %v4472, %v4467
      %v4583 = vpack.c.b16 %v4473, %v4468
      %v4584 = vpack.c.b16 %v4474, %v4469
      %v4585 = vpack.c.b16 %v4480, %v4475
      %v4586 = vpack.c.b16 %v4481, %v4476
      %v4587 = vpack.c.b16 %v4482, %v4477
      %v4588 = vpack.c.b16 %v4483, %v4478
      %v4589 = vpack.c.b16 %v4484, %v4479
      %v4590 = vpack.c.b16 %v4490, %v4485
      %v4591 = vpack.c.b16 %v4491, %v4486
      %v4592 = vpack.c.b16 %v4492, %v4487
      %v4593 = vpack.c.b16 %v4493, %v4488
      %v4594 = vpack.c.b16 %v4494, %v4489
      %v4595 = vpack.c.b16 %v4500, %v4495
      %v4596 = vpack.c.b16 %v4501, %v4496
      %v4597 = vpack.c.b16 %v4502, %v4497
      %v4598 = vpack.c.b16 %v4503, %v4498
      %v4599 = vpack.c.b16 %v4504, %v4499
      %v4600 = vpack.c.b16 %v4510, %v4505
      %v4601 = vpack.c.b16 %v4511, %v4506
      %v4602 = vpack.c.b16 %v4512, %v4507
      %v4603 = vpack.c.b16 %v4513, %v4508
      %v4604 = vpack.c.b16 %v4514, %v4509
      %v4605 = vpack.c.b16 %v4520, %v4515
      %v4606 = vpack.c.b16 %v4521, %v4516
      %v4607 = vpack.c.b16 %v4522, %v4517
      %v4608 = vpack.c.b16 %v4523, %v4518
      %v4609 = vpack.c.b16 %v4524, %v4519
      %v4610 = vpack.c.b16 %v4530, %v4525
      %v4611 = vpack.c.b16 %v4531, %v4526
      %v4612 = vpack.c.b16 %v4532, %v4527
      %v4613 = vpack.c.b16 %v4533, %v4528
      %v4614 = vpack.c.b16 %v4534, %v4529
      %4695 = vmatprep.subr.bf16.mxu0 %v4536
      %4696 = vmatpush1.bf16.msra.mxu0 %v4535
      %4697 = vmatprep.subr.bf16.mxu0 %v4541
      %4698 = vmatpush1.bf16.msra.mxu0 %v4540
      %4699 = vmatprep.subr.bf16.mxu0 %v4546
      %4700 = vmatpush1.bf16.msra.mxu0 %v4545
      %4701 = vmatprep.subr.bf16.mxu0 %v4551
      %4702 = vmatpush1.bf16.msra.mxu0 %v4550
      %4703 = vmatprep.subr.bf16.mxu0 %v4556
      %4704 = vmatpush1.bf16.msra.mxu0 %v4555
      %4705 = vmatprep.subr.bf16.mxu0 %v4561
      %4706 = vmatpush1.bf16.msra.mxu0 %v4560
      %4707 = vmatprep.subr.bf16.mxu0 %v4566
      %4708 = vmatpush1.bf16.msra.mxu0 %v4565
      %4709 = vmatprep.subr.bf16.mxu0 %v4571
      %4710 = vmatpush1.bf16.msra.mxu0 %v4570
      %4711 = vmatprep.subr.bf16.mxu0 %v4576
      %4712 = vmatpush1.bf16.msra.mxu0 %v4575
      %4713 = vmatprep.subr.bf16.mxu0 %v4581
      %4714 = vmatpush1.bf16.msra.mxu0 %v4580
      %4715 = vmatprep.subr.bf16.mxu0 %v4586
      %4716 = vmatpush1.bf16.msra.mxu0 %v4585
      %4717 = vmatprep.subr.bf16.mxu0 %v4591
      %4718 = vmatpush1.bf16.msra.mxu0 %v4590
      %4719 = vmatprep.subr.bf16.mxu0 %v4596
      %4720 = vmatpush1.bf16.msra.mxu0 %v4595
      %4721 = vmatprep.subr.bf16.mxu0 %v4601
      %4722 = vmatpush1.bf16.msra.mxu0 %v4600
      %4723 = vmatprep.subr.bf16.mxu0 %v4606
      %4724 = vmatpush1.bf16.msra.mxu0 %v4605
      %4725 = vmatprep.subr.bf16.mxu0 %v4611
      %4726 = vmatpush1.bf16.msra.mxu0 %v4610
      %4727 = vmatprep.mubr.bf16.mxu0 %v3497
      %4728 = vmatmul.mubr.bf16.gmra.mrb[0].mxu0 %v3496
      %v4729 = vpop.f32.mrb[0].mxu0
      %v4730 = vadd.f32 %v4187, %v4729
      %v4731 = vpop.f32.mrb[0].mxu0
      %v4732 = vadd.f32 %v4189, %v4731
      %v4733 = vpop.f32.mrb[0].mxu0
      %v4734 = vadd.f32 %v4191, %v4733
      %v4735 = vpop.f32.mrb[0].mxu0
      %v4736 = vadd.f32 %v4193, %v4735
      %4737 = vdwg.mxu0
      %4738 = vmatprep.subr.bf16.mxu0 %v4538
      %4739 = vmatpush1.bf16.msra.mxu0 %v4537
      %4740 = vmatprep.subr.bf16.mxu0 %v4543
      %4741 = vmatpush1.bf16.msra.mxu0 %v4542
      %4742 = vmatprep.subr.bf16.mxu0 %v4548
      %4743 = vmatpush1.bf16.msra.mxu0 %v4547
      %4744 = vmatprep.subr.bf16.mxu0 %v4553
      %4745 = vmatpush1.bf16.msra.mxu0 %v4552
      %4746 = vmatprep.subr.bf16.mxu0 %v4558
      %4747 = vmatpush1.bf16.msra.mxu0 %v4557
      %4748 = vmatprep.subr.bf16.mxu0 %v4563
      %4749 = vmatpush1.bf16.msra.mxu0 %v4562
      %4750 = vmatprep.subr.bf16.mxu0 %v4568
      %4751 = vmatpush1.bf16.msra.mxu0 %v4567
      %4752 = vmatprep.subr.bf16.mxu0 %v4573
      %4753 = vmatpush1.bf16.msra.mxu0 %v4572
      %4754 = vmatprep.subr.bf16.mxu0 %v4578
      %4755 = vmatpush1.bf16.msra.mxu0 %v4577
      %4756 = vmatprep.subr.bf16.mxu0 %v4583
      %4757 = vmatpush1.bf16.msra.mxu0 %v4582
      %4758 = vmatprep.subr.bf16.mxu0 %v4588
      %4759 = vmatpush1.bf16.msra.mxu0 %v4587
      %4760 = vmatprep.subr.bf16.mxu0 %v4593
      %4761 = vmatpush1.bf16.msra.mxu0 %v4592
      %4762 = vmatprep.subr.bf16.mxu0 %v4598
      %4763 = vmatpush1.bf16.msra.mxu0 %v4597
      %4764 = vmatprep.subr.bf16.mxu0 %v4603
      %4765 = vmatpush1.bf16.msra.mxu0 %v4602
      %4766 = vmatprep.subr.bf16.mxu0 %v4608
      %4767 = vmatpush1.bf16.msra.mxu0 %v4607
      %4768 = vmatprep.subr.bf16.mxu0 %v4613
      %4769 = vmatpush1.bf16.msra.mxu0 %v4612
      %4770 = vmatprep.mubr.bf16.mxu0 %v3497
      %4771 = vmatmul.mubr.bf16.gmra.mrb[0].mxu0 %v3496
      %v4772 = vpop.f32.mrb[0].mxu0
      %v4773 = vadd.f32 %v4230, %v4772
      %v4774 = vpop.f32.mrb[0].mxu0
      %v4775 = vadd.f32 %v4232, %v4774
      %v4776 = vpop.f32.mrb[0].mxu0
      %v4777 = vadd.f32 %v4234, %v4776
      %v4778 = vpop.f32.mrb[0].mxu0
      %v4779 = vadd.f32 %v4236, %v4778
      %4780 = vdwg.mxu0
      %4781 = vmatprep.subr.bf16.mxu0 0
      %4782 = vmatpush1.bf16.msra.mxu0 %v4539
      %4783 = vmatprep.subr.bf16.mxu0 0
      %4784 = vmatpush1.bf16.msra.mxu0 %v4544
      %4785 = vmatprep.subr.bf16.mxu0 0
      %4786 = vmatpush1.bf16.msra.mxu0 %v4549
      %4787 = vmatprep.subr.bf16.mxu0 0
      %4788 = vmatpush1.bf16.msra.mxu0 %v4554
      %4789 = vmatprep.subr.bf16.mxu0 0
      %4790 = vmatpush1.bf16.msra.mxu0 %v4559
      %4791 = vmatprep.subr.bf16.mxu0 0
      %4792 = vmatpush1.bf16.msra.mxu0 %v4564
      %4793 = vmatprep.subr.bf16.mxu0 0
      %4794 = vmatpush1.bf16.msra.mxu0 %v4569
      %4795 = vmatprep.subr.bf16.mxu0 0
      %4796 = vmatpush1.bf16.msra.mxu0 %v4574
      %4797 = vmatprep.subr.bf16.mxu0 0
      %4798 = vmatpush1.bf16.msra.mxu0 %v4579
      %4799 = vmatprep.subr.bf16.mxu0 0
      %4800 = vmatpush1.bf16.msra.mxu0 %v4584
      %4801 = vmatprep.subr.bf16.mxu0 0
      %4802 = vmatpush1.bf16.msra.mxu0 %v4589
      %4803 = vmatprep.subr.bf16.mxu0 0
      %4804 = vmatpush1.bf16.msra.mxu0 %v4594
      %4805 = vmatprep.subr.bf16.mxu0 0
      %4806 = vmatpush1.bf16.msra.mxu0 %v4599
      %4807 = vmatprep.subr.bf16.mxu0 0
      %4808 = vmatpush1.bf16.msra.mxu0 %v4604
      %4809 = vmatprep.subr.bf16.mxu0 0
      %4810 = vmatpush1.bf16.msra.mxu0 %v4609
      %4811 = vmatprep.subr.bf16.mxu0 0
      %4812 = vmatpush1.bf16.msra.mxu0 %v4614
      %4813 = vmatprep.mubr.bf16.mxu0 %v3497
      %4814 = vmatmul.mubr.bf16.gmra.mrb[0].mxu0 %v3496
      %v4815 = vpop.f32.mrb[0].mxu0
      %v4816 = vadd.f32 %v4273, %v4815
      %v4817 = vpop.f32.mrb[0].mxu0
      %v4818 = vpop.f32.mrb[0].mxu0
      %v4819 = vadd.f32 %v4276, %v4818
      %v4820 = vpop.f32.mrb[0].mxu0
      %4821 = vdwg.mxu0
      %4822 = vmatprep.subr.bf16.mxu0 %v1921
      %4823 = vmatpush1.bf16.msra.mxu0 %v1920
      %4824 = vmatprep.subr.bf16.mxu0 0
      %4825 = vmatpush1.bf16.msra.mxu0 0
      %4826 = vmatprep.subr.bf16.mxu0 0
      %4827 = vmatpush1.bf16.msra.mxu0 0
      %4828 = vmatprep.subr.bf16.mxu0 0
      %4829 = vmatpush1.bf16.msra.mxu0 0
      %4830 = vmatprep.subr.bf16.mxu0 0
      %4831 = vmatpush1.bf16.msra.mxu0 0
      %4832 = vmatprep.subr.bf16.mxu0 0
      %4833 = vmatpush1.bf16.msra.mxu0 0
      %4834 = vmatprep.subr.bf16.mxu0 0
      %4835 = vmatpush1.bf16.msra.mxu0 0
      %4836 = vmatprep.subr.bf16.mxu0 0
      %4837 = vmatpush1.bf16.msra.mxu0 0
      %4838 = vmatprep.subr.bf16.mxu0 0
      %4839 = vmatpush1.bf16.msra.mxu0 0
      %4840 = vmatprep.subr.bf16.mxu0 0
      %4841 = vmatpush1.bf16.msra.mxu0 0
      %4842 = vmatprep.subr.bf16.mxu0 0
      %4843 = vmatpush1.bf16.msra.mxu0 0
      %4844 = vmatprep.subr.bf16.mxu0 0
      %4845 = vmatpush1.bf16.msra.mxu0 0
      %4846 = vmatprep.subr.bf16.mxu0 0
      %4847 = vmatpush1.bf16.msra.mxu0 0
      %4848 = vmatprep.subr.bf16.mxu0 0
      %4849 = vmatpush1.bf16.msra.mxu0 0
      %4850 = vmatprep.subr.bf16.mxu0 0
      %4851 = vmatpush1.bf16.msra.mxu0 0
      %4852 = vmatprep.subr.bf16.mxu0 0
      %4853 = vmatpush1.bf16.msra.mxu0 0
      %4854 = vmatprep.mubr.bf16.mxu0 0
      %4855 = vmatmul.mubr.bf16.gmra.mrb[0].mxu0 %v889
      %v4856 = vpop.f32.mrb[0].mxu0
      %v4857 = vadd.f32 0.0, %v4856
      %v4858 = vpop.f32.mrb[0].mxu0
      %v4859 = vadd.f32 0.0, %v4858
      %v4860 = vpop.f32.mrb[0].mxu0
      %v4861 = vadd.f32 0.0, %v4860
      %v4862 = vpop.f32.mrb[0].mxu0
      %v4863 = vadd.f32 0.0, %v4862
      %4864 = vdwg.mxu0
      %v4865 = vpack.c.bf16 %v4861, %v4857
      %v4866 = vpack.c.bf16 %v4863, %v4859
      %s4867 = scalar_lea.vmem %s9, 1280
      %v4868 = vld [vmem:[%s4867] sm:$0xff]
      %v4869 = vld [vmem:[%s4867 + $0x8] sm:$0xff]
      %v4870 = vld [vmem:[%s4867 + $0x10] sm:$0xf]
      %v4871 = vld [vmem:[%s4867 + $0x14] sm:$0xff]
      %v4872 = vld [vmem:[%s4867 + $0x1c] sm:$0xff]
      %v4873 = vld [vmem:[%s4867 + $0x24] sm:$0xf]
      %v4874 = vld [vmem:[%s4867 + $0x28] sm:$0xff]
      %v4875 = vld [vmem:[%s4867 + $0x30] sm:$0xff]
      %v4876 = vld [vmem:[%s4867 + $0x38] sm:$0xf]
      %v4877 = vld [vmem:[%s4867 + $0x3c] sm:$0xff]
      %v4878 = vld [vmem:[%s4867 + $0x44] sm:$0xff]
      %v4879 = vld [vmem:[%s4867 + $0x4c] sm:$0xf]
      %v4880 = vld [vmem:[%s4867 + $0x50] sm:$0xff]
      %v4881 = vld [vmem:[%s4867 + $0x58] sm:$0xff]
      %v4882 = vld [vmem:[%s4867 + $0x60] sm:$0xf]
      %v4883 = vld [vmem:[%s4867 + $0x64] sm:$0xff]
      %v4884 = vld [vmem:[%s4867 + $0x6c] sm:$0xff]
      %v4885 = vld [vmem:[%s4867 + $0x74] sm:$0xf]
      %v4886 = vld [vmem:[%s4867 + $0x78] sm:$0xff]
      %v4887 = vld [vmem:[%s4867 + $0x80] sm:$0xff]
      %v4888 = vld [vmem:[%s4867 + $0x88] sm:$0xf]
      %v4889 = vld [vmem:[%s4867 + $0x8c] sm:$0xff]
      %v4890 = vld [vmem:[%s4867 + $0x94] sm:$0xff]
      %v4891 = vld [vmem:[%s4867 + $0x9c] sm:$0xf]
      %v4892 = vld [vmem:[%s4867 + $0xa0] sm:$0xff]
      %v4893 = vld [vmem:[%s4867 + $0xa8] sm:$0xff]
      %v4894 = vld [vmem:[%s4867 + $0xb0] sm:$0xf]
      %v4895 = vld [vmem:[%s4867 + $0xb4] sm:$0xff]
      %v4896 = vld [vmem:[%s4867 + $0xbc] sm:$0xff]
      %v4897 = vld [vmem:[%s4867 + $0xc4] sm:$0xf]
      %v4898 = vld [vmem:[%s4867 + $0xc8] sm:$0xff]
      %v4899 = vld [vmem:[%s4867 + $0xd0] sm:$0xff]
      %v4900 = vld [vmem:[%s4867 + $0xd8] sm:$0xf]
      %v4901 = vld [vmem:[%s4867 + $0xdc] sm:$0xff]
      %v4902 = vld [vmem:[%s4867 + $0xe4] sm:$0xff]
      %v4903 = vld [vmem:[%s4867 + $0xec] sm:$0xf]
      %v4904 = vld [vmem:[%s4867 + $0xf0] sm:$0xff]
      %v4905 = vld [vmem:[%s4867 + $0xf8] sm:$0xff]
      %v4906 = vld [vmem:[%s4867 + $0x100] sm:$0xf]
      %v4907 = vld [vmem:[%s4867 + $0x104] sm:$0xff]
      %v4908 = vld [vmem:[%s4867 + $0x10c] sm:$0xff]
      %v4909 = vld [vmem:[%s4867 + $0x114] sm:$0xf]
      %v4910 = vld [vmem:[%s4867 + $0x118] sm:$0xff]
      %v4911 = vld [vmem:[%s4867 + $0x120] sm:$0xff]
      %v4912 = vld [vmem:[%s4867 + $0x128] sm:$0xf]
      %v4913 = vld [vmem:[%s4867 + $0x12c] sm:$0xff]
      %v4914 = vld [vmem:[%s4867 + $0x134] sm:$0xff]
      %v4915 = vld [vmem:[%s4867 + $0x13c] sm:$0xf]
      %v4916 = vld [vmem:[%s4867 + $0x140] sm:$0xff]
      %v4917 = vld [vmem:[%s4867 + $0x148] sm:$0xff]
      %v4918 = vld [vmem:[%s4867 + $0x150] sm:$0xf]
      %v4919 = vld [vmem:[%s4867 + $0x154] sm:$0xff]
      %v4920 = vld [vmem:[%s4867 + $0x15c] sm:$0xff]
      %v4921 = vld [vmem:[%s4867 + $0x164] sm:$0xf]
      %v4922 = vld [vmem:[%s4867 + $0x168] sm:$0xff]
      %v4923 = vld [vmem:[%s4867 + $0x170] sm:$0xff]
      %v4924 = vld [vmem:[%s4867 + $0x178] sm:$0xf]
      %v4925 = vld [vmem:[%s4867 + $0x17c] sm:$0xff]
      %v4926 = vld [vmem:[%s4867 + $0x184] sm:$0xff]
      %v4927 = vld [vmem:[%s4867 + $0x18c] sm:$0xf]
      %v4928 = vld [vmem:[%s4867 + $0x190] sm:$0xff]
      %v4929 = vld [vmem:[%s4867 + $0x198] sm:$0xff]
      %v4930 = vld [vmem:[%s4867 + $0x1a0] sm:$0xf]
      %v4931 = vld [vmem:[%s4867 + $0x1a4] sm:$0xff]
      %v4932 = vld [vmem:[%s4867 + $0x1ac] sm:$0xff]
      %v4933 = vld [vmem:[%s4867 + $0x1b4] sm:$0xf]
      %v4934 = vld [vmem:[%s4867 + $0x1b8] sm:$0xff]
      %v4935 = vld [vmem:[%s4867 + $0x1c0] sm:$0xff]
      %v4936 = vld [vmem:[%s4867 + $0x1c8] sm:$0xf]
      %v4937 = vld [vmem:[%s4867 + $0x1cc] sm:$0xff]
      %v4938 = vld [vmem:[%s4867 + $0x1d4] sm:$0xff]
      %v4939 = vld [vmem:[%s4867 + $0x1dc] sm:$0xf]
      %v4940 = vld [vmem:[%s4867 + $0x1e0] sm:$0xff]
      %v4941 = vld [vmem:[%s4867 + $0x1e8] sm:$0xff]
      %v4942 = vld [vmem:[%s4867 + $0x1f0] sm:$0xf]
      %v4943 = vld [vmem:[%s4867 + $0x1f4] sm:$0xff]
      %v4944 = vld [vmem:[%s4867 + $0x1fc] sm:$0xff]
      %v4945 = vld [vmem:[%s4867 + $0x204] sm:$0xf]
      %v4946 = vld [vmem:[%s4867 + $0x208] sm:$0xff]
      %v4947 = vld [vmem:[%s4867 + $0x210] sm:$0xff]
      %v4948 = vld [vmem:[%s4867 + $0x218] sm:$0xf]
      %v4949 = vld [vmem:[%s4867 + $0x21c] sm:$0xff]
      %v4950 = vld [vmem:[%s4867 + $0x224] sm:$0xff]
      %v4951 = vld [vmem:[%s4867 + $0x22c] sm:$0xf]
      %v4952 = vld [vmem:[%s4867 + $0x230] sm:$0xff]
      %v4953 = vld [vmem:[%s4867 + $0x238] sm:$0xff]
      %v4954 = vld [vmem:[%s4867 + $0x240] sm:$0xf]
      %v4955 = vld [vmem:[%s4867 + $0x244] sm:$0xff]
      %v4956 = vld [vmem:[%s4867 + $0x24c] sm:$0xff]
      %v4957 = vld [vmem:[%s4867 + $0x254] sm:$0xf]
      %v4958 = vld [vmem:[%s4867 + $0x258] sm:$0xff]
      %v4959 = vld [vmem:[%s4867 + $0x260] sm:$0xff]
      %v4960 = vld [vmem:[%s4867 + $0x268] sm:$0xf]
      %v4961 = vld [vmem:[%s4867 + $0x26c] sm:$0xff]
      %v4962 = vld [vmem:[%s4867 + $0x274] sm:$0xff]
      %v4963 = vld [vmem:[%s4867 + $0x27c] sm:$0xf]
      %v5060 = vunpack.c.l.b16 %v4868
      %v5061 = vunpack.c.h.b16 %v4868
      %v5062 = vunpack.c.l.b16 %v4869
      %v5063 = vunpack.c.h.b16 %v4869
      %v5064 = vunpack.c.l.b16 %v4870
      %v5065 = vunpack.c.l.b16 %v4871
      %v5066 = vunpack.c.h.b16 %v4871
      %v5067 = vunpack.c.l.b16 %v4872
      %v5068 = vunpack.c.h.b16 %v4872
      %v5069 = vunpack.c.l.b16 %v4873
      %v5070 = vunpack.c.l.b16 %v4874
      %v5071 = vunpack.c.h.b16 %v4874
      %v5072 = vunpack.c.l.b16 %v4875
      %v5073 = vunpack.c.h.b16 %v4875
      %v5074 = vunpack.c.l.b16 %v4876
      %v5075 = vunpack.c.l.b16 %v4877
      %v5076 = vunpack.c.h.b16 %v4877
      %v5077 = vunpack.c.l.b16 %v4878
      %v5078 = vunpack.c.h.b16 %v4878
      %v5079 = vunpack.c.l.b16 %v4879
      %v5080 = vunpack.c.l.b16 %v4880
      %v5081 = vunpack.c.h.b16 %v4880
      %v5082 = vunpack.c.l.b16 %v4881
      %v5083 = vunpack.c.h.b16 %v4881
      %v5084 = vunpack.c.l.b16 %v4882
      %v5085 = vunpack.c.l.b16 %v4883
      %v5086 = vunpack.c.h.b16 %v4883
      %v5087 = vunpack.c.l.b16 %v4884
      %v5088 = vunpack.c.h.b16 %v4884
      %v5089 = vunpack.c.l.b16 %v4885
      %v5090 = vunpack.c.l.b16 %v4886
      %v5091 = vunpack.c.h.b16 %v4886
      %v5092 = vunpack.c.l.b16 %v4887
      %v5093 = vunpack.c.h.b16 %v4887
      %v5094 = vunpack.c.l.b16 %v4888
      %v5095 = vunpack.c.l.b16 %v4889
      %v5096 = vunpack.c.h.b16 %v4889
      %v5097 = vunpack.c.l.b16 %v4890
      %v5098 = vunpack.c.h.b16 %v4890
      %v5099 = vunpack.c.l.b16 %v4891
      %v5100 = vunpack.c.l.b16 %v4892
      %v5101 = vunpack.c.h.b16 %v4892
      %v5102 = vunpack.c.l.b16 %v4893
      %v5103 = vunpack.c.h.b16 %v4893
      %v5104 = vunpack.c.l.b16 %v4894
      %v5105 = vunpack.c.l.b16 %v4895
      %v5106 = vunpack.c.h.b16 %v4895
      %v5107 = vunpack.c.l.b16 %v4896
      %v5108 = vunpack.c.h.b16 %v4896
      %v5109 = vunpack.c.l.b16 %v4897
      %v5110 = vunpack.c.l.b16 %v4898
      %v5111 = vunpack.c.h.b16 %v4898
      %v5112 = vunpack.c.l.b16 %v4899
      %v5113 = vunpack.c.h.b16 %v4899
      %v5114 = vunpack.c.l.b16 %v4900
      %v5115 = vunpack.c.l.b16 %v4901
      %v5116 = vunpack.c.h.b16 %v4901
      %v5117 = vunpack.c.l.b16 %v4902
      %v5118 = vunpack.c.h.b16 %v4902
      %v5119 = vunpack.c.l.b16 %v4903
      %v5120 = vunpack.c.l.b16 %v4904
      %v5121 = vunpack.c.h.b16 %v4904
      %v5122 = vunpack.c.l.b16 %v4905
      %v5123 = vunpack.c.h.b16 %v4905
      %v5124 = vunpack.c.l.b16 %v4906
      %v5125 = vunpack.c.l.b16 %v4907
      %v5126 = vunpack.c.h.b16 %v4907
      %v5127 = vunpack.c.l.b16 %v4908
      %v5128 = vunpack.c.h.b16 %v4908
      %v5129 = vunpack.c.l.b16 %v4909
      %v5130 = vunpack.c.l.b16 %v4910
      %v5131 = vunpack.c.h.b16 %v4910
      %v5132 = vunpack.c.l.b16 %v4911
      %v5133 = vunpack.c.h.b16 %v4911
      %v5134 = vunpack.c.l.b16 %v4912
      %v5135 = vunpack.c.l.b16 %v4913
      %v5136 = vunpack.c.h.b16 %v4913
      %v5137 = vunpack.c.l.b16 %v4914
      %v5138 = vunpack.c.h.b16 %v4914
      %v5139 = vunpack.c.l.b16 %v4915
      %v5140 = vunpack.c.l.b16 %v4916
      %v5141 = vunpack.c.h.b16 %v4916
      %v5142 = vunpack.c.l.b16 %v4917
      %v5143 = vunpack.c.h.b16 %v4917
      %v5144 = vunpack.c.l.b16 %v4918
      %v5145 = vunpack.c.l.b16 %v4919
      %v5146 = vunpack.c.h.b16 %v4919
      %v5147 = vunpack.c.l.b16 %v4920
      %v5148 = vunpack.c.h.b16 %v4920
      %v5149 = vunpack.c.l.b16 %v4921
      %v5150 = vunpack.c.l.b16 %v4922
      %v5151 = vunpack.c.h.b16 %v4922
      %v5152 = vunpack.c.l.b16 %v4923
      %v5153 = vunpack.c.h.b16 %v4923
      %v5154 = vunpack.c.l.b16 %v4924
      %v5155 = vunpack.c.l.b16 %v4925
      %v5156 = vunpack.c.h.b16 %v4925
      %v5157 = vunpack.c.l.b16 %v4926
      %v5158 = vunpack.c.h.b16 %v4926
      %v5159 = vunpack.c.l.b16 %v4927
      %v5160 = vunpack.c.l.b16 %v4928
      %v5161 = vunpack.c.h.b16 %v4928
      %v5162 = vunpack.c.l.b16 %v4929
      %v5163 = vunpack.c.h.b16 %v4929
      %v5164 = vunpack.c.l.b16 %v4930
      %v5165 = vunpack.c.l.b16 %v4931
      %v5166 = vunpack.c.h.b16 %v4931
      %v5167 = vunpack.c.l.b16 %v4932
      %v5168 = vunpack.c.h.b16 %v4932
      %v5169 = vunpack.c.l.b16 %v4933
      %v5170 = vunpack.c.l.b16 %v4934
      %v5171 = vunpack.c.h.b16 %v4934
      %v5172 = vunpack.c.l.b16 %v4935
      %v5173 = vunpack.c.h.b16 %v4935
      %v5174 = vunpack.c.l.b16 %v4936
      %v5175 = vunpack.c.l.b16 %v4937
      %v5176 = vunpack.c.h.b16 %v4937
      %v5177 = vunpack.c.l.b16 %v4938
      %v5178 = vunpack.c.h.b16 %v4938
      %v5179 = vunpack.c.l.b16 %v4939
      %v5180 = vunpack.c.l.b16 %v4940
      %v5181 = vunpack.c.h.b16 %v4940
      %v5182 = vunpack.c.l.b16 %v4941
      %v5183 = vunpack.c.h.b16 %v4941
      %v5184 = vunpack.c.l.b16 %v4942
      %v5185 = vunpack.c.l.b16 %v4943
      %v5186 = vunpack.c.h.b16 %v4943
      %v5187 = vunpack.c.l.b16 %v4944
      %v5188 = vunpack.c.h.b16 %v4944
      %v5189 = vunpack.c.l.b16 %v4945
      %v5190 = vunpack.c.l.b16 %v4946
      %v5191 = vunpack.c.h.b16 %v4946
      %v5192 = vunpack.c.l.b16 %v4947
      %v5193 = vunpack.c.h.b16 %v4947
      %v5194 = vunpack.c.l.b16 %v4948
      %v5195 = vunpack.c.l.b16 %v4949
      %v5196 = vunpack.c.h.b16 %v4949
      %v5197 = vunpack.c.l.b16 %v4950
      %v5198 = vunpack.c.h.b16 %v4950
      %v5199 = vunpack.c.l.b16 %v4951
      %v5200 = vunpack.c.l.b16 %v4952
      %v5201 = vunpack.c.h.b16 %v4952
      %v5202 = vunpack.c.l.b16 %v4953
      %v5203 = vunpack.c.h.b16 %v4953
      %v5204 = vunpack.c.l.b16 %v4954
      %v5205 = vunpack.c.l.b16 %v4955
      %v5206 = vunpack.c.h.b16 %v4955
      %v5207 = vunpack.c.l.b16 %v4956
      %v5208 = vunpack.c.h.b16 %v4956
      %v5209 = vunpack.c.l.b16 %v4957
      %v5210 = vunpack.c.l.b16 %v4958
      %v5211 = vunpack.c.h.b16 %v4958
      %v5212 = vunpack.c.l.b16 %v4959
      %v5213 = vunpack.c.h.b16 %v4959
      %v5214 = vunpack.c.l.b16 %v4960
      %v5215 = vunpack.c.l.b16 %v4961
      %v5216 = vunpack.c.h.b16 %v4961
      %v5217 = vunpack.c.l.b16 %v4962
      %v5218 = vunpack.c.h.b16 %v4962
      %v5219 = vunpack.c.l.b16 %v4963
      %v5220 = vpack.c.b16 %v5065, %v5060
      %v5221 = vpack.c.b16 %v5066, %v5061
      %v5222 = vpack.c.b16 %v5067, %v5062
      %v5223 = vpack.c.b16 %v5068, %v5063
      %v5224 = vpack.c.b16 %v5069, %v5064
      %v5225 = vpack.c.b16 %v5075, %v5070
      %v5226 = vpack.c.b16 %v5076, %v5071
      %v5227 = vpack.c.b16 %v5077, %v5072
      %v5228 = vpack.c.b16 %v5078, %v5073
      %v5229 = vpack.c.b16 %v5079, %v5074
      %v5230 = vpack.c.b16 %v5085, %v5080
      %v5231 = vpack.c.b16 %v5086, %v5081
      %v5232 = vpack.c.b16 %v5087, %v5082
      %v5233 = vpack.c.b16 %v5088, %v5083
      %v5234 = vpack.c.b16 %v5089, %v5084
      %v5235 = vpack.c.b16 %v5095, %v5090
      %v5236 = vpack.c.b16 %v5096, %v5091
      %v5237 = vpack.c.b16 %v5097, %v5092
      %v5238 = vpack.c.b16 %v5098, %v5093
      %v5239 = vpack.c.b16 %v5099, %v5094
      %v5240 = vpack.c.b16 %v5105, %v5100
      %v5241 = vpack.c.b16 %v5106, %v5101
      %v5242 = vpack.c.b16 %v5107, %v5102
      %v5243 = vpack.c.b16 %v5108, %v5103
      %v5244 = vpack.c.b16 %v5109, %v5104
      %v5245 = vpack.c.b16 %v5115, %v5110
      %v5246 = vpack.c.b16 %v5116, %v5111
      %v5247 = vpack.c.b16 %v5117, %v5112
      %v5248 = vpack.c.b16 %v5118, %v5113
      %v5249 = vpack.c.b16 %v5119, %v5114
      %v5250 = vpack.c.b16 %v5125, %v5120
      %v5251 = vpack.c.b16 %v5126, %v5121
      %v5252 = vpack.c.b16 %v5127, %v5122
      %v5253 = vpack.c.b16 %v5128, %v5123
      %v5254 = vpack.c.b16 %v5129, %v5124
      %v5255 = vpack.c.b16 %v5135, %v5130
      %v5256 = vpack.c.b16 %v5136, %v5131
      %v5257 = vpack.c.b16 %v5137, %v5132
      %v5258 = vpack.c.b16 %v5138, %v5133
      %v5259 = vpack.c.b16 %v5139, %v5134
      %v5260 = vpack.c.b16 %v5145, %v5140
      %v5261 = vpack.c.b16 %v5146, %v5141
      %v5262 = vpack.c.b16 %v5147, %v5142
      %v5263 = vpack.c.b16 %v5148, %v5143
      %v5264 = vpack.c.b16 %v5149, %v5144
      %v5265 = vpack.c.b16 %v5155, %v5150
      %v5266 = vpack.c.b16 %v5156, %v5151
      %v5267 = vpack.c.b16 %v5157, %v5152
      %v5268 = vpack.c.b16 %v5158, %v5153
      %v5269 = vpack.c.b16 %v5159, %v5154
      %v5270 = vpack.c.b16 %v5165, %v5160
      %v5271 = vpack.c.b16 %v5166, %v5161
      %v5272 = vpack.c.b16 %v5167, %v5162
      %v5273 = vpack.c.b16 %v5168, %v5163
      %v5274 = vpack.c.b16 %v5169, %v5164
      %v5275 = vpack.c.b16 %v5175, %v5170
      %v5276 = vpack.c.b16 %v5176, %v5171
      %v5277 = vpack.c.b16 %v5177, %v5172
      %v5278 = vpack.c.b16 %v5178, %v5173
      %v5279 = vpack.c.b16 %v5179, %v5174
      %v5280 = vpack.c.b16 %v5185, %v5180
      %v5281 = vpack.c.b16 %v5186, %v5181
      %v5282 = vpack.c.b16 %v5187, %v5182
      %v5283 = vpack.c.b16 %v5188, %v5183
      %v5284 = vpack.c.b16 %v5189, %v5184
      %v5285 = vpack.c.b16 %v5195, %v5190
      %v5286 = vpack.c.b16 %v5196, %v5191
      %v5287 = vpack.c.b16 %v5197, %v5192
      %v5288 = vpack.c.b16 %v5198, %v5193
      %v5289 = vpack.c.b16 %v5199, %v5194
      %v5290 = vpack.c.b16 %v5205, %v5200
      %v5291 = vpack.c.b16 %v5206, %v5201
      %v5292 = vpack.c.b16 %v5207, %v5202
      %v5293 = vpack.c.b16 %v5208, %v5203
      %v5294 = vpack.c.b16 %v5209, %v5204
      %v5295 = vpack.c.b16 %v5215, %v5210
      %v5296 = vpack.c.b16 %v5216, %v5211
      %v5297 = vpack.c.b16 %v5217, %v5212
      %v5298 = vpack.c.b16 %v5218, %v5213
      %v5299 = vpack.c.b16 %v5219, %v5214
      %5380 = vmatprep.subr.bf16.mxu0 %v5221
      %5381 = vmatpush1.bf16.msra.mxu0 %v5220
      %5382 = vmatprep.subr.bf16.mxu0 %v5226
      %5383 = vmatpush1.bf16.msra.mxu0 %v5225
      %5384 = vmatprep.subr.bf16.mxu0 %v5231
      %5385 = vmatpush1.bf16.msra.mxu0 %v5230
      %5386 = vmatprep.subr.bf16.mxu0 %v5236
      %5387 = vmatpush1.bf16.msra.mxu0 %v5235
      %5388 = vmatprep.subr.bf16.mxu0 %v5241
      %5389 = vmatpush1.bf16.msra.mxu0 %v5240
      %5390 = vmatprep.subr.bf16.mxu0 %v5246
      %5391 = vmatpush1.bf16.msra.mxu0 %v5245
      %5392 = vmatprep.subr.bf16.mxu0 %v5251
      %5393 = vmatpush1.bf16.msra.mxu0 %v5250
      %5394 = vmatprep.subr.bf16.mxu0 %v5256
      %5395 = vmatpush1.bf16.msra.mxu0 %v5255
      %5396 = vmatprep.subr.bf16.mxu0 %v5261
      %5397 = vmatpush1.bf16.msra.mxu0 %v5260
      %5398 = vmatprep.subr.bf16.mxu0 %v5266
      %5399 = vmatpush1.bf16.msra.mxu0 %v5265
      %5400 = vmatprep.subr.bf16.mxu0 %v5271
      %5401 = vmatpush1.bf16.msra.mxu0 %v5270
      %5402 = vmatprep.subr.bf16.mxu0 %v5276
      %5403 = vmatpush1.bf16.msra.mxu0 %v5275
      %5404 = vmatprep.subr.bf16.mxu0 %v5281
      %5405 = vmatpush1.bf16.msra.mxu0 %v5280
      %5406 = vmatprep.subr.bf16.mxu0 %v5286
      %5407 = vmatpush1.bf16.msra.mxu0 %v5285
      %5408 = vmatprep.subr.bf16.mxu0 %v5291
      %5409 = vmatpush1.bf16.msra.mxu0 %v5290
      %5410 = vmatprep.subr.bf16.mxu0 %v5296
      %5411 = vmatpush1.bf16.msra.mxu0 %v5295
      %5412 = vmatprep.mubr.bf16.mxu0 %v4866
      %5413 = vmatmul.mubr.bf16.gmra.mrb[0].mxu0 %v4865
      %v5414 = vpop.f32.mrb[0].mxu0
      %v5415 = vadd.f32 0.0, %v5414
      %v5416 = vpop.f32.mrb[0].mxu0
      %v5417 = vadd.f32 0.0, %v5416
      %v5418 = vpop.f32.mrb[0].mxu0
      %v5419 = vadd.f32 0.0, %v5418
      %v5420 = vpop.f32.mrb[0].mxu0
      %v5421 = vadd.f32 0.0, %v5420
      %5422 = vdwg.mxu0
      %5423 = vmatprep.subr.bf16.mxu0 %v5223
      %5424 = vmatpush1.bf16.msra.mxu0 %v5222
      %5425 = vmatprep.subr.bf16.mxu0 %v5228
      %5426 = vmatpush1.bf16.msra.mxu0 %v5227
      %5427 = vmatprep.subr.bf16.mxu0 %v5233
      %5428 = vmatpush1.bf16.msra.mxu0 %v5232
      %5429 = vmatprep.subr.bf16.mxu0 %v5238
      %5430 = vmatpush1.bf16.msra.mxu0 %v5237
      %5431 = vmatprep.subr.bf16.mxu0 %v5243
      %5432 = vmatpush1.bf16.msra.mxu0 %v5242
      %5433 = vmatprep.subr.bf16.mxu0 %v5248
      %5434 = vmatpush1.bf16.msra.mxu0 %v5247
      %5435 = vmatprep.subr.bf16.mxu0 %v5253
      %5436 = vmatpush1.bf16.msra.mxu0 %v5252
      %5437 = vmatprep.subr.bf16.mxu0 %v5258
      %5438 = vmatpush1.bf16.msra.mxu0 %v5257
      %5439 = vmatprep.subr.bf16.mxu0 %v5263
      %5440 = vmatpush1.bf16.msra.mxu0 %v5262
      %5441 = vmatprep.subr.bf16.mxu0 %v5268
      %5442 = vmatpush1.bf16.msra.mxu0 %v5267
      %5443 = vmatprep.subr.bf16.mxu0 %v5273
      %5444 = vmatpush1.bf16.msra.mxu0 %v5272
      %5445 = vmatprep.subr.bf16.mxu0 %v5278
      %5446 = vmatpush1.bf16.msra.mxu0 %v5277
      %5447 = vmatprep.subr.bf16.mxu0 %v5283
      %5448 = vmatpush1.bf16.msra.mxu0 %v5282
      %5449 = vmatprep.subr.bf16.mxu0 %v5288
      %5450 = vmatpush1.bf16.msra.mxu0 %v5287
      %5451 = vmatprep.subr.bf16.mxu0 %v5293
      %5452 = vmatpush1.bf16.msra.mxu0 %v5292
      %5453 = vmatprep.subr.bf16.mxu0 %v5298
      %5454 = vmatpush1.bf16.msra.mxu0 %v5297
      %5455 = vmatprep.mubr.bf16.mxu0 %v4866
      %5456 = vmatmul.mubr.bf16.gmra.mrb[0].mxu0 %v4865
      %v5457 = vpop.f32.mrb[0].mxu0
      %v5458 = vadd.f32 0.0, %v5457
      %v5459 = vpop.f32.mrb[0].mxu0
      %v5460 = vadd.f32 0.0, %v5459
      %v5461 = vpop.f32.mrb[0].mxu0
      %v5462 = vadd.f32 0.0, %v5461
      %v5463 = vpop.f32.mrb[0].mxu0
      %v5464 = vadd.f32 0.0, %v5463
      %5465 = vdwg.mxu0
      %5466 = vmatprep.subr.bf16.mxu0 0
      %5467 = vmatpush1.bf16.msra.mxu0 %v5224
      %5468 = vmatprep.subr.bf16.mxu0 0
      %5469 = vmatpush1.bf16.msra.mxu0 %v5229
      %5470 = vmatprep.subr.bf16.mxu0 0
      %5471 = vmatpush1.bf16.msra.mxu0 %v5234
      %5472 = vmatprep.subr.bf16.mxu0 0
      %5473 = vmatpush1.bf16.msra.mxu0 %v5239
      %5474 = vmatprep.subr.bf16.mxu0 0
      %5475 = vmatpush1.bf16.msra.mxu0 %v5244
      %5476 = vmatprep.subr.bf16.mxu0 0
      %5477 = vmatpush1.bf16.msra.mxu0 %v5249
      %5478 = vmatprep.subr.bf16.mxu0 0
      %5479 = vmatpush1.bf16.msra.mxu0 %v5254
      %5480 = vmatprep.subr.bf16.mxu0 0
      %5481 = vmatpush1.bf16.msra.mxu0 %v5259
      %5482 = vmatprep.subr.bf16.mxu0 0
      %5483 = vmatpush1.bf16.msra.mxu0 %v5264
      %5484 = vmatprep.subr.bf16.mxu0 0
      %5485 = vmatpush1.bf16.msra.mxu0 %v5269
      %5486 = vmatprep.subr.bf16.mxu0 0
      %5487 = vmatpush1.bf16.msra.mxu0 %v5274
      %5488 = vmatprep.subr.bf16.mxu0 0
      %5489 = vmatpush1.bf16.msra.mxu0 %v5279
      %5490 = vmatprep.subr.bf16.mxu0 0
      %5491 = vmatpush1.bf16.msra.mxu0 %v5284
      %5492 = vmatprep.subr.bf16.mxu0 0
      %5493 = vmatpush1.bf16.msra.mxu0 %v5289
      %5494 = vmatprep.subr.bf16.mxu0 0
      %5495 = vmatpush1.bf16.msra.mxu0 %v5294
      %5496 = vmatprep.subr.bf16.mxu0 0
      %5497 = vmatpush1.bf16.msra.mxu0 %v5299
      %5498 = vmatprep.mubr.bf16.mxu0 %v4866
      %5499 = vmatmul.mubr.bf16.gmra.mrb[0].mxu0 %v4865
      %v5500 = vpop.f32.mrb[0].mxu0
      %v5501 = vadd.f32 0.0, %v5500
      %v5502 = vpop.f32.mrb[0].mxu0
      %v5503 = vpop.f32.mrb[0].mxu0
      %v5504 = vadd.f32 0.0, %v5503
      %v5505 = vpop.f32.mrb[0].mxu0
      %5506 = vdwg.mxu0
      %v5507 = vadd.f32 %v4730, %v5415
      %v5508 = vadd.f32 %v4732, %v5417
      %v5509 = vadd.f32 %v4773, %v5458
      %v5510 = vadd.f32 %v4775, %v5460
      %v5511 = vadd.f32 %v4816, %v5501
      %v5512 = vadd.f32 %v4734, %v5419
      %v5513 = vadd.f32 %v4736, %v5421
      %v5514 = vadd.f32 %v4777, %v5462
      %v5515 = vadd.f32 %v4779, %v5464
      %v5516 = vadd.f32 %v4819, %v5504
      %v5517 = vld [vmem:[%s10] sm:$0x1f]
      %v5519 = vlaneseq
      %v5520 = vshrl.u32 %v5519, 7
      %v5521 = vsub.s32 0, %v5520
      %v5522 = vrot.slane %v5517, %v5521
      %v5523 = vlaneseq
      %v5524 = vshrl.u32 %v5523, 7
      %v5525 = vsub.s32 1, %v5524
      %v5526 = vrot.slane %v5517, %v5525
      %v5527 = vlaneseq
      %v5528 = vshrl.u32 %v5527, 7
      %v5529 = vsub.s32 2, %v5528
      %v5530 = vrot.slane %v5517, %v5529
      %v5531 = vlaneseq
      %v5532 = vshrl.u32 %v5531, 7
      %v5533 = vsub.s32 3, %v5532
      %v5534 = vrot.slane %v5517, %v5533
      %v5535 = vlaneseq
      %v5536 = vshrl.u32 %v5535, 7
      %v5537 = vsub.s32 4, %v5536
      %v5538 = vrot.slane %v5517, %v5537
      %v5544 = vadd.f32 %v5507, %v5522
      %v5545 = vadd.f32 %v5508, %v5526
      %v5546 = vadd.f32 %v5509, %v5530
      %v5547 = vadd.f32 %v5510, %v5534
      %v5548 = vadd.f32 %v5511, %v5538
      %v5549 = vadd.f32 %v5512, %v5522
      %v5550 = vadd.f32 %v5513, %v5526
      %v5551 = vadd.f32 %v5514, %v5530
      %v5552 = vadd.f32 %v5515, %v5534
      %v5553 = vadd.f32 %v5516, %v5538
      %5554 = vst [vmem:[%s563] sm:$0xff] %v5544
      %5555 = vst [vmem:[%s563 + $0x8] sm:$0xff] %v5545
      %5556 = vst [vmem:[%s563 + $0x10] sm:$0xff] %v5546
      %5557 = vst [vmem:[%s563 + $0x18] sm:$0xff] %v5547
      %5558 = vst.msk [vmem:[%s563 + $0x20] sm:$0xff] %vm748, %v5548
      %5559 = vst [vmem:[%s563 + $0x28] sm:$0xff] %v5549
      %5560 = vst [vmem:[%s563 + $0x30] sm:$0xff] %v5550
      %5561 = vst [vmem:[%s563 + $0x38] sm:$0xff] %v5551
      %5562 = vst [vmem:[%s563 + $0x40] sm:$0xff] %v5552
      %5563 = vst.msk [vmem:[%s563 + $0x48] sm:$0xff] %vm748, %v5553
      %v5564 = vpack.c.bf16 %v586, %v586
      %v5566 = vsel %vm2793, %v5564, 0
      %5568 = vmatprep.subr.bf16.mxu0 %v2801
      %5569 = vmatpush1.bf16.msra.mxu0 %v2798
      %5570 = vmatprep.subr.bf16.mxu0 0
      %5571 = vmatpush1.bf16.msra.mxu0 0
      %5572 = vmatprep.subr.bf16.mxu0 0
      %5573 = vmatpush1.bf16.msra.mxu0 0
      %5574 = vmatprep.subr.bf16.mxu0 0
      %5575 = vmatpush1.bf16.msra.mxu0 0
      %5576 = vmatprep.subr.bf16.mxu0 0
      %5577 = vmatpush1.bf16.msra.mxu0 0
      %5578 = vmatprep.subr.bf16.mxu0 0
      %5579 = vmatpush1.bf16.msra.mxu0 0
      %5580 = vmatprep.subr.bf16.mxu0 0
      %5581 = vmatpush1.bf16.msra.mxu0 0
      %5582 = vmatprep.subr.bf16.mxu0 0
      %5583 = vmatpush1.bf16.msra.mxu0 0
      %5584 = vmatprep.subr.bf16.mxu0 0
      %5585 = vmatpush1.bf16.msra.mxu0 0
      %5586 = vmatprep.subr.bf16.mxu0 0
      %5587 = vmatpush1.bf16.msra.mxu0 0
      %5588 = vmatprep.subr.bf16.mxu0 0
      %5589 = vmatpush1.bf16.msra.mxu0 0
      %5590 = vmatprep.subr.bf16.mxu0 0
      %5591 = vmatpush1.bf16.msra.mxu0 0
      %5592 = vmatprep.subr.bf16.mxu0 0
      %5593 = vmatpush1.bf16.msra.mxu0 0
      %5594 = vmatprep.subr.bf16.mxu0 0
      %5595 = vmatpush1.bf16.msra.mxu0 0
      %5596 = vmatprep.subr.bf16.mxu0 0
      %5597 = vmatpush1.bf16.msra.mxu0 0
      %5598 = vmatprep.subr.bf16.mxu0 0
      %5599 = vmatpush1.bf16.msra.mxu0 0
      %5600 = vmatprep.mubr.bf16.mxu0 0
      %5601 = vmatmul.mubr.bf16.gmra.mrb[0].mxu0 %v5566
      %v5602 = vpop.f32.mrb[0].mxu0
      %v5603 = vadd.f32 0.0, %v5602
      %v5604 = vpop.f32.mrb[0].mxu0
      %v5605 = vadd.f32 0.0, %v5604
      %v5606 = vpop.f32.mrb[0].mxu0
      %v5607 = vpop.f32.mrb[0].mxu0
      %5608 = vdwg.mxu0
      %v5609 = vpack.c.bf16 %v5603, %v5603
      %v5610 = vpack.c.bf16 %v5605, %v5605
      %v5611 = vld [vmem:[%s11] sm:$0xff]
      %v5612 = vld [vmem:[%s11 + $0x8] sm:$0xf]
      %v5613 = vld [vmem:[%s11 + $0xc] sm:$0xff]
      %v5614 = vld [vmem:[%s11 + $0x14] sm:$0xf]
      %v5615 = vld [vmem:[%s11 + $0x18] sm:$0xff]
      %v5616 = vld [vmem:[%s11 + $0x20] sm:$0xf]
      %v5617 = vld [vmem:[%s11 + $0x24] sm:$0xff]
      %v5618 = vld [vmem:[%s11 + $0x2c] sm:$0xf]
      %v5619 = vld [vmem:[%s11 + $0x30] sm:$0xff]
      %v5620 = vld [vmem:[%s11 + $0x38] sm:$0xf]
      %v5621 = vld [vmem:[%s11 + $0x3c] sm:$0xff]
      %v5622 = vld [vmem:[%s11 + $0x44] sm:$0xf]
      %v5623 = vld [vmem:[%s11 + $0x48] sm:$0xff]
      %v5624 = vld [vmem:[%s11 + $0x50] sm:$0xf]
      %v5625 = vld [vmem:[%s11 + $0x54] sm:$0xff]
      %v5626 = vld [vmem:[%s11 + $0x5c] sm:$0xf]
      %v5627 = vld [vmem:[%s11 + $0x60] sm:$0xff]
      %v5628 = vld [vmem:[%s11 + $0x68] sm:$0xf]
      %v5629 = vld [vmem:[%s11 + $0x6c] sm:$0xff]
      %v5630 = vld [vmem:[%s11 + $0x74] sm:$0xf]
      %v5631 = vld [vmem:[%s11 + $0x78] sm:$0xff]
      %v5632 = vld [vmem:[%s11 + $0x80] sm:$0xf]
      %v5633 = vld [vmem:[%s11 + $0x84] sm:$0xff]
      %v5634 = vld [vmem:[%s11 + $0x8c] sm:$0xf]
      %v5635 = vld [vmem:[%s11 + $0x90] sm:$0xff]
      %v5636 = vld [vmem:[%s11 + $0x98] sm:$0xf]
      %v5637 = vld [vmem:[%s11 + $0x9c] sm:$0xff]
      %v5638 = vld [vmem:[%s11 + $0xa4] sm:$0xf]
      %v5639 = vld [vmem:[%s11 + $0xa8] sm:$0xff]
      %v5640 = vld [vmem:[%s11 + $0xb0] sm:$0xf]
      %v5641 = vld [vmem:[%s11 + $0xb4] sm:$0xff]
      %v5642 = vld [vmem:[%s11 + $0xbc] sm:$0xf]
      %v5643 = vld [vmem:[%s11 + $0xc0] sm:$0xff]
      %v5644 = vld [vmem:[%s11 + $0xc8] sm:$0xf]
      %v5645 = vld [vmem:[%s11 + $0xcc] sm:$0xff]
      %v5646 = vld [vmem:[%s11 + $0xd4] sm:$0xf]
      %v5647 = vld [vmem:[%s11 + $0xd8] sm:$0xff]
      %v5648 = vld [vmem:[%s11 + $0xe0] sm:$0xf]
      %v5649 = vld [vmem:[%s11 + $0xe4] sm:$0xff]
      %v5650 = vld [vmem:[%s11 + $0xec] sm:$0xf]
      %v5651 = vld [vmem:[%s11 + $0xf0] sm:$0xff]
      %v5652 = vld [vmem:[%s11 + $0xf8] sm:$0xf]
      %v5653 = vld [vmem:[%s11 + $0xfc] sm:$0xff]
      %v5654 = vld [vmem:[%s11 + $0x104] sm:$0xf]
      %v5655 = vld [vmem:[%s11 + $0x108] sm:$0xff]
      %v5656 = vld [vmem:[%s11 + $0x110] sm:$0xf]
      %v5657 = vld [vmem:[%s11 + $0x114] sm:$0xff]
      %v5658 = vld [vmem:[%s11 + $0x11c] sm:$0xf]
      %v5659 = vld [vmem:[%s11 + $0x120] sm:$0xff]
      %v5660 = vld [vmem:[%s11 + $0x128] sm:$0xf]
      %v5661 = vld [vmem:[%s11 + $0x12c] sm:$0xff]
      %v5662 = vld [vmem:[%s11 + $0x134] sm:$0xf]
      %v5663 = vld [vmem:[%s11 + $0x138] sm:$0xff]
      %v5664 = vld [vmem:[%s11 + $0x140] sm:$0xf]
      %v5665 = vld [vmem:[%s11 + $0x144] sm:$0xff]
      %v5666 = vld [vmem:[%s11 + $0x14c] sm:$0xf]
      %v5667 = vld [vmem:[%s11 + $0x150] sm:$0xff]
      %v5668 = vld [vmem:[%s11 + $0x158] sm:$0xf]
      %v5669 = vld [vmem:[%s11 + $0x15c] sm:$0xff]
      %v5670 = vld [vmem:[%s11 + $0x164] sm:$0xf]
      %v5671 = vld [vmem:[%s11 + $0x168] sm:$0xff]
      %v5672 = vld [vmem:[%s11 + $0x170] sm:$0xf]
      %v5673 = vld [vmem:[%s11 + $0x174] sm:$0xff]
      %v5674 = vld [vmem:[%s11 + $0x17c] sm:$0xf]
      %v5675 = vpack.c.bf16 %v651, %v651
      %v5677 = vsel %vm2793, %v5675, 0
      %5679 = vmatprep.subr.bf16.mxu0 %v2801
      %5680 = vmatpush1.bf16.msra.mxu0 %v2798
      %5681 = vmatprep.subr.bf16.mxu0 0
      %5682 = vmatpush1.bf16.msra.mxu0 0
      %5683 = vmatprep.subr.bf16.mxu0 0
      %5684 = vmatpush1.bf16.msra.mxu0 0
      %5685 = vmatprep.subr.bf16.mxu0 0
      %5686 = vmatpush1.bf16.msra.mxu0 0
      %5687 = vmatprep.subr.bf16.mxu0 0
      %5688 = vmatpush1.bf16.msra.mxu0 0
      %5689 = vmatprep.subr.bf16.mxu0 0
      %5690 = vmatpush1.bf16.msra.mxu0 0
      %5691 = vmatprep.subr.bf16.mxu0 0
      %5692 = vmatpush1.bf16.msra.mxu0 0
      %5693 = vmatprep.subr.bf16.mxu0 0
      %5694 = vmatpush1.bf16.msra.mxu0 0
      %5695 = vmatprep.subr.bf16.mxu0 0
      %5696 = vmatpush1.bf16.msra.mxu0 0
      %5697 = vmatprep.subr.bf16.mxu0 0
      %5698 = vmatpush1.bf16.msra.mxu0 0
      %5699 = vmatprep.subr.bf16.mxu0 0
      %5700 = vmatpush1.bf16.msra.mxu0 0
      %5701 = vmatprep.subr.bf16.mxu0 0
      %5702 = vmatpush1.bf16.msra.mxu0 0
      %5703 = vmatprep.subr.bf16.mxu0 0
      %5704 = vmatpush1.bf16.msra.mxu0 0
      %5705 = vmatprep.subr.bf16.mxu0 0
      %5706 = vmatpush1.bf16.msra.mxu0 0
      %5707 = vmatprep.subr.bf16.mxu0 0
      %5708 = vmatpush1.bf16.msra.mxu0 0
      %5709 = vmatprep.subr.bf16.mxu0 0
      %5710 = vmatpush1.bf16.msra.mxu0 0
      %5711 = vmatprep.mubr.bf16.mxu0 0
      %5712 = vmatmul.mubr.bf16.gmra.mrb[0].mxu0 %v5677
      %v5713 = vpop.f32.mrb[0].mxu0
      %v5714 = vadd.f32 0.0, %v5713
      %v5715 = vpop.f32.mrb[0].mxu0
      %v5716 = vadd.f32 0.0, %v5715
      %v5717 = vpop.f32.mrb[0].mxu0
      %v5718 = vpop.f32.mrb[0].mxu0
      %5719 = vdwg.mxu0
      %v5720 = vpack.c.bf16 %v5714, %v5714
      %v5721 = vpack.c.bf16 %v5716, %v5716
      %s5722 = scalar_lea.vmem %s11, 384
      %v5723 = vld [vmem:[%s5722] sm:$0xff]
      %v5724 = vld [vmem:[%s5722 + $0x8] sm:$0xf]
      %v5725 = vld [vmem:[%s5722 + $0xc] sm:$0xff]
      %v5726 = vld [vmem:[%s5722 + $0x14] sm:$0xf]
      %v5727 = vld [vmem:[%s5722 + $0x18] sm:$0xff]
      %v5728 = vld [vmem:[%s5722 + $0x20] sm:$0xf]
      %v5729 = vld [vmem:[%s5722 + $0x24] sm:$0xff]
      %v5730 = vld [vmem:[%s5722 + $0x2c] sm:$0xf]
      %v5731 = vld [vmem:[%s5722 + $0x30] sm:$0xff]
      %v5732 = vld [vmem:[%s5722 + $0x38] sm:$0xf]
      %v5733 = vld [vmem:[%s5722 + $0x3c] sm:$0xff]
      %v5734 = vld [vmem:[%s5722 + $0x44] sm:$0xf]
      %v5735 = vld [vmem:[%s5722 + $0x48] sm:$0xff]
      %v5736 = vld [vmem:[%s5722 + $0x50] sm:$0xf]
      %v5737 = vld [vmem:[%s5722 + $0x54] sm:$0xff]
      %v5738 = vld [vmem:[%s5722 + $0x5c] sm:$0xf]
      %v5739 = vld [vmem:[%s5722 + $0x60] sm:$0xff]
      %v5740 = vld [vmem:[%s5722 + $0x68] sm:$0xf]
      %v5741 = vld [vmem:[%s5722 + $0x6c] sm:$0xff]
      %v5742 = vld [vmem:[%s5722 + $0x74] sm:$0xf]
      %v5743 = vld [vmem:[%s5722 + $0x78] sm:$0xff]
      %v5744 = vld [vmem:[%s5722 + $0x80] sm:$0xf]
      %v5745 = vld [vmem:[%s5722 + $0x84] sm:$0xff]
      %v5746 = vld [vmem:[%s5722 + $0x8c] sm:$0xf]
      %v5747 = vld [vmem:[%s5722 + $0x90] sm:$0xff]
      %v5748 = vld [vmem:[%s5722 + $0x98] sm:$0xf]
      %v5749 = vld [vmem:[%s5722 + $0x9c] sm:$0xff]
      %v5750 = vld [vmem:[%s5722 + $0xa4] sm:$0xf]
      %v5751 = vld [vmem:[%s5722 + $0xa8] sm:$0xff]
      %v5752 = vld [vmem:[%s5722 + $0xb0] sm:$0xf]
      %v5753 = vld [vmem:[%s5722 + $0xb4] sm:$0xff]
      %v5754 = vld [vmem:[%s5722 + $0xbc] sm:$0xf]
      %v5755 = vld [vmem:[%s5722 + $0xc0] sm:$0xff]
      %v5756 = vld [vmem:[%s5722 + $0xc8] sm:$0xf]
      %v5757 = vld [vmem:[%s5722 + $0xcc] sm:$0xff]
      %v5758 = vld [vmem:[%s5722 + $0xd4] sm:$0xf]
      %v5759 = vld [vmem:[%s5722 + $0xd8] sm:$0xff]
      %v5760 = vld [vmem:[%s5722 + $0xe0] sm:$0xf]
      %v5761 = vld [vmem:[%s5722 + $0xe4] sm:$0xff]
      %v5762 = vld [vmem:[%s5722 + $0xec] sm:$0xf]
      %v5763 = vld [vmem:[%s5722 + $0xf0] sm:$0xff]
      %v5764 = vld [vmem:[%s5722 + $0xf8] sm:$0xf]
      %v5765 = vld [vmem:[%s5722 + $0xfc] sm:$0xff]
      %v5766 = vld [vmem:[%s5722 + $0x104] sm:$0xf]
      %v5767 = vld [vmem:[%s5722 + $0x108] sm:$0xff]
      %v5768 = vld [vmem:[%s5722 + $0x110] sm:$0xf]
      %v5769 = vld [vmem:[%s5722 + $0x114] sm:$0xff]
      %v5770 = vld [vmem:[%s5722 + $0x11c] sm:$0xf]
      %v5771 = vld [vmem:[%s5722 + $0x120] sm:$0xff]
      %v5772 = vld [vmem:[%s5722 + $0x128] sm:$0xf]
      %v5773 = vld [vmem:[%s5722 + $0x12c] sm:$0xff]
      %v5774 = vld [vmem:[%s5722 + $0x134] sm:$0xf]
      %v5775 = vld [vmem:[%s5722 + $0x138] sm:$0xff]
      %v5776 = vld [vmem:[%s5722 + $0x140] sm:$0xf]
      %v5777 = vld [vmem:[%s5722 + $0x144] sm:$0xff]
      %v5778 = vld [vmem:[%s5722 + $0x14c] sm:$0xf]
      %v5779 = vld [vmem:[%s5722 + $0x150] sm:$0xff]
      %v5780 = vld [vmem:[%s5722 + $0x158] sm:$0xf]
      %v5781 = vld [vmem:[%s5722 + $0x15c] sm:$0xff]
      %v5782 = vld [vmem:[%s5722 + $0x164] sm:$0xf]
      %v5783 = vld [vmem:[%s5722 + $0x168] sm:$0xff]
      %v5784 = vld [vmem:[%s5722 + $0x170] sm:$0xf]
      %v5785 = vld [vmem:[%s5722 + $0x174] sm:$0xff]
      %v5786 = vld [vmem:[%s5722 + $0x17c] sm:$0xf]
      %v5851 = vunpack.c.l.b16 %v5723
      %v5852 = vunpack.c.h.b16 %v5723
      %v5853 = vunpack.c.l.b16 %v5724
      %v5854 = vunpack.c.l.b16 %v5725
      %v5855 = vunpack.c.h.b16 %v5725
      %v5856 = vunpack.c.l.b16 %v5726
      %v5857 = vunpack.c.l.b16 %v5727
      %v5858 = vunpack.c.h.b16 %v5727
      %v5859 = vunpack.c.l.b16 %v5728
      %v5860 = vunpack.c.l.b16 %v5729
      %v5861 = vunpack.c.h.b16 %v5729
      %v5862 = vunpack.c.l.b16 %v5730
      %v5863 = vunpack.c.l.b16 %v5731
      %v5864 = vunpack.c.h.b16 %v5731
      %v5865 = vunpack.c.l.b16 %v5732
      %v5866 = vunpack.c.l.b16 %v5733
      %v5867 = vunpack.c.h.b16 %v5733
      %v5868 = vunpack.c.l.b16 %v5734
      %v5869 = vunpack.c.l.b16 %v5735
      %v5870 = vunpack.c.h.b16 %v5735
      %v5871 = vunpack.c.l.b16 %v5736
      %v5872 = vunpack.c.l.b16 %v5737
      %v5873 = vunpack.c.h.b16 %v5737
      %v5874 = vunpack.c.l.b16 %v5738
      %v5875 = vunpack.c.l.b16 %v5739
      %v5876 = vunpack.c.h.b16 %v5739
      %v5877 = vunpack.c.l.b16 %v5740
      %v5878 = vunpack.c.l.b16 %v5741
      %v5879 = vunpack.c.h.b16 %v5741
      %v5880 = vunpack.c.l.b16 %v5742
      %v5881 = vunpack.c.l.b16 %v5743
      %v5882 = vunpack.c.h.b16 %v5743
      %v5883 = vunpack.c.l.b16 %v5744
      %v5884 = vunpack.c.l.b16 %v5745
      %v5885 = vunpack.c.h.b16 %v5745
      %v5886 = vunpack.c.l.b16 %v5746
      %v5887 = vunpack.c.l.b16 %v5747
      %v5888 = vunpack.c.h.b16 %v5747
      %v5889 = vunpack.c.l.b16 %v5748
      %v5890 = vunpack.c.l.b16 %v5749
      %v5891 = vunpack.c.h.b16 %v5749
      %v5892 = vunpack.c.l.b16 %v5750
      %v5893 = vunpack.c.l.b16 %v5751
      %v5894 = vunpack.c.h.b16 %v5751
      %v5895 = vunpack.c.l.b16 %v5752
      %v5896 = vunpack.c.l.b16 %v5753
      %v5897 = vunpack.c.h.b16 %v5753
      %v5898 = vunpack.c.l.b16 %v5754
      %v5899 = vunpack.c.l.b16 %v5755
      %v5900 = vunpack.c.h.b16 %v5755
      %v5901 = vunpack.c.l.b16 %v5756
      %v5902 = vunpack.c.l.b16 %v5757
      %v5903 = vunpack.c.h.b16 %v5757
      %v5904 = vunpack.c.l.b16 %v5758
      %v5905 = vunpack.c.l.b16 %v5759
      %v5906 = vunpack.c.h.b16 %v5759
      %v5907 = vunpack.c.l.b16 %v5760
      %v5908 = vunpack.c.l.b16 %v5761
      %v5909 = vunpack.c.h.b16 %v5761
      %v5910 = vunpack.c.l.b16 %v5762
      %v5911 = vunpack.c.l.b16 %v5763
      %v5912 = vunpack.c.h.b16 %v5763
      %v5913 = vunpack.c.l.b16 %v5764
      %v5914 = vunpack.c.l.b16 %v5765
      %v5915 = vunpack.c.h.b16 %v5765
      %v5916 = vunpack.c.l.b16 %v5766
      %v5917 = vunpack.c.l.b16 %v5767
      %v5918 = vunpack.c.h.b16 %v5767
      %v5919 = vunpack.c.l.b16 %v5768
      %v5920 = vunpack.c.l.b16 %v5769
      %v5921 = vunpack.c.h.b16 %v5769
      %v5922 = vunpack.c.l.b16 %v5770
      %v5923 = vunpack.c.l.b16 %v5771
      %v5924 = vunpack.c.h.b16 %v5771
      %v5925 = vunpack.c.l.b16 %v5772
      %v5926 = vunpack.c.l.b16 %v5773
      %v5927 = vunpack.c.h.b16 %v5773
      %v5928 = vunpack.c.l.b16 %v5774
      %v5929 = vunpack.c.l.b16 %v5775
      %v5930 = vunpack.c.h.b16 %v5775
      %v5931 = vunpack.c.l.b16 %v5776
      %v5932 = vunpack.c.l.b16 %v5777
      %v5933 = vunpack.c.h.b16 %v5777
      %v5934 = vunpack.c.l.b16 %v5778
      %v5935 = vunpack.c.l.b16 %v5779
      %v5936 = vunpack.c.h.b16 %v5779
      %v5937 = vunpack.c.l.b16 %v5780
      %v5938 = vunpack.c.l.b16 %v5781
      %v5939 = vunpack.c.h.b16 %v5781
      %v5940 = vunpack.c.l.b16 %v5782
      %v5941 = vunpack.c.l.b16 %v5783
      %v5942 = vunpack.c.h.b16 %v5783
      %v5943 = vunpack.c.l.b16 %v5784
      %v5944 = vunpack.c.l.b16 %v5785
      %v5945 = vunpack.c.h.b16 %v5785
      %v5946 = vunpack.c.l.b16 %v5786
      %v5947 = vpack.c.b16 %v5854, %v5851
      %v5948 = vpack.c.b16 %v5855, %v5852
      %v5949 = vpack.c.b16 %v5856, %v5853
      %v5950 = vpack.c.b16 %v5860, %v5857
      %v5951 = vpack.c.b16 %v5861, %v5858
      %v5952 = vpack.c.b16 %v5862, %v5859
      %v5953 = vpack.c.b16 %v5866, %v5863
      %v5954 = vpack.c.b16 %v5867, %v5864
      %v5955 = vpack.c.b16 %v5868, %v5865
      %v5956 = vpack.c.b16 %v5872, %v5869
      %v5957 = vpack.c.b16 %v5873, %v5870
      %v5958 = vpack.c.b16 %v5874, %v5871
      %v5959 = vpack.c.b16 %v5878, %v5875
      %v5960 = vpack.c.b16 %v5879, %v5876
      %v5961 = vpack.c.b16 %v5880, %v5877
      %v5962 = vpack.c.b16 %v5884, %v5881
      %v5963 = vpack.c.b16 %v5885, %v5882
      %v5964 = vpack.c.b16 %v5886, %v5883
      %v5965 = vpack.c.b16 %v5890, %v5887
      %v5966 = vpack.c.b16 %v5891, %v5888
      %v5967 = vpack.c.b16 %v5892, %v5889
      %v5968 = vpack.c.b16 %v5896, %v5893
      %v5969 = vpack.c.b16 %v5897, %v5894
      %v5970 = vpack.c.b16 %v5898, %v5895
      %v5971 = vpack.c.b16 %v5902, %v5899
      %v5972 = vpack.c.b16 %v5903, %v5900
      %v5973 = vpack.c.b16 %v5904, %v5901
      %v5974 = vpack.c.b16 %v5908, %v5905
      %v5975 = vpack.c.b16 %v5909, %v5906
      %v5976 = vpack.c.b16 %v5910, %v5907
      %v5977 = vpack.c.b16 %v5914, %v5911
      %v5978 = vpack.c.b16 %v5915, %v5912
      %v5979 = vpack.c.b16 %v5916, %v5913
      %v5980 = vpack.c.b16 %v5920, %v5917
      %v5981 = vpack.c.b16 %v5921, %v5918
      %v5982 = vpack.c.b16 %v5922, %v5919
      %v5983 = vpack.c.b16 %v5926, %v5923
      %v5984 = vpack.c.b16 %v5927, %v5924
      %v5985 = vpack.c.b16 %v5928, %v5925
      %v5986 = vpack.c.b16 %v5932, %v5929
      %v5987 = vpack.c.b16 %v5933, %v5930
      %v5988 = vpack.c.b16 %v5934, %v5931
      %v5989 = vpack.c.b16 %v5938, %v5935
      %v5990 = vpack.c.b16 %v5939, %v5936
      %v5991 = vpack.c.b16 %v5940, %v5937
      %v5992 = vpack.c.b16 %v5944, %v5941
      %v5993 = vpack.c.b16 %v5945, %v5942
      %v5994 = vpack.c.b16 %v5946, %v5943
      %6043 = vmatprep.subr.bf16.mxu0 %v5948
      %6044 = vmatpush1.bf16.msra.mxu0 %v5947
      %6045 = vmatprep.subr.bf16.mxu0 %v5951
      %6046 = vmatpush1.bf16.msra.mxu0 %v5950
      %6047 = vmatprep.subr.bf16.mxu0 %v5954
      %6048 = vmatpush1.bf16.msra.mxu0 %v5953
      %6049 = vmatprep.subr.bf16.mxu0 %v5957
      %6050 = vmatpush1.bf16.msra.mxu0 %v5956
      %6051 = vmatprep.subr.bf16.mxu0 %v5960
      %6052 = vmatpush1.bf16.msra.mxu0 %v5959
      %6053 = vmatprep.subr.bf16.mxu0 %v5963
      %6054 = vmatpush1.bf16.msra.mxu0 %v5962
      %6055 = vmatprep.subr.bf16.mxu0 %v5966
      %6056 = vmatpush1.bf16.msra.mxu0 %v5965
      %6057 = vmatprep.subr.bf16.mxu0 %v5969
      %6058 = vmatpush1.bf16.msra.mxu0 %v5968
      %6059 = vmatprep.subr.bf16.mxu0 %v5972
      %6060 = vmatpush1.bf16.msra.mxu0 %v5971
      %6061 = vmatprep.subr.bf16.mxu0 %v5975
      %6062 = vmatpush1.bf16.msra.mxu0 %v5974
      %6063 = vmatprep.subr.bf16.mxu0 %v5978
      %6064 = vmatpush1.bf16.msra.mxu0 %v5977
      %6065 = vmatprep.subr.bf16.mxu0 %v5981
      %6066 = vmatpush1.bf16.msra.mxu0 %v5980
      %6067 = vmatprep.subr.bf16.mxu0 %v5984
      %6068 = vmatpush1.bf16.msra.mxu0 %v5983
      %6069 = vmatprep.subr.bf16.mxu0 %v5987
      %6070 = vmatpush1.bf16.msra.mxu0 %v5986
      %6071 = vmatprep.subr.bf16.mxu0 %v5990
      %6072 = vmatpush1.bf16.msra.mxu0 %v5989
      %6073 = vmatprep.subr.bf16.mxu0 %v5993
      %6074 = vmatpush1.bf16.msra.mxu0 %v5992
      %6075 = vmatprep.mubr.bf16.mxu0 %v5721
      %6076 = vmatmul.mubr.bf16.gmra.mrb[0].mxu0 %v5720
      %v6077 = vpop.f32.mrb[0].mxu0
      %v6078 = vadd.f32 0.0, %v6077
      %v6079 = vpop.f32.mrb[0].mxu0
      %v6080 = vadd.f32 0.0, %v6079
      %v6081 = vpop.f32.mrb[0].mxu0
      %v6082 = vpop.f32.mrb[0].mxu0
      %6083 = vdwg.mxu0
      %6084 = vmatprep.subr.bf16.mxu0 0
      %6085 = vmatpush1.bf16.msra.mxu0 %v5949
      %6086 = vmatprep.subr.bf16.mxu0 0
      %6087 = vmatpush1.bf16.msra.mxu0 %v5952
      %6088 = vmatprep.subr.bf16.mxu0 0
      %6089 = vmatpush1.bf16.msra.mxu0 %v5955
      %6090 = vmatprep.subr.bf16.mxu0 0
      %6091 = vmatpush1.bf16.msra.mxu0 %v5958
      %6092 = vmatprep.subr.bf16.mxu0 0
      %6093 = vmatpush1.bf16.msra.mxu0 %v5961
      %6094 = vmatprep.subr.bf16.mxu0 0
      %6095 = vmatpush1.bf16.msra.mxu0 %v5964
      %6096 = vmatprep.subr.bf16.mxu0 0
      %6097 = vmatpush1.bf16.msra.mxu0 %v5967
      %6098 = vmatprep.subr.bf16.mxu0 0
      %6099 = vmatpush1.bf16.msra.mxu0 %v5970
      %6100 = vmatprep.subr.bf16.mxu0 0
      %6101 = vmatpush1.bf16.msra.mxu0 %v5973
      %6102 = vmatprep.subr.bf16.mxu0 0
      %6103 = vmatpush1.bf16.msra.mxu0 %v5976
      %6104 = vmatprep.subr.bf16.mxu0 0
      %6105 = vmatpush1.bf16.msra.mxu0 %v5979
      %6106 = vmatprep.subr.bf16.mxu0 0
      %6107 = vmatpush1.bf16.msra.mxu0 %v5982
      %6108 = vmatprep.subr.bf16.mxu0 0
      %6109 = vmatpush1.bf16.msra.mxu0 %v5985
      %6110 = vmatprep.subr.bf16.mxu0 0
      %6111 = vmatpush1.bf16.msra.mxu0 %v5988
      %6112 = vmatprep.subr.bf16.mxu0 0
      %6113 = vmatpush1.bf16.msra.mxu0 %v5991
      %6114 = vmatprep.subr.bf16.mxu0 0
      %6115 = vmatpush1.bf16.msra.mxu0 %v5994
      %6116 = vmatprep.mubr.bf16.mxu0 %v5721
      %6117 = vmatmul.mubr.bf16.gmra.mrb[0].mxu0 %v5720
      %v6118 = vpop.f32.mrb[0].mxu0
      %v6119 = vadd.f32 0.0, %v6118
      %v6120 = vpop.f32.mrb[0].mxu0
      %v6121 = vpop.f32.mrb[0].mxu0
      %v6122 = vpop.f32.mrb[0].mxu0
      %6123 = vdwg.mxu0
      %v6188 = vunpack.c.l.b16 %v5611
      %v6189 = vunpack.c.h.b16 %v5611
      %v6190 = vunpack.c.l.b16 %v5612
      %v6191 = vunpack.c.l.b16 %v5613
      %v6192 = vunpack.c.h.b16 %v5613
      %v6193 = vunpack.c.l.b16 %v5614
      %v6194 = vunpack.c.l.b16 %v5615
      %v6195 = vunpack.c.h.b16 %v5615
      %v6196 = vunpack.c.l.b16 %v5616
      %v6197 = vunpack.c.l.b16 %v5617
      %v6198 = vunpack.c.h.b16 %v5617
      %v6199 = vunpack.c.l.b16 %v5618
      %v6200 = vunpack.c.l.b16 %v5619
      %v6201 = vunpack.c.h.b16 %v5619
      %v6202 = vunpack.c.l.b16 %v5620
      %v6203 = vunpack.c.l.b16 %v5621
      %v6204 = vunpack.c.h.b16 %v5621
      %v6205 = vunpack.c.l.b16 %v5622
      %v6206 = vunpack.c.l.b16 %v5623
      %v6207 = vunpack.c.h.b16 %v5623
      %v6208 = vunpack.c.l.b16 %v5624
      %v6209 = vunpack.c.l.b16 %v5625
      %v6210 = vunpack.c.h.b16 %v5625
      %v6211 = vunpack.c.l.b16 %v5626
      %v6212 = vunpack.c.l.b16 %v5627
      %v6213 = vunpack.c.h.b16 %v5627
      %v6214 = vunpack.c.l.b16 %v5628
      %v6215 = vunpack.c.l.b16 %v5629
      %v6216 = vunpack.c.h.b16 %v5629
      %v6217 = vunpack.c.l.b16 %v5630
      %v6218 = vunpack.c.l.b16 %v5631
      %v6219 = vunpack.c.h.b16 %v5631
      %v6220 = vunpack.c.l.b16 %v5632
      %v6221 = vunpack.c.l.b16 %v5633
      %v6222 = vunpack.c.h.b16 %v5633
      %v6223 = vunpack.c.l.b16 %v5634
      %v6224 = vunpack.c.l.b16 %v5635
      %v6225 = vunpack.c.h.b16 %v5635
      %v6226 = vunpack.c.l.b16 %v5636
      %v6227 = vunpack.c.l.b16 %v5637
      %v6228 = vunpack.c.h.b16 %v5637
      %v6229 = vunpack.c.l.b16 %v5638
      %v6230 = vunpack.c.l.b16 %v5639
      %v6231 = vunpack.c.h.b16 %v5639
      %v6232 = vunpack.c.l.b16 %v5640
      %v6233 = vunpack.c.l.b16 %v5641
      %v6234 = vunpack.c.h.b16 %v5641
      %v6235 = vunpack.c.l.b16 %v5642
      %v6236 = vunpack.c.l.b16 %v5643
      %v6237 = vunpack.c.h.b16 %v5643
      %v6238 = vunpack.c.l.b16 %v5644
      %v6239 = vunpack.c.l.b16 %v5645
      %v6240 = vunpack.c.h.b16 %v5645
      %v6241 = vunpack.c.l.b16 %v5646
      %v6242 = vunpack.c.l.b16 %v5647
      %v6243 = vunpack.c.h.b16 %v5647
      %v6244 = vunpack.c.l.b16 %v5648
      %v6245 = vunpack.c.l.b16 %v5649
      %v6246 = vunpack.c.h.b16 %v5649
      %v6247 = vunpack.c.l.b16 %v5650
      %v6248 = vunpack.c.l.b16 %v5651
      %v6249 = vunpack.c.h.b16 %v5651
      %v6250 = vunpack.c.l.b16 %v5652
      %v6251 = vunpack.c.l.b16 %v5653
      %v6252 = vunpack.c.h.b16 %v5653
      %v6253 = vunpack.c.l.b16 %v5654
      %v6254 = vunpack.c.l.b16 %v5655
      %v6255 = vunpack.c.h.b16 %v5655
      %v6256 = vunpack.c.l.b16 %v5656
      %v6257 = vunpack.c.l.b16 %v5657
      %v6258 = vunpack.c.h.b16 %v5657
      %v6259 = vunpack.c.l.b16 %v5658
      %v6260 = vunpack.c.l.b16 %v5659
      %v6261 = vunpack.c.h.b16 %v5659
      %v6262 = vunpack.c.l.b16 %v5660
      %v6263 = vunpack.c.l.b16 %v5661
      %v6264 = vunpack.c.h.b16 %v5661
      %v6265 = vunpack.c.l.b16 %v5662
      %v6266 = vunpack.c.l.b16 %v5663
      %v6267 = vunpack.c.h.b16 %v5663
      %v6268 = vunpack.c.l.b16 %v5664
      %v6269 = vunpack.c.l.b16 %v5665
      %v6270 = vunpack.c.h.b16 %v5665
      %v6271 = vunpack.c.l.b16 %v5666
      %v6272 = vunpack.c.l.b16 %v5667
      %v6273 = vunpack.c.h.b16 %v5667
      %v6274 = vunpack.c.l.b16 %v5668
      %v6275 = vunpack.c.l.b16 %v5669
      %v6276 = vunpack.c.h.b16 %v5669
      %v6277 = vunpack.c.l.b16 %v5670
      %v6278 = vunpack.c.l.b16 %v5671
      %v6279 = vunpack.c.h.b16 %v5671
      %v6280 = vunpack.c.l.b16 %v5672
      %v6281 = vunpack.c.l.b16 %v5673
      %v6282 = vunpack.c.h.b16 %v5673
      %v6283 = vunpack.c.l.b16 %v5674
      %v6284 = vpack.c.b16 %v6191, %v6188
      %v6285 = vpack.c.b16 %v6192, %v6189
      %v6286 = vpack.c.b16 %v6193, %v6190
      %v6287 = vpack.c.b16 %v6197, %v6194
      %v6288 = vpack.c.b16 %v6198, %v6195
      %v6289 = vpack.c.b16 %v6199, %v6196
      %v6290 = vpack.c.b16 %v6203, %v6200
      %v6291 = vpack.c.b16 %v6204, %v6201
      %v6292 = vpack.c.b16 %v6205, %v6202
      %v6293 = vpack.c.b16 %v6209, %v6206
      %v6294 = vpack.c.b16 %v6210, %v6207
      %v6295 = vpack.c.b16 %v6211, %v6208
      %v6296 = vpack.c.b16 %v6215, %v6212
      %v6297 = vpack.c.b16 %v6216, %v6213
      %v6298 = vpack.c.b16 %v6217, %v6214
      %v6299 = vpack.c.b16 %v6221, %v6218
      %v6300 = vpack.c.b16 %v6222, %v6219
      %v6301 = vpack.c.b16 %v6223, %v6220
      %v6302 = vpack.c.b16 %v6227, %v6224
      %v6303 = vpack.c.b16 %v6228, %v6225
      %v6304 = vpack.c.b16 %v6229, %v6226
      %v6305 = vpack.c.b16 %v6233, %v6230
      %v6306 = vpack.c.b16 %v6234, %v6231
      %v6307 = vpack.c.b16 %v6235, %v6232
      %v6308 = vpack.c.b16 %v6239, %v6236
      %v6309 = vpack.c.b16 %v6240, %v6237
      %v6310 = vpack.c.b16 %v6241, %v6238
      %v6311 = vpack.c.b16 %v6245, %v6242
      %v6312 = vpack.c.b16 %v6246, %v6243
      %v6313 = vpack.c.b16 %v6247, %v6244
      %v6314 = vpack.c.b16 %v6251, %v6248
      %v6315 = vpack.c.b16 %v6252, %v6249
      %v6316 = vpack.c.b16 %v6253, %v6250
      %v6317 = vpack.c.b16 %v6257, %v6254
      %v6318 = vpack.c.b16 %v6258, %v6255
      %v6319 = vpack.c.b16 %v6259, %v6256
      %v6320 = vpack.c.b16 %v6263, %v6260
      %v6321 = vpack.c.b16 %v6264, %v6261
      %v6322 = vpack.c.b16 %v6265, %v6262
      %v6323 = vpack.c.b16 %v6269, %v6266
      %v6324 = vpack.c.b16 %v6270, %v6267
      %v6325 = vpack.c.b16 %v6271, %v6268
      %v6326 = vpack.c.b16 %v6275, %v6272
      %v6327 = vpack.c.b16 %v6276, %v6273
      %v6328 = vpack.c.b16 %v6277, %v6274
      %v6329 = vpack.c.b16 %v6281, %v6278
      %v6330 = vpack.c.b16 %v6282, %v6279
      %v6331 = vpack.c.b16 %v6283, %v6280
      %6380 = vmatprep.subr.bf16.mxu0 %v6285
      %6381 = vmatpush1.bf16.msra.mxu0 %v6284
      %6382 = vmatprep.subr.bf16.mxu0 %v6288
      %6383 = vmatpush1.bf16.msra.mxu0 %v6287
      %6384 = vmatprep.subr.bf16.mxu0 %v6291
      %6385 = vmatpush1.bf16.msra.mxu0 %v6290
      %6386 = vmatprep.subr.bf16.mxu0 %v6294
      %6387 = vmatpush1.bf16.msra.mxu0 %v6293
      %6388 = vmatprep.subr.bf16.mxu0 %v6297
      %6389 = vmatpush1.bf16.msra.mxu0 %v6296
      %6390 = vmatprep.subr.bf16.mxu0 %v6300
      %6391 = vmatpush1.bf16.msra.mxu0 %v6299
      %6392 = vmatprep.subr.bf16.mxu0 %v6303
      %6393 = vmatpush1.bf16.msra.mxu0 %v6302
      %6394 = vmatprep.subr.bf16.mxu0 %v6306
      %6395 = vmatpush1.bf16.msra.mxu0 %v6305
      %6396 = vmatprep.subr.bf16.mxu0 %v6309
      %6397 = vmatpush1.bf16.msra.mxu0 %v6308
      %6398 = vmatprep.subr.bf16.mxu0 %v6312
      %6399 = vmatpush1.bf16.msra.mxu0 %v6311
      %6400 = vmatprep.subr.bf16.mxu0 %v6315
      %6401 = vmatpush1.bf16.msra.mxu0 %v6314
      %6402 = vmatprep.subr.bf16.mxu0 %v6318
      %6403 = vmatpush1.bf16.msra.mxu0 %v6317
      %6404 = vmatprep.subr.bf16.mxu0 %v6321
      %6405 = vmatpush1.bf16.msra.mxu0 %v6320
      %6406 = vmatprep.subr.bf16.mxu0 %v6324
      %6407 = vmatpush1.bf16.msra.mxu0 %v6323
      %6408 = vmatprep.subr.bf16.mxu0 %v6327
      %6409 = vmatpush1.bf16.msra.mxu0 %v6326
      %6410 = vmatprep.subr.bf16.mxu0 %v6330
      %6411 = vmatpush1.bf16.msra.mxu0 %v6329
      %6412 = vmatprep.mubr.bf16.mxu0 %v5610
      %6413 = vmatmul.mubr.bf16.gmra.mrb[0].mxu0 %v5609
      %v6414 = vpop.f32.mrb[0].mxu0
      %v6415 = vadd.f32 %v6078, %v6414
      %v6416 = vpop.f32.mrb[0].mxu0
      %v6417 = vadd.f32 %v6080, %v6416
      %v6418 = vpop.f32.mrb[0].mxu0
      %v6419 = vpop.f32.mrb[0].mxu0
      %6420 = vdwg.mxu0
      %6421 = vmatprep.subr.bf16.mxu0 0
      %6422 = vmatpush1.bf16.msra.mxu0 %v6286
      %6423 = vmatprep.subr.bf16.mxu0 0
      %6424 = vmatpush1.bf16.msra.mxu0 %v6289
      %6425 = vmatprep.subr.bf16.mxu0 0
      %6426 = vmatpush1.bf16.msra.mxu0 %v6292
      %6427 = vmatprep.subr.bf16.mxu0 0
      %6428 = vmatpush1.bf16.msra.mxu0 %v6295
      %6429 = vmatprep.subr.bf16.mxu0 0
      %6430 = vmatpush1.bf16.msra.mxu0 %v6298
      %6431 = vmatprep.subr.bf16.mxu0 0
      %6432 = vmatpush1.bf16.msra.mxu0 %v6301
      %6433 = vmatprep.subr.bf16.mxu0 0
      %6434 = vmatpush1.bf16.msra.mxu0 %v6304
      %6435 = vmatprep.subr.bf16.mxu0 0
      %6436 = vmatpush1.bf16.msra.mxu0 %v6307
      %6437 = vmatprep.subr.bf16.mxu0 0
      %6438 = vmatpush1.bf16.msra.mxu0 %v6310
      %6439 = vmatprep.subr.bf16.mxu0 0
      %6440 = vmatpush1.bf16.msra.mxu0 %v6313
      %6441 = vmatprep.subr.bf16.mxu0 0
      %6442 = vmatpush1.bf16.msra.mxu0 %v6316
      %6443 = vmatprep.subr.bf16.mxu0 0
      %6444 = vmatpush1.bf16.msra.mxu0 %v6319
      %6445 = vmatprep.subr.bf16.mxu0 0
      %6446 = vmatpush1.bf16.msra.mxu0 %v6322
      %6447 = vmatprep.subr.bf16.mxu0 0
      %6448 = vmatpush1.bf16.msra.mxu0 %v6325
      %6449 = vmatprep.subr.bf16.mxu0 0
      %6450 = vmatpush1.bf16.msra.mxu0 %v6328
      %6451 = vmatprep.subr.bf16.mxu0 0
      %6452 = vmatpush1.bf16.msra.mxu0 %v6331
      %6453 = vmatprep.mubr.bf16.mxu0 %v5610
      %6454 = vmatmul.mubr.bf16.gmra.mrb[0].mxu0 %v5609
      %v6455 = vpop.f32.mrb[0].mxu0
      %v6456 = vadd.f32 %v6119, %v6455
      %v6457 = vpop.f32.mrb[0].mxu0
      %v6458 = vpop.f32.mrb[0].mxu0
      %v6459 = vpop.f32.mrb[0].mxu0
      %6460 = vdwg.mxu0
      %v6461 = vpack.c.bf16 %v885, %v885
      %v6463 = vsel %vm2793, %v6461, 0
      %6465 = vmatprep.subr.bf16.mxu0 %v2801
      %6466 = vmatpush1.bf16.msra.mxu0 %v2798
      %6467 = vmatprep.subr.bf16.mxu0 0
      %6468 = vmatpush1.bf16.msra.mxu0 0
      %6469 = vmatprep.subr.bf16.mxu0 0
      %6470 = vmatpush1.bf16.msra.mxu0 0
      %6471 = vmatprep.subr.bf16.mxu0 0
      %6472 = vmatpush1.bf16.msra.mxu0 0
      %6473 = vmatprep.subr.bf16.mxu0 0
      %6474 = vmatpush1.bf16.msra.mxu0 0
      %6475 = vmatprep.subr.bf16.mxu0 0
      %6476 = vmatpush1.bf16.msra.mxu0 0
      %6477 = vmatprep.subr.bf16.mxu0 0
      %6478 = vmatpush1.bf16.msra.mxu0 0
      %6479 = vmatprep.subr.bf16.mxu0 0
      %6480 = vmatpush1.bf16.msra.mxu0 0
      %6481 = vmatprep.subr.bf16.mxu0 0
      %6482 = vmatpush1.bf16.msra.mxu0 0
      %6483 = vmatprep.subr.bf16.mxu0 0
      %6484 = vmatpush1.bf16.msra.mxu0 0
      %6485 = vmatprep.subr.bf16.mxu0 0
      %6486 = vmatpush1.bf16.msra.mxu0 0
      %6487 = vmatprep.subr.bf16.mxu0 0
      %6488 = vmatpush1.bf16.msra.mxu0 0
      %6489 = vmatprep.subr.bf16.mxu0 0
      %6490 = vmatpush1.bf16.msra.mxu0 0
      %6491 = vmatprep.subr.bf16.mxu0 0
      %6492 = vmatpush1.bf16.msra.mxu0 0
      %6493 = vmatprep.subr.bf16.mxu0 0
      %6494 = vmatpush1.bf16.msra.mxu0 0
      %6495 = vmatprep.subr.bf16.mxu0 0
      %6496 = vmatpush1.bf16.msra.mxu0 0
      %6497 = vmatprep.mubr.bf16.mxu0 0
      %6498 = vmatmul.mubr.bf16.gmra.mrb[0].mxu0 %v6463
      %v6499 = vpop.f32.mrb[0].mxu0
      %v6500 = vadd.f32 0.0, %v6499
      %v6501 = vpop.f32.mrb[0].mxu0
      %v6502 = vadd.f32 0.0, %v6501
      %v6503 = vpop.f32.mrb[0].mxu0
      %v6504 = vpop.f32.mrb[0].mxu0
      %6505 = vdwg.mxu0
      %v6506 = vpack.c.bf16 %v6500, %v6500
      %v6507 = vpack.c.bf16 %v6502, %v6502
      %s6508 = scalar_lea.vmem %s11, 768
      %v6509 = vld [vmem:[%s6508] sm:$0xff]
      %v6510 = vld [vmem:[%s6508 + $0x8] sm:$0xf]
      %v6511 = vld [vmem:[%s6508 + $0xc] sm:$0xff]
      %v6512 = vld [vmem:[%s6508 + $0x14] sm:$0xf]
      %v6513 = vld [vmem:[%s6508 + $0x18] sm:$0xff]
      %v6514 = vld [vmem:[%s6508 + $0x20] sm:$0xf]
      %v6515 = vld [vmem:[%s6508 + $0x24] sm:$0xff]
      %v6516 = vld [vmem:[%s6508 + $0x2c] sm:$0xf]
      %v6517 = vld [vmem:[%s6508 + $0x30] sm:$0xff]
      %v6518 = vld [vmem:[%s6508 + $0x38] sm:$0xf]
      %v6519 = vld [vmem:[%s6508 + $0x3c] sm:$0xff]
      %v6520 = vld [vmem:[%s6508 + $0x44] sm:$0xf]
      %v6521 = vld [vmem:[%s6508 + $0x48] sm:$0xff]
      %v6522 = vld [vmem:[%s6508 + $0x50] sm:$0xf]
      %v6523 = vld [vmem:[%s6508 + $0x54] sm:$0xff]
      %v6524 = vld [vmem:[%s6508 + $0x5c] sm:$0xf]
      %v6525 = vld [vmem:[%s6508 + $0x60] sm:$0xff]
      %v6526 = vld [vmem:[%s6508 + $0x68] sm:$0xf]
      %v6527 = vld [vmem:[%s6508 + $0x6c] sm:$0xff]
      %v6528 = vld [vmem:[%s6508 + $0x74] sm:$0xf]
      %v6529 = vld [vmem:[%s6508 + $0x78] sm:$0xff]
      %v6530 = vld [vmem:[%s6508 + $0x80] sm:$0xf]
      %v6531 = vld [vmem:[%s6508 + $0x84] sm:$0xff]
      %v6532 = vld [vmem:[%s6508 + $0x8c] sm:$0xf]
      %v6533 = vld [vmem:[%s6508 + $0x90] sm:$0xff]
      %v6534 = vld [vmem:[%s6508 + $0x98] sm:$0xf]
      %v6535 = vld [vmem:[%s6508 + $0x9c] sm:$0xff]
      %v6536 = vld [vmem:[%s6508 + $0xa4] sm:$0xf]
      %v6537 = vld [vmem:[%s6508 + $0xa8] sm:$0xff]
      %v6538 = vld [vmem:[%s6508 + $0xb0] sm:$0xf]
      %v6539 = vld [vmem:[%s6508 + $0xb4] sm:$0xff]
      %v6540 = vld [vmem:[%s6508 + $0xbc] sm:$0xf]
      %v6541 = vld [vmem:[%s6508 + $0xc0] sm:$0xff]
      %v6542 = vld [vmem:[%s6508 + $0xc8] sm:$0xf]
      %v6543 = vld [vmem:[%s6508 + $0xcc] sm:$0xff]
      %v6544 = vld [vmem:[%s6508 + $0xd4] sm:$0xf]
      %v6545 = vld [vmem:[%s6508 + $0xd8] sm:$0xff]
      %v6546 = vld [vmem:[%s6508 + $0xe0] sm:$0xf]
      %v6547 = vld [vmem:[%s6508 + $0xe4] sm:$0xff]
      %v6548 = vld [vmem:[%s6508 + $0xec] sm:$0xf]
      %v6549 = vld [vmem:[%s6508 + $0xf0] sm:$0xff]
      %v6550 = vld [vmem:[%s6508 + $0xf8] sm:$0xf]
      %v6551 = vld [vmem:[%s6508 + $0xfc] sm:$0xff]
      %v6552 = vld [vmem:[%s6508 + $0x104] sm:$0xf]
      %v6553 = vld [vmem:[%s6508 + $0x108] sm:$0xff]
      %v6554 = vld [vmem:[%s6508 + $0x110] sm:$0xf]
      %v6555 = vld [vmem:[%s6508 + $0x114] sm:$0xff]
      %v6556 = vld [vmem:[%s6508 + $0x11c] sm:$0xf]
      %v6557 = vld [vmem:[%s6508 + $0x120] sm:$0xff]
      %v6558 = vld [vmem:[%s6508 + $0x128] sm:$0xf]
      %v6559 = vld [vmem:[%s6508 + $0x12c] sm:$0xff]
      %v6560 = vld [vmem:[%s6508 + $0x134] sm:$0xf]
      %v6561 = vld [vmem:[%s6508 + $0x138] sm:$0xff]
      %v6562 = vld [vmem:[%s6508 + $0x140] sm:$0xf]
      %v6563 = vld [vmem:[%s6508 + $0x144] sm:$0xff]
      %v6564 = vld [vmem:[%s6508 + $0x14c] sm:$0xf]
      %v6565 = vld [vmem:[%s6508 + $0x150] sm:$0xff]
      %v6566 = vld [vmem:[%s6508 + $0x158] sm:$0xf]
      %v6567 = vld [vmem:[%s6508 + $0x15c] sm:$0xff]
      %v6568 = vld [vmem:[%s6508 + $0x164] sm:$0xf]
      %v6569 = vld [vmem:[%s6508 + $0x168] sm:$0xff]
      %v6570 = vld [vmem:[%s6508 + $0x170] sm:$0xf]
      %v6571 = vld [vmem:[%s6508 + $0x174] sm:$0xff]
      %v6572 = vld [vmem:[%s6508 + $0x17c] sm:$0xf]
      %v6637 = vunpack.c.l.b16 %v6509
      %v6638 = vunpack.c.h.b16 %v6509
      %v6639 = vunpack.c.l.b16 %v6510
      %v6640 = vunpack.c.l.b16 %v6511
      %v6641 = vunpack.c.h.b16 %v6511
      %v6642 = vunpack.c.l.b16 %v6512
      %v6643 = vunpack.c.l.b16 %v6513
      %v6644 = vunpack.c.h.b16 %v6513
      %v6645 = vunpack.c.l.b16 %v6514
      %v6646 = vunpack.c.l.b16 %v6515
      %v6647 = vunpack.c.h.b16 %v6515
      %v6648 = vunpack.c.l.b16 %v6516
      %v6649 = vunpack.c.l.b16 %v6517
      %v6650 = vunpack.c.h.b16 %v6517
      %v6651 = vunpack.c.l.b16 %v6518
      %v6652 = vunpack.c.l.b16 %v6519
      %v6653 = vunpack.c.h.b16 %v6519
      %v6654 = vunpack.c.l.b16 %v6520
      %v6655 = vunpack.c.l.b16 %v6521
      %v6656 = vunpack.c.h.b16 %v6521
      %v6657 = vunpack.c.l.b16 %v6522
      %v6658 = vunpack.c.l.b16 %v6523
      %v6659 = vunpack.c.h.b16 %v6523
      %v6660 = vunpack.c.l.b16 %v6524
      %v6661 = vunpack.c.l.b16 %v6525
      %v6662 = vunpack.c.h.b16 %v6525
      %v6663 = vunpack.c.l.b16 %v6526
      %v6664 = vunpack.c.l.b16 %v6527
      %v6665 = vunpack.c.h.b16 %v6527
      %v6666 = vunpack.c.l.b16 %v6528
      %v6667 = vunpack.c.l.b16 %v6529
      %v6668 = vunpack.c.h.b16 %v6529
      %v6669 = vunpack.c.l.b16 %v6530
      %v6670 = vunpack.c.l.b16 %v6531
      %v6671 = vunpack.c.h.b16 %v6531
      %v6672 = vunpack.c.l.b16 %v6532
      %v6673 = vunpack.c.l.b16 %v6533
      %v6674 = vunpack.c.h.b16 %v6533
      %v6675 = vunpack.c.l.b16 %v6534
      %v6676 = vunpack.c.l.b16 %v6535
      %v6677 = vunpack.c.h.b16 %v6535
      %v6678 = vunpack.c.l.b16 %v6536
      %v6679 = vunpack.c.l.b16 %v6537
      %v6680 = vunpack.c.h.b16 %v6537
      %v6681 = vunpack.c.l.b16 %v6538
      %v6682 = vunpack.c.l.b16 %v6539
      %v6683 = vunpack.c.h.b16 %v6539
      %v6684 = vunpack.c.l.b16 %v6540
      %v6685 = vunpack.c.l.b16 %v6541
      %v6686 = vunpack.c.h.b16 %v6541
      %v6687 = vunpack.c.l.b16 %v6542
      %v6688 = vunpack.c.l.b16 %v6543
      %v6689 = vunpack.c.h.b16 %v6543
      %v6690 = vunpack.c.l.b16 %v6544
      %v6691 = vunpack.c.l.b16 %v6545
      %v6692 = vunpack.c.h.b16 %v6545
      %v6693 = vunpack.c.l.b16 %v6546
      %v6694 = vunpack.c.l.b16 %v6547
      %v6695 = vunpack.c.h.b16 %v6547
      %v6696 = vunpack.c.l.b16 %v6548
      %v6697 = vunpack.c.l.b16 %v6549
      %v6698 = vunpack.c.h.b16 %v6549
      %v6699 = vunpack.c.l.b16 %v6550
      %v6700 = vunpack.c.l.b16 %v6551
      %v6701 = vunpack.c.h.b16 %v6551
      %v6702 = vunpack.c.l.b16 %v6552
      %v6703 = vunpack.c.l.b16 %v6553
      %v6704 = vunpack.c.h.b16 %v6553
      %v6705 = vunpack.c.l.b16 %v6554
      %v6706 = vunpack.c.l.b16 %v6555
      %v6707 = vunpack.c.h.b16 %v6555
      %v6708 = vunpack.c.l.b16 %v6556
      %v6709 = vunpack.c.l.b16 %v6557
      %v6710 = vunpack.c.h.b16 %v6557
      %v6711 = vunpack.c.l.b16 %v6558
      %v6712 = vunpack.c.l.b16 %v6559
      %v6713 = vunpack.c.h.b16 %v6559
      %v6714 = vunpack.c.l.b16 %v6560
      %v6715 = vunpack.c.l.b16 %v6561
      %v6716 = vunpack.c.h.b16 %v6561
      %v6717 = vunpack.c.l.b16 %v6562
      %v6718 = vunpack.c.l.b16 %v6563
      %v6719 = vunpack.c.h.b16 %v6563
      %v6720 = vunpack.c.l.b16 %v6564
      %v6721 = vunpack.c.l.b16 %v6565
      %v6722 = vunpack.c.h.b16 %v6565
      %v6723 = vunpack.c.l.b16 %v6566
      %v6724 = vunpack.c.l.b16 %v6567
      %v6725 = vunpack.c.h.b16 %v6567
      %v6726 = vunpack.c.l.b16 %v6568
      %v6727 = vunpack.c.l.b16 %v6569
      %v6728 = vunpack.c.h.b16 %v6569
      %v6729 = vunpack.c.l.b16 %v6570
      %v6730 = vunpack.c.l.b16 %v6571
      %v6731 = vunpack.c.h.b16 %v6571
      %v6732 = vunpack.c.l.b16 %v6572
      %v6733 = vpack.c.b16 %v6640, %v6637
      %v6734 = vpack.c.b16 %v6641, %v6638
      %v6735 = vpack.c.b16 %v6642, %v6639
      %v6736 = vpack.c.b16 %v6646, %v6643
      %v6737 = vpack.c.b16 %v6647, %v6644
      %v6738 = vpack.c.b16 %v6648, %v6645
      %v6739 = vpack.c.b16 %v6652, %v6649
      %v6740 = vpack.c.b16 %v6653, %v6650
      %v6741 = vpack.c.b16 %v6654, %v6651
      %v6742 = vpack.c.b16 %v6658, %v6655
      %v6743 = vpack.c.b16 %v6659, %v6656
      %v6744 = vpack.c.b16 %v6660, %v6657
      %v6745 = vpack.c.b16 %v6664, %v6661
      %v6746 = vpack.c.b16 %v6665, %v6662
      %v6747 = vpack.c.b16 %v6666, %v6663
      %v6748 = vpack.c.b16 %v6670, %v6667
      %v6749 = vpack.c.b16 %v6671, %v6668
      %v6750 = vpack.c.b16 %v6672, %v6669
      %v6751 = vpack.c.b16 %v6676, %v6673
      %v6752 = vpack.c.b16 %v6677, %v6674
      %v6753 = vpack.c.b16 %v6678, %v6675
      %v6754 = vpack.c.b16 %v6682, %v6679
      %v6755 = vpack.c.b16 %v6683, %v6680
      %v6756 = vpack.c.b16 %v6684, %v6681
      %v6757 = vpack.c.b16 %v6688, %v6685
      %v6758 = vpack.c.b16 %v6689, %v6686
      %v6759 = vpack.c.b16 %v6690, %v6687
      %v6760 = vpack.c.b16 %v6694, %v6691
      %v6761 = vpack.c.b16 %v6695, %v6692
      %v6762 = vpack.c.b16 %v6696, %v6693
      %v6763 = vpack.c.b16 %v6700, %v6697
      %v6764 = vpack.c.b16 %v6701, %v6698
      %v6765 = vpack.c.b16 %v6702, %v6699
      %v6766 = vpack.c.b16 %v6706, %v6703
      %v6767 = vpack.c.b16 %v6707, %v6704
      %v6768 = vpack.c.b16 %v6708, %v6705
      %v6769 = vpack.c.b16 %v6712, %v6709
      %v6770 = vpack.c.b16 %v6713, %v6710
      %v6771 = vpack.c.b16 %v6714, %v6711
      %v6772 = vpack.c.b16 %v6718, %v6715
      %v6773 = vpack.c.b16 %v6719, %v6716
      %v6774 = vpack.c.b16 %v6720, %v6717
      %v6775 = vpack.c.b16 %v6724, %v6721
      %v6776 = vpack.c.b16 %v6725, %v6722
      %v6777 = vpack.c.b16 %v6726, %v6723
      %v6778 = vpack.c.b16 %v6730, %v6727
      %v6779 = vpack.c.b16 %v6731, %v6728
      %v6780 = vpack.c.b16 %v6732, %v6729
      %6829 = vmatprep.subr.bf16.mxu0 %v6734
      %6830 = vmatpush1.bf16.msra.mxu0 %v6733
      %6831 = vmatprep.subr.bf16.mxu0 %v6737
      %6832 = vmatpush1.bf16.msra.mxu0 %v6736
      %6833 = vmatprep.subr.bf16.mxu0 %v6740
      %6834 = vmatpush1.bf16.msra.mxu0 %v6739
      %6835 = vmatprep.subr.bf16.mxu0 %v6743
      %6836 = vmatpush1.bf16.msra.mxu0 %v6742
      %6837 = vmatprep.subr.bf16.mxu0 %v6746
      %6838 = vmatpush1.bf16.msra.mxu0 %v6745
      %6839 = vmatprep.subr.bf16.mxu0 %v6749
      %6840 = vmatpush1.bf16.msra.mxu0 %v6748
      %6841 = vmatprep.subr.bf16.mxu0 %v6752
      %6842 = vmatpush1.bf16.msra.mxu0 %v6751
      %6843 = vmatprep.subr.bf16.mxu0 %v6755
      %6844 = vmatpush1.bf16.msra.mxu0 %v6754
      %6845 = vmatprep.subr.bf16.mxu0 %v6758
      %6846 = vmatpush1.bf16.msra.mxu0 %v6757
      %6847 = vmatprep.subr.bf16.mxu0 %v6761
      %6848 = vmatpush1.bf16.msra.mxu0 %v6760
      %6849 = vmatprep.subr.bf16.mxu0 %v6764
      %6850 = vmatpush1.bf16.msra.mxu0 %v6763
      %6851 = vmatprep.subr.bf16.mxu0 %v6767
      %6852 = vmatpush1.bf16.msra.mxu0 %v6766
      %6853 = vmatprep.subr.bf16.mxu0 %v6770
      %6854 = vmatpush1.bf16.msra.mxu0 %v6769
      %6855 = vmatprep.subr.bf16.mxu0 %v6773
      %6856 = vmatpush1.bf16.msra.mxu0 %v6772
      %6857 = vmatprep.subr.bf16.mxu0 %v6776
      %6858 = vmatpush1.bf16.msra.mxu0 %v6775
      %6859 = vmatprep.subr.bf16.mxu0 %v6779
      %6860 = vmatpush1.bf16.msra.mxu0 %v6778
      %6861 = vmatprep.mubr.bf16.mxu0 %v6507
      %6862 = vmatmul.mubr.bf16.gmra.mrb[0].mxu0 %v6506
      %v6863 = vpop.f32.mrb[0].mxu0
      %v6864 = vadd.f32 0.0, %v6863
      %v6865 = vpop.f32.mrb[0].mxu0
      %v6866 = vadd.f32 0.0, %v6865
      %v6867 = vpop.f32.mrb[0].mxu0
      %v6868 = vpop.f32.mrb[0].mxu0
      %6869 = vdwg.mxu0
      %6870 = vmatprep.subr.bf16.mxu0 0
      %6871 = vmatpush1.bf16.msra.mxu0 %v6735
      %6872 = vmatprep.subr.bf16.mxu0 0
      %6873 = vmatpush1.bf16.msra.mxu0 %v6738
      %6874 = vmatprep.subr.bf16.mxu0 0
      %6875 = vmatpush1.bf16.msra.mxu0 %v6741
      %6876 = vmatprep.subr.bf16.mxu0 0
      %6877 = vmatpush1.bf16.msra.mxu0 %v6744
      %6878 = vmatprep.subr.bf16.mxu0 0
      %6879 = vmatpush1.bf16.msra.mxu0 %v6747
      %6880 = vmatprep.subr.bf16.mxu0 0
      %6881 = vmatpush1.bf16.msra.mxu0 %v6750
      %6882 = vmatprep.subr.bf16.mxu0 0
      %6883 = vmatpush1.bf16.msra.mxu0 %v6753
      %6884 = vmatprep.subr.bf16.mxu0 0
      %6885 = vmatpush1.bf16.msra.mxu0 %v6756
      %6886 = vmatprep.subr.bf16.mxu0 0
      %6887 = vmatpush1.bf16.msra.mxu0 %v6759
      %6888 = vmatprep.subr.bf16.mxu0 0
      %6889 = vmatpush1.bf16.msra.mxu0 %v6762
      %6890 = vmatprep.subr.bf16.mxu0 0
      %6891 = vmatpush1.bf16.msra.mxu0 %v6765
      %6892 = vmatprep.subr.bf16.mxu0 0
      %6893 = vmatpush1.bf16.msra.mxu0 %v6768
      %6894 = vmatprep.subr.bf16.mxu0 0
      %6895 = vmatpush1.bf16.msra.mxu0 %v6771
      %6896 = vmatprep.subr.bf16.mxu0 0
      %6897 = vmatpush1.bf16.msra.mxu0 %v6774
      %6898 = vmatprep.subr.bf16.mxu0 0
      %6899 = vmatpush1.bf16.msra.mxu0 %v6777
      %6900 = vmatprep.subr.bf16.mxu0 0
      %6901 = vmatpush1.bf16.msra.mxu0 %v6780
      %6902 = vmatprep.mubr.bf16.mxu0 %v6507
      %6903 = vmatmul.mubr.bf16.gmra.mrb[0].mxu0 %v6506
      %v6904 = vpop.f32.mrb[0].mxu0
      %v6905 = vadd.f32 0.0, %v6904
      %v6906 = vpop.f32.mrb[0].mxu0
      %v6907 = vpop.f32.mrb[0].mxu0
      %v6908 = vpop.f32.mrb[0].mxu0
      %6909 = vdwg.mxu0
      %v6910 = vadd.f32 %v6415, %v6864
      %v6911 = vadd.f32 %v6417, %v6866
      %v6912 = vadd.f32 %v6456, %v6905
      %v6913 = vld [vmem:[%s12] sm:$0x7]
      %v6915 = vlaneseq
      %v6916 = vshrl.u32 %v6915, 7
      %v6917 = vsub.s32 0, %v6916
      %v6918 = vrot.slane %v6913, %v6917
      %v6919 = vlaneseq
      %v6920 = vshrl.u32 %v6919, 7
      %v6921 = vsub.s32 1, %v6920
      %v6922 = vrot.slane %v6913, %v6921
      %v6923 = vlaneseq
      %v6924 = vshrl.u32 %v6923, 7
      %v6925 = vsub.s32 2, %v6924
      %v6926 = vrot.slane %v6913, %v6925
      %v6930 = vadd.f32 %v6910, %v6918
      %v6931 = vadd.f32 %v6911, %v6922
      %v6932 = vadd.f32 %v6912, %v6926
      %6933 = vst [vmem:[%s568] sm:$0xff] %v6930
      %6934 = vst [vmem:[%s568 + $0x8] sm:$0xff] %v6931
      %vm6935 = vcmask 261120
      %6936 = vst.msk [vmem:[%s568 + $0x10] sm:$0xff] %vm6935, %v6932
      %vm6937 = vcmask 31744
      %v6938 = vsel %vm6937, %v5564, 0
      %vm6940 = vcmask 1041408
      %v6942 = vsel %vm6940, %v3452, 0
      %6944 = vmatprep.subr.bf16.mxu0 0
      %6945 = vmatpush1.bf16.msra.mxu0 %v6942
      %6946 = vmatprep.subr.bf16.mxu0 0
      %6947 = vmatpush1.bf16.msra.mxu0 0
      %6948 = vmatprep.subr.bf16.mxu0 0
      %6949 = vmatpush1.bf16.msra.mxu0 0
      %6950 = vmatprep.subr.bf16.mxu0 0
      %6951 = vmatpush1.bf16.msra.mxu0 0
      %6952 = vmatprep.subr.bf16.mxu0 0
      %6953 = vmatpush1.bf16.msra.mxu0 0
      %6954 = vmatprep.subr.bf16.mxu0 0
      %6955 = vmatpush1.bf16.msra.mxu0 0
      %6956 = vmatprep.subr.bf16.mxu0 0
      %6957 = vmatpush1.bf16.msra.mxu0 0
      %6958 = vmatprep.subr.bf16.mxu0 0
      %6959 = vmatpush1.bf16.msra.mxu0 0
      %6960 = vmatprep.subr.bf16.mxu0 0
      %6961 = vmatpush1.bf16.msra.mxu0 0
      %6962 = vmatprep.subr.bf16.mxu0 0
      %6963 = vmatpush1.bf16.msra.mxu0 0
      %6964 = vmatprep.subr.bf16.mxu0 0
      %6965 = vmatpush1.bf16.msra.mxu0 0
      %6966 = vmatprep.subr.bf16.mxu0 0
      %6967 = vmatpush1.bf16.msra.mxu0 0
      %6968 = vmatprep.subr.bf16.mxu0 0
      %6969 = vmatpush1.bf16.msra.mxu0 0
      %6970 = vmatprep.subr.bf16.mxu0 0
      %6971 = vmatpush1.bf16.msra.mxu0 0
      %6972 = vmatprep.subr.bf16.mxu0 0
      %6973 = vmatpush1.bf16.msra.mxu0 0
      %6974 = vmatprep.subr.bf16.mxu0 0
      %6975 = vmatpush1.bf16.msra.mxu0 0
      %6976 = vmatprep.mubr.bf16.mxu0 0
      %6977 = vmatmul.mubr.bf16.gmra.mrb[0].mxu0 %v6938
      %v6978 = vpop.f32.mrb[0].mxu0
      %v6979 = vadd.f32 0.0, %v6978
      %v6980 = vpop.f32.mrb[0].mxu0
      %v6981 = vpop.f32.mrb[0].mxu0
      %v6982 = vpop.f32.mrb[0].mxu0
      %6983 = vdwg.mxu0
      %v6984 = vpack.c.bf16 %v6979, %v6979
      %v6985 = vld [vmem:[%s13] sm:$0xff]
      %v6986 = vld [vmem:[%s13 + $0x8] sm:$0xff]
      %v6987 = vld [vmem:[%s13 + $0x10] sm:$0xff]
      %v6988 = vld [vmem:[%s13 + $0x18] sm:$0xff]
      %v6989 = vld [vmem:[%s13 + $0x20] sm:$0xff]
      %v6990 = vld [vmem:[%s13 + $0x28] sm:$0xff]
      %v6991 = vld [vmem:[%s13 + $0x30] sm:$0xff]
      %v6992 = vld [vmem:[%s13 + $0x38] sm:$0xff]
      %v6993 = vld [vmem:[%s13 + $0x40] sm:$0xff]
      %v6994 = vld [vmem:[%s13 + $0x48] sm:$0xff]
      %v6995 = vld [vmem:[%s13 + $0x50] sm:$0xff]
      %v6996 = vld [vmem:[%s13 + $0x58] sm:$0xff]
      %v6997 = vld [vmem:[%s13 + $0x60] sm:$0xff]
      %v6998 = vld [vmem:[%s13 + $0x68] sm:$0xff]
      %v6999 = vld [vmem:[%s13 + $0x70] sm:$0xff]
      %v7000 = vld [vmem:[%s13 + $0x78] sm:$0xff]
      %v7001 = vsel %vm6937, %v5675, 0
      %7003 = vmatprep.subr.bf16.mxu0 0
      %7004 = vmatpush1.bf16.msra.mxu0 %v6942
      %7005 = vmatprep.subr.bf16.mxu0 0
      %7006 = vmatpush1.bf16.msra.mxu0 0
      %7007 = vmatprep.subr.bf16.mxu0 0
      %7008 = vmatpush1.bf16.msra.mxu0 0
      %7009 = vmatprep.subr.bf16.mxu0 0
      %7010 = vmatpush1.bf16.msra.mxu0 0
      %7011 = vmatprep.subr.bf16.mxu0 0
      %7012 = vmatpush1.bf16.msra.mxu0 0
      %7013 = vmatprep.subr.bf16.mxu0 0
      %7014 = vmatpush1.bf16.msra.mxu0 0
      %7015 = vmatprep.subr.bf16.mxu0 0
      %7016 = vmatpush1.bf16.msra.mxu0 0
      %7017 = vmatprep.subr.bf16.mxu0 0
      %7018 = vmatpush1.bf16.msra.mxu0 0
      %7019 = vmatprep.subr.bf16.mxu0 0
      %7020 = vmatpush1.bf16.msra.mxu0 0
      %7021 = vmatprep.subr.bf16.mxu0 0
      %7022 = vmatpush1.bf16.msra.mxu0 0
      %7023 = vmatprep.subr.bf16.mxu0 0
      %7024 = vmatpush1.bf16.msra.mxu0 0
      %7025 = vmatprep.subr.bf16.mxu0 0
      %7026 = vmatpush1.bf16.msra.mxu0 0
      %7027 = vmatprep.subr.bf16.mxu0 0
      %7028 = vmatpush1.bf16.msra.mxu0 0
      %7029 = vmatprep.subr.bf16.mxu0 0
      %7030 = vmatpush1.bf16.msra.mxu0 0
      %7031 = vmatprep.subr.bf16.mxu0 0
      %7032 = vmatpush1.bf16.msra.mxu0 0
      %7033 = vmatprep.subr.bf16.mxu0 0
      %7034 = vmatpush1.bf16.msra.mxu0 0
      %7035 = vmatprep.mubr.bf16.mxu0 0
      %7036 = vmatmul.mubr.bf16.gmra.mrb[0].mxu0 %v7001
      %v7037 = vpop.f32.mrb[0].mxu0
      %v7038 = vadd.f32 0.0, %v7037
      %v7039 = vpop.f32.mrb[0].mxu0
      %v7040 = vpop.f32.mrb[0].mxu0
      %v7041 = vpop.f32.mrb[0].mxu0
      %7042 = vdwg.mxu0
      %v7043 = vpack.c.bf16 %v7038, %v7038
      %s7044 = scalar_lea.vmem %s13, 128
      %v7045 = vld [vmem:[%s7044] sm:$0xff]
      %v7046 = vld [vmem:[%s7044 + $0x8] sm:$0xff]
      %v7047 = vld [vmem:[%s7044 + $0x10] sm:$0xff]
      %v7048 = vld [vmem:[%s7044 + $0x18] sm:$0xff]
      %v7049 = vld [vmem:[%s7044 + $0x20] sm:$0xff]
      %v7050 = vld [vmem:[%s7044 + $0x28] sm:$0xff]
      %v7051 = vld [vmem:[%s7044 + $0x30] sm:$0xff]
      %v7052 = vld [vmem:[%s7044 + $0x38] sm:$0xff]
      %v7053 = vld [vmem:[%s7044 + $0x40] sm:$0xff]
      %v7054 = vld [vmem:[%s7044 + $0x48] sm:$0xff]
      %v7055 = vld [vmem:[%s7044 + $0x50] sm:$0xff]
      %v7056 = vld [vmem:[%s7044 + $0x58] sm:$0xff]
      %v7057 = vld [vmem:[%s7044 + $0x60] sm:$0xff]
      %v7058 = vld [vmem:[%s7044 + $0x68] sm:$0xff]
      %v7059 = vld [vmem:[%s7044 + $0x70] sm:$0xff]
      %v7060 = vld [vmem:[%s7044 + $0x78] sm:$0xff]
      %v7077 = vunpack.c.l.b16 %v7045
      %v7078 = vunpack.c.h.b16 %v7045
      %v7079 = vunpack.c.l.b16 %v7046
      %v7080 = vunpack.c.h.b16 %v7046
      %v7081 = vunpack.c.l.b16 %v7047
      %v7082 = vunpack.c.h.b16 %v7047
      %v7083 = vunpack.c.l.b16 %v7048
      %v7084 = vunpack.c.h.b16 %v7048
      %v7085 = vunpack.c.l.b16 %v7049
      %v7086 = vunpack.c.h.b16 %v7049
      %v7087 = vunpack.c.l.b16 %v7050
      %v7088 = vunpack.c.h.b16 %v7050
      %v7089 = vunpack.c.l.b16 %v7051
      %v7090 = vunpack.c.h.b16 %v7051
      %v7091 = vunpack.c.l.b16 %v7052
      %v7092 = vunpack.c.h.b16 %v7052
      %v7093 = vunpack.c.l.b16 %v7053
      %v7094 = vunpack.c.h.b16 %v7053
      %v7095 = vunpack.c.l.b16 %v7054
      %v7096 = vunpack.c.h.b16 %v7054
      %v7097 = vunpack.c.l.b16 %v7055
      %v7098 = vunpack.c.h.b16 %v7055
      %v7099 = vunpack.c.l.b16 %v7056
      %v7100 = vunpack.c.h.b16 %v7056
      %v7101 = vunpack.c.l.b16 %v7057
      %v7102 = vunpack.c.h.b16 %v7057
      %v7103 = vunpack.c.l.b16 %v7058
      %v7104 = vunpack.c.h.b16 %v7058
      %v7105 = vunpack.c.l.b16 %v7059
      %v7106 = vunpack.c.h.b16 %v7059
      %v7107 = vunpack.c.l.b16 %v7060
      %v7108 = vunpack.c.h.b16 %v7060
      %v7109 = vpack.c.b16 %v7079, %v7077
      %v7110 = vpack.c.b16 %v7080, %v7078
      %v7111 = vpack.c.b16 %v7083, %v7081
      %v7112 = vpack.c.b16 %v7084, %v7082
      %v7113 = vpack.c.b16 %v7087, %v7085
      %v7114 = vpack.c.b16 %v7088, %v7086
      %v7115 = vpack.c.b16 %v7091, %v7089
      %v7116 = vpack.c.b16 %v7092, %v7090
      %v7117 = vpack.c.b16 %v7095, %v7093
      %v7118 = vpack.c.b16 %v7096, %v7094
      %v7119 = vpack.c.b16 %v7099, %v7097
      %v7120 = vpack.c.b16 %v7100, %v7098
      %v7121 = vpack.c.b16 %v7103, %v7101
      %v7122 = vpack.c.b16 %v7104, %v7102
      %v7123 = vpack.c.b16 %v7107, %v7105
      %v7124 = vpack.c.b16 %v7108, %v7106
      %7141 = vmatprep.subr.bf16.mxu0 %v7110
      %7142 = vmatpush1.bf16.msra.mxu0 %v7109
      %7143 = vmatprep.subr.bf16.mxu0 %v7112
      %7144 = vmatpush1.bf16.msra.mxu0 %v7111
      %7145 = vmatprep.subr.bf16.mxu0 %v7114
      %7146 = vmatpush1.bf16.msra.mxu0 %v7113
      %7147 = vmatprep.subr.bf16.mxu0 %v7116
      %7148 = vmatpush1.bf16.msra.mxu0 %v7115
      %7149 = vmatprep.subr.bf16.mxu0 %v7118
      %7150 = vmatpush1.bf16.msra.mxu0 %v7117
      %7151 = vmatprep.subr.bf16.mxu0 %v7120
      %7152 = vmatpush1.bf16.msra.mxu0 %v7119
      %7153 = vmatprep.subr.bf16.mxu0 %v7122
      %7154 = vmatpush1.bf16.msra.mxu0 %v7121
      %7155 = vmatprep.subr.bf16.mxu0 %v7124
      %7156 = vmatpush1.bf16.msra.mxu0 %v7123
      %7157 = vmatprep.subr.bf16.mxu0 0
      %7158 = vmatpush1.bf16.msra.mxu0 0
      %7159 = vmatprep.subr.bf16.mxu0 0
      %7160 = vmatpush1.bf16.msra.mxu0 0
      %7161 = vmatprep.subr.bf16.mxu0 0
      %7162 = vmatpush1.bf16.msra.mxu0 0
      %7163 = vmatprep.subr.bf16.mxu0 0
      %7164 = vmatpush1.bf16.msra.mxu0 0
      %7165 = vmatprep.subr.bf16.mxu0 0
      %7166 = vmatpush1.bf16.msra.mxu0 0
      %7167 = vmatprep.subr.bf16.mxu0 0
      %7168 = vmatpush1.bf16.msra.mxu0 0
      %7169 = vmatprep.subr.bf16.mxu0 0
      %7170 = vmatpush1.bf16.msra.mxu0 0
      %7171 = vmatprep.subr.bf16.mxu0 0
      %7172 = vmatpush1.bf16.msra.mxu0 0
      %7173 = vmatprep.mubr.bf16.mxu0 0
      %7174 = vmatmul.mubr.bf16.gmra.mrb[0].mxu0 %v7043
      %v7175 = vpop.f32.mrb[0].mxu0
      %v7176 = vadd.f32 0.0, %v7175
      %v7177 = vpop.f32.mrb[0].mxu0
      %v7178 = vadd.f32 0.0, %v7177
      %v7179 = vpop.f32.mrb[0].mxu0
      %v7180 = vpop.f32.mrb[0].mxu0
      %7181 = vdwg.mxu0
      %v7198 = vunpack.c.l.b16 %v6985
      %v7199 = vunpack.c.h.b16 %v6985
      %v7200 = vunpack.c.l.b16 %v6986
      %v7201 = vunpack.c.h.b16 %v6986
      %v7202 = vunpack.c.l.b16 %v6987
      %v7203 = vunpack.c.h.b16 %v6987
      %v7204 = vunpack.c.l.b16 %v6988
      %v7205 = vunpack.c.h.b16 %v6988
      %v7206 = vunpack.c.l.b16 %v6989
      %v7207 = vunpack.c.h.b16 %v6989
      %v7208 = vunpack.c.l.b16 %v6990
      %v7209 = vunpack.c.h.b16 %v6990
      %v7210 = vunpack.c.l.b16 %v6991
      %v7211 = vunpack.c.h.b16 %v6991
      %v7212 = vunpack.c.l.b16 %v6992
      %v7213 = vunpack.c.h.b16 %v6992
      %v7214 = vunpack.c.l.b16 %v6993
      %v7215 = vunpack.c.h.b16 %v6993
      %v7216 = vunpack.c.l.b16 %v6994
      %v7217 = vunpack.c.h.b16 %v6994
      %v7218 = vunpack.c.l.b16 %v6995
      %v7219 = vunpack.c.h.b16 %v6995
      %v7220 = vunpack.c.l.b16 %v6996
      %v7221 = vunpack.c.h.b16 %v6996
      %v7222 = vunpack.c.l.b16 %v6997
      %v7223 = vunpack.c.h.b16 %v6997
      %v7224 = vunpack.c.l.b16 %v6998
      %v7225 = vunpack.c.h.b16 %v6998
      %v7226 = vunpack.c.l.b16 %v6999
      %v7227 = vunpack.c.h.b16 %v6999
      %v7228 = vunpack.c.l.b16 %v7000
      %v7229 = vunpack.c.h.b16 %v7000
      %v7230 = vpack.c.b16 %v7200, %v7198
      %v7231 = vpack.c.b16 %v7201, %v7199
      %v7232 = vpack.c.b16 %v7204, %v7202
      %v7233 = vpack.c.b16 %v7205, %v7203
      %v7234 = vpack.c.b16 %v7208, %v7206
      %v7235 = vpack.c.b16 %v7209, %v7207
      %v7236 = vpack.c.b16 %v7212, %v7210
      %v7237 = vpack.c.b16 %v7213, %v7211
      %v7238 = vpack.c.b16 %v7216, %v7214
      %v7239 = vpack.c.b16 %v7217, %v7215
      %v7240 = vpack.c.b16 %v7220, %v7218
      %v7241 = vpack.c.b16 %v7221, %v7219
      %v7242 = vpack.c.b16 %v7224, %v7222
      %v7243 = vpack.c.b16 %v7225, %v7223
      %v7244 = vpack.c.b16 %v7228, %v7226
      %v7245 = vpack.c.b16 %v7229, %v7227
      %7262 = vmatprep.subr.bf16.mxu0 %v7231
      %7263 = vmatpush1.bf16.msra.mxu0 %v7230
      %7264 = vmatprep.subr.bf16.mxu0 %v7233
      %7265 = vmatpush1.bf16.msra.mxu0 %v7232
      %7266 = vmatprep.subr.bf16.mxu0 %v7235
      %7267 = vmatpush1.bf16.msra.mxu0 %v7234
      %7268 = vmatprep.subr.bf16.mxu0 %v7237
      %7269 = vmatpush1.bf16.msra.mxu0 %v7236
      %7270 = vmatprep.subr.bf16.mxu0 %v7239
      %7271 = vmatpush1.bf16.msra.mxu0 %v7238
      %7272 = vmatprep.subr.bf16.mxu0 %v7241
      %7273 = vmatpush1.bf16.msra.mxu0 %v7240
      %7274 = vmatprep.subr.bf16.mxu0 %v7243
      %7275 = vmatpush1.bf16.msra.mxu0 %v7242
      %7276 = vmatprep.subr.bf16.mxu0 %v7245
      %7277 = vmatpush1.bf16.msra.mxu0 %v7244
      %7278 = vmatprep.subr.bf16.mxu0 0
      %7279 = vmatpush1.bf16.msra.mxu0 0
      %7280 = vmatprep.subr.bf16.mxu0 0
      %7281 = vmatpush1.bf16.msra.mxu0 0
      %7282 = vmatprep.subr.bf16.mxu0 0
      %7283 = vmatpush1.bf16.msra.mxu0 0
      %7284 = vmatprep.subr.bf16.mxu0 0
      %7285 = vmatpush1.bf16.msra.mxu0 0
      %7286 = vmatprep.subr.bf16.mxu0 0
      %7287 = vmatpush1.bf16.msra.mxu0 0
      %7288 = vmatprep.subr.bf16.mxu0 0
      %7289 = vmatpush1.bf16.msra.mxu0 0
      %7290 = vmatprep.subr.bf16.mxu0 0
      %7291 = vmatpush1.bf16.msra.mxu0 0
      %7292 = vmatprep.subr.bf16.mxu0 0
      %7293 = vmatpush1.bf16.msra.mxu0 0
      %7294 = vmatprep.mubr.bf16.mxu0 0
      %7295 = vmatmul.mubr.bf16.gmra.mrb[0].mxu0 %v6984
      %v7296 = vpop.f32.mrb[0].mxu0
      %v7297 = vadd.f32 %v7176, %v7296
      %v7298 = vpop.f32.mrb[0].mxu0
      %v7299 = vadd.f32 %v7178, %v7298
      %v7300 = vpop.f32.mrb[0].mxu0
      %v7301 = vpop.f32.mrb[0].mxu0
      %7302 = vdwg.mxu0
      %v7303 = vsel %vm6937, %v6461, 0
      %7305 = vmatprep.subr.bf16.mxu0 0
      %7306 = vmatpush1.bf16.msra.mxu0 %v6942
      %7307 = vmatprep.subr.bf16.mxu0 0
      %7308 = vmatpush1.bf16.msra.mxu0 0
      %7309 = vmatprep.subr.bf16.mxu0 0
      %7310 = vmatpush1.bf16.msra.mxu0 0
      %7311 = vmatprep.subr.bf16.mxu0 0
      %7312 = vmatpush1.bf16.msra.mxu0 0
      %7313 = vmatprep.subr.bf16.mxu0 0
      %7314 = vmatpush1.bf16.msra.mxu0 0
      %7315 = vmatprep.subr.bf16.mxu0 0
      %7316 = vmatpush1.bf16.msra.mxu0 0
      %7317 = vmatprep.subr.bf16.mxu0 0
      %7318 = vmatpush1.bf16.msra.mxu0 0
      %7319 = vmatprep.subr.bf16.mxu0 0
      %7320 = vmatpush1.bf16.msra.mxu0 0
      %7321 = vmatprep.subr.bf16.mxu0 0
      %7322 = vmatpush1.bf16.msra.mxu0 0
      %7323 = vmatprep.subr.bf16.mxu0 0
      %7324 = vmatpush1.bf16.msra.mxu0 0
      %7325 = vmatprep.subr.bf16.mxu0 0
      %7326 = vmatpush1.bf16.msra.mxu0 0
      %7327 = vmatprep.subr.bf16.mxu0 0
      %7328 = vmatpush1.bf16.msra.mxu0 0
      %7329 = vmatprep.subr.bf16.mxu0 0
      %7330 = vmatpush1.bf16.msra.mxu0 0
      %7331 = vmatprep.subr.bf16.mxu0 0
      %7332 = vmatpush1.bf16.msra.mxu0 0
      %7333 = vmatprep.subr.bf16.mxu0 0
      %7334 = vmatpush1.bf16.msra.mxu0 0
      %7335 = vmatprep.subr.bf16.mxu0 0
      %7336 = vmatpush1.bf16.msra.mxu0 0
      %7337 = vmatprep.mubr.bf16.mxu0 0
      %7338 = vmatmul.mubr.bf16.gmra.mrb[0].mxu0 %v7303
      %v7339 = vpop.f32.mrb[0].mxu0
      %v7340 = vadd.f32 0.0, %v7339
      %v7341 = vpop.f32.mrb[0].mxu0
      %v7342 = vpop.f32.mrb[0].mxu0
      %v7343 = vpop.f32.mrb[0].mxu0
      %7344 = vdwg.mxu0
      %v7345 = vpack.c.bf16 %v7340, %v7340
      %s7346 = scalar_lea.vmem %s13, 256
      %v7347 = vld [vmem:[%s7346] sm:$0xff]
      %v7348 = vld [vmem:[%s7346 + $0x8] sm:$0xff]
      %v7349 = vld [vmem:[%s7346 + $0x10] sm:$0xff]
      %v7350 = vld [vmem:[%s7346 + $0x18] sm:$0xff]
      %v7351 = vld [vmem:[%s7346 + $0x20] sm:$0xff]
      %v7352 = vld [vmem:[%s7346 + $0x28] sm:$0xff]
      %v7353 = vld [vmem:[%s7346 + $0x30] sm:$0xff]
      %v7354 = vld [vmem:[%s7346 + $0x38] sm:$0xff]
      %v7355 = vld [vmem:[%s7346 + $0x40] sm:$0xff]
      %v7356 = vld [vmem:[%s7346 + $0x48] sm:$0xff]
      %v7357 = vld [vmem:[%s7346 + $0x50] sm:$0xff]
      %v7358 = vld [vmem:[%s7346 + $0x58] sm:$0xff]
      %v7359 = vld [vmem:[%s7346 + $0x60] sm:$0xff]
      %v7360 = vld [vmem:[%s7346 + $0x68] sm:$0xff]
      %v7361 = vld [vmem:[%s7346 + $0x70] sm:$0xff]
      %v7362 = vld [vmem:[%s7346 + $0x78] sm:$0xff]
      %v7379 = vunpack.c.l.b16 %v7347
      %v7380 = vunpack.c.h.b16 %v7347
      %v7381 = vunpack.c.l.b16 %v7348
      %v7382 = vunpack.c.h.b16 %v7348
      %v7383 = vunpack.c.l.b16 %v7349
      %v7384 = vunpack.c.h.b16 %v7349
      %v7385 = vunpack.c.l.b16 %v7350
      %v7386 = vunpack.c.h.b16 %v7350
      %v7387 = vunpack.c.l.b16 %v7351
      %v7388 = vunpack.c.h.b16 %v7351
      %v7389 = vunpack.c.l.b16 %v7352
      %v7390 = vunpack.c.h.b16 %v7352
      %v7391 = vunpack.c.l.b16 %v7353
      %v7392 = vunpack.c.h.b16 %v7353
      %v7393 = vunpack.c.l.b16 %v7354
      %v7394 = vunpack.c.h.b16 %v7354
      %v7395 = vunpack.c.l.b16 %v7355
      %v7396 = vunpack.c.h.b16 %v7355
      %v7397 = vunpack.c.l.b16 %v7356
      %v7398 = vunpack.c.h.b16 %v7356
      %v7399 = vunpack.c.l.b16 %v7357
      %v7400 = vunpack.c.h.b16 %v7357
      %v7401 = vunpack.c.l.b16 %v7358
      %v7402 = vunpack.c.h.b16 %v7358
      %v7403 = vunpack.c.l.b16 %v7359
      %v7404 = vunpack.c.h.b16 %v7359
      %v7405 = vunpack.c.l.b16 %v7360
      %v7406 = vunpack.c.h.b16 %v7360
      %v7407 = vunpack.c.l.b16 %v7361
      %v7408 = vunpack.c.h.b16 %v7361
      %v7409 = vunpack.c.l.b16 %v7362
      %v7410 = vunpack.c.h.b16 %v7362
      %v7411 = vpack.c.b16 %v7381, %v7379
      %v7412 = vpack.c.b16 %v7382, %v7380
      %v7413 = vpack.c.b16 %v7385, %v7383
      %v7414 = vpack.c.b16 %v7386, %v7384
      %v7415 = vpack.c.b16 %v7389, %v7387
      %v7416 = vpack.c.b16 %v7390, %v7388
      %v7417 = vpack.c.b16 %v7393, %v7391
      %v7418 = vpack.c.b16 %v7394, %v7392
      %v7419 = vpack.c.b16 %v7397, %v7395
      %v7420 = vpack.c.b16 %v7398, %v7396
      %v7421 = vpack.c.b16 %v7401, %v7399
      %v7422 = vpack.c.b16 %v7402, %v7400
      %v7423 = vpack.c.b16 %v7405, %v7403
      %v7424 = vpack.c.b16 %v7406, %v7404
      %v7425 = vpack.c.b16 %v7409, %v7407
      %v7426 = vpack.c.b16 %v7410, %v7408
      %7443 = vmatprep.subr.bf16.mxu0 %v7412
      %7444 = vmatpush1.bf16.msra.mxu0 %v7411
      %7445 = vmatprep.subr.bf16.mxu0 %v7414
      %7446 = vmatpush1.bf16.msra.mxu0 %v7413
      %7447 = vmatprep.subr.bf16.mxu0 %v7416
      %7448 = vmatpush1.bf16.msra.mxu0 %v7415
      %7449 = vmatprep.subr.bf16.mxu0 %v7418
      %7450 = vmatpush1.bf16.msra.mxu0 %v7417
      %7451 = vmatprep.subr.bf16.mxu0 %v7420
      %7452 = vmatpush1.bf16.msra.mxu0 %v7419
      %7453 = vmatprep.subr.bf16.mxu0 %v7422
      %7454 = vmatpush1.bf16.msra.mxu0 %v7421
      %7455 = vmatprep.subr.bf16.mxu0 %v7424
      %7456 = vmatpush1.bf16.msra.mxu0 %v7423
      %7457 = vmatprep.subr.bf16.mxu0 %v7426
      %7458 = vmatpush1.bf16.msra.mxu0 %v7425
      %7459 = vmatprep.subr.bf16.mxu0 0
      %7460 = vmatpush1.bf16.msra.mxu0 0
      %7461 = vmatprep.subr.bf16.mxu0 0
      %7462 = vmatpush1.bf16.msra.mxu0 0
      %7463 = vmatprep.subr.bf16.mxu0 0
      %7464 = vmatpush1.bf16.msra.mxu0 0
      %7465 = vmatprep.subr.bf16.mxu0 0
      %7466 = vmatpush1.bf16.msra.mxu0 0
      %7467 = vmatprep.subr.bf16.mxu0 0
      %7468 = vmatpush1.bf16.msra.mxu0 0
      %7469 = vmatprep.subr.bf16.mxu0 0
      %7470 = vmatpush1.bf16.msra.mxu0 0
      %7471 = vmatprep.subr.bf16.mxu0 0
      %7472 = vmatpush1.bf16.msra.mxu0 0
      %7473 = vmatprep.subr.bf16.mxu0 0
      %7474 = vmatpush1.bf16.msra.mxu0 0
      %7475 = vmatprep.mubr.bf16.mxu0 0
      %7476 = vmatmul.mubr.bf16.gmra.mrb[0].mxu0 %v7345
      %v7477 = vpop.f32.mrb[0].mxu0
      %v7478 = vadd.f32 0.0, %v7477
      %v7479 = vpop.f32.mrb[0].mxu0
      %v7480 = vadd.f32 0.0, %v7479
      %v7481 = vpop.f32.mrb[0].mxu0
      %v7482 = vpop.f32.mrb[0].mxu0
      %7483 = vdwg.mxu0
      %v7484 = vadd.f32 %v7297, %v7478
      %v7485 = vadd.f32 %v7299, %v7480
      %v7486 = vld [vmem:[%s14] sm:$0x3]
      %v7488 = vlaneseq
      %v7489 = vshrl.u32 %v7488, 7
      %v7490 = vsub.s32 0, %v7489
      %v7491 = vrot.slane %v7486, %v7490
      %v7492 = vlaneseq
      %v7493 = vshrl.u32 %v7492, 7
      %v7494 = vsub.s32 1, %v7493
      %v7495 = vrot.slane %v7486, %v7494
      %v7498 = vadd.f32 %v7484, %v7491
      %v7499 = vadd.f32 %v7485, %v7495
      %v7502 = vcombine.low %v7498, %v7499
      %vm7504 = vcmask 130052
      %vm7505 = vmor %vm7504, %vm2796
      %7506 = vst.msk [vmem:[%s573] sm:$0xff] %vm7505, %v7502
      %p7507 = scmp.lt.s32.totalorder %s29, 1
      %s7508 = scalar_select %p7507, %s29, 1
      %s7509 = smul.addr %s7508, 10
      %s7510 = smul.addr %s7509, 8
      %s7511 = scalar_lea.vmem %s15, %s7510
      %p7512 = scmp.lt.s32.totalorder %s29, 1
      %s7513 = scalar_select %p7512, %s29, 1
      %s7514 = smul.addr %s7513, 3
      %s7515 = smul.addr %s7514, 8
      %s7516 = scalar_lea.vmem %s16, %s7515
      %p7517 = scmp.lt.s32.totalorder %s29, 1
      %s7518 = scalar_select %p7517, %s29, 1
      %s7519 = smul.addr %s7518, 2
      %s7520 = smul.addr %s7519, 4
      %s7521 = scalar_lea.vmem %s17, %s7520
      // Predicated region
      $region81: #{_ssd_forward.1} parent=79 // pred_check
        %p7522 = pneg %p367
      $region82: #{_ssd_forward.1} parent=79 // pred_check_branch
        %7524 = sbr.rel (%p7522) target = $region84
      $region83: #{_ssd_forward.1} parent=79 // pred_region
        _
      $region84: #{_ssd_forward.1} parent=79 // pred_fallthru
        _
      // Predicated region
      $region85: #{_ssd_forward.1} parent=79 // pred_check
        %p7525 = pneg %p393
      $region86: #{_ssd_forward.1} parent=79 // pred_check_branch
        %7527 = sbr.rel (%p7525) target = $region88
      $region87: #{_ssd_forward.1} parent=79 // pred_region
        _
      $region88: #{_ssd_forward.1} parent=79 // pred_fallthru
        _
      // Predicated region
      $region89: #{_ssd_forward.1} parent=79 // pred_check
        %p7528 = pneg %p419
      $region90: #{_ssd_forward.1} parent=79 // pred_check_branch
        %7530 = sbr.rel (%p7528) target = $region92
      $region91: #{_ssd_forward.1} parent=79 // pred_region
        _
      $region92: #{_ssd_forward.1} parent=79 // pred_fallthru
        _
    $region80: #{_ssd_forward.1} parent=5 // pred_fallthru
      _
    %p7531 = scmp.le.s32.totalorder 2, %s24
    // Predicated region
    $region93: #{_ssd_forward.1} parent=5 // pred_check
      %p7532 = pneg %p7531
    $region94: #{_ssd_forward.1} parent=5 // pred_check_branch
      %7534 = sbr.rel (%p7532) target = $region96
    $region95: #{_ssd_forward.1} parent=5 // pred_region
      %s7535 = ssub.s32 %s24, 2
      // Predicated region
      $region97: #{_ssd_forward.1} parent=95 // pred_check
        %p7536 = pneg %p373
      $region98: #{_ssd_forward.1} parent=95 // pred_check_branch
        %7538 = sbr.rel (%p7536) target = $region100
      $region99: #{_ssd_forward.1} parent=95 // pred_region
        %p7539 = scmp.lt.s32.totalorder %s30, 1
        %s7540 = scalar_select %p7539, %s30, 1
        %s7541 = smul.addr %s7540, 10
        %s7542 = smul.addr %s7541, 8
        %s7543 = scalar_lea.vmem %s15, %s7542
      $region100: #{_ssd_forward.1} parent=95 // pred_fallthru
        _
      // Predicated region
      $region101: #{_ssd_forward.1} parent=95 // pred_check
        %p7544 = pneg %p399
      $region102: #{_ssd_forward.1} parent=95 // pred_check_branch
        %7546 = sbr.rel (%p7544) target = $region104
      $region103: #{_ssd_forward.1} parent=95 // pred_region
        %p7547 = scmp.lt.s32.totalorder %s30, 1
        %s7548 = scalar_select %p7547, %s30, 1
        %s7549 = smul.addr %s7548, 3
        %s7550 = smul.addr %s7549, 8
        %s7551 = scalar_lea.vmem %s16, %s7550
      $region104: #{_ssd_forward.1} parent=95 // pred_fallthru
        _
      // Predicated region
      $region105: #{_ssd_forward.1} parent=95 // pred_check
        %p7552 = pneg %p425
      $region106: #{_ssd_forward.1} parent=95 // pred_check_branch
        %7554 = sbr.rel (%p7552) target = $region108
      $region107: #{_ssd_forward.1} parent=95 // pred_region
        %p7555 = scmp.lt.s32.totalorder %s30, 1
        %s7556 = scalar_select %p7555, %s30, 1
        %s7557 = smul.addr %s7556, 2
        %s7558 = smul.addr %s7557, 4
        %s7559 = scalar_lea.vmem %s17, %s7558
      $region108: #{_ssd_forward.1} parent=95 // pred_fallthru
        _
    $region96: #{_ssd_forward.1} parent=5 // pred_fallthru
      _
  $region6: #{_ssd_forward.1} parent=0 // loop_footer
    %s28 = sadd.s32 1, %s24
  $region7: #{_ssd_forward.1} parent=0 // loop_footer_branch
    %23 = sbr.rel target = $region3
  $region8: #{_ssd_forward.1} parent=0 // loop_exit
    _

</llo_original>
